<compile_context>
chip_gen: v7x
topology: tpu7x:2x2x1
jax: 0.10.0
libtpu: 0.0.40
codegen_flags: <defaults>
</compile_context>

<pallas_src>
import functools

import jax
import jax.numpy as jnp
from jax.experimental import pallas as pl
from jax.experimental.pallas import tpu as pltpu

_LANES = 128
_NUM_ACC = 7


def _partial_sums_kernel(scal_ref,                       # (2,) f32 SMEM (prefetched)
                         t_ref, p_ref, evt_ref, tm_ref,  # (rows_per_tile, 128) VMEM
                         out_ref,                        # (1, 7, 8, 128) f32 VMEM block
                         *, rows, rows_per_tile, tiles_per_core):
    c = pl.program_id(0)   # core/partial axis ("parallel")
    i = pl.program_id(1)   # tile axis ("arbitrary", accumulated)

    @pl.when(i == 0)
    def _():
        out_ref[...] = jnp.zeros_like(out_ref)

    # Row-validity mask: rows past the end of the (rows, 128) array are
    # undefined in VMEM (partial last block / over-covered core axis) and must
    # be selected away.  Select, never mask-multiply -> garbage/NaN cannot leak.
    base_row = (c * tiles_per_core + i) * rows_per_tile
    row_ids = jax.lax.broadcasted_iota(jnp.int32, (rows_per_tile, _LANES), 0)
    valid = row_ids < (rows - base_row)

    t = t_ref[...]
    p = p_ref[...]
    tm = tm_ref[...]
    evt = evt_ref[...].astype(jnp.float32)   # int8 HBM stream, widened in-register

    unc_b = valid & (evt == 1.0)             # uncensored
    cen_b = valid & (evt == 0.0)             # censored (lane pad evt == -1 -> neither)
    tc_b = cen_b & (t < tm)                  # censored AND t_pred < time

    umean = scal_ref[0]
    cmean = scal_ref[1]
    sq_err = (t - tm) * (t - tm)
    d_u = tm - umean
    d_c = tm - cmean

    def fold(x):
        # (rows_per_tile, 128) -> (8, 128): pure VPU vreg adds, no XLU.
        return jnp.sum(x.reshape(rows_per_tile // 8, 8, _LANES), axis=0)

    out_ref[0, 0] += fold(jnp.where(unc_b, 1.0, 0.0))         # n uncensored
    out_ref[0, 1] += fold(jnp.where(unc_b, sq_err, 0.0))      # sum (t-time)^2, uncens.
    out_ref[0, 2] += fold(jnp.where(unc_b, d_u * d_u, 0.0))   # first normalization
    out_ref[0, 3] += fold(jnp.where(unc_b, jnp.log(p), 0.0))  # sum log p, uncens.
    out_ref[0, 4] += fold(jnp.where(tc_b, 1.0, 0.0))          # n censored & t < time
    out_ref[0, 5] += fold(jnp.where(tc_b, sq_err * p, 0.0))   # third-loss numerator
    out_ref[0, 6] += fold(jnp.where(cen_b, d_c * d_c, 0.0))   # third normalization


@functools.partial(jax.jit, static_argnames=("rows_per_tile",))
def my_loss_no_sigmoid(t_pred, p_pred, y_true, uncensored_mean, censored_mean,
                       coefficients=None, *, rows_per_tile=2048):
    if coefficients is None:
        coefficients = jnp.ones((3,), jnp.float32)
    coefficients = jnp.asarray(coefficients, jnp.float32)
    assert rows_per_tile % 32 == 0, "rows_per_tile must be a multiple of 32 (int8 tiling)"

    n = y_true.shape[0]
    rows = -(-n // _LANES)                 # valid rows in the (rows, 128) layout
    rows_evt = -(-rows // 32) * 32         # int8 sublane-packing multiple (free: fused
                                           # with the column-extraction copy anyway)
    pad = rows * _LANES - n
    pad_evt = rows_evt * _LANES - n

    # t / p: ravel + reshape are free for contiguous inputs; pad only the
    # <128-element ragged tail (skipped when N is a multiple of 128).
    t = jnp.ravel(t_pred).astype(jnp.float32)
    p = jnp.ravel(p_pred).astype(jnp.float32)
    tm = y_true[:, 1].astype(jnp.float32)
    if pad:
        t = jnp.pad(t, (0, pad))
        p = jnp.pad(p, (0, pad), constant_values=1.0)
        tm = jnp.pad(tm, (0, pad))
    t = t.reshape(rows, _LANES)
    p = p.reshape(rows, _LANES)
    tm = tm.reshape(rows, _LANES)
    # evt: -1 pad drops padded lanes out of BOTH masks; int8 -> 1 B/elem stream.
    evt = jnp.pad(y_true[:, 0].astype(jnp.int8), (0, pad_evt),
                  constant_values=-1).reshape(rows_evt, _LANES)

    scalars = jnp.stack([jnp.asarray(uncensored_mean, jnp.float32).reshape(()),
                         jnp.asarray(censored_mean, jnp.float32).reshape(())])

    tiles_total = -(-rows // rows_per_tile)
    tiles_per_core = -(-tiles_total // 2)

    def tile_map(c, i, scal):
        # The size-2 core axis may over-cover by one tile when tiles_total is
        # odd (or 1); clamp to a valid block — the duplicate block contributes
        # nothing because the in-kernel row-validity mask excludes it.
        return (jnp.minimum(c * tiles_per_core + i, tiles_total - 1), 0)

    tile_spec = pl.BlockSpec((rows_per_tile, _LANES), tile_map)

    grid_spec = pltpu.PrefetchScalarGridSpec(
        num_scalar_prefetch=1,
        grid=(2, tiles_per_core),
        in_specs=[tile_spec, tile_spec, tile_spec, tile_spec],
        out_specs=pl.BlockSpec((1, _NUM_ACC, 8, _LANES),
                               lambda c, i, scal: (c, 0, 0, 0)),
    )

    kernel = functools.partial(_partial_sums_kernel, rows=rows,
                               rows_per_tile=rows_per_tile,
                               tiles_per_core=tiles_per_core)

    partials = pl.pallas_call(
        kernel,
        out_shape=jax.ShapeDtypeStruct((2, _NUM_ACC, 8, _LANES), jnp.float32),
        grid_spec=grid_spec,
        compiler_params=pltpu.CompilerParams(
            dimension_semantics=("parallel", "arbitrary")),
        cost_estimate=pl.CostEstimate(flops=30 * n, transcendentals=n,
                                      bytes_accessed=13 * n),
    )(scalars, t, p, evt, tm)

    # Tiny finalize in the wrapper: combine both per-core partials, then do the
    # 7 reductions, divisions and coefficient scaling exactly once.
    s = jnp.sum(partials, axis=(0, 2, 3))
    n_unc, sum_sq_u, first_norm, sum_logp = s[0], s[1], s[2], s[3]
    n_tc, sum_third, third_norm = s[4], s[5], s[6]

    denom_u = jnp.maximum(n_unc, 1.0)
    first_loss = (sum_sq_u / denom_u) * coefficients[0]
    second_loss = -(sum_logp / denom_u) * coefficients[1]
    third_loss = (sum_third / jnp.maximum(n_tc, 1.0)) * coefficients[2]

    loss = jnp.where(n_unc > 0.0, first_loss / first_norm + second_loss, 0.0)
    loss = loss + jnp.where(n_tc > 0.0, third_loss / third_norm, 0.0)
    return loss


def _reference(t_pred, p_pred, y_true, uncensored_mean, censored_mean, coefs):
    t = jnp.ravel(t_pred).astype(jnp.float32)
    p = jnp.ravel(p_pred).astype(jnp.float32)
    evt = y_true[:, 0].astype(jnp.float32)
    tm = y_true[:, 1].astype(jnp.float32)
    unc = evt == 1.0
    cen = evt == 0.0
    loss = 0.0
    if bool(jnp.any(unc)):
        first = jnp.mean((t[unc] - tm[unc]) ** 2) * coefs[0]
        first_norm = jnp.sum((tm[unc] - uncensored_mean) ** 2)
        second = -jnp.mean(jnp.log(p[unc])) * coefs[1]
        loss = loss + first / first_norm + second
    tc = (t < tm) & cen
    if bool(jnp.any(tc)):
        third = jnp.mean(((t[tc] - tm[tc]) ** 2) * p[tc]) * coefs[2]
        third_norm = jnp.sum((tm[cen] - censored_mean) ** 2)
        loss = loss + third / third_norm
    return jnp.float32(loss)


if __name__ == "__main__":
    key = jax.random.PRNGKey(0)

    def make_inputs(k, n):
        k0, k1, k2, k3 = jax.random.split(k, 4)
        event = (jax.random.uniform(k0, (n,)) < 0.6).astype(jnp.float32)  # 1 = uncensored
        time = jax.random.uniform(k1, (n,), minval=1.0, maxval=10.0)
        y_true = jnp.stack([event, time], axis=1).astype(jnp.float32)     # [N, 2]
        t_pred = jax.random.uniform(k2, (n, 1), minval=0.5, maxval=9.5).astype(jnp.float32)
        p_pred = jax.random.uniform(k3, (n, 1), minval=0.05, maxval=0.95).astype(jnp.float32)
        umean = jnp.mean(time[event == 1.0])
        cmean = jnp.mean(time[event == 0.0])
        return t_pred, p_pred, y_true, umean, cmean

    coefficients = jnp.array([1.0, 0.7, 1.3], jnp.float32)
    cases = [
        (0, 6000, 2048),   # ragged tail, single partial tile, clamp path on core 1
        (1, 6000, 32),     # ragged tail, 2 tiles -> one per core, partial last tile
        (2, 12288, 32),    # N % 128 == 0 (no pad), 3 tiles -> odd split + clamp
    ]
    for seed, n, rpt in cases:
        sub = jax.random.fold_in(key, seed)
        t_pred, p_pred, y_true, umean, cmean = make_inputs(sub, n)
        loss = my_loss_no_sigmoid(t_pred, p_pred, y_true, umean, cmean,
                                  coefficients, rows_per_tile=rpt)
        loss = jax.block_until_ready(loss)
        ref = _reference(t_pred, p_pred, y_true, float(umean), float(cmean),
                         [1.0, 0.7, 1.3])
        assert jnp.allclose(loss, ref, rtol=5e-4, atol=1e-6), (n, rpt, loss, ref)
    print("KERNEL_OK")
</pallas_src>

<mosaic_0001>
module attributes {stable_mosaic.version = 11 : i64} {
  func.func @_partial_sums_kernel(%arg0: i32, %arg1: i32, %arg2: memref<2xf32, #tpu.memory_space<smem>>, %arg3: memref<2048x128xf32, #tpu.memory_space<vmem>>, %arg4: memref<2048x128xf32, #tpu.memory_space<vmem>>, %arg5: memref<2048x128xi8, #tpu.memory_space<vmem>>, %arg6: memref<2048x128xf32, #tpu.memory_space<vmem>>, %arg7: memref<1x7x8x128xf32, #tpu.memory_space<vmem>>) attributes {dimension_semantics = [#tpu.dimension_semantics<parallel>, #tpu.dimension_semantics<arbitrary>], iteration_bounds = array<i64: 2, 1>, scalar_prefetch = 1 : i64, scratch_operands = 0 : i64, tpu.core_type = #tpu.core_type<tc>, window_params = [{transform_indices = @transform_0, window_bounds = array<i64: 2048, 128>}, {transform_indices = @transform_1, window_bounds = array<i64: 2048, 128>}, {transform_indices = @transform_2, window_bounds = array<i64: 2048, 128>}, {transform_indices = @transform_3, window_bounds = array<i64: 2048, 128>}, {transform_indices = @transform_4, window_bounds = array<i64: 1, 7, 8, 128>}]} {
    %c0_i32 = arith.constant 0 : i32
    %0 = arith.cmpi eq, %arg1, %c0_i32 : i32
    %1 = arith.extui %0 : i1 to i32
    %c0_i32_0 = arith.constant 0 : i32
    %2 = arith.cmpi ne, %1, %c0_i32_0 : i32
    scf.if %2 {
      %cst_77 = arith.constant 0.000000e+00 : f32
      %108 = vector.broadcast %cst_77 : f32 to vector<1x7x8x128xf32>
      %c0_78 = arith.constant 0 : index
      %c0_79 = arith.constant 0 : index
      %c0_80 = arith.constant 0 : index
      %c0_81 = arith.constant 0 : index
      %109 = vector.load %arg7[%c0_78, %c0_79, %c0_80, %c0_81] : memref<1x7x8x128xf32, #tpu.memory_space<vmem>>, vector<1x7x8x128xf32>
      tpu.vector_store %arg7[%c0_78, %c0_79, %c0_80, %c0_81], %108 {strides = array<i32>} : memref<1x7x8x128xf32, #tpu.memory_space<vmem>>, vector<1x7x8x128xf32>,
    } else {
    }
    %c1_i32 = arith.constant 1 : i32
    %3 = arith.muli %arg0, %c1_i32 : i32
    %4 = arith.addi %3, %arg1 : i32
    %c2048_i32 = arith.constant 2048 : i32
    %5 = arith.muli %4, %c2048_i32 : i32
    %6 = tpu.iota {dimensions = array<i32: 0>} : vector<2048x128xi32>
    %c47_i32 = arith.constant 47 : i32
    %7 = arith.subi %c47_i32, %5 : i32
    %8 = vector.broadcast %7 : i32 to vector<2048x128xi32>
    %9 = arith.cmpi slt, %6, %8 : vector<2048x128xi32>
    %c0 = arith.constant 0 : index
    %c0_1 = arith.constant 0 : index
    %10 = vector.load %arg3[%c0, %c0_1] : memref<2048x128xf32, #tpu.memory_space<vmem>>, vector<2048x128xf32>
    %c0_2 = arith.constant 0 : index
    %c0_3 = arith.constant 0 : index
    %11 = vector.load %arg4[%c0_2, %c0_3] : memref<2048x128xf32, #tpu.memory_space<vmem>>, vector<2048x128xf32>
    %c0_4 = arith.constant 0 : index
    %c0_5 = arith.constant 0 : index
    %12 = vector.load %arg6[%c0_4, %c0_5] : memref<2048x128xf32, #tpu.memory_space<vmem>>, vector<2048x128xf32>
    %c0_6 = arith.constant 0 : index
    %c0_7 = arith.constant 0 : index
    %13 = vector.load %arg5[%c0_6, %c0_7] : memref<2048x128xi8, #tpu.memory_space<vmem>>, vector<2048x128xi8>
    %14 = arith.sitofp %13 : vector<2048x128xi8> to vector<2048x128xf32>
    %cst = arith.constant 1.000000e+00 : f32
    %15 = vector.broadcast %cst : f32 to vector<2048x128xf32>
    %16 = arith.cmpf oeq, %14, %15 : vector<2048x128xf32>
    %17 = arith.andi %9, %16 : vector<2048x128xi1>
    %cst_8 = arith.constant 0.000000e+00 : f32
    %18 = vector.broadcast %cst_8 : f32 to vector<2048x128xf32>
    %19 = arith.cmpf oeq, %14, %18 : vector<2048x128xf32>
    %20 = arith.andi %9, %19 : vector<2048x128xi1>
    %21 = arith.cmpf olt, %10, %12 : vector<2048x128xf32>
    %22 = arith.andi %20, %21 : vector<2048x128xi1>
    %c0_9 = arith.constant 0 : index
    %23 = memref.load %arg2[%c0_9] : memref<2xf32, #tpu.memory_space<smem>>
    %c1 = arith.constant 1 : index
    %24 = memref.load %arg2[%c1] : memref<2xf32, #tpu.memory_space<smem>>
    %25 = arith.subf %10, %12 : vector<2048x128xf32>
    %26 = arith.subf %10, %12 : vector<2048x128xf32>
    %27 = arith.mulf %25, %26 : vector<2048x128xf32>
    %28 = vector.broadcast %23 : f32 to vector<2048x128xf32>
    %29 = arith.subf %12, %28 : vector<2048x128xf32>
    %30 = vector.broadcast %24 : f32 to vector<2048x128xf32>
    %31 = arith.subf %12, %30 : vector<2048x128xf32>
    %c0_10 = arith.constant 0 : index
    %c0_11 = arith.constant 0 : index
    %c0_12 = arith.constant 0 : index
    %c0_13 = arith.constant 0 : index
    %32 = vector.load %arg7[%c0_10, %c0_11, %c0_12, %c0_13] : memref<1x7x8x128xf32, #tpu.memory_space<vmem>>, vector<1x1x8x128xf32>
    %33 = vector.shape_cast %32 : vector<1x1x8x128xf32> to vector<8x128xf32>
    %cst_14 = arith.constant 1.000000e+00 : f32
    %cst_15 = arith.constant 0.000000e+00 : f32
    %34 = vector.broadcast %cst_14 : f32 to vector<2048x128xf32>
    %35 = vector.broadcast %cst_15 : f32 to vector<2048x128xf32>
    %36 = arith.select %17, %34, %35 : vector<2048x128xi1>, vector<2048x128xf32>
    %37 = vector.shape_cast %36 : vector<2048x128xf32> to vector<256x8x128xf32>
    %cst_16 = arith.constant dense<0.000000e+00> : vector<8x128xf32>
    %38 = vector.multi_reduction <add>, %37, %cst_16 [0] : vector<256x8x128xf32> to vector<8x128xf32>
    %39 = arith.addf %33, %38 : vector<8x128xf32>
    %c0_17 = arith.constant 0 : index
    %c0_18 = arith.constant 0 : index
    %c0_19 = arith.constant 0 : index
    %c0_20 = arith.constant 0 : index
    %40 = vector.load %arg7[%c0_17, %c0_18, %c0_19, %c0_20] : memref<1x7x8x128xf32, #tpu.memory_space<vmem>>, vector<1x1x8x128xf32>
    %41 = vector.shape_cast %40 : vector<1x1x8x128xf32> to vector<8x128xf32>
    %42 = vector.shape_cast %39 : vector<8x128xf32> to vector<1x1x8x128xf32>
    tpu.vector_store %arg7[%c0_17, %c0_18, %c0_19, %c0_20], %42 {strides = array<i32>} : memref<1x7x8x128xf32, #tpu.memory_space<vmem>>, vector<1x1x8x128xf32>,
    %c0_21 = arith.constant 0 : index
    %c1_22 = arith.constant 1 : index
    %c0_23 = arith.constant 0 : index
    %c0_24 = arith.constant 0 : index
    %43 = vector.load %arg7[%c0_21, %c1_22, %c0_23, %c0_24] : memref<1x7x8x128xf32, #tpu.memory_space<vmem>>, vector<1x1x8x128xf32>
    %44 = vector.shape_cast %43 : vector<1x1x8x128xf32> to vector<8x128xf32>
    %cst_25 = arith.constant 0.000000e+00 : f32
    %45 = vector.broadcast %cst_25 : f32 to vector<2048x128xf32>
    %46 = arith.select %17, %27, %45 : vector<2048x128xi1>, vector<2048x128xf32>
    %47 = vector.shape_cast %46 : vector<2048x128xf32> to vector<256x8x128xf32>
    %cst_26 = arith.constant dense<0.000000e+00> : vector<8x128xf32>
    %48 = vector.multi_reduction <add>, %47, %cst_26 [0] : vector<256x8x128xf32> to vector<8x128xf32>
    %49 = arith.addf %44, %48 : vector<8x128xf32>
    %c0_27 = arith.constant 0 : index
    %c1_28 = arith.constant 1 : index
    %c0_29 = arith.constant 0 : index
    %c0_30 = arith.constant 0 : index
    %50 = vector.load %arg7[%c0_27, %c1_28, %c0_29, %c0_30] : memref<1x7x8x128xf32, #tpu.memory_space<vmem>>, vector<1x1x8x128xf32>
    %51 = vector.shape_cast %50 : vector<1x1x8x128xf32> to vector<8x128xf32>
    %52 = vector.shape_cast %49 : vector<8x128xf32> to vector<1x1x8x128xf32>
    tpu.vector_store %arg7[%c0_27, %c1_28, %c0_29, %c0_30], %52 {strides = array<i32>} : memref<1x7x8x128xf32, #tpu.memory_space<vmem>>, vector<1x1x8x128xf32>,
    %c0_31 = arith.constant 0 : index
    %c2 = arith.constant 2 : index
    %c0_32 = arith.constant 0 : index
    %c0_33 = arith.constant 0 : index
    %53 = vector.load %arg7[%c0_31, %c2, %c0_32, %c0_33] : memref<1x7x8x128xf32, #tpu.memory_space<vmem>>, vector<1x1x8x128xf32>
    %54 = vector.shape_cast %53 : vector<1x1x8x128xf32> to vector<8x128xf32>
    %55 = arith.mulf %29, %29 : vector<2048x128xf32>
    %cst_34 = arith.constant 0.000000e+00 : f32
    %56 = vector.broadcast %cst_34 : f32 to vector<2048x128xf32>
    %57 = arith.select %17, %55, %56 : vector<2048x128xi1>, vector<2048x128xf32>
    %58 = vector.shape_cast %57 : vector<2048x128xf32> to vector<256x8x128xf32>
    %cst_35 = arith.constant dense<0.000000e+00> : vector<8x128xf32>
    %59 = vector.multi_reduction <add>, %58, %cst_35 [0] : vector<256x8x128xf32> to vector<8x128xf32>
    %60 = arith.addf %54, %59 : vector<8x128xf32>
    %c0_36 = arith.constant 0 : index
    %c2_37 = arith.constant 2 : index
    %c0_38 = arith.constant 0 : index
    %c0_39 = arith.constant 0 : index
    %61 = vector.load %arg7[%c0_36, %c2_37, %c0_38, %c0_39] : memref<1x7x8x128xf32, #tpu.memory_space<vmem>>, vector<1x1x8x128xf32>
    %62 = vector.shape_cast %61 : vector<1x1x8x128xf32> to vector<8x128xf32>
    %63 = vector.shape_cast %60 : vector<8x128xf32> to vector<1x1x8x128xf32>
    tpu.vector_store %arg7[%c0_36, %c2_37, %c0_38, %c0_39], %63 {strides = array<i32>} : memref<1x7x8x128xf32, #tpu.memory_space<vmem>>, vector<1x1x8x128xf32>,
    %c0_40 = arith.constant 0 : index
    %c3 = arith.constant 3 : index
    %c0_41 = arith.constant 0 : index
    %c0_42 = arith.constant 0 : index
    %64 = vector.load %arg7[%c0_40, %c3, %c0_41, %c0_42] : memref<1x7x8x128xf32, #tpu.memory_space<vmem>>, vector<1x1x8x128xf32>
    %65 = vector.shape_cast %64 : vector<1x1x8x128xf32> to vector<8x128xf32>
    %66 = math.log %11 : vector<2048x128xf32>
    %cst_43 = arith.constant 0.000000e+00 : f32
    %67 = vector.broadcast %cst_43 : f32 to vector<2048x128xf32>
    %68 = arith.select %17, %66, %67 : vector<2048x128xi1>, vector<2048x128xf32>
    %69 = vector.shape_cast %68 : vector<2048x128xf32> to vector<256x8x128xf32>
    %cst_44 = arith.constant dense<0.000000e+00> : vector<8x128xf32>
    %70 = vector.multi_reduction <add>, %69, %cst_44 [0] : vector<256x8x128xf32> to vector<8x128xf32>
    %71 = arith.addf %65, %70 : vector<8x128xf32>
    %c0_45 = arith.constant 0 : index
    %c3_46 = arith.constant 3 : index
    %c0_47 = arith.constant 0 : index
    %c0_48 = arith.constant 0 : index
    %72 = vector.load %arg7[%c0_45, %c3_46, %c0_47, %c0_48] : memref<1x7x8x128xf32, #tpu.memory_space<vmem>>, vector<1x1x8x128xf32>
    %73 = vector.shape_cast %72 : vector<1x1x8x128xf32> to vector<8x128xf32>
    %74 = vector.shape_cast %71 : vector<8x128xf32> to vector<1x1x8x128xf32>
    tpu.vector_store %arg7[%c0_45, %c3_46, %c0_47, %c0_48], %74 {strides = array<i32>} : memref<1x7x8x128xf32, #tpu.memory_space<vmem>>, vector<1x1x8x128xf32>,
    %c0_49 = arith.constant 0 : index
    %c4 = arith.constant 4 : index
    %c0_50 = arith.constant 0 : index
    %c0_51 = arith.constant 0 : index
    %75 = vector.load %arg7[%c0_49, %c4, %c0_50, %c0_51] : memref<1x7x8x128xf32, #tpu.memory_space<vmem>>, vector<1x1x8x128xf32>
    %76 = vector.shape_cast %75 : vector<1x1x8x128xf32> to vector<8x128xf32>
    %cst_52 = arith.constant 1.000000e+00 : f32
    %cst_53 = arith.constant 0.000000e+00 : f32
    %77 = vector.broadcast %cst_52 : f32 to vector<2048x128xf32>
    %78 = vector.broadcast %cst_53 : f32 to vector<2048x128xf32>
    %79 = arith.select %22, %77, %78 : vector<2048x128xi1>, vector<2048x128xf32>
    %80 = vector.shape_cast %79 : vector<2048x128xf32> to vector<256x8x128xf32>
    %cst_54 = arith.constant dense<0.000000e+00> : vector<8x128xf32>
    %81 = vector.multi_reduction <add>, %80, %cst_54 [0] : vector<256x8x128xf32> to vector<8x128xf32>
    %82 = arith.addf %76, %81 : vector<8x128xf32>
    %c0_55 = arith.constant 0 : index
    %c4_56 = arith.constant 4 : index
    %c0_57 = arith.constant 0 : index
    %c0_58 = arith.constant 0 : index
    %83 = vector.load %arg7[%c0_55, %c4_56, %c0_57, %c0_58] : memref<1x7x8x128xf32, #tpu.memory_space<vmem>>, vector<1x1x8x128xf32>
    %84 = vector.shape_cast %83 : vector<1x1x8x128xf32> to vector<8x128xf32>
    %85 = vector.shape_cast %82 : vector<8x128xf32> to vector<1x1x8x128xf32>
    tpu.vector_store %arg7[%c0_55, %c4_56, %c0_57, %c0_58], %85 {strides = array<i32>} : memref<1x7x8x128xf32, #tpu.memory_space<vmem>>, vector<1x1x8x128xf32>,
    %c0_59 = arith.constant 0 : index
    %c5 = arith.constant 5 : index
    %c0_60 = arith.constant 0 : index
    %c0_61 = arith.constant 0 : index
    %86 = vector.load %arg7[%c0_59, %c5, %c0_60, %c0_61] : memref<1x7x8x128xf32, #tpu.memory_space<vmem>>, vector<1x1x8x128xf32>
    %87 = vector.shape_cast %86 : vector<1x1x8x128xf32> to vector<8x128xf32>
    %88 = arith.mulf %27, %11 : vector<2048x128xf32>
    %cst_62 = arith.constant 0.000000e+00 : f32
    %89 = vector.broadcast %cst_62 : f32 to vector<2048x128xf32>
    %90 = arith.select %22, %88, %89 : vector<2048x128xi1>, vector<2048x128xf32>
    %91 = vector.shape_cast %90 : vector<2048x128xf32> to vector<256x8x128xf32>
    %cst_63 = arith.constant dense<0.000000e+00> : vector<8x128xf32>
    %92 = vector.multi_reduction <add>, %91, %cst_63 [0] : vector<256x8x128xf32> to vector<8x128xf32>
    %93 = arith.addf %87, %92 : vector<8x128xf32>
    %c0_64 = arith.constant 0 : index
    %c5_65 = arith.constant 5 : index
    %c0_66 = arith.constant 0 : index
    %c0_67 = arith.constant 0 : index
    %94 = vector.load %arg7[%c0_64, %c5_65, %c0_66, %c0_67] : memref<1x7x8x128xf32, #tpu.memory_space<vmem>>, vector<1x1x8x128xf32>
    %95 = vector.shape_cast %94 : vector<1x1x8x128xf32> to vector<8x128xf32>
    %96 = vector.shape_cast %93 : vector<8x128xf32> to vector<1x1x8x128xf32>
    tpu.vector_store %arg7[%c0_64, %c5_65, %c0_66, %c0_67], %96 {strides = array<i32>} : memref<1x7x8x128xf32, #tpu.memory_space<vmem>>, vector<1x1x8x128xf32>,
    %c0_68 = arith.constant 0 : index
    %c6 = arith.constant 6 : index
    %c0_69 = arith.constant 0 : index
    %c0_70 = arith.constant 0 : index
    %97 = vector.load %arg7[%c0_68, %c6, %c0_69, %c0_70] : memref<1x7x8x128xf32, #tpu.memory_space<vmem>>, vector<1x1x8x128xf32>
    %98 = vector.shape_cast %97 : vector<1x1x8x128xf32> to vector<8x128xf32>
    %99 = arith.mulf %31, %31 : vector<2048x128xf32>
    %cst_71 = arith.constant 0.000000e+00 : f32
    %100 = vector.broadcast %cst_71 : f32 to vector<2048x128xf32>
    %101 = arith.select %20, %99, %100 : vector<2048x128xi1>, vector<2048x128xf32>
    %102 = vector.shape_cast %101 : vector<2048x128xf32> to vector<256x8x128xf32>
    %cst_72 = arith.constant dense<0.000000e+00> : vector<8x128xf32>
    %103 = vector.multi_reduction <add>, %102, %cst_72 [0] : vector<256x8x128xf32> to vector<8x128xf32>
    %104 = arith.addf %98, %103 : vector<8x128xf32>
    %c0_73 = arith.constant 0 : index
    %c6_74 = arith.constant 6 : index
    %c0_75 = arith.constant 0 : index
    %c0_76 = arith.constant 0 : index
    %105 = vector.load %arg7[%c0_73, %c6_74, %c0_75, %c0_76] : memref<1x7x8x128xf32, #tpu.memory_space<vmem>>, vector<1x1x8x128xf32>
    %106 = vector.shape_cast %105 : vector<1x1x8x128xf32> to vector<8x128xf32>
    %107 = vector.shape_cast %104 : vector<8x128xf32> to vector<1x1x8x128xf32>
    tpu.vector_store %arg7[%c0_73, %c6_74, %c0_75, %c0_76], %107 {strides = array<i32>} : memref<1x7x8x128xf32, #tpu.memory_space<vmem>>, vector<1x1x8x128xf32>,
    return
  }
  func.func @transform_0(%arg0: i32, %arg1: i32, %arg2: memref<2xf32, #tpu.memory_space<smem>>) -> (i32, i32) {
    %c1_i32 = arith.constant 1 : i32
    %0 = arith.muli %arg0, %c1_i32 : i32
    %1 = arith.addi %0, %arg1 : i32
    %c0_i32 = arith.constant 0 : i32
    %2 = arith.minsi %1, %c0_i32 : i32
    %c0_i32_0 = arith.constant 0 : i32
    %c0_i32_1 = arith.constant 0 : i32
    return %2, %c0_i32_0 : i32, i32
  }
  func.func @transform_1(%arg0: i32, %arg1: i32, %arg2: memref<2xf32, #tpu.memory_space<smem>>) -> (i32, i32) {
    %c1_i32 = arith.constant 1 : i32
    %0 = arith.muli %arg0, %c1_i32 : i32
    %1 = arith.addi %0, %arg1 : i32
    %c0_i32 = arith.constant 0 : i32
    %2 = arith.minsi %1, %c0_i32 : i32
    %c0_i32_0 = arith.constant 0 : i32
    %c0_i32_1 = arith.constant 0 : i32
    return %2, %c0_i32_0 : i32, i32
  }
  func.func @transform_2(%arg0: i32, %arg1: i32, %arg2: memref<2xf32, #tpu.memory_space<smem>>) -> (i32, i32) {
    %c1_i32 = arith.constant 1 : i32
    %0 = arith.muli %arg0, %c1_i32 : i32
    %1 = arith.addi %0, %arg1 : i32
    %c0_i32 = arith.constant 0 : i32
    %2 = arith.minsi %1, %c0_i32 : i32
    %c0_i32_0 = arith.constant 0 : i32
    %c0_i32_1 = arith.constant 0 : i32
    return %2, %c0_i32_0 : i32, i32
  }
  func.func @transform_3(%arg0: i32, %arg1: i32, %arg2: memref<2xf32, #tpu.memory_space<smem>>) -> (i32, i32) {
    %c1_i32 = arith.constant 1 : i32
    %0 = arith.muli %arg0, %c1_i32 : i32
    %1 = arith.addi %0, %arg1 : i32
    %c0_i32 = arith.constant 0 : i32
    %2 = arith.minsi %1, %c0_i32 : i32
    %c0_i32_0 = arith.constant 0 : i32
    %c0_i32_1 = arith.constant 0 : i32
    return %2, %c0_i32_0 : i32, i32
  }
  func.func @transform_4(%arg0: i32, %arg1: i32, %arg2: memref<2xf32, #tpu.memory_space<smem>>) -> (i32, i32, i32, i32) {
    %c0_i32 = arith.constant 0 : i32
    %c0_i32_0 = arith.constant 0 : i32
    %c0_i32_1 = arith.constant 0 : i32
    %c0_i32_2 = arith.constant 0 : i32
    return %arg0, %c0_i32, %c0_i32_0, %c0_i32_1 : i32, i32, i32, i32
  }
}

</mosaic_0001>

<llo_original>
// kernel: my_loss_no_sigmoid.1
$region0: #{my_loss_no_sigmoid.1}
  #allocation0 [shape = 'u32[]', space=smem, size = 0x4, offset = 0x4, fixed_abs, tag = 'smem constant byte address 0x4 - core index']
  #allocation1 [shape = 'u32[144,128]{1,0:T(1,128)}', space=vmem, size = 0x12000, scoped, tag = 'internal scratch']
  #allocation2 [shape = 's32[1]{0}', space=sflag, size = 0x4, scoped, tag = 'scoped memory for my_loss_no_sigmoid.1']
  #allocation3 [shape = 'u8[512]{0}', space=smem, size = 0x200, scoped, tag = 'prefetched SMEM operand 0']
  %s0 = inlined_call_operand.vmem [shape: f32[2], index: 0, kind: input, shape index: {}]
  %s1 = inlined_call_operand.vmem [shape: f32[47,128], index: 1, kind: input, shape index: {}]
  %s2 = inlined_call_operand.vmem [shape: f32[47,128], index: 2, kind: input, shape index: {}]
  %s3 = inlined_call_operand.vmem [shape: s8[64,128], index: 3, kind: input, shape index: {}]
  %s4 = inlined_call_operand.vmem [shape: f32[47,128], index: 4, kind: input, shape index: {}]
  %s5 = inlined_call_operand.vmem [shape: f32[2,7,8,128], index: 5, kind: output, shape index: {}]
  %s6 = sld [smem:[#allocation0]]
  $region53: #{my_loss_no_sigmoid.1} parent=0
    _
  %s8 = ssub.s32 1, %s6
  %s9 = scalar_select 0, %s8, %s6
  %s10 = sshll.u32 %s0, 4
  %s11 = int_to_ptr.vmem [resolvable:$true] %s10
  %13 = dma.vmem_to_smem %s11, 16, [#allocation3], [#allocation2]
  %14 = dma.done [#allocation2], 16
  %15 = sfence
  loop: start=0, step=1, limit=4
  $region2: #{my_loss_no_sigmoid.1} parent=0 // loop_pre_header
    _
  $region3: #{my_loss_no_sigmoid.1} parent=0 // loop_header
    %s17 = sphi 0, %s21
    %p18 = scmp.ge.s32.totalorder %s17, 4
    %s24 = sphi 0, %s36
    %s25 = sphi 0, %s32
    %s26 = sphi 0, %s24
    %s27 = sphi 0, %s25
    %s28 = sphi 0, %s26
    %s29 = sphi 0, %s27
    %s45 = sphi 0, %s47
    %s48 = sphi 0, %s45
    %s49 = sphi 0, %s48
    %s65 = sphi 0, %s49
    %s77 = sphi 0, %s79
    %s80 = sphi 0, %s77
    %s81 = sphi 0, %s80
    %s97 = sphi 0, %s81
    %s109 = sphi 0, %s111
    %s112 = sphi 0, %s109
    %s113 = sphi 0, %s112
    %s129 = sphi 0, %s113
    %s141 = sphi 0, %s143
    %s144 = sphi 0, %s141
    %s145 = sphi 0, %s144
    %s161 = sphi 0, %s145
    %s167 = sphi 0, %s169
    %s170 = sphi 0, %s167
    %s171 = sphi 0, %s170
    %s187 = sphi 0, %s171
  $region4: #{my_loss_no_sigmoid.1} parent=0 // loop_header_branch
    %20 = sbr.rel (%p18) target = $region8
  $region5: #{my_loss_no_sigmoid.1} parent=0 // loop_body
    %s22 = ssub.s32 %s17, 1
    %s23 = ssub.s32 %s17, 2
    %s30 = sadd.s32 1, %s25
    %p31 = scmp.ge.s32.totalorder %s30, 1
    %s32 = scalar_select %p31, 0, %s30
    %s33 = sadd.s32 1, %s24
    %s34 = scalar_select %p31, %s33, %s24
    %p35 = scmp.ge.s32.totalorder %s34, 2
    %s36 = scalar_select %p35, 0, %s34
    %s37 = sadd.s32 %s24, %s25
    %p38 = scmp.lt.s32.totalorder %s37, 0
    %s39 = scalar_select %p38, %s37, 0
    %s40 = sadd.s32 %s36, %s32
    %p41 = scmp.lt.s32.totalorder %s40, 0
    %s42 = scalar_select %p41, %s40, 0
    %s43 = ssub.s32 %s39, %s42
    %p44 = scmp.eq.s32.totalorder %s43, 0
    %s46 = sadd.s32 %s45, 1
    %s47 = scalar_select %p44, %s45, %s46
    %p50 = pneg %p44
    %p51 = scmp.eq.s32.totalorder %s17, 1
    %p52 = por %p50, %p51
    %p53 = scmp.ne.s32.totalorder %s45, %s48
    %p54 = scmp.eq.s32.totalorder %s17, 0
    %p55 = por %p53, %p54
    %p56 = scmp.ne.s32.totalorder %s45, %s48
    %p57 = scmp.eq.s32.totalorder %s22, 1
    %p58 = por %p56, %p57
    %p59 = scmp.ne.s32.totalorder %s48, %s49
    %p60 = scmp.eq.s32.totalorder %s22, 0
    %p61 = por %p59, %p60
    %p62 = scmp.ne.s32.totalorder %s48, %s49
    %p63 = scmp.eq.s32.totalorder %s23, 1
    %p64 = por %p62, %p63
    %p66 = scmp.ne.s32.totalorder %s49, %s65
    %p67 = scmp.eq.s32.totalorder %s23, 0
    %p68 = por %p66, %p67
    %s69 = sadd.s32 %s24, %s25
    %p70 = scmp.lt.s32.totalorder %s69, 0
    %s71 = scalar_select %p70, %s69, 0
    %s72 = sadd.s32 %s36, %s32
    %p73 = scmp.lt.s32.totalorder %s72, 0
    %s74 = scalar_select %p73, %s72, 0
    %s75 = ssub.s32 %s71, %s74
    %p76 = scmp.eq.s32.totalorder %s75, 0
    %s78 = sadd.s32 %s77, 1
    %s79 = scalar_select %p76, %s77, %s78
    %p82 = pneg %p76
    %p83 = scmp.eq.s32.totalorder %s17, 1
    %p84 = por %p82, %p83
    %p85 = scmp.ne.s32.totalorder %s77, %s80
    %p86 = scmp.eq.s32.totalorder %s17, 0
    %p87 = por %p85, %p86
    %p88 = scmp.ne.s32.totalorder %s77, %s80
    %p89 = scmp.eq.s32.totalorder %s22, 1
    %p90 = por %p88, %p89
    %p91 = scmp.ne.s32.totalorder %s80, %s81
    %p92 = scmp.eq.s32.totalorder %s22, 0
    %p93 = por %p91, %p92
    %p94 = scmp.ne.s32.totalorder %s80, %s81
    %p95 = scmp.eq.s32.totalorder %s23, 1
    %p96 = por %p94, %p95
    %p98 = scmp.ne.s32.totalorder %s81, %s97
    %p99 = scmp.eq.s32.totalorder %s23, 0
    %p100 = por %p98, %p99
    %s101 = sadd.s32 %s24, %s25
    %p102 = scmp.lt.s32.totalorder %s101, 0
    %s103 = scalar_select %p102, %s101, 0
    %s104 = sadd.s32 %s36, %s32
    %p105 = scmp.lt.s32.totalorder %s104, 0
    %s106 = scalar_select %p105, %s104, 0
    %s107 = ssub.s32 %s103, %s106
    %p108 = scmp.eq.s32.totalorder %s107, 0
    %s110 = sadd.s32 %s109, 1
    %s111 = scalar_select %p108, %s109, %s110
    %p114 = pneg %p108
    %p115 = scmp.eq.s32.totalorder %s17, 1
    %p116 = por %p114, %p115
    %p117 = scmp.ne.s32.totalorder %s109, %s112
    %p118 = scmp.eq.s32.totalorder %s17, 0
    %p119 = por %p117, %p118
    %p120 = scmp.ne.s32.totalorder %s109, %s112
    %p121 = scmp.eq.s32.totalorder %s22, 1
    %p122 = por %p120, %p121
    %p123 = scmp.ne.s32.totalorder %s112, %s113
    %p124 = scmp.eq.s32.totalorder %s22, 0
    %p125 = por %p123, %p124
    %p126 = scmp.ne.s32.totalorder %s112, %s113
    %p127 = scmp.eq.s32.totalorder %s23, 1
    %p128 = por %p126, %p127
    %p130 = scmp.ne.s32.totalorder %s113, %s129
    %p131 = scmp.eq.s32.totalorder %s23, 0
    %p132 = por %p130, %p131
    %s133 = sadd.s32 %s24, %s25
    %p134 = scmp.lt.s32.totalorder %s133, 0
    %s135 = scalar_select %p134, %s133, 0
    %s136 = sadd.s32 %s36, %s32
    %p137 = scmp.lt.s32.totalorder %s136, 0
    %s138 = scalar_select %p137, %s136, 0
    %s139 = ssub.s32 %s135, %s138
    %p140 = scmp.eq.s32.totalorder %s139, 0
    %s142 = sadd.s32 %s141, 1
    %s143 = scalar_select %p140, %s141, %s142
    %p146 = pneg %p140
    %p147 = scmp.eq.s32.totalorder %s17, 1
    %p148 = por %p146, %p147
    %p149 = scmp.ne.s32.totalorder %s141, %s144
    %p150 = scmp.eq.s32.totalorder %s17, 0
    %p151 = por %p149, %p150
    %p152 = scmp.ne.s32.totalorder %s141, %s144
    %p153 = scmp.eq.s32.totalorder %s22, 1
    %p154 = por %p152, %p153
    %p155 = scmp.ne.s32.totalorder %s144, %s145
    %p156 = scmp.eq.s32.totalorder %s22, 0
    %p157 = por %p155, %p156
    %p158 = scmp.ne.s32.totalorder %s144, %s145
    %p159 = scmp.eq.s32.totalorder %s23, 1
    %p160 = por %p158, %p159
    %p162 = scmp.ne.s32.totalorder %s145, %s161
    %p163 = scmp.eq.s32.totalorder %s23, 0
    %p164 = por %p162, %p163
    %s165 = ssub.s32 %s24, %s36
    %p166 = scmp.eq.s32.totalorder %s165, 0
    %s168 = sadd.s32 %s167, 1
    %s169 = scalar_select %p166, %s167, %s168
    %p172 = pneg %p166
    %p173 = scmp.eq.s32.totalorder %s17, 1
    %p174 = por %p172, %p173
    %p175 = scmp.ne.s32.totalorder %s167, %s170
    %p176 = scmp.eq.s32.totalorder %s17, 0
    %p177 = por %p175, %p176
    %p178 = scmp.ne.s32.totalorder %s167, %s170
    %p179 = scmp.eq.s32.totalorder %s22, 1
    %p180 = por %p178, %p179
    %p181 = scmp.ne.s32.totalorder %s170, %s171
    %p182 = scmp.eq.s32.totalorder %s22, 0
    %p183 = por %p181, %p182
    %p184 = scmp.ne.s32.totalorder %s170, %s171
    %p185 = scmp.eq.s32.totalorder %s23, 1
    %p186 = por %p184, %p185
    %p188 = scmp.ne.s32.totalorder %s171, %s187
    %p189 = scmp.eq.s32.totalorder %s23, 0
    %p190 = por %p188, %p189
    %p191 = scmp.le.s32.totalorder 1, %s17
    %p192 = scmp.lt.s32.totalorder %s17, 3
    %p193 = pnand %p191, %p192
    %p194 = pneg %p193
    // Predicated region
    $region9: #{my_loss_no_sigmoid.1} parent=5 // pred_check
      _
    $region10: #{my_loss_no_sigmoid.1} parent=5 // pred_check_branch
      %196 = sbr.rel (%p193) target = $region12
    $region11: #{my_loss_no_sigmoid.1} parent=5 // pred_region
      %s197 = ssub.s32 %s17, 1
    $region12: #{my_loss_no_sigmoid.1} parent=5 // pred_fallthru
      _
    %p198 = scmp.lt.s32.totalorder %s17, 2
    // Predicated region
    $region13: #{my_loss_no_sigmoid.1} parent=5 // pred_check
      %p199 = pneg %p198
    $region14: #{my_loss_no_sigmoid.1} parent=5 // pred_check_branch
      %201 = sbr.rel (%p199) target = $region16
    $region15: #{my_loss_no_sigmoid.1} parent=5 // pred_region
      // Predicated region
      $region17: #{my_loss_no_sigmoid.1} parent=15 // pred_check
        %p202 = pneg %p55
      $region18: #{my_loss_no_sigmoid.1} parent=15 // pred_check_branch
        %204 = sbr.rel (%p202) target = $region20
      $region19: #{my_loss_no_sigmoid.1} parent=15 // pred_region
        %s205 = sadd.s32 %s24, %s25
        %p206 = scmp.lt.s32.totalorder %s205, 0
        %s207 = scalar_select %p206, %s205, 0
        %s208 = smul.u32 256, %s207
        %s209 = ssub.s32 6, %s208
        %s210 = smul.u32 128, %s209
        %p211 = scmp.lt.s32.totalorder %s208, 5
        %s212 = scalar_select %p211, %s208, 5
        %s213 = smul.addr %s212, 8
        %s214 = scalar_lea.vmem %s1, %s213
        %s215 = sadd.s32 %s24, %s25
        %p216 = scmp.lt.s32.totalorder %s215, 0
        %s217 = scalar_select %p216, %s215, 0
        %s218 = smul.u32 256, %s217
        %s219 = ssub.s32 6, %s218
        %s220 = smul.u32 128, %s219
      $region20: #{my_loss_no_sigmoid.1} parent=15 // pred_fallthru
        _
      // Predicated region
      $region21: #{my_loss_no_sigmoid.1} parent=15 // pred_check
        %p221 = pneg %p87
      $region22: #{my_loss_no_sigmoid.1} parent=15 // pred_check_branch
        %223 = sbr.rel (%p221) target = $region24
      $region23: #{my_loss_no_sigmoid.1} parent=15 // pred_region
        %s224 = sadd.s32 %s24, %s25
        %p225 = scmp.lt.s32.totalorder %s224, 0
        %s226 = scalar_select %p225, %s224, 0
        %s227 = smul.u32 256, %s226
        %s228 = ssub.s32 6, %s227
        %s229 = smul.u32 128, %s228
        %p230 = scmp.lt.s32.totalorder %s227, 5
        %s231 = scalar_select %p230, %s227, 5
        %s232 = smul.addr %s231, 8
        %s233 = scalar_lea.vmem %s2, %s232
        %s234 = sadd.s32 %s24, %s25
        %p235 = scmp.lt.s32.totalorder %s234, 0
        %s236 = scalar_select %p235, %s234, 0
        %s237 = smul.u32 256, %s236
        %s238 = ssub.s32 6, %s237
        %s239 = smul.u32 128, %s238
      $region24: #{my_loss_no_sigmoid.1} parent=15 // pred_fallthru
        _
      // Predicated region
      $region25: #{my_loss_no_sigmoid.1} parent=15 // pred_check
        %p240 = pneg %p119
      $region26: #{my_loss_no_sigmoid.1} parent=15 // pred_check_branch
        %242 = sbr.rel (%p240) target = $region28
      $region27: #{my_loss_no_sigmoid.1} parent=15 // pred_region
        %s243 = sadd.s32 %s24, %s25
        %p244 = scmp.lt.s32.totalorder %s243, 0
        %s245 = scalar_select %p244, %s243, 0
        %s246 = smul.u32 64, %s245
        %s247 = ssub.s32 2, %s246
        %s248 = smul.u32 128, %s247
        %p249 = scmp.lt.s32.totalorder %s246, 1
        %s250 = scalar_select %p249, %s246, 1
        %s251 = smul.addr %s250, 8
        %s252 = scalar_lea.vmem %s3, %s251
        %s253 = sadd.s32 %s24, %s25
        %p254 = scmp.lt.s32.totalorder %s253, 0
        %s255 = scalar_select %p254, %s253, 0
        %s256 = smul.u32 64, %s255
        %s257 = ssub.s32 2, %s256
        %s258 = smul.u32 128, %s257
      $region28: #{my_loss_no_sigmoid.1} parent=15 // pred_fallthru
        _
      // Predicated region
      $region29: #{my_loss_no_sigmoid.1} parent=15 // pred_check
        %p259 = pneg %p151
      $region30: #{my_loss_no_sigmoid.1} parent=15 // pred_check_branch
        %261 = sbr.rel (%p259) target = $region32
      $region31: #{my_loss_no_sigmoid.1} parent=15 // pred_region
        %s262 = sadd.s32 %s24, %s25
        %p263 = scmp.lt.s32.totalorder %s262, 0
        %s264 = scalar_select %p263, %s262, 0
        %s265 = smul.u32 256, %s264
        %s266 = ssub.s32 6, %s265
        %s267 = smul.u32 128, %s266
        %p268 = scmp.lt.s32.totalorder %s265, 5
        %s269 = scalar_select %p268, %s265, 5
        %s270 = smul.addr %s269, 8
        %s271 = scalar_lea.vmem %s4, %s270
        %s272 = sadd.s32 %s24, %s25
        %p273 = scmp.lt.s32.totalorder %s272, 0
        %s274 = scalar_select %p273, %s272, 0
        %s275 = smul.u32 256, %s274
        %s276 = ssub.s32 6, %s275
        %s277 = smul.u32 128, %s276
      $region32: #{my_loss_no_sigmoid.1} parent=15 // pred_fallthru
        _
    $region16: #{my_loss_no_sigmoid.1} parent=5 // pred_fallthru
      _
    %p278 = scmp.le.s32.totalorder 1, %s17
    %p279 = scmp.lt.s32.totalorder %s17, 3
    %p280 = pnand %p278, %p279
    %p281 = pneg %p280
    // Predicated region
    $region33: #{my_loss_no_sigmoid.1} parent=5 // pred_check
      _
    $region34: #{my_loss_no_sigmoid.1} parent=5 // pred_check_branch
      %283 = sbr.rel (%p280) target = $region36
    $region35: #{my_loss_no_sigmoid.1} parent=5 // pred_region
      %s284 = ssub.s32 %s17, 1
      %s285 = sadd.s32 %s26, %s27
      %p286 = scmp.lt.s32.totalorder %s285, 0
      %s287 = scalar_select %p286, %s285, 0
      %s288 = smul.u32 256, %s287
      %s289 = ssub.s32 6, %s288
      %s290 = smul.u32 128, %s289
      %p291 = scmp.lt.s32.totalorder %s288, 5
      %s292 = scalar_select %p291, %s288, 5
      %s293 = smul.addr %s292, 8
      %s294 = scalar_lea.vmem %s1, %s293
      %p295 = pneg %p61
      %p296 = pneg %p58
      %s297 = sadd.s32 %s26, %s27
      %p298 = scmp.lt.s32.totalorder %s297, 0
      %s299 = scalar_select %p298, %s297, 0
      %s300 = smul.u32 256, %s299
      %s301 = ssub.s32 6, %s300
      %s302 = smul.u32 128, %s301
      %p303 = scmp.lt.s32.totalorder %s300, 5
      %s304 = scalar_select %p303, %s300, 5
      %s305 = smul.addr %s304, 8
      %s306 = scalar_lea.vmem %s2, %s305
      %p307 = pneg %p93
      %p308 = pneg %p90
      %s309 = sadd.s32 %s26, %s27
      %p310 = scmp.lt.s32.totalorder %s309, 0
      %s311 = scalar_select %p310, %s309, 0
      %s312 = smul.u32 64, %s311
      %s313 = ssub.s32 2, %s312
      %s314 = smul.u32 128, %s313
      %p315 = scmp.lt.s32.totalorder %s312, 1
      %s316 = scalar_select %p315, %s312, 1
      %s317 = smul.addr %s316, 8
      %s318 = scalar_lea.vmem %s3, %s317
      %p319 = pneg %p125
      %p320 = pneg %p122
      %s321 = sadd.s32 %s26, %s27
      %p322 = scmp.lt.s32.totalorder %s321, 0
      %s323 = scalar_select %p322, %s321, 0
      %s324 = smul.u32 256, %s323
      %s325 = ssub.s32 6, %s324
      %s326 = smul.u32 128, %s325
      %p327 = scmp.lt.s32.totalorder %s324, 5
      %s328 = scalar_select %p327, %s324, 5
      %s329 = smul.addr %s328, 8
      %s330 = scalar_lea.vmem %s4, %s329
      %p331 = pneg %p157
      %p332 = pneg %p154
      %p333 = pneg %p183
      %p334 = pneg %p180
      %p335 = scmp.lt.s32.totalorder %s26, 1
      %s336 = scalar_select %p335, %s26, 1
      %s337 = smul.addr %s336, 7
      %s338 = smul.addr %s337, 8
      %s339 = scalar_lea.vmem %s5, %s338
      %s340 = sadd.s32 %s26, %s27
      %p341 = scmp.lt.s32.totalorder %s340, 0
      %s342 = scalar_select %p341, %s340, 0
      %s343 = smul.u32 256, %s342
      %s344 = ssub.s32 6, %s343
      %s345 = smul.u32 128, %s344
      %p346 = scmp.lt.s32.totalorder %s343, 5
      %s347 = scalar_select %p346, %s343, 5
      %s348 = smul.addr %s347, 8
      %s349 = scalar_lea.vmem %s1, %s348
      %s350 = sadd.s32 %s26, %s27
      %p351 = scmp.lt.s32.totalorder %s350, 0
      %s352 = scalar_select %p351, %s350, 0
      %s353 = smul.u32 256, %s352
      %s354 = ssub.s32 6, %s353
      %s355 = smul.u32 128, %s354
      %s356 = sadd.s32 %s26, %s27
      %p357 = scmp.lt.s32.totalorder %s356, 0
      %s358 = scalar_select %p357, %s356, 0
      %s359 = smul.u32 256, %s358
      %s360 = ssub.s32 6, %s359
      %s361 = smul.u32 128, %s360
      %p362 = scmp.lt.s32.totalorder %s359, 5
      %s363 = scalar_select %p362, %s359, 5
      %s364 = smul.addr %s363, 8
      %s365 = scalar_lea.vmem %s2, %s364
      %s366 = sadd.s32 %s26, %s27
      %p367 = scmp.lt.s32.totalorder %s366, 0
      %s368 = scalar_select %p367, %s366, 0
      %s369 = smul.u32 256, %s368
      %s370 = ssub.s32 6, %s369
      %s371 = smul.u32 128, %s370
      %s372 = sadd.s32 %s26, %s27
      %p373 = scmp.lt.s32.totalorder %s372, 0
      %s374 = scalar_select %p373, %s372, 0
      %s375 = smul.u32 64, %s374
      %s376 = ssub.s32 2, %s375
      %s377 = smul.u32 128, %s376
      %p378 = scmp.lt.s32.totalorder %s375, 1
      %s379 = scalar_select %p378, %s375, 1
      %s380 = smul.addr %s379, 8
      %s381 = scalar_lea.vmem %s3, %s380
      %s382 = sadd.s32 %s26, %s27
      %p383 = scmp.lt.s32.totalorder %s382, 0
      %s384 = scalar_select %p383, %s382, 0
      %s385 = smul.u32 64, %s384
      %s386 = ssub.s32 2, %s385
      %s387 = smul.u32 128, %s386
      %s388 = sadd.s32 %s26, %s27
      %p389 = scmp.lt.s32.totalorder %s388, 0
      %s390 = scalar_select %p389, %s388, 0
      %s391 = smul.u32 256, %s390
      %s392 = ssub.s32 6, %s391
      %s393 = smul.u32 128, %s392
      %p394 = scmp.lt.s32.totalorder %s391, 5
      %s395 = scalar_select %p394, %s391, 5
      %s396 = smul.addr %s395, 8
      %s397 = scalar_lea.vmem %s4, %s396
      %s398 = sadd.s32 %s26, %s27
      %p399 = scmp.lt.s32.totalorder %s398, 0
      %s400 = scalar_select %p399, %s398, 0
      %s401 = smul.u32 256, %s400
      %s402 = ssub.s32 6, %s401
      %s403 = smul.u32 128, %s402
      %p404 = scmp.lt.s32.totalorder %s26, 1
      %s405 = scalar_select %p404, %s26, 1
      %s406 = smul.addr %s405, 7
      %s407 = smul.addr %s406, 8
      %s408 = scalar_lea.vmem %s5, %s407
      %p409 = scmp.eq.s32.totalorder %s27, 0
      // Predicated region
      $region37: #{my_loss_no_sigmoid.1} parent=35 // pred_check
        %p410 = pneg %p409
      $region38: #{my_loss_no_sigmoid.1} parent=35 // pred_check_branch
        %412 = sbr.rel (%p410) target = $region40
      $region39: #{my_loss_no_sigmoid.1} parent=35 // pred_region
        %413 = vst [vmem:[%s408] sm:$0xff] 0.0
        %414 = vst [vmem:[%s408 + $0x8] sm:$0xff] 0.0
        %415 = vst [vmem:[%s408 + $0x10] sm:$0xff] 0.0
        %416 = vst [vmem:[%s408 + $0x18] sm:$0xff] 0.0
        %417 = vst [vmem:[%s408 + $0x20] sm:$0xff] 0.0
        %418 = vst [vmem:[%s408 + $0x28] sm:$0xff] 0.0
        %419 = vst [vmem:[%s408 + $0x30] sm:$0xff] 0.0
      $region40: #{my_loss_no_sigmoid.1} parent=35 // pred_fallthru
        _
      %s420 = sadd.s32 %s26, %s27
      %s421 = smul.u32 %s420, 2048
      %v422 = vlaneseq
      %v423 = vshrl.u32 %v422, 7
      %v424 = vadd.s32 %v423, 8
      %v425 = vadd.s32 %v423, 16
      %v426 = vadd.s32 %v423, 24
      %v427 = vadd.s32 %v423, 32
      %v428 = vadd.s32 %v423, 40
      %v429 = vadd.s32 %v423, 48
      %v430 = vadd.s32 %v423, 56
      %v431 = vadd.s32 %v423, 64
      %v432 = vadd.s32 %v423, 72
      %v433 = vadd.s32 %v423, 80
      %v434 = vadd.s32 %v423, 88
      %v435 = vadd.s32 %v423, 96
      %v436 = vadd.s32 %v423, 104
      %v437 = vadd.s32 %v423, 112
      %v438 = vadd.s32 %v423, 120
      %v439 = vadd.s32 %v423, 128
      %v440 = vadd.s32 %v423, 136
      %v441 = vadd.s32 %v423, 144
      %v442 = vadd.s32 %v423, 152
      %v443 = vadd.s32 %v423, 160
      %v444 = vadd.s32 %v423, 168
      %v445 = vadd.s32 %v423, 176
      %v446 = vadd.s32 %v423, 184
      %v447 = vadd.s32 %v423, 192
      %v448 = vadd.s32 %v423, 200
      %v449 = vadd.s32 %v423, 208
      %v450 = vadd.s32 %v423, 216
      %v451 = vadd.s32 %v423, 224
      %v452 = vadd.s32 %v423, 232
      %v453 = vadd.s32 %v423, 240
      %v454 = vadd.s32 %v423, 248
      %v455 = vadd.s32 %v423, 256
      %v456 = vadd.s32 %v423, 264
      %v457 = vadd.s32 %v423, 272
      %v458 = vadd.s32 %v423, 280
      %v459 = vadd.s32 %v423, 288
      %v460 = vadd.s32 %v423, 296
      %v461 = vadd.s32 %v423, 304
      %v462 = vadd.s32 %v423, 312
      %v463 = vadd.s32 %v423, 320
      %v464 = vadd.s32 %v423, 328
      %v465 = vadd.s32 %v423, 336
      %v466 = vadd.s32 %v423, 344
      %v467 = vadd.s32 %v423, 352
      %v468 = vadd.s32 %v423, 360
      %v469 = vadd.s32 %v423, 368
      %v470 = vadd.s32 %v423, 376
      %v471 = vadd.s32 %v423, 384
      %v472 = vadd.s32 %v423, 392
      %v473 = vadd.s32 %v423, 400
      %v474 = vadd.s32 %v423, 408
      %v475 = vadd.s32 %v423, 416
      %v476 = vadd.s32 %v423, 424
      %v477 = vadd.s32 %v423, 432
      %v478 = vadd.s32 %v423, 440
      %v479 = vadd.s32 %v423, 448
      %v480 = vadd.s32 %v423, 456
      %v481 = vadd.s32 %v423, 464
      %v482 = vadd.s32 %v423, 472
      %v483 = vadd.s32 %v423, 480
      %v484 = vadd.s32 %v423, 488
      %v485 = vadd.s32 %v423, 496
      %v486 = vadd.s32 %v423, 504
      %v487 = vadd.s32 %v423, 512
      %v488 = vadd.s32 %v423, 520
      %v489 = vadd.s32 %v423, 528
      %v490 = vadd.s32 %v423, 536
      %v491 = vadd.s32 %v423, 544
      %v492 = vadd.s32 %v423, 552
      %v493 = vadd.s32 %v423, 560
      %v494 = vadd.s32 %v423, 568
      %v495 = vadd.s32 %v423, 576
      %v496 = vadd.s32 %v423, 584
      %v497 = vadd.s32 %v423, 592
      %v498 = vadd.s32 %v423, 600
      %v499 = vadd.s32 %v423, 608
      %v500 = vadd.s32 %v423, 616
      %v501 = vadd.s32 %v423, 624
      %v502 = vadd.s32 %v423, 632
      %v503 = vadd.s32 %v423, 640
      %v504 = vadd.s32 %v423, 648
      %v505 = vadd.s32 %v423, 656
      %v506 = vadd.s32 %v423, 664
      %v507 = vadd.s32 %v423, 672
      %v508 = vadd.s32 %v423, 680
      %v509 = vadd.s32 %v423, 688
      %v510 = vadd.s32 %v423, 696
      %v511 = vadd.s32 %v423, 704
      %v512 = vadd.s32 %v423, 712
      %v513 = vadd.s32 %v423, 720
      %v514 = vadd.s32 %v423, 728
      %v515 = vadd.s32 %v423, 736
      %v516 = vadd.s32 %v423, 744
      %v517 = vadd.s32 %v423, 752
      %v518 = vadd.s32 %v423, 760
      %v519 = vadd.s32 %v423, 768
      %v520 = vadd.s32 %v423, 776
      %v521 = vadd.s32 %v423, 784
      %v522 = vadd.s32 %v423, 792
      %v523 = vadd.s32 %v423, 800
      %v524 = vadd.s32 %v423, 808
      %v525 = vadd.s32 %v423, 816
      %v526 = vadd.s32 %v423, 824
      %v527 = vadd.s32 %v423, 832
      %v528 = vadd.s32 %v423, 840
      %v529 = vadd.s32 %v423, 848
      %v530 = vadd.s32 %v423, 856
      %v531 = vadd.s32 %v423, 864
      %v532 = vadd.s32 %v423, 872
      %v533 = vadd.s32 %v423, 880
      %v534 = vadd.s32 %v423, 888
      %v535 = vadd.s32 %v423, 896
      %v536 = vadd.s32 %v423, 904
      %v537 = vadd.s32 %v423, 912
      %v538 = vadd.s32 %v423, 920
      %v539 = vadd.s32 %v423, 928
      %v540 = vadd.s32 %v423, 936
      %v541 = vadd.s32 %v423, 944
      %v542 = vadd.s32 %v423, 952
      %v543 = vadd.s32 %v423, 960
      %v544 = vadd.s32 %v423, 968
      %v545 = vadd.s32 %v423, 976
      %v546 = vadd.s32 %v423, 984
      %v547 = vadd.s32 %v423, 992
      %v548 = vadd.s32 %v423, 1000
      %v549 = vadd.s32 %v423, 1008
      %v550 = vadd.s32 %v423, 1016
      %v551 = vadd.s32 %v423, 1024
      %v552 = vadd.s32 %v423, 1032
      %v553 = vadd.s32 %v423, 1040
      %v554 = vadd.s32 %v423, 1048
      %v555 = vadd.s32 %v423, 1056
      %v556 = vadd.s32 %v423, 1064
      %v557 = vadd.s32 %v423, 1072
      %v558 = vadd.s32 %v423, 1080
      %v559 = vadd.s32 %v423, 1088
      %v560 = vadd.s32 %v423, 1096
      %v561 = vadd.s32 %v423, 1104
      %v562 = vadd.s32 %v423, 1112
      %v563 = vadd.s32 %v423, 1120
      %v564 = vadd.s32 %v423, 1128
      %v565 = vadd.s32 %v423, 1136
      %v566 = vadd.s32 %v423, 1144
      %v567 = vadd.s32 %v423, 1152
      %v568 = vadd.s32 %v423, 1160
      %v569 = vadd.s32 %v423, 1168
      %v570 = vadd.s32 %v423, 1176
      %v571 = vadd.s32 %v423, 1184
      %v572 = vadd.s32 %v423, 1192
      %v573 = vadd.s32 %v423, 1200
      %v574 = vadd.s32 %v423, 1208
      %v575 = vadd.s32 %v423, 1216
      %v576 = vadd.s32 %v423, 1224
      %v577 = vadd.s32 %v423, 1232
      %v578 = vadd.s32 %v423, 1240
      %v579 = vadd.s32 %v423, 1248
      %v580 = vadd.s32 %v423, 1256
      %v581 = vadd.s32 %v423, 1264
      %v582 = vadd.s32 %v423, 1272
      %v583 = vadd.s32 %v423, 1280
      %v584 = vadd.s32 %v423, 1288
      %v585 = vadd.s32 %v423, 1296
      %v586 = vadd.s32 %v423, 1304
      %v587 = vadd.s32 %v423, 1312
      %v588 = vadd.s32 %v423, 1320
      %v589 = vadd.s32 %v423, 1328
      %v590 = vadd.s32 %v423, 1336
      %v591 = vadd.s32 %v423, 1344
      %v592 = vadd.s32 %v423, 1352
      %v593 = vadd.s32 %v423, 1360
      %v594 = vadd.s32 %v423, 1368
      %v595 = vadd.s32 %v423, 1376
      %v596 = vadd.s32 %v423, 1384
      %v597 = vadd.s32 %v423, 1392
      %v598 = vadd.s32 %v423, 1400
      %v599 = vadd.s32 %v423, 1408
      %v600 = vadd.s32 %v423, 1416
      %v601 = vadd.s32 %v423, 1424
      %v602 = vadd.s32 %v423, 1432
      %v603 = vadd.s32 %v423, 1440
      %v604 = vadd.s32 %v423, 1448
      %v605 = vadd.s32 %v423, 1456
      %v606 = vadd.s32 %v423, 1464
      %v607 = vadd.s32 %v423, 1472
      %v608 = vadd.s32 %v423, 1480
      %v609 = vadd.s32 %v423, 1488
      %v610 = vadd.s32 %v423, 1496
      %v611 = vadd.s32 %v423, 1504
      %v612 = vadd.s32 %v423, 1512
      %v613 = vadd.s32 %v423, 1520
      %v614 = vadd.s32 %v423, 1528
      %v615 = vadd.s32 %v423, 1536
      %v616 = vadd.s32 %v423, 1544
      %v617 = vadd.s32 %v423, 1552
      %v618 = vadd.s32 %v423, 1560
      %v619 = vadd.s32 %v423, 1568
      %v620 = vadd.s32 %v423, 1576
      %v621 = vadd.s32 %v423, 1584
      %v622 = vadd.s32 %v423, 1592
      %v623 = vadd.s32 %v423, 1600
      %v624 = vadd.s32 %v423, 1608
      %v625 = vadd.s32 %v423, 1616
      %v626 = vadd.s32 %v423, 1624
      %v627 = vadd.s32 %v423, 1632
      %v628 = vadd.s32 %v423, 1640
      %v629 = vadd.s32 %v423, 1648
      %v630 = vadd.s32 %v423, 1656
      %v631 = vadd.s32 %v423, 1664
      %v632 = vadd.s32 %v423, 1672
      %v633 = vadd.s32 %v423, 1680
      %v634 = vadd.s32 %v423, 1688
      %v635 = vadd.s32 %v423, 1696
      %v636 = vadd.s32 %v423, 1704
      %v637 = vadd.s32 %v423, 1712
      %v638 = vadd.s32 %v423, 1720
      %v639 = vadd.s32 %v423, 1728
      %v640 = vadd.s32 %v423, 1736
      %v641 = vadd.s32 %v423, 1744
      %v642 = vadd.s32 %v423, 1752
      %v643 = vadd.s32 %v423, 1760
      %v644 = vadd.s32 %v423, 1768
      %v645 = vadd.s32 %v423, 1776
      %v646 = vadd.s32 %v423, 1784
      %v647 = vadd.s32 %v423, 1792
      %v648 = vadd.s32 %v423, 1800
      %v649 = vadd.s32 %v423, 1808
      %v650 = vadd.s32 %v423, 1816
      %v651 = vadd.s32 %v423, 1824
      %v652 = vadd.s32 %v423, 1832
      %v653 = vadd.s32 %v423, 1840
      %v654 = vadd.s32 %v423, 1848
      %v655 = vadd.s32 %v423, 1856
      %v656 = vadd.s32 %v423, 1864
      %v657 = vadd.s32 %v423, 1872
      %v658 = vadd.s32 %v423, 1880
      %v659 = vadd.s32 %v423, 1888
      %v660 = vadd.s32 %v423, 1896
      %v661 = vadd.s32 %v423, 1904
      %v662 = vadd.s32 %v423, 1912
      %v663 = vadd.s32 %v423, 1920
      %v664 = vadd.s32 %v423, 1928
      %v665 = vadd.s32 %v423, 1936
      %v666 = vadd.s32 %v423, 1944
      %v667 = vadd.s32 %v423, 1952
      %v668 = vadd.s32 %v423, 1960
      %v669 = vadd.s32 %v423, 1968
      %v670 = vadd.s32 %v423, 1976
      %v671 = vadd.s32 %v423, 1984
      %v672 = vadd.s32 %v423, 1992
      %v673 = vadd.s32 %v423, 2000
      %v674 = vadd.s32 %v423, 2008
      %v675 = vadd.s32 %v423, 2016
      %v676 = vadd.s32 %v423, 2024
      %v677 = vadd.s32 %v423, 2032
      %v678 = vadd.s32 %v423, 2040
      %s679 = ssub.s32 47, %s421
      %v680 = vstv %s679
      %vm681 = vcmp.lt.s32.totalorder %v423, %v680
      %vm682 = vcmp.lt.s32.totalorder %v424, %v680
      %vm683 = vcmp.lt.s32.totalorder %v425, %v680
      %vm684 = vcmp.lt.s32.totalorder %v426, %v680
      %vm685 = vcmp.lt.s32.totalorder %v427, %v680
      %vm686 = vcmp.lt.s32.totalorder %v428, %v680
      %vm687 = vcmp.lt.s32.totalorder %v429, %v680
      %vm688 = vcmp.lt.s32.totalorder %v430, %v680
      %vm689 = vcmp.lt.s32.totalorder %v431, %v680
      %vm690 = vcmp.lt.s32.totalorder %v432, %v680
      %vm691 = vcmp.lt.s32.totalorder %v433, %v680
      %vm692 = vcmp.lt.s32.totalorder %v434, %v680
      %vm693 = vcmp.lt.s32.totalorder %v435, %v680
      %vm694 = vcmp.lt.s32.totalorder %v436, %v680
      %vm695 = vcmp.lt.s32.totalorder %v437, %v680
      %vm696 = vcmp.lt.s32.totalorder %v438, %v680
      %vm697 = vcmp.lt.s32.totalorder %v439, %v680
      %vm698 = vcmp.lt.s32.totalorder %v440, %v680
      %vm699 = vcmp.lt.s32.totalorder %v441, %v680
      %vm700 = vcmp.lt.s32.totalorder %v442, %v680
      %vm701 = vcmp.lt.s32.totalorder %v443, %v680
      %vm702 = vcmp.lt.s32.totalorder %v444, %v680
      %vm703 = vcmp.lt.s32.totalorder %v445, %v680
      %vm704 = vcmp.lt.s32.totalorder %v446, %v680
      %vm705 = vcmp.lt.s32.totalorder %v447, %v680
      %vm706 = vcmp.lt.s32.totalorder %v448, %v680
      %vm707 = vcmp.lt.s32.totalorder %v449, %v680
      %vm708 = vcmp.lt.s32.totalorder %v450, %v680
      %vm709 = vcmp.lt.s32.totalorder %v451, %v680
      %vm710 = vcmp.lt.s32.totalorder %v452, %v680
      %vm711 = vcmp.lt.s32.totalorder %v453, %v680
      %vm712 = vcmp.lt.s32.totalorder %v454, %v680
      %vm713 = vcmp.lt.s32.totalorder %v455, %v680
      %vm714 = vcmp.lt.s32.totalorder %v456, %v680
      %vm715 = vcmp.lt.s32.totalorder %v457, %v680
      %vm716 = vcmp.lt.s32.totalorder %v458, %v680
      %vm717 = vcmp.lt.s32.totalorder %v459, %v680
      %vm718 = vcmp.lt.s32.totalorder %v460, %v680
      %vm719 = vcmp.lt.s32.totalorder %v461, %v680
      %vm720 = vcmp.lt.s32.totalorder %v462, %v680
      %vm721 = vcmp.lt.s32.totalorder %v463, %v680
      %vm722 = vcmp.lt.s32.totalorder %v464, %v680
      %vm723 = vcmp.lt.s32.totalorder %v465, %v680
      %vm724 = vcmp.lt.s32.totalorder %v466, %v680
      %vm725 = vcmp.lt.s32.totalorder %v467, %v680
      %vm726 = vcmp.lt.s32.totalorder %v468, %v680
      %vm727 = vcmp.lt.s32.totalorder %v469, %v680
      %vm728 = vcmp.lt.s32.totalorder %v470, %v680
      %vm729 = vcmp.lt.s32.totalorder %v471, %v680
      %vm730 = vcmp.lt.s32.totalorder %v472, %v680
      %vm731 = vcmp.lt.s32.totalorder %v473, %v680
      %vm732 = vcmp.lt.s32.totalorder %v474, %v680
      %vm733 = vcmp.lt.s32.totalorder %v475, %v680
      %vm734 = vcmp.lt.s32.totalorder %v476, %v680
      %vm735 = vcmp.lt.s32.totalorder %v477, %v680
      %vm736 = vcmp.lt.s32.totalorder %v478, %v680
      %vm737 = vcmp.lt.s32.totalorder %v479, %v680
      %vm738 = vcmp.lt.s32.totalorder %v480, %v680
      %vm739 = vcmp.lt.s32.totalorder %v481, %v680
      %vm740 = vcmp.lt.s32.totalorder %v482, %v680
      %vm741 = vcmp.lt.s32.totalorder %v483, %v680
      %vm742 = vcmp.lt.s32.totalorder %v484, %v680
      %vm743 = vcmp.lt.s32.totalorder %v485, %v680
      %vm744 = vcmp.lt.s32.totalorder %v486, %v680
      %vm745 = vcmp.lt.s32.totalorder %v487, %v680
      %vm746 = vcmp.lt.s32.totalorder %v488, %v680
      %vm747 = vcmp.lt.s32.totalorder %v489, %v680
      %vm748 = vcmp.lt.s32.totalorder %v490, %v680
      %vm749 = vcmp.lt.s32.totalorder %v491, %v680
      %vm750 = vcmp.lt.s32.totalorder %v492, %v680
      %vm751 = vcmp.lt.s32.totalorder %v493, %v680
      %vm752 = vcmp.lt.s32.totalorder %v494, %v680
      %vm753 = vcmp.lt.s32.totalorder %v495, %v680
      %vm754 = vcmp.lt.s32.totalorder %v496, %v680
      %vm755 = vcmp.lt.s32.totalorder %v497, %v680
      %vm756 = vcmp.lt.s32.totalorder %v498, %v680
      %vm757 = vcmp.lt.s32.totalorder %v499, %v680
      %vm758 = vcmp.lt.s32.totalorder %v500, %v680
      %vm759 = vcmp.lt.s32.totalorder %v501, %v680
      %vm760 = vcmp.lt.s32.totalorder %v502, %v680
      %vm761 = vcmp.lt.s32.totalorder %v503, %v680
      %vm762 = vcmp.lt.s32.totalorder %v504, %v680
      %vm763 = vcmp.lt.s32.totalorder %v505, %v680
      %vm764 = vcmp.lt.s32.totalorder %v506, %v680
      %vm765 = vcmp.lt.s32.totalorder %v507, %v680
      %vm766 = vcmp.lt.s32.totalorder %v508, %v680
      %vm767 = vcmp.lt.s32.totalorder %v509, %v680
      %vm768 = vcmp.lt.s32.totalorder %v510, %v680
      %vm769 = vcmp.lt.s32.totalorder %v511, %v680
      %vm770 = vcmp.lt.s32.totalorder %v512, %v680
      %vm771 = vcmp.lt.s32.totalorder %v513, %v680
      %vm772 = vcmp.lt.s32.totalorder %v514, %v680
      %vm773 = vcmp.lt.s32.totalorder %v515, %v680
      %vm774 = vcmp.lt.s32.totalorder %v516, %v680
      %vm775 = vcmp.lt.s32.totalorder %v517, %v680
      %vm776 = vcmp.lt.s32.totalorder %v518, %v680
      %vm777 = vcmp.lt.s32.totalorder %v519, %v680
      %vm778 = vcmp.lt.s32.totalorder %v520, %v680
      %vm779 = vcmp.lt.s32.totalorder %v521, %v680
      %vm780 = vcmp.lt.s32.totalorder %v522, %v680
      %vm781 = vcmp.lt.s32.totalorder %v523, %v680
      %vm782 = vcmp.lt.s32.totalorder %v524, %v680
      %vm783 = vcmp.lt.s32.totalorder %v525, %v680
      %vm784 = vcmp.lt.s32.totalorder %v526, %v680
      %vm785 = vcmp.lt.s32.totalorder %v527, %v680
      %vm786 = vcmp.lt.s32.totalorder %v528, %v680
      %vm787 = vcmp.lt.s32.totalorder %v529, %v680
      %vm788 = vcmp.lt.s32.totalorder %v530, %v680
      %vm789 = vcmp.lt.s32.totalorder %v531, %v680
      %vm790 = vcmp.lt.s32.totalorder %v532, %v680
      %vm791 = vcmp.lt.s32.totalorder %v533, %v680
      %vm792 = vcmp.lt.s32.totalorder %v534, %v680
      %vm793 = vcmp.lt.s32.totalorder %v535, %v680
      %vm794 = vcmp.lt.s32.totalorder %v536, %v680
      %vm795 = vcmp.lt.s32.totalorder %v537, %v680
      %vm796 = vcmp.lt.s32.totalorder %v538, %v680
      %vm797 = vcmp.lt.s32.totalorder %v539, %v680
      %vm798 = vcmp.lt.s32.totalorder %v540, %v680
      %vm799 = vcmp.lt.s32.totalorder %v541, %v680
      %vm800 = vcmp.lt.s32.totalorder %v542, %v680
      %vm801 = vcmp.lt.s32.totalorder %v543, %v680
      %vm802 = vcmp.lt.s32.totalorder %v544, %v680
      %vm803 = vcmp.lt.s32.totalorder %v545, %v680
      %vm804 = vcmp.lt.s32.totalorder %v546, %v680
      %vm805 = vcmp.lt.s32.totalorder %v547, %v680
      %vm806 = vcmp.lt.s32.totalorder %v548, %v680
      %vm807 = vcmp.lt.s32.totalorder %v549, %v680
      %vm808 = vcmp.lt.s32.totalorder %v550, %v680
      %vm809 = vcmp.lt.s32.totalorder %v551, %v680
      %vm810 = vcmp.lt.s32.totalorder %v552, %v680
      %vm811 = vcmp.lt.s32.totalorder %v553, %v680
      %vm812 = vcmp.lt.s32.totalorder %v554, %v680
      %vm813 = vcmp.lt.s32.totalorder %v555, %v680
      %vm814 = vcmp.lt.s32.totalorder %v556, %v680
      %vm815 = vcmp.lt.s32.totalorder %v557, %v680
      %vm816 = vcmp.lt.s32.totalorder %v558, %v680
      %vm817 = vcmp.lt.s32.totalorder %v559, %v680
      %vm818 = vcmp.lt.s32.totalorder %v560, %v680
      %vm819 = vcmp.lt.s32.totalorder %v561, %v680
      %vm820 = vcmp.lt.s32.totalorder %v562, %v680
      %vm821 = vcmp.lt.s32.totalorder %v563, %v680
      %vm822 = vcmp.lt.s32.totalorder %v564, %v680
      %vm823 = vcmp.lt.s32.totalorder %v565, %v680
      %vm824 = vcmp.lt.s32.totalorder %v566, %v680
      %vm825 = vcmp.lt.s32.totalorder %v567, %v680
      %vm826 = vcmp.lt.s32.totalorder %v568, %v680
      %vm827 = vcmp.lt.s32.totalorder %v569, %v680
      %vm828 = vcmp.lt.s32.totalorder %v570, %v680
      %vm829 = vcmp.lt.s32.totalorder %v571, %v680
      %vm830 = vcmp.lt.s32.totalorder %v572, %v680
      %vm831 = vcmp.lt.s32.totalorder %v573, %v680
      %vm832 = vcmp.lt.s32.totalorder %v574, %v680
      %vm833 = vcmp.lt.s32.totalorder %v575, %v680
      %vm834 = vcmp.lt.s32.totalorder %v576, %v680
      %vm835 = vcmp.lt.s32.totalorder %v577, %v680
      %vm836 = vcmp.lt.s32.totalorder %v578, %v680
      %vm837 = vcmp.lt.s32.totalorder %v579, %v680
      %vm838 = vcmp.lt.s32.totalorder %v580, %v680
      %vm839 = vcmp.lt.s32.totalorder %v581, %v680
      %vm840 = vcmp.lt.s32.totalorder %v582, %v680
      %vm841 = vcmp.lt.s32.totalorder %v583, %v680
      %vm842 = vcmp.lt.s32.totalorder %v584, %v680
      %vm843 = vcmp.lt.s32.totalorder %v585, %v680
      %vm844 = vcmp.lt.s32.totalorder %v586, %v680
      %vm845 = vcmp.lt.s32.totalorder %v587, %v680
      %vm846 = vcmp.lt.s32.totalorder %v588, %v680
      %vm847 = vcmp.lt.s32.totalorder %v589, %v680
      %vm848 = vcmp.lt.s32.totalorder %v590, %v680
      %vm849 = vcmp.lt.s32.totalorder %v591, %v680
      %vm850 = vcmp.lt.s32.totalorder %v592, %v680
      %vm851 = vcmp.lt.s32.totalorder %v593, %v680
      %vm852 = vcmp.lt.s32.totalorder %v594, %v680
      %vm853 = vcmp.lt.s32.totalorder %v595, %v680
      %vm854 = vcmp.lt.s32.totalorder %v596, %v680
      %vm855 = vcmp.lt.s32.totalorder %v597, %v680
      %vm856 = vcmp.lt.s32.totalorder %v598, %v680
      %vm857 = vcmp.lt.s32.totalorder %v599, %v680
      %vm858 = vcmp.lt.s32.totalorder %v600, %v680
      %vm859 = vcmp.lt.s32.totalorder %v601, %v680
      %vm860 = vcmp.lt.s32.totalorder %v602, %v680
      %vm861 = vcmp.lt.s32.totalorder %v603, %v680
      %vm862 = vcmp.lt.s32.totalorder %v604, %v680
      %vm863 = vcmp.lt.s32.totalorder %v605, %v680
      %vm864 = vcmp.lt.s32.totalorder %v606, %v680
      %vm865 = vcmp.lt.s32.totalorder %v607, %v680
      %vm866 = vcmp.lt.s32.totalorder %v608, %v680
      %vm867 = vcmp.lt.s32.totalorder %v609, %v680
      %vm868 = vcmp.lt.s32.totalorder %v610, %v680
      %vm869 = vcmp.lt.s32.totalorder %v611, %v680
      %vm870 = vcmp.lt.s32.totalorder %v612, %v680
      %vm871 = vcmp.lt.s32.totalorder %v613, %v680
      %vm872 = vcmp.lt.s32.totalorder %v614, %v680
      %vm873 = vcmp.lt.s32.totalorder %v615, %v680
      %vm874 = vcmp.lt.s32.totalorder %v616, %v680
      %vm875 = vcmp.lt.s32.totalorder %v617, %v680
      %vm876 = vcmp.lt.s32.totalorder %v618, %v680
      %vm877 = vcmp.lt.s32.totalorder %v619, %v680
      %vm878 = vcmp.lt.s32.totalorder %v620, %v680
      %vm879 = vcmp.lt.s32.totalorder %v621, %v680
      %vm880 = vcmp.lt.s32.totalorder %v622, %v680
      %vm881 = vcmp.lt.s32.totalorder %v623, %v680
      %vm882 = vcmp.lt.s32.totalorder %v624, %v680
      %vm883 = vcmp.lt.s32.totalorder %v625, %v680
      %vm884 = vcmp.lt.s32.totalorder %v626, %v680
      %vm885 = vcmp.lt.s32.totalorder %v627, %v680
      %vm886 = vcmp.lt.s32.totalorder %v628, %v680
      %vm887 = vcmp.lt.s32.totalorder %v629, %v680
      %vm888 = vcmp.lt.s32.totalorder %v630, %v680
      %vm889 = vcmp.lt.s32.totalorder %v631, %v680
      %vm890 = vcmp.lt.s32.totalorder %v632, %v680
      %vm891 = vcmp.lt.s32.totalorder %v633, %v680
      %vm892 = vcmp.lt.s32.totalorder %v634, %v680
      %vm893 = vcmp.lt.s32.totalorder %v635, %v680
      %vm894 = vcmp.lt.s32.totalorder %v636, %v680
      %vm895 = vcmp.lt.s32.totalorder %v637, %v680
      %vm896 = vcmp.lt.s32.totalorder %v638, %v680
      %vm897 = vcmp.lt.s32.totalorder %v639, %v680
      %vm898 = vcmp.lt.s32.totalorder %v640, %v680
      %vm899 = vcmp.lt.s32.totalorder %v641, %v680
      %vm900 = vcmp.lt.s32.totalorder %v642, %v680
      %vm901 = vcmp.lt.s32.totalorder %v643, %v680
      %vm902 = vcmp.lt.s32.totalorder %v644, %v680
      %vm903 = vcmp.lt.s32.totalorder %v645, %v680
      %vm904 = vcmp.lt.s32.totalorder %v646, %v680
      %vm905 = vcmp.lt.s32.totalorder %v647, %v680
      %vm906 = vcmp.lt.s32.totalorder %v648, %v680
      %vm907 = vcmp.lt.s32.totalorder %v649, %v680
      %vm908 = vcmp.lt.s32.totalorder %v650, %v680
      %vm909 = vcmp.lt.s32.totalorder %v651, %v680
      %vm910 = vcmp.lt.s32.totalorder %v652, %v680
      %vm911 = vcmp.lt.s32.totalorder %v653, %v680
      %vm912 = vcmp.lt.s32.totalorder %v654, %v680
      %vm913 = vcmp.lt.s32.totalorder %v655, %v680
      %vm914 = vcmp.lt.s32.totalorder %v656, %v680
      %vm915 = vcmp.lt.s32.totalorder %v657, %v680
      %vm916 = vcmp.lt.s32.totalorder %v658, %v680
      %vm917 = vcmp.lt.s32.totalorder %v659, %v680
      %vm918 = vcmp.lt.s32.totalorder %v660, %v680
      %vm919 = vcmp.lt.s32.totalorder %v661, %v680
      %vm920 = vcmp.lt.s32.totalorder %v662, %v680
      %vm921 = vcmp.lt.s32.totalorder %v663, %v680
      %vm922 = vcmp.lt.s32.totalorder %v664, %v680
      %vm923 = vcmp.lt.s32.totalorder %v665, %v680
      %vm924 = vcmp.lt.s32.totalorder %v666, %v680
      %vm925 = vcmp.lt.s32.totalorder %v667, %v680
      %vm926 = vcmp.lt.s32.totalorder %v668, %v680
      %vm927 = vcmp.lt.s32.totalorder %v669, %v680
      %vm928 = vcmp.lt.s32.totalorder %v670, %v680
      %vm929 = vcmp.lt.s32.totalorder %v671, %v680
      %vm930 = vcmp.lt.s32.totalorder %v672, %v680
      %vm931 = vcmp.lt.s32.totalorder %v673, %v680
      %vm932 = vcmp.lt.s32.totalorder %v674, %v680
      %vm933 = vcmp.lt.s32.totalorder %v675, %v680
      %vm934 = vcmp.lt.s32.totalorder %v676, %v680
      %vm935 = vcmp.lt.s32.totalorder %v677, %v680
      %vm936 = vcmp.lt.s32.totalorder %v678, %v680
      %v937 = vld [vmem:[%s349] sm:$0xff]
      %v938 = vld [vmem:[%s349 + $0x8] sm:$0xff]
      %v939 = vld [vmem:[%s349 + $0x10] sm:$0xff]
      %v940 = vld [vmem:[%s349 + $0x18] sm:$0xff]
      %v941 = vld [vmem:[%s349 + $0x20] sm:$0xff]
      %v942 = vld [vmem:[%s349 + $0x28] sm:$0xff]
      %v943 = vld [vmem:[%s349 + $0x30] sm:$0xff]
      %v944 = vld [vmem:[%s349 + $0x38] sm:$0xff]
      %v945 = vld [vmem:[%s349 + $0x40] sm:$0xff]
      %v946 = vld [vmem:[%s349 + $0x48] sm:$0xff]
      %v947 = vld [vmem:[%s349 + $0x50] sm:$0xff]
      %v948 = vld [vmem:[%s349 + $0x58] sm:$0xff]
      %v949 = vld [vmem:[%s349 + $0x60] sm:$0xff]
      %v950 = vld [vmem:[%s349 + $0x68] sm:$0xff]
      %v951 = vld [vmem:[%s349 + $0x70] sm:$0xff]
      %v952 = vld [vmem:[%s349 + $0x78] sm:$0xff]
      %v953 = vld [vmem:[%s349 + $0x80] sm:$0xff]
      %v954 = vld [vmem:[%s349 + $0x88] sm:$0xff]
      %v955 = vld [vmem:[%s349 + $0x90] sm:$0xff]
      %v956 = vld [vmem:[%s349 + $0x98] sm:$0xff]
      %v957 = vld [vmem:[%s349 + $0xa0] sm:$0xff]
      %v958 = vld [vmem:[%s349 + $0xa8] sm:$0xff]
      %v959 = vld [vmem:[%s349 + $0xb0] sm:$0xff]
      %v960 = vld [vmem:[%s349 + $0xb8] sm:$0xff]
      %v961 = vld [vmem:[%s349 + $0xc0] sm:$0xff]
      %v962 = vld [vmem:[%s349 + $0xc8] sm:$0xff]
      %v963 = vld [vmem:[%s349 + $0xd0] sm:$0xff]
      %v964 = vld [vmem:[%s349 + $0xd8] sm:$0xff]
      %v965 = vld [vmem:[%s349 + $0xe0] sm:$0xff]
      %v966 = vld [vmem:[%s349 + $0xe8] sm:$0xff]
      %v967 = vld [vmem:[%s349 + $0xf0] sm:$0xff]
      %v968 = vld [vmem:[%s349 + $0xf8] sm:$0xff]
      %v969 = vld [vmem:[%s349 + $0x100] sm:$0xff]
      %v970 = vld [vmem:[%s349 + $0x108] sm:$0xff]
      %v971 = vld [vmem:[%s349 + $0x110] sm:$0xff]
      %v972 = vld [vmem:[%s349 + $0x118] sm:$0xff]
      %v973 = vld [vmem:[%s349 + $0x120] sm:$0xff]
      %v974 = vld [vmem:[%s349 + $0x128] sm:$0xff]
      %v975 = vld [vmem:[%s349 + $0x130] sm:$0xff]
      %v976 = vld [vmem:[%s349 + $0x138] sm:$0xff]
      %v977 = vld [vmem:[%s349 + $0x140] sm:$0xff]
      %v978 = vld [vmem:[%s349 + $0x148] sm:$0xff]
      %v979 = vld [vmem:[%s349 + $0x150] sm:$0xff]
      %v980 = vld [vmem:[%s349 + $0x158] sm:$0xff]
      %v981 = vld [vmem:[%s349 + $0x160] sm:$0xff]
      %v982 = vld [vmem:[%s349 + $0x168] sm:$0xff]
      %v983 = vld [vmem:[%s349 + $0x170] sm:$0xff]
      %v984 = vld [vmem:[%s349 + $0x178] sm:$0xff]
      %v985 = vld [vmem:[%s349 + $0x180] sm:$0xff]
      %v986 = vld [vmem:[%s349 + $0x188] sm:$0xff]
      %v987 = vld [vmem:[%s349 + $0x190] sm:$0xff]
      %v988 = vld [vmem:[%s349 + $0x198] sm:$0xff]
      %v989 = vld [vmem:[%s349 + $0x1a0] sm:$0xff]
      %v990 = vld [vmem:[%s349 + $0x1a8] sm:$0xff]
      %v991 = vld [vmem:[%s349 + $0x1b0] sm:$0xff]
      %v992 = vld [vmem:[%s349 + $0x1b8] sm:$0xff]
      %v993 = vld [vmem:[%s349 + $0x1c0] sm:$0xff]
      %v994 = vld [vmem:[%s349 + $0x1c8] sm:$0xff]
      %v995 = vld [vmem:[%s349 + $0x1d0] sm:$0xff]
      %v996 = vld [vmem:[%s349 + $0x1d8] sm:$0xff]
      %v997 = vld [vmem:[%s349 + $0x1e0] sm:$0xff]
      %v998 = vld [vmem:[%s349 + $0x1e8] sm:$0xff]
      %v999 = vld [vmem:[%s349 + $0x1f0] sm:$0xff]
      %v1000 = vld [vmem:[%s349 + $0x1f8] sm:$0xff]
      %v1001 = vld [vmem:[%s349 + $0x200] sm:$0xff]
      %v1002 = vld [vmem:[%s349 + $0x208] sm:$0xff]
      %v1003 = vld [vmem:[%s349 + $0x210] sm:$0xff]
      %v1004 = vld [vmem:[%s349 + $0x218] sm:$0xff]
      %v1005 = vld [vmem:[%s349 + $0x220] sm:$0xff]
      %v1006 = vld [vmem:[%s349 + $0x228] sm:$0xff]
      %v1007 = vld [vmem:[%s349 + $0x230] sm:$0xff]
      %v1008 = vld [vmem:[%s349 + $0x238] sm:$0xff]
      %v1009 = vld [vmem:[%s349 + $0x240] sm:$0xff]
      %v1010 = vld [vmem:[%s349 + $0x248] sm:$0xff]
      %v1011 = vld [vmem:[%s349 + $0x250] sm:$0xff]
      %v1012 = vld [vmem:[%s349 + $0x258] sm:$0xff]
      %v1013 = vld [vmem:[%s349 + $0x260] sm:$0xff]
      %v1014 = vld [vmem:[%s349 + $0x268] sm:$0xff]
      %v1015 = vld [vmem:[%s349 + $0x270] sm:$0xff]
      %v1016 = vld [vmem:[%s349 + $0x278] sm:$0xff]
      %v1017 = vld [vmem:[%s349 + $0x280] sm:$0xff]
      %v1018 = vld [vmem:[%s349 + $0x288] sm:$0xff]
      %v1019 = vld [vmem:[%s349 + $0x290] sm:$0xff]
      %v1020 = vld [vmem:[%s349 + $0x298] sm:$0xff]
      %v1021 = vld [vmem:[%s349 + $0x2a0] sm:$0xff]
      %v1022 = vld [vmem:[%s349 + $0x2a8] sm:$0xff]
      %v1023 = vld [vmem:[%s349 + $0x2b0] sm:$0xff]
      %v1024 = vld [vmem:[%s349 + $0x2b8] sm:$0xff]
      %v1025 = vld [vmem:[%s349 + $0x2c0] sm:$0xff]
      %v1026 = vld [vmem:[%s349 + $0x2c8] sm:$0xff]
      %v1027 = vld [vmem:[%s349 + $0x2d0] sm:$0xff]
      %v1028 = vld [vmem:[%s349 + $0x2d8] sm:$0xff]
      %v1029 = vld [vmem:[%s349 + $0x2e0] sm:$0xff]
      %v1030 = vld [vmem:[%s349 + $0x2e8] sm:$0xff]
      %v1031 = vld [vmem:[%s349 + $0x2f0] sm:$0xff]
      %v1032 = vld [vmem:[%s349 + $0x2f8] sm:$0xff]
      %v1033 = vld [vmem:[%s349 + $0x300] sm:$0xff]
      %v1034 = vld [vmem:[%s349 + $0x308] sm:$0xff]
      %v1035 = vld [vmem:[%s349 + $0x310] sm:$0xff]
      %v1036 = vld [vmem:[%s349 + $0x318] sm:$0xff]
      %v1037 = vld [vmem:[%s349 + $0x320] sm:$0xff]
      %v1038 = vld [vmem:[%s349 + $0x328] sm:$0xff]
      %v1039 = vld [vmem:[%s349 + $0x330] sm:$0xff]
      %v1040 = vld [vmem:[%s349 + $0x338] sm:$0xff]
      %v1041 = vld [vmem:[%s349 + $0x340] sm:$0xff]
      %v1042 = vld [vmem:[%s349 + $0x348] sm:$0xff]
      %v1043 = vld [vmem:[%s349 + $0x350] sm:$0xff]
      %v1044 = vld [vmem:[%s349 + $0x358] sm:$0xff]
      %v1045 = vld [vmem:[%s349 + $0x360] sm:$0xff]
      %v1046 = vld [vmem:[%s349 + $0x368] sm:$0xff]
      %v1047 = vld [vmem:[%s349 + $0x370] sm:$0xff]
      %v1048 = vld [vmem:[%s349 + $0x378] sm:$0xff]
      %v1049 = vld [vmem:[%s349 + $0x380] sm:$0xff]
      %v1050 = vld [vmem:[%s349 + $0x388] sm:$0xff]
      %v1051 = vld [vmem:[%s349 + $0x390] sm:$0xff]
      %v1052 = vld [vmem:[%s349 + $0x398] sm:$0xff]
      %v1053 = vld [vmem:[%s349 + $0x3a0] sm:$0xff]
      %v1054 = vld [vmem:[%s349 + $0x3a8] sm:$0xff]
      %v1055 = vld [vmem:[%s349 + $0x3b0] sm:$0xff]
      %v1056 = vld [vmem:[%s349 + $0x3b8] sm:$0xff]
      %v1057 = vld [vmem:[%s349 + $0x3c0] sm:$0xff]
      %v1058 = vld [vmem:[%s349 + $0x3c8] sm:$0xff]
      %v1059 = vld [vmem:[%s349 + $0x3d0] sm:$0xff]
      %v1060 = vld [vmem:[%s349 + $0x3d8] sm:$0xff]
      %v1061 = vld [vmem:[%s349 + $0x3e0] sm:$0xff]
      %v1062 = vld [vmem:[%s349 + $0x3e8] sm:$0xff]
      %v1063 = vld [vmem:[%s349 + $0x3f0] sm:$0xff]
      %v1064 = vld [vmem:[%s349 + $0x3f8] sm:$0xff]
      %v1065 = vld [vmem:[%s349 + $0x400] sm:$0xff]
      %v1066 = vld [vmem:[%s349 + $0x408] sm:$0xff]
      %v1067 = vld [vmem:[%s349 + $0x410] sm:$0xff]
      %v1068 = vld [vmem:[%s349 + $0x418] sm:$0xff]
      %v1069 = vld [vmem:[%s349 + $0x420] sm:$0xff]
      %v1070 = vld [vmem:[%s349 + $0x428] sm:$0xff]
      %v1071 = vld [vmem:[%s349 + $0x430] sm:$0xff]
      %v1072 = vld [vmem:[%s349 + $0x438] sm:$0xff]
      %v1073 = vld [vmem:[%s349 + $0x440] sm:$0xff]
      %v1074 = vld [vmem:[%s349 + $0x448] sm:$0xff]
      %v1075 = vld [vmem:[%s349 + $0x450] sm:$0xff]
      %v1076 = vld [vmem:[%s349 + $0x458] sm:$0xff]
      %v1077 = vld [vmem:[%s349 + $0x460] sm:$0xff]
      %v1078 = vld [vmem:[%s349 + $0x468] sm:$0xff]
      %v1079 = vld [vmem:[%s349 + $0x470] sm:$0xff]
      %v1080 = vld [vmem:[%s349 + $0x478] sm:$0xff]
      %v1081 = vld [vmem:[%s349 + $0x480] sm:$0xff]
      %v1082 = vld [vmem:[%s349 + $0x488] sm:$0xff]
      %v1083 = vld [vmem:[%s349 + $0x490] sm:$0xff]
      %v1084 = vld [vmem:[%s349 + $0x498] sm:$0xff]
      %v1085 = vld [vmem:[%s349 + $0x4a0] sm:$0xff]
      %v1086 = vld [vmem:[%s349 + $0x4a8] sm:$0xff]
      %v1087 = vld [vmem:[%s349 + $0x4b0] sm:$0xff]
      %v1088 = vld [vmem:[%s349 + $0x4b8] sm:$0xff]
      %v1089 = vld [vmem:[%s349 + $0x4c0] sm:$0xff]
      %v1090 = vld [vmem:[%s349 + $0x4c8] sm:$0xff]
      %v1091 = vld [vmem:[%s349 + $0x4d0] sm:$0xff]
      %v1092 = vld [vmem:[%s349 + $0x4d8] sm:$0xff]
      %v1093 = vld [vmem:[%s349 + $0x4e0] sm:$0xff]
      %v1094 = vld [vmem:[%s349 + $0x4e8] sm:$0xff]
      %v1095 = vld [vmem:[%s349 + $0x4f0] sm:$0xff]
      %v1096 = vld [vmem:[%s349 + $0x4f8] sm:$0xff]
      %v1097 = vld [vmem:[%s349 + $0x500] sm:$0xff]
      %v1098 = vld [vmem:[%s349 + $0x508] sm:$0xff]
      %v1099 = vld [vmem:[%s349 + $0x510] sm:$0xff]
      %v1100 = vld [vmem:[%s349 + $0x518] sm:$0xff]
      %v1101 = vld [vmem:[%s349 + $0x520] sm:$0xff]
      %v1102 = vld [vmem:[%s349 + $0x528] sm:$0xff]
      %v1103 = vld [vmem:[%s349 + $0x530] sm:$0xff]
      %v1104 = vld [vmem:[%s349 + $0x538] sm:$0xff]
      %v1105 = vld [vmem:[%s349 + $0x540] sm:$0xff]
      %v1106 = vld [vmem:[%s349 + $0x548] sm:$0xff]
      %v1107 = vld [vmem:[%s349 + $0x550] sm:$0xff]
      %v1108 = vld [vmem:[%s349 + $0x558] sm:$0xff]
      %v1109 = vld [vmem:[%s349 + $0x560] sm:$0xff]
      %v1110 = vld [vmem:[%s349 + $0x568] sm:$0xff]
      %v1111 = vld [vmem:[%s349 + $0x570] sm:$0xff]
      %v1112 = vld [vmem:[%s349 + $0x578] sm:$0xff]
      %v1113 = vld [vmem:[%s349 + $0x580] sm:$0xff]
      %v1114 = vld [vmem:[%s349 + $0x588] sm:$0xff]
      %v1115 = vld [vmem:[%s349 + $0x590] sm:$0xff]
      %v1116 = vld [vmem:[%s349 + $0x598] sm:$0xff]
      %v1117 = vld [vmem:[%s349 + $0x5a0] sm:$0xff]
      %v1118 = vld [vmem:[%s349 + $0x5a8] sm:$0xff]
      %v1119 = vld [vmem:[%s349 + $0x5b0] sm:$0xff]
      %v1120 = vld [vmem:[%s349 + $0x5b8] sm:$0xff]
      %v1121 = vld [vmem:[%s349 + $0x5c0] sm:$0xff]
      %v1122 = vld [vmem:[%s349 + $0x5c8] sm:$0xff]
      %v1123 = vld [vmem:[%s349 + $0x5d0] sm:$0xff]
      %v1124 = vld [vmem:[%s349 + $0x5d8] sm:$0xff]
      %v1125 = vld [vmem:[%s349 + $0x5e0] sm:$0xff]
      %v1126 = vld [vmem:[%s349 + $0x5e8] sm:$0xff]
      %v1127 = vld [vmem:[%s349 + $0x5f0] sm:$0xff]
      %v1128 = vld [vmem:[%s349 + $0x5f8] sm:$0xff]
      %v1129 = vld [vmem:[%s349 + $0x600] sm:$0xff]
      %v1130 = vld [vmem:[%s349 + $0x608] sm:$0xff]
      %v1131 = vld [vmem:[%s349 + $0x610] sm:$0xff]
      %v1132 = vld [vmem:[%s349 + $0x618] sm:$0xff]
      %v1133 = vld [vmem:[%s349 + $0x620] sm:$0xff]
      %v1134 = vld [vmem:[%s349 + $0x628] sm:$0xff]
      %v1135 = vld [vmem:[%s349 + $0x630] sm:$0xff]
      %v1136 = vld [vmem:[%s349 + $0x638] sm:$0xff]
      %v1137 = vld [vmem:[%s349 + $0x640] sm:$0xff]
      %v1138 = vld [vmem:[%s349 + $0x648] sm:$0xff]
      %v1139 = vld [vmem:[%s349 + $0x650] sm:$0xff]
      %v1140 = vld [vmem:[%s349 + $0x658] sm:$0xff]
      %v1141 = vld [vmem:[%s349 + $0x660] sm:$0xff]
      %v1142 = vld [vmem:[%s349 + $0x668] sm:$0xff]
      %v1143 = vld [vmem:[%s349 + $0x670] sm:$0xff]
      %v1144 = vld [vmem:[%s349 + $0x678] sm:$0xff]
      %v1145 = vld [vmem:[%s349 + $0x680] sm:$0xff]
      %v1146 = vld [vmem:[%s349 + $0x688] sm:$0xff]
      %v1147 = vld [vmem:[%s349 + $0x690] sm:$0xff]
      %v1148 = vld [vmem:[%s349 + $0x698] sm:$0xff]
      %v1149 = vld [vmem:[%s349 + $0x6a0] sm:$0xff]
      %v1150 = vld [vmem:[%s349 + $0x6a8] sm:$0xff]
      %v1151 = vld [vmem:[%s349 + $0x6b0] sm:$0xff]
      %v1152 = vld [vmem:[%s349 + $0x6b8] sm:$0xff]
      %v1153 = vld [vmem:[%s349 + $0x6c0] sm:$0xff]
      %v1154 = vld [vmem:[%s349 + $0x6c8] sm:$0xff]
      %v1155 = vld [vmem:[%s349 + $0x6d0] sm:$0xff]
      %v1156 = vld [vmem:[%s349 + $0x6d8] sm:$0xff]
      %v1157 = vld [vmem:[%s349 + $0x6e0] sm:$0xff]
      %v1158 = vld [vmem:[%s349 + $0x6e8] sm:$0xff]
      %v1159 = vld [vmem:[%s349 + $0x6f0] sm:$0xff]
      %v1160 = vld [vmem:[%s349 + $0x6f8] sm:$0xff]
      %v1161 = vld [vmem:[%s349 + $0x700] sm:$0xff]
      %v1162 = vld [vmem:[%s349 + $0x708] sm:$0xff]
      %v1163 = vld [vmem:[%s349 + $0x710] sm:$0xff]
      %v1164 = vld [vmem:[%s349 + $0x718] sm:$0xff]
      %v1165 = vld [vmem:[%s349 + $0x720] sm:$0xff]
      %v1166 = vld [vmem:[%s349 + $0x728] sm:$0xff]
      %v1167 = vld [vmem:[%s349 + $0x730] sm:$0xff]
      %v1168 = vld [vmem:[%s349 + $0x738] sm:$0xff]
      %v1169 = vld [vmem:[%s349 + $0x740] sm:$0xff]
      %v1170 = vld [vmem:[%s349 + $0x748] sm:$0xff]
      %v1171 = vld [vmem:[%s349 + $0x750] sm:$0xff]
      %v1172 = vld [vmem:[%s349 + $0x758] sm:$0xff]
      %v1173 = vld [vmem:[%s349 + $0x760] sm:$0xff]
      %v1174 = vld [vmem:[%s349 + $0x768] sm:$0xff]
      %v1175 = vld [vmem:[%s349 + $0x770] sm:$0xff]
      %v1176 = vld [vmem:[%s349 + $0x778] sm:$0xff]
      %v1177 = vld [vmem:[%s349 + $0x780] sm:$0xff]
      %v1178 = vld [vmem:[%s349 + $0x788] sm:$0xff]
      %v1179 = vld [vmem:[%s349 + $0x790] sm:$0xff]
      %v1180 = vld [vmem:[%s349 + $0x798] sm:$0xff]
      %v1181 = vld [vmem:[%s349 + $0x7a0] sm:$0xff]
      %v1182 = vld [vmem:[%s349 + $0x7a8] sm:$0xff]
      %v1183 = vld [vmem:[%s349 + $0x7b0] sm:$0xff]
      %v1184 = vld [vmem:[%s349 + $0x7b8] sm:$0xff]
      %v1185 = vld [vmem:[%s349 + $0x7c0] sm:$0xff]
      %v1186 = vld [vmem:[%s349 + $0x7c8] sm:$0xff]
      %v1187 = vld [vmem:[%s349 + $0x7d0] sm:$0xff]
      %v1188 = vld [vmem:[%s349 + $0x7d8] sm:$0xff]
      %v1189 = vld [vmem:[%s349 + $0x7e0] sm:$0xff]
      %v1190 = vld [vmem:[%s349 + $0x7e8] sm:$0xff]
      %v1191 = vld [vmem:[%s349 + $0x7f0] sm:$0xff]
      %v1192 = vld [vmem:[%s349 + $0x7f8] sm:$0xff]
      %v1193 = vld [vmem:[%s365] sm:$0xff]
      %v1194 = vld [vmem:[%s365 + $0x8] sm:$0xff]
      %v1195 = vld [vmem:[%s365 + $0x10] sm:$0xff]
      %v1196 = vld [vmem:[%s365 + $0x18] sm:$0xff]
      %v1197 = vld [vmem:[%s365 + $0x20] sm:$0xff]
      %v1198 = vld [vmem:[%s365 + $0x28] sm:$0xff]
      %v1199 = vld [vmem:[%s365 + $0x30] sm:$0xff]
      %v1200 = vld [vmem:[%s365 + $0x38] sm:$0xff]
      %v1201 = vld [vmem:[%s365 + $0x40] sm:$0xff]
      %v1202 = vld [vmem:[%s365 + $0x48] sm:$0xff]
      %v1203 = vld [vmem:[%s365 + $0x50] sm:$0xff]
      %v1204 = vld [vmem:[%s365 + $0x58] sm:$0xff]
      %v1205 = vld [vmem:[%s365 + $0x60] sm:$0xff]
      %v1206 = vld [vmem:[%s365 + $0x68] sm:$0xff]
      %v1207 = vld [vmem:[%s365 + $0x70] sm:$0xff]
      %v1208 = vld [vmem:[%s365 + $0x78] sm:$0xff]
      %v1209 = vld [vmem:[%s365 + $0x80] sm:$0xff]
      %v1210 = vld [vmem:[%s365 + $0x88] sm:$0xff]
      %v1211 = vld [vmem:[%s365 + $0x90] sm:$0xff]
      %v1212 = vld [vmem:[%s365 + $0x98] sm:$0xff]
      %v1213 = vld [vmem:[%s365 + $0xa0] sm:$0xff]
      %v1214 = vld [vmem:[%s365 + $0xa8] sm:$0xff]
      %v1215 = vld [vmem:[%s365 + $0xb0] sm:$0xff]
      %v1216 = vld [vmem:[%s365 + $0xb8] sm:$0xff]
      %v1217 = vld [vmem:[%s365 + $0xc0] sm:$0xff]
      %v1218 = vld [vmem:[%s365 + $0xc8] sm:$0xff]
      %v1219 = vld [vmem:[%s365 + $0xd0] sm:$0xff]
      %v1220 = vld [vmem:[%s365 + $0xd8] sm:$0xff]
      %v1221 = vld [vmem:[%s365 + $0xe0] sm:$0xff]
      %v1222 = vld [vmem:[%s365 + $0xe8] sm:$0xff]
      %v1223 = vld [vmem:[%s365 + $0xf0] sm:$0xff]
      %v1224 = vld [vmem:[%s365 + $0xf8] sm:$0xff]
      %v1225 = vld [vmem:[%s365 + $0x100] sm:$0xff]
      %v1226 = vld [vmem:[%s365 + $0x108] sm:$0xff]
      %v1227 = vld [vmem:[%s365 + $0x110] sm:$0xff]
      %v1228 = vld [vmem:[%s365 + $0x118] sm:$0xff]
      %v1229 = vld [vmem:[%s365 + $0x120] sm:$0xff]
      %v1230 = vld [vmem:[%s365 + $0x128] sm:$0xff]
      %v1231 = vld [vmem:[%s365 + $0x130] sm:$0xff]
      %v1232 = vld [vmem:[%s365 + $0x138] sm:$0xff]
      %v1233 = vld [vmem:[%s365 + $0x140] sm:$0xff]
      %v1234 = vld [vmem:[%s365 + $0x148] sm:$0xff]
      %v1235 = vld [vmem:[%s365 + $0x150] sm:$0xff]
      %v1236 = vld [vmem:[%s365 + $0x158] sm:$0xff]
      %v1237 = vld [vmem:[%s365 + $0x160] sm:$0xff]
      %v1238 = vld [vmem:[%s365 + $0x168] sm:$0xff]
      %v1239 = vld [vmem:[%s365 + $0x170] sm:$0xff]
      %v1240 = vld [vmem:[%s365 + $0x178] sm:$0xff]
      %v1241 = vld [vmem:[%s365 + $0x180] sm:$0xff]
      %v1242 = vld [vmem:[%s365 + $0x188] sm:$0xff]
      %v1243 = vld [vmem:[%s365 + $0x190] sm:$0xff]
      %v1244 = vld [vmem:[%s365 + $0x198] sm:$0xff]
      %v1245 = vld [vmem:[%s365 + $0x1a0] sm:$0xff]
      %v1246 = vld [vmem:[%s365 + $0x1a8] sm:$0xff]
      %v1247 = vld [vmem:[%s365 + $0x1b0] sm:$0xff]
      %v1248 = vld [vmem:[%s365 + $0x1b8] sm:$0xff]
      %v1249 = vld [vmem:[%s365 + $0x1c0] sm:$0xff]
      %v1250 = vld [vmem:[%s365 + $0x1c8] sm:$0xff]
      %v1251 = vld [vmem:[%s365 + $0x1d0] sm:$0xff]
      %v1252 = vld [vmem:[%s365 + $0x1d8] sm:$0xff]
      %v1253 = vld [vmem:[%s365 + $0x1e0] sm:$0xff]
      %v1254 = vld [vmem:[%s365 + $0x1e8] sm:$0xff]
      %v1255 = vld [vmem:[%s365 + $0x1f0] sm:$0xff]
      %v1256 = vld [vmem:[%s365 + $0x1f8] sm:$0xff]
      %v1257 = vld [vmem:[%s365 + $0x200] sm:$0xff]
      %v1258 = vld [vmem:[%s365 + $0x208] sm:$0xff]
      %v1259 = vld [vmem:[%s365 + $0x210] sm:$0xff]
      %v1260 = vld [vmem:[%s365 + $0x218] sm:$0xff]
      %v1261 = vld [vmem:[%s365 + $0x220] sm:$0xff]
      %v1262 = vld [vmem:[%s365 + $0x228] sm:$0xff]
      %v1263 = vld [vmem:[%s365 + $0x230] sm:$0xff]
      %v1264 = vld [vmem:[%s365 + $0x238] sm:$0xff]
      %v1265 = vld [vmem:[%s365 + $0x240] sm:$0xff]
      %v1266 = vld [vmem:[%s365 + $0x248] sm:$0xff]
      %v1267 = vld [vmem:[%s365 + $0x250] sm:$0xff]
      %v1268 = vld [vmem:[%s365 + $0x258] sm:$0xff]
      %v1269 = vld [vmem:[%s365 + $0x260] sm:$0xff]
      %v1270 = vld [vmem:[%s365 + $0x268] sm:$0xff]
      %v1271 = vld [vmem:[%s365 + $0x270] sm:$0xff]
      %v1272 = vld [vmem:[%s365 + $0x278] sm:$0xff]
      %v1273 = vld [vmem:[%s365 + $0x280] sm:$0xff]
      %v1274 = vld [vmem:[%s365 + $0x288] sm:$0xff]
      %v1275 = vld [vmem:[%s365 + $0x290] sm:$0xff]
      %v1276 = vld [vmem:[%s365 + $0x298] sm:$0xff]
      %v1277 = vld [vmem:[%s365 + $0x2a0] sm:$0xff]
      %v1278 = vld [vmem:[%s365 + $0x2a8] sm:$0xff]
      %v1279 = vld [vmem:[%s365 + $0x2b0] sm:$0xff]
      %v1280 = vld [vmem:[%s365 + $0x2b8] sm:$0xff]
      %v1281 = vld [vmem:[%s365 + $0x2c0] sm:$0xff]
      %v1282 = vld [vmem:[%s365 + $0x2c8] sm:$0xff]
      %v1283 = vld [vmem:[%s365 + $0x2d0] sm:$0xff]
      %v1284 = vld [vmem:[%s365 + $0x2d8] sm:$0xff]
      %v1285 = vld [vmem:[%s365 + $0x2e0] sm:$0xff]
      %v1286 = vld [vmem:[%s365 + $0x2e8] sm:$0xff]
      %v1287 = vld [vmem:[%s365 + $0x2f0] sm:$0xff]
      %v1288 = vld [vmem:[%s365 + $0x2f8] sm:$0xff]
      %v1289 = vld [vmem:[%s365 + $0x300] sm:$0xff]
      %v1290 = vld [vmem:[%s365 + $0x308] sm:$0xff]
      %v1291 = vld [vmem:[%s365 + $0x310] sm:$0xff]
      %v1292 = vld [vmem:[%s365 + $0x318] sm:$0xff]
      %v1293 = vld [vmem:[%s365 + $0x320] sm:$0xff]
      %v1294 = vld [vmem:[%s365 + $0x328] sm:$0xff]
      %v1295 = vld [vmem:[%s365 + $0x330] sm:$0xff]
      %v1296 = vld [vmem:[%s365 + $0x338] sm:$0xff]
      %v1297 = vld [vmem:[%s365 + $0x340] sm:$0xff]
      %v1298 = vld [vmem:[%s365 + $0x348] sm:$0xff]
      %v1299 = vld [vmem:[%s365 + $0x350] sm:$0xff]
      %v1300 = vld [vmem:[%s365 + $0x358] sm:$0xff]
      %v1301 = vld [vmem:[%s365 + $0x360] sm:$0xff]
      %v1302 = vld [vmem:[%s365 + $0x368] sm:$0xff]
      %v1303 = vld [vmem:[%s365 + $0x370] sm:$0xff]
      %v1304 = vld [vmem:[%s365 + $0x378] sm:$0xff]
      %v1305 = vld [vmem:[%s365 + $0x380] sm:$0xff]
      %v1306 = vld [vmem:[%s365 + $0x388] sm:$0xff]
      %v1307 = vld [vmem:[%s365 + $0x390] sm:$0xff]
      %v1308 = vld [vmem:[%s365 + $0x398] sm:$0xff]
      %v1309 = vld [vmem:[%s365 + $0x3a0] sm:$0xff]
      %v1310 = vld [vmem:[%s365 + $0x3a8] sm:$0xff]
      %v1311 = vld [vmem:[%s365 + $0x3b0] sm:$0xff]
      %v1312 = vld [vmem:[%s365 + $0x3b8] sm:$0xff]
      %v1313 = vld [vmem:[%s365 + $0x3c0] sm:$0xff]
      %v1314 = vld [vmem:[%s365 + $0x3c8] sm:$0xff]
      %v1315 = vld [vmem:[%s365 + $0x3d0] sm:$0xff]
      %v1316 = vld [vmem:[%s365 + $0x3d8] sm:$0xff]
      %v1317 = vld [vmem:[%s365 + $0x3e0] sm:$0xff]
      %v1318 = vld [vmem:[%s365 + $0x3e8] sm:$0xff]
      %v1319 = vld [vmem:[%s365 + $0x3f0] sm:$0xff]
      %v1320 = vld [vmem:[%s365 + $0x3f8] sm:$0xff]
      %v1321 = vld [vmem:[%s365 + $0x400] sm:$0xff]
      %v1322 = vld [vmem:[%s365 + $0x408] sm:$0xff]
      %v1323 = vld [vmem:[%s365 + $0x410] sm:$0xff]
      %v1324 = vld [vmem:[%s365 + $0x418] sm:$0xff]
      %v1325 = vld [vmem:[%s365 + $0x420] sm:$0xff]
      %v1326 = vld [vmem:[%s365 + $0x428] sm:$0xff]
      %v1327 = vld [vmem:[%s365 + $0x430] sm:$0xff]
      %v1328 = vld [vmem:[%s365 + $0x438] sm:$0xff]
      %v1329 = vld [vmem:[%s365 + $0x440] sm:$0xff]
      %v1330 = vld [vmem:[%s365 + $0x448] sm:$0xff]
      %v1331 = vld [vmem:[%s365 + $0x450] sm:$0xff]
      %v1332 = vld [vmem:[%s365 + $0x458] sm:$0xff]
      %v1333 = vld [vmem:[%s365 + $0x460] sm:$0xff]
      %v1334 = vld [vmem:[%s365 + $0x468] sm:$0xff]
      %v1335 = vld [vmem:[%s365 + $0x470] sm:$0xff]
      %v1336 = vld [vmem:[%s365 + $0x478] sm:$0xff]
      %v1337 = vld [vmem:[%s365 + $0x480] sm:$0xff]
      %v1338 = vld [vmem:[%s365 + $0x488] sm:$0xff]
      %v1339 = vld [vmem:[%s365 + $0x490] sm:$0xff]
      %v1340 = vld [vmem:[%s365 + $0x498] sm:$0xff]
      %v1341 = vld [vmem:[%s365 + $0x4a0] sm:$0xff]
      %v1342 = vld [vmem:[%s365 + $0x4a8] sm:$0xff]
      %v1343 = vld [vmem:[%s365 + $0x4b0] sm:$0xff]
      %v1344 = vld [vmem:[%s365 + $0x4b8] sm:$0xff]
      %v1345 = vld [vmem:[%s365 + $0x4c0] sm:$0xff]
      %v1346 = vld [vmem:[%s365 + $0x4c8] sm:$0xff]
      %v1347 = vld [vmem:[%s365 + $0x4d0] sm:$0xff]
      %v1348 = vld [vmem:[%s365 + $0x4d8] sm:$0xff]
      %v1349 = vld [vmem:[%s365 + $0x4e0] sm:$0xff]
      %v1350 = vld [vmem:[%s365 + $0x4e8] sm:$0xff]
      %v1351 = vld [vmem:[%s365 + $0x4f0] sm:$0xff]
      %v1352 = vld [vmem:[%s365 + $0x4f8] sm:$0xff]
      %v1353 = vld [vmem:[%s365 + $0x500] sm:$0xff]
      %v1354 = vld [vmem:[%s365 + $0x508] sm:$0xff]
      %v1355 = vld [vmem:[%s365 + $0x510] sm:$0xff]
      %v1356 = vld [vmem:[%s365 + $0x518] sm:$0xff]
      %v1357 = vld [vmem:[%s365 + $0x520] sm:$0xff]
      %v1358 = vld [vmem:[%s365 + $0x528] sm:$0xff]
      %v1359 = vld [vmem:[%s365 + $0x530] sm:$0xff]
      %v1360 = vld [vmem:[%s365 + $0x538] sm:$0xff]
      %v1361 = vld [vmem:[%s365 + $0x540] sm:$0xff]
      %v1362 = vld [vmem:[%s365 + $0x548] sm:$0xff]
      %v1363 = vld [vmem:[%s365 + $0x550] sm:$0xff]
      %v1364 = vld [vmem:[%s365 + $0x558] sm:$0xff]
      %v1365 = vld [vmem:[%s365 + $0x560] sm:$0xff]
      %v1366 = vld [vmem:[%s365 + $0x568] sm:$0xff]
      %v1367 = vld [vmem:[%s365 + $0x570] sm:$0xff]
      %v1368 = vld [vmem:[%s365 + $0x578] sm:$0xff]
      %v1369 = vld [vmem:[%s365 + $0x580] sm:$0xff]
      %v1370 = vld [vmem:[%s365 + $0x588] sm:$0xff]
      %v1371 = vld [vmem:[%s365 + $0x590] sm:$0xff]
      %v1372 = vld [vmem:[%s365 + $0x598] sm:$0xff]
      %v1373 = vld [vmem:[%s365 + $0x5a0] sm:$0xff]
      %v1374 = vld [vmem:[%s365 + $0x5a8] sm:$0xff]
      %v1375 = vld [vmem:[%s365 + $0x5b0] sm:$0xff]
      %v1376 = vld [vmem:[%s365 + $0x5b8] sm:$0xff]
      %v1377 = vld [vmem:[%s365 + $0x5c0] sm:$0xff]
      %v1378 = vld [vmem:[%s365 + $0x5c8] sm:$0xff]
      %v1379 = vld [vmem:[%s365 + $0x5d0] sm:$0xff]
      %v1380 = vld [vmem:[%s365 + $0x5d8] sm:$0xff]
      %v1381 = vld [vmem:[%s365 + $0x5e0] sm:$0xff]
      %v1382 = vld [vmem:[%s365 + $0x5e8] sm:$0xff]
      %v1383 = vld [vmem:[%s365 + $0x5f0] sm:$0xff]
      %v1384 = vld [vmem:[%s365 + $0x5f8] sm:$0xff]
      %v1385 = vld [vmem:[%s365 + $0x600] sm:$0xff]
      %v1386 = vld [vmem:[%s365 + $0x608] sm:$0xff]
      %v1387 = vld [vmem:[%s365 + $0x610] sm:$0xff]
      %v1388 = vld [vmem:[%s365 + $0x618] sm:$0xff]
      %v1389 = vld [vmem:[%s365 + $0x620] sm:$0xff]
      %v1390 = vld [vmem:[%s365 + $0x628] sm:$0xff]
      %v1391 = vld [vmem:[%s365 + $0x630] sm:$0xff]
      %v1392 = vld [vmem:[%s365 + $0x638] sm:$0xff]
      %v1393 = vld [vmem:[%s365 + $0x640] sm:$0xff]
      %v1394 = vld [vmem:[%s365 + $0x648] sm:$0xff]
      %v1395 = vld [vmem:[%s365 + $0x650] sm:$0xff]
      %v1396 = vld [vmem:[%s365 + $0x658] sm:$0xff]
      %v1397 = vld [vmem:[%s365 + $0x660] sm:$0xff]
      %v1398 = vld [vmem:[%s365 + $0x668] sm:$0xff]
      %v1399 = vld [vmem:[%s365 + $0x670] sm:$0xff]
      %v1400 = vld [vmem:[%s365 + $0x678] sm:$0xff]
      %v1401 = vld [vmem:[%s365 + $0x680] sm:$0xff]
      %v1402 = vld [vmem:[%s365 + $0x688] sm:$0xff]
      %v1403 = vld [vmem:[%s365 + $0x690] sm:$0xff]
      %v1404 = vld [vmem:[%s365 + $0x698] sm:$0xff]
      %v1405 = vld [vmem:[%s365 + $0x6a0] sm:$0xff]
      %v1406 = vld [vmem:[%s365 + $0x6a8] sm:$0xff]
      %v1407 = vld [vmem:[%s365 + $0x6b0] sm:$0xff]
      %v1408 = vld [vmem:[%s365 + $0x6b8] sm:$0xff]
      %v1409 = vld [vmem:[%s365 + $0x6c0] sm:$0xff]
      %v1410 = vld [vmem:[%s365 + $0x6c8] sm:$0xff]
      %v1411 = vld [vmem:[%s365 + $0x6d0] sm:$0xff]
      %v1412 = vld [vmem:[%s365 + $0x6d8] sm:$0xff]
      %v1413 = vld [vmem:[%s365 + $0x6e0] sm:$0xff]
      %v1414 = vld [vmem:[%s365 + $0x6e8] sm:$0xff]
      %v1415 = vld [vmem:[%s365 + $0x6f0] sm:$0xff]
      %v1416 = vld [vmem:[%s365 + $0x6f8] sm:$0xff]
      %v1417 = vld [vmem:[%s365 + $0x700] sm:$0xff]
      %v1418 = vld [vmem:[%s365 + $0x708] sm:$0xff]
      %v1419 = vld [vmem:[%s365 + $0x710] sm:$0xff]
      %v1420 = vld [vmem:[%s365 + $0x718] sm:$0xff]
      %v1421 = vld [vmem:[%s365 + $0x720] sm:$0xff]
      %v1422 = vld [vmem:[%s365 + $0x728] sm:$0xff]
      %v1423 = vld [vmem:[%s365 + $0x730] sm:$0xff]
      %v1424 = vld [vmem:[%s365 + $0x738] sm:$0xff]
      %v1425 = vld [vmem:[%s365 + $0x740] sm:$0xff]
      %v1426 = vld [vmem:[%s365 + $0x748] sm:$0xff]
      %v1427 = vld [vmem:[%s365 + $0x750] sm:$0xff]
      %v1428 = vld [vmem:[%s365 + $0x758] sm:$0xff]
      %v1429 = vld [vmem:[%s365 + $0x760] sm:$0xff]
      %v1430 = vld [vmem:[%s365 + $0x768] sm:$0xff]
      %v1431 = vld [vmem:[%s365 + $0x770] sm:$0xff]
      %v1432 = vld [vmem:[%s365 + $0x778] sm:$0xff]
      %v1433 = vld [vmem:[%s365 + $0x780] sm:$0xff]
      %v1434 = vld [vmem:[%s365 + $0x788] sm:$0xff]
      %v1435 = vld [vmem:[%s365 + $0x790] sm:$0xff]
      %v1436 = vld [vmem:[%s365 + $0x798] sm:$0xff]
      %v1437 = vld [vmem:[%s365 + $0x7a0] sm:$0xff]
      %v1438 = vld [vmem:[%s365 + $0x7a8] sm:$0xff]
      %v1439 = vld [vmem:[%s365 + $0x7b0] sm:$0xff]
      %v1440 = vld [vmem:[%s365 + $0x7b8] sm:$0xff]
      %v1441 = vld [vmem:[%s365 + $0x7c0] sm:$0xff]
      %v1442 = vld [vmem:[%s365 + $0x7c8] sm:$0xff]
      %v1443 = vld [vmem:[%s365 + $0x7d0] sm:$0xff]
      %v1444 = vld [vmem:[%s365 + $0x7d8] sm:$0xff]
      %v1445 = vld [vmem:[%s365 + $0x7e0] sm:$0xff]
      %v1446 = vld [vmem:[%s365 + $0x7e8] sm:$0xff]
      %v1447 = vld [vmem:[%s365 + $0x7f0] sm:$0xff]
      %v1448 = vld [vmem:[%s365 + $0x7f8] sm:$0xff]
      %v1449 = vld [vmem:[%s397] sm:$0xff]
      %v1450 = vld [vmem:[%s397 + $0x8] sm:$0xff]
      %v1451 = vld [vmem:[%s397 + $0x10] sm:$0xff]
      %v1452 = vld [vmem:[%s397 + $0x18] sm:$0xff]
      %v1453 = vld [vmem:[%s397 + $0x20] sm:$0xff]
      %v1454 = vld [vmem:[%s397 + $0x28] sm:$0xff]
      %v1455 = vld [vmem:[%s397 + $0x30] sm:$0xff]
      %v1456 = vld [vmem:[%s397 + $0x38] sm:$0xff]
      %v1457 = vld [vmem:[%s397 + $0x40] sm:$0xff]
      %v1458 = vld [vmem:[%s397 + $0x48] sm:$0xff]
      %v1459 = vld [vmem:[%s397 + $0x50] sm:$0xff]
      %v1460 = vld [vmem:[%s397 + $0x58] sm:$0xff]
      %v1461 = vld [vmem:[%s397 + $0x60] sm:$0xff]
      %v1462 = vld [vmem:[%s397 + $0x68] sm:$0xff]
      %v1463 = vld [vmem:[%s397 + $0x70] sm:$0xff]
      %v1464 = vld [vmem:[%s397 + $0x78] sm:$0xff]
      %v1465 = vld [vmem:[%s397 + $0x80] sm:$0xff]
      %v1466 = vld [vmem:[%s397 + $0x88] sm:$0xff]
      %v1467 = vld [vmem:[%s397 + $0x90] sm:$0xff]
      %v1468 = vld [vmem:[%s397 + $0x98] sm:$0xff]
      %v1469 = vld [vmem:[%s397 + $0xa0] sm:$0xff]
      %v1470 = vld [vmem:[%s397 + $0xa8] sm:$0xff]
      %v1471 = vld [vmem:[%s397 + $0xb0] sm:$0xff]
      %v1472 = vld [vmem:[%s397 + $0xb8] sm:$0xff]
      %v1473 = vld [vmem:[%s397 + $0xc0] sm:$0xff]
      %v1474 = vld [vmem:[%s397 + $0xc8] sm:$0xff]
      %v1475 = vld [vmem:[%s397 + $0xd0] sm:$0xff]
      %v1476 = vld [vmem:[%s397 + $0xd8] sm:$0xff]
      %v1477 = vld [vmem:[%s397 + $0xe0] sm:$0xff]
      %v1478 = vld [vmem:[%s397 + $0xe8] sm:$0xff]
      %v1479 = vld [vmem:[%s397 + $0xf0] sm:$0xff]
      %v1480 = vld [vmem:[%s397 + $0xf8] sm:$0xff]
      %v1481 = vld [vmem:[%s397 + $0x100] sm:$0xff]
      %v1482 = vld [vmem:[%s397 + $0x108] sm:$0xff]
      %v1483 = vld [vmem:[%s397 + $0x110] sm:$0xff]
      %v1484 = vld [vmem:[%s397 + $0x118] sm:$0xff]
      %v1485 = vld [vmem:[%s397 + $0x120] sm:$0xff]
      %v1486 = vld [vmem:[%s397 + $0x128] sm:$0xff]
      %v1487 = vld [vmem:[%s397 + $0x130] sm:$0xff]
      %v1488 = vld [vmem:[%s397 + $0x138] sm:$0xff]
      %v1489 = vld [vmem:[%s397 + $0x140] sm:$0xff]
      %v1490 = vld [vmem:[%s397 + $0x148] sm:$0xff]
      %v1491 = vld [vmem:[%s397 + $0x150] sm:$0xff]
      %v1492 = vld [vmem:[%s397 + $0x158] sm:$0xff]
      %v1493 = vld [vmem:[%s397 + $0x160] sm:$0xff]
      %v1494 = vld [vmem:[%s397 + $0x168] sm:$0xff]
      %v1495 = vld [vmem:[%s397 + $0x170] sm:$0xff]
      %v1496 = vld [vmem:[%s397 + $0x178] sm:$0xff]
      %v1497 = vld [vmem:[%s397 + $0x180] sm:$0xff]
      %v1498 = vld [vmem:[%s397 + $0x188] sm:$0xff]
      %v1499 = vld [vmem:[%s397 + $0x190] sm:$0xff]
      %v1500 = vld [vmem:[%s397 + $0x198] sm:$0xff]
      %v1501 = vld [vmem:[%s397 + $0x1a0] sm:$0xff]
      %v1502 = vld [vmem:[%s397 + $0x1a8] sm:$0xff]
      %v1503 = vld [vmem:[%s397 + $0x1b0] sm:$0xff]
      %v1504 = vld [vmem:[%s397 + $0x1b8] sm:$0xff]
      %v1505 = vld [vmem:[%s397 + $0x1c0] sm:$0xff]
      %v1506 = vld [vmem:[%s397 + $0x1c8] sm:$0xff]
      %v1507 = vld [vmem:[%s397 + $0x1d0] sm:$0xff]
      %v1508 = vld [vmem:[%s397 + $0x1d8] sm:$0xff]
      %v1509 = vld [vmem:[%s397 + $0x1e0] sm:$0xff]
      %v1510 = vld [vmem:[%s397 + $0x1e8] sm:$0xff]
      %v1511 = vld [vmem:[%s397 + $0x1f0] sm:$0xff]
      %v1512 = vld [vmem:[%s397 + $0x1f8] sm:$0xff]
      %v1513 = vld [vmem:[%s397 + $0x200] sm:$0xff]
      %v1514 = vld [vmem:[%s397 + $0x208] sm:$0xff]
      %v1515 = vld [vmem:[%s397 + $0x210] sm:$0xff]
      %v1516 = vld [vmem:[%s397 + $0x218] sm:$0xff]
      %v1517 = vld [vmem:[%s397 + $0x220] sm:$0xff]
      %v1518 = vld [vmem:[%s397 + $0x228] sm:$0xff]
      %v1519 = vld [vmem:[%s397 + $0x230] sm:$0xff]
      %v1520 = vld [vmem:[%s397 + $0x238] sm:$0xff]
      %v1521 = vld [vmem:[%s397 + $0x240] sm:$0xff]
      %v1522 = vld [vmem:[%s397 + $0x248] sm:$0xff]
      %v1523 = vld [vmem:[%s397 + $0x250] sm:$0xff]
      %v1524 = vld [vmem:[%s397 + $0x258] sm:$0xff]
      %v1525 = vld [vmem:[%s397 + $0x260] sm:$0xff]
      %v1526 = vld [vmem:[%s397 + $0x268] sm:$0xff]
      %v1527 = vld [vmem:[%s397 + $0x270] sm:$0xff]
      %v1528 = vld [vmem:[%s397 + $0x278] sm:$0xff]
      %v1529 = vld [vmem:[%s397 + $0x280] sm:$0xff]
      %v1530 = vld [vmem:[%s397 + $0x288] sm:$0xff]
      %v1531 = vld [vmem:[%s397 + $0x290] sm:$0xff]
      %v1532 = vld [vmem:[%s397 + $0x298] sm:$0xff]
      %v1533 = vld [vmem:[%s397 + $0x2a0] sm:$0xff]
      %v1534 = vld [vmem:[%s397 + $0x2a8] sm:$0xff]
      %v1535 = vld [vmem:[%s397 + $0x2b0] sm:$0xff]
      %v1536 = vld [vmem:[%s397 + $0x2b8] sm:$0xff]
      %v1537 = vld [vmem:[%s397 + $0x2c0] sm:$0xff]
      %v1538 = vld [vmem:[%s397 + $0x2c8] sm:$0xff]
      %v1539 = vld [vmem:[%s397 + $0x2d0] sm:$0xff]
      %v1540 = vld [vmem:[%s397 + $0x2d8] sm:$0xff]
      %v1541 = vld [vmem:[%s397 + $0x2e0] sm:$0xff]
      %v1542 = vld [vmem:[%s397 + $0x2e8] sm:$0xff]
      %v1543 = vld [vmem:[%s397 + $0x2f0] sm:$0xff]
      %v1544 = vld [vmem:[%s397 + $0x2f8] sm:$0xff]
      %v1545 = vld [vmem:[%s397 + $0x300] sm:$0xff]
      %v1546 = vld [vmem:[%s397 + $0x308] sm:$0xff]
      %v1547 = vld [vmem:[%s397 + $0x310] sm:$0xff]
      %v1548 = vld [vmem:[%s397 + $0x318] sm:$0xff]
      %v1549 = vld [vmem:[%s397 + $0x320] sm:$0xff]
      %v1550 = vld [vmem:[%s397 + $0x328] sm:$0xff]
      %v1551 = vld [vmem:[%s397 + $0x330] sm:$0xff]
      %v1552 = vld [vmem:[%s397 + $0x338] sm:$0xff]
      %v1553 = vld [vmem:[%s397 + $0x340] sm:$0xff]
      %v1554 = vld [vmem:[%s397 + $0x348] sm:$0xff]
      %v1555 = vld [vmem:[%s397 + $0x350] sm:$0xff]
      %v1556 = vld [vmem:[%s397 + $0x358] sm:$0xff]
      %v1557 = vld [vmem:[%s397 + $0x360] sm:$0xff]
      %v1558 = vld [vmem:[%s397 + $0x368] sm:$0xff]
      %v1559 = vld [vmem:[%s397 + $0x370] sm:$0xff]
      %v1560 = vld [vmem:[%s397 + $0x378] sm:$0xff]
      %v1561 = vld [vmem:[%s397 + $0x380] sm:$0xff]
      %v1562 = vld [vmem:[%s397 + $0x388] sm:$0xff]
      %v1563 = vld [vmem:[%s397 + $0x390] sm:$0xff]
      %v1564 = vld [vmem:[%s397 + $0x398] sm:$0xff]
      %v1565 = vld [vmem:[%s397 + $0x3a0] sm:$0xff]
      %v1566 = vld [vmem:[%s397 + $0x3a8] sm:$0xff]
      %v1567 = vld [vmem:[%s397 + $0x3b0] sm:$0xff]
      %v1568 = vld [vmem:[%s397 + $0x3b8] sm:$0xff]
      %v1569 = vld [vmem:[%s397 + $0x3c0] sm:$0xff]
      %v1570 = vld [vmem:[%s397 + $0x3c8] sm:$0xff]
      %v1571 = vld [vmem:[%s397 + $0x3d0] sm:$0xff]
      %v1572 = vld [vmem:[%s397 + $0x3d8] sm:$0xff]
      %v1573 = vld [vmem:[%s397 + $0x3e0] sm:$0xff]
      %v1574 = vld [vmem:[%s397 + $0x3e8] sm:$0xff]
      %v1575 = vld [vmem:[%s397 + $0x3f0] sm:$0xff]
      %v1576 = vld [vmem:[%s397 + $0x3f8] sm:$0xff]
      %v1577 = vld [vmem:[%s397 + $0x400] sm:$0xff]
      %v1578 = vld [vmem:[%s397 + $0x408] sm:$0xff]
      %v1579 = vld [vmem:[%s397 + $0x410] sm:$0xff]
      %v1580 = vld [vmem:[%s397 + $0x418] sm:$0xff]
      %v1581 = vld [vmem:[%s397 + $0x420] sm:$0xff]
      %v1582 = vld [vmem:[%s397 + $0x428] sm:$0xff]
      %v1583 = vld [vmem:[%s397 + $0x430] sm:$0xff]
      %v1584 = vld [vmem:[%s397 + $0x438] sm:$0xff]
      %v1585 = vld [vmem:[%s397 + $0x440] sm:$0xff]
      %v1586 = vld [vmem:[%s397 + $0x448] sm:$0xff]
      %v1587 = vld [vmem:[%s397 + $0x450] sm:$0xff]
      %v1588 = vld [vmem:[%s397 + $0x458] sm:$0xff]
      %v1589 = vld [vmem:[%s397 + $0x460] sm:$0xff]
      %v1590 = vld [vmem:[%s397 + $0x468] sm:$0xff]
      %v1591 = vld [vmem:[%s397 + $0x470] sm:$0xff]
      %v1592 = vld [vmem:[%s397 + $0x478] sm:$0xff]
      %v1593 = vld [vmem:[%s397 + $0x480] sm:$0xff]
      %v1594 = vld [vmem:[%s397 + $0x488] sm:$0xff]
      %v1595 = vld [vmem:[%s397 + $0x490] sm:$0xff]
      %v1596 = vld [vmem:[%s397 + $0x498] sm:$0xff]
      %v1597 = vld [vmem:[%s397 + $0x4a0] sm:$0xff]
      %v1598 = vld [vmem:[%s397 + $0x4a8] sm:$0xff]
      %v1599 = vld [vmem:[%s397 + $0x4b0] sm:$0xff]
      %v1600 = vld [vmem:[%s397 + $0x4b8] sm:$0xff]
      %v1601 = vld [vmem:[%s397 + $0x4c0] sm:$0xff]
      %v1602 = vld [vmem:[%s397 + $0x4c8] sm:$0xff]
      %v1603 = vld [vmem:[%s397 + $0x4d0] sm:$0xff]
      %v1604 = vld [vmem:[%s397 + $0x4d8] sm:$0xff]
      %v1605 = vld [vmem:[%s397 + $0x4e0] sm:$0xff]
      %v1606 = vld [vmem:[%s397 + $0x4e8] sm:$0xff]
      %v1607 = vld [vmem:[%s397 + $0x4f0] sm:$0xff]
      %v1608 = vld [vmem:[%s397 + $0x4f8] sm:$0xff]
      %v1609 = vld [vmem:[%s397 + $0x500] sm:$0xff]
      %v1610 = vld [vmem:[%s397 + $0x508] sm:$0xff]
      %v1611 = vld [vmem:[%s397 + $0x510] sm:$0xff]
      %v1612 = vld [vmem:[%s397 + $0x518] sm:$0xff]
      %v1613 = vld [vmem:[%s397 + $0x520] sm:$0xff]
      %v1614 = vld [vmem:[%s397 + $0x528] sm:$0xff]
      %v1615 = vld [vmem:[%s397 + $0x530] sm:$0xff]
      %v1616 = vld [vmem:[%s397 + $0x538] sm:$0xff]
      %v1617 = vld [vmem:[%s397 + $0x540] sm:$0xff]
      %v1618 = vld [vmem:[%s397 + $0x548] sm:$0xff]
      %v1619 = vld [vmem:[%s397 + $0x550] sm:$0xff]
      %v1620 = vld [vmem:[%s397 + $0x558] sm:$0xff]
      %v1621 = vld [vmem:[%s397 + $0x560] sm:$0xff]
      %v1622 = vld [vmem:[%s397 + $0x568] sm:$0xff]
      %v1623 = vld [vmem:[%s397 + $0x570] sm:$0xff]
      %v1624 = vld [vmem:[%s397 + $0x578] sm:$0xff]
      %v1625 = vld [vmem:[%s397 + $0x580] sm:$0xff]
      %v1626 = vld [vmem:[%s397 + $0x588] sm:$0xff]
      %v1627 = vld [vmem:[%s397 + $0x590] sm:$0xff]
      %v1628 = vld [vmem:[%s397 + $0x598] sm:$0xff]
      %v1629 = vld [vmem:[%s397 + $0x5a0] sm:$0xff]
      %v1630 = vld [vmem:[%s397 + $0x5a8] sm:$0xff]
      %v1631 = vld [vmem:[%s397 + $0x5b0] sm:$0xff]
      %v1632 = vld [vmem:[%s397 + $0x5b8] sm:$0xff]
      %v1633 = vld [vmem:[%s397 + $0x5c0] sm:$0xff]
      %v1634 = vld [vmem:[%s397 + $0x5c8] sm:$0xff]
      %v1635 = vld [vmem:[%s397 + $0x5d0] sm:$0xff]
      %v1636 = vld [vmem:[%s397 + $0x5d8] sm:$0xff]
      %v1637 = vld [vmem:[%s397 + $0x5e0] sm:$0xff]
      %v1638 = vld [vmem:[%s397 + $0x5e8] sm:$0xff]
      %v1639 = vld [vmem:[%s397 + $0x5f0] sm:$0xff]
      %v1640 = vld [vmem:[%s397 + $0x5f8] sm:$0xff]
      %v1641 = vld [vmem:[%s397 + $0x600] sm:$0xff]
      %v1642 = vld [vmem:[%s397 + $0x608] sm:$0xff]
      %v1643 = vld [vmem:[%s397 + $0x610] sm:$0xff]
      %v1644 = vld [vmem:[%s397 + $0x618] sm:$0xff]
      %v1645 = vld [vmem:[%s397 + $0x620] sm:$0xff]
      %v1646 = vld [vmem:[%s397 + $0x628] sm:$0xff]
      %v1647 = vld [vmem:[%s397 + $0x630] sm:$0xff]
      %v1648 = vld [vmem:[%s397 + $0x638] sm:$0xff]
      %v1649 = vld [vmem:[%s397 + $0x640] sm:$0xff]
      %v1650 = vld [vmem:[%s397 + $0x648] sm:$0xff]
      %v1651 = vld [vmem:[%s397 + $0x650] sm:$0xff]
      %v1652 = vld [vmem:[%s397 + $0x658] sm:$0xff]
      %v1653 = vld [vmem:[%s397 + $0x660] sm:$0xff]
      %v1654 = vld [vmem:[%s397 + $0x668] sm:$0xff]
      %v1655 = vld [vmem:[%s397 + $0x670] sm:$0xff]
      %v1656 = vld [vmem:[%s397 + $0x678] sm:$0xff]
      %v1657 = vld [vmem:[%s397 + $0x680] sm:$0xff]
      %v1658 = vld [vmem:[%s397 + $0x688] sm:$0xff]
      %v1659 = vld [vmem:[%s397 + $0x690] sm:$0xff]
      %v1660 = vld [vmem:[%s397 + $0x698] sm:$0xff]
      %v1661 = vld [vmem:[%s397 + $0x6a0] sm:$0xff]
      %v1662 = vld [vmem:[%s397 + $0x6a8] sm:$0xff]
      %v1663 = vld [vmem:[%s397 + $0x6b0] sm:$0xff]
      %v1664 = vld [vmem:[%s397 + $0x6b8] sm:$0xff]
      %v1665 = vld [vmem:[%s397 + $0x6c0] sm:$0xff]
      %v1666 = vld [vmem:[%s397 + $0x6c8] sm:$0xff]
      %v1667 = vld [vmem:[%s397 + $0x6d0] sm:$0xff]
      %v1668 = vld [vmem:[%s397 + $0x6d8] sm:$0xff]
      %v1669 = vld [vmem:[%s397 + $0x6e0] sm:$0xff]
      %v1670 = vld [vmem:[%s397 + $0x6e8] sm:$0xff]
      %v1671 = vld [vmem:[%s397 + $0x6f0] sm:$0xff]
      %v1672 = vld [vmem:[%s397 + $0x6f8] sm:$0xff]
      %v1673 = vld [vmem:[%s397 + $0x700] sm:$0xff]
      %v1674 = vld [vmem:[%s397 + $0x708] sm:$0xff]
      %v1675 = vld [vmem:[%s397 + $0x710] sm:$0xff]
      %v1676 = vld [vmem:[%s397 + $0x718] sm:$0xff]
      %v1677 = vld [vmem:[%s397 + $0x720] sm:$0xff]
      %v1678 = vld [vmem:[%s397 + $0x728] sm:$0xff]
      %v1679 = vld [vmem:[%s397 + $0x730] sm:$0xff]
      %v1680 = vld [vmem:[%s397 + $0x738] sm:$0xff]
      %v1681 = vld [vmem:[%s397 + $0x740] sm:$0xff]
      %v1682 = vld [vmem:[%s397 + $0x748] sm:$0xff]
      %v1683 = vld [vmem:[%s397 + $0x750] sm:$0xff]
      %v1684 = vld [vmem:[%s397 + $0x758] sm:$0xff]
      %v1685 = vld [vmem:[%s397 + $0x760] sm:$0xff]
      %v1686 = vld [vmem:[%s397 + $0x768] sm:$0xff]
      %v1687 = vld [vmem:[%s397 + $0x770] sm:$0xff]
      %v1688 = vld [vmem:[%s397 + $0x778] sm:$0xff]
      %v1689 = vld [vmem:[%s397 + $0x780] sm:$0xff]
      %v1690 = vld [vmem:[%s397 + $0x788] sm:$0xff]
      %v1691 = vld [vmem:[%s397 + $0x790] sm:$0xff]
      %v1692 = vld [vmem:[%s397 + $0x798] sm:$0xff]
      %v1693 = vld [vmem:[%s397 + $0x7a0] sm:$0xff]
      %v1694 = vld [vmem:[%s397 + $0x7a8] sm:$0xff]
      %v1695 = vld [vmem:[%s397 + $0x7b0] sm:$0xff]
      %v1696 = vld [vmem:[%s397 + $0x7b8] sm:$0xff]
      %v1697 = vld [vmem:[%s397 + $0x7c0] sm:$0xff]
      %v1698 = vld [vmem:[%s397 + $0x7c8] sm:$0xff]
      %v1699 = vld [vmem:[%s397 + $0x7d0] sm:$0xff]
      %v1700 = vld [vmem:[%s397 + $0x7d8] sm:$0xff]
      %v1701 = vld [vmem:[%s397 + $0x7e0] sm:$0xff]
      %v1702 = vld [vmem:[%s397 + $0x7e8] sm:$0xff]
      %v1703 = vld [vmem:[%s397 + $0x7f0] sm:$0xff]
      %v1704 = vld [vmem:[%s397 + $0x7f8] sm:$0xff]
      %v1705 = vld [vmem:[%s381] sm:$0xff]
      %v1706 = vld [vmem:[%s381 + $0x8] sm:$0xff]
      %v1707 = vld [vmem:[%s381 + $0x10] sm:$0xff]
      %v1708 = vld [vmem:[%s381 + $0x18] sm:$0xff]
      %v1709 = vld [vmem:[%s381 + $0x20] sm:$0xff]
      %v1710 = vld [vmem:[%s381 + $0x28] sm:$0xff]
      %v1711 = vld [vmem:[%s381 + $0x30] sm:$0xff]
      %v1712 = vld [vmem:[%s381 + $0x38] sm:$0xff]
      %v1713 = vld [vmem:[%s381 + $0x40] sm:$0xff]
      %v1714 = vld [vmem:[%s381 + $0x48] sm:$0xff]
      %v1715 = vld [vmem:[%s381 + $0x50] sm:$0xff]
      %v1716 = vld [vmem:[%s381 + $0x58] sm:$0xff]
      %v1717 = vld [vmem:[%s381 + $0x60] sm:$0xff]
      %v1718 = vld [vmem:[%s381 + $0x68] sm:$0xff]
      %v1719 = vld [vmem:[%s381 + $0x70] sm:$0xff]
      %v1720 = vld [vmem:[%s381 + $0x78] sm:$0xff]
      %v1721 = vld [vmem:[%s381 + $0x80] sm:$0xff]
      %v1722 = vld [vmem:[%s381 + $0x88] sm:$0xff]
      %v1723 = vld [vmem:[%s381 + $0x90] sm:$0xff]
      %v1724 = vld [vmem:[%s381 + $0x98] sm:$0xff]
      %v1725 = vld [vmem:[%s381 + $0xa0] sm:$0xff]
      %v1726 = vld [vmem:[%s381 + $0xa8] sm:$0xff]
      %v1727 = vld [vmem:[%s381 + $0xb0] sm:$0xff]
      %v1728 = vld [vmem:[%s381 + $0xb8] sm:$0xff]
      %v1729 = vld [vmem:[%s381 + $0xc0] sm:$0xff]
      %v1730 = vld [vmem:[%s381 + $0xc8] sm:$0xff]
      %v1731 = vld [vmem:[%s381 + $0xd0] sm:$0xff]
      %v1732 = vld [vmem:[%s381 + $0xd8] sm:$0xff]
      %v1733 = vld [vmem:[%s381 + $0xe0] sm:$0xff]
      %v1734 = vld [vmem:[%s381 + $0xe8] sm:$0xff]
      %v1735 = vld [vmem:[%s381 + $0xf0] sm:$0xff]
      %v1736 = vld [vmem:[%s381 + $0xf8] sm:$0xff]
      %v1737 = vld [vmem:[%s381 + $0x100] sm:$0xff]
      %v1738 = vld [vmem:[%s381 + $0x108] sm:$0xff]
      %v1739 = vld [vmem:[%s381 + $0x110] sm:$0xff]
      %v1740 = vld [vmem:[%s381 + $0x118] sm:$0xff]
      %v1741 = vld [vmem:[%s381 + $0x120] sm:$0xff]
      %v1742 = vld [vmem:[%s381 + $0x128] sm:$0xff]
      %v1743 = vld [vmem:[%s381 + $0x130] sm:$0xff]
      %v1744 = vld [vmem:[%s381 + $0x138] sm:$0xff]
      %v1745 = vld [vmem:[%s381 + $0x140] sm:$0xff]
      %v1746 = vld [vmem:[%s381 + $0x148] sm:$0xff]
      %v1747 = vld [vmem:[%s381 + $0x150] sm:$0xff]
      %v1748 = vld [vmem:[%s381 + $0x158] sm:$0xff]
      %v1749 = vld [vmem:[%s381 + $0x160] sm:$0xff]
      %v1750 = vld [vmem:[%s381 + $0x168] sm:$0xff]
      %v1751 = vld [vmem:[%s381 + $0x170] sm:$0xff]
      %v1752 = vld [vmem:[%s381 + $0x178] sm:$0xff]
      %v1753 = vld [vmem:[%s381 + $0x180] sm:$0xff]
      %v1754 = vld [vmem:[%s381 + $0x188] sm:$0xff]
      %v1755 = vld [vmem:[%s381 + $0x190] sm:$0xff]
      %v1756 = vld [vmem:[%s381 + $0x198] sm:$0xff]
      %v1757 = vld [vmem:[%s381 + $0x1a0] sm:$0xff]
      %v1758 = vld [vmem:[%s381 + $0x1a8] sm:$0xff]
      %v1759 = vld [vmem:[%s381 + $0x1b0] sm:$0xff]
      %v1760 = vld [vmem:[%s381 + $0x1b8] sm:$0xff]
      %v1761 = vld [vmem:[%s381 + $0x1c0] sm:$0xff]
      %v1762 = vld [vmem:[%s381 + $0x1c8] sm:$0xff]
      %v1763 = vld [vmem:[%s381 + $0x1d0] sm:$0xff]
      %v1764 = vld [vmem:[%s381 + $0x1d8] sm:$0xff]
      %v1765 = vld [vmem:[%s381 + $0x1e0] sm:$0xff]
      %v1766 = vld [vmem:[%s381 + $0x1e8] sm:$0xff]
      %v1767 = vld [vmem:[%s381 + $0x1f0] sm:$0xff]
      %v1768 = vld [vmem:[%s381 + $0x1f8] sm:$0xff]
      %v1769 = vunpack.c.0.s8 %v1705
      %v1770 = vunpack.c.1.s8 %v1705
      %v1771 = vunpack.c.2.s8 %v1705
      %v1772 = vunpack.c.3.s8 %v1705
      %v1773 = vunpack.c.0.s8 %v1706
      %v1774 = vunpack.c.1.s8 %v1706
      %v1775 = vunpack.c.2.s8 %v1706
      %v1776 = vunpack.c.3.s8 %v1706
      %v1777 = vunpack.c.0.s8 %v1707
      %v1778 = vunpack.c.1.s8 %v1707
      %v1779 = vunpack.c.2.s8 %v1707
      %v1780 = vunpack.c.3.s8 %v1707
      %v1781 = vunpack.c.0.s8 %v1708
      %v1782 = vunpack.c.1.s8 %v1708
      %v1783 = vunpack.c.2.s8 %v1708
      %v1784 = vunpack.c.3.s8 %v1708
      %v1785 = vunpack.c.0.s8 %v1709
      %v1786 = vunpack.c.1.s8 %v1709
      %v1787 = vunpack.c.2.s8 %v1709
      %v1788 = vunpack.c.3.s8 %v1709
      %v1789 = vunpack.c.0.s8 %v1710
      %v1790 = vunpack.c.1.s8 %v1710
      %v1791 = vunpack.c.2.s8 %v1710
      %v1792 = vunpack.c.3.s8 %v1710
      %v1793 = vunpack.c.0.s8 %v1711
      %v1794 = vunpack.c.1.s8 %v1711
      %v1795 = vunpack.c.2.s8 %v1711
      %v1796 = vunpack.c.3.s8 %v1711
      %v1797 = vunpack.c.0.s8 %v1712
      %v1798 = vunpack.c.1.s8 %v1712
      %v1799 = vunpack.c.2.s8 %v1712
      %v1800 = vunpack.c.3.s8 %v1712
      %v1801 = vunpack.c.0.s8 %v1713
      %v1802 = vunpack.c.1.s8 %v1713
      %v1803 = vunpack.c.2.s8 %v1713
      %v1804 = vunpack.c.3.s8 %v1713
      %v1805 = vunpack.c.0.s8 %v1714
      %v1806 = vunpack.c.1.s8 %v1714
      %v1807 = vunpack.c.2.s8 %v1714
      %v1808 = vunpack.c.3.s8 %v1714
      %v1809 = vunpack.c.0.s8 %v1715
      %v1810 = vunpack.c.1.s8 %v1715
      %v1811 = vunpack.c.2.s8 %v1715
      %v1812 = vunpack.c.3.s8 %v1715
      %v1813 = vunpack.c.0.s8 %v1716
      %v1814 = vunpack.c.1.s8 %v1716
      %v1815 = vunpack.c.2.s8 %v1716
      %v1816 = vunpack.c.3.s8 %v1716
      %v1817 = vunpack.c.0.s8 %v1717
      %v1818 = vunpack.c.1.s8 %v1717
      %v1819 = vunpack.c.2.s8 %v1717
      %v1820 = vunpack.c.3.s8 %v1717
      %v1821 = vunpack.c.0.s8 %v1718
      %v1822 = vunpack.c.1.s8 %v1718
      %v1823 = vunpack.c.2.s8 %v1718
      %v1824 = vunpack.c.3.s8 %v1718
      %v1825 = vunpack.c.0.s8 %v1719
      %v1826 = vunpack.c.1.s8 %v1719
      %v1827 = vunpack.c.2.s8 %v1719
      %v1828 = vunpack.c.3.s8 %v1719
      %v1829 = vunpack.c.0.s8 %v1720
      %v1830 = vunpack.c.1.s8 %v1720
      %v1831 = vunpack.c.2.s8 %v1720
      %v1832 = vunpack.c.3.s8 %v1720
      %v1833 = vunpack.c.0.s8 %v1721
      %v1834 = vunpack.c.1.s8 %v1721
      %v1835 = vunpack.c.2.s8 %v1721
      %v1836 = vunpack.c.3.s8 %v1721
      %v1837 = vunpack.c.0.s8 %v1722
      %v1838 = vunpack.c.1.s8 %v1722
      %v1839 = vunpack.c.2.s8 %v1722
      %v1840 = vunpack.c.3.s8 %v1722
      %v1841 = vunpack.c.0.s8 %v1723
      %v1842 = vunpack.c.1.s8 %v1723
      %v1843 = vunpack.c.2.s8 %v1723
      %v1844 = vunpack.c.3.s8 %v1723
      %v1845 = vunpack.c.0.s8 %v1724
      %v1846 = vunpack.c.1.s8 %v1724
      %v1847 = vunpack.c.2.s8 %v1724
      %v1848 = vunpack.c.3.s8 %v1724
      %v1849 = vunpack.c.0.s8 %v1725
      %v1850 = vunpack.c.1.s8 %v1725
      %v1851 = vunpack.c.2.s8 %v1725
      %v1852 = vunpack.c.3.s8 %v1725
      %v1853 = vunpack.c.0.s8 %v1726
      %v1854 = vunpack.c.1.s8 %v1726
      %v1855 = vunpack.c.2.s8 %v1726
      %v1856 = vunpack.c.3.s8 %v1726
      %v1857 = vunpack.c.0.s8 %v1727
      %v1858 = vunpack.c.1.s8 %v1727
      %v1859 = vunpack.c.2.s8 %v1727
      %v1860 = vunpack.c.3.s8 %v1727
      %v1861 = vunpack.c.0.s8 %v1728
      %v1862 = vunpack.c.1.s8 %v1728
      %v1863 = vunpack.c.2.s8 %v1728
      %v1864 = vunpack.c.3.s8 %v1728
      %v1865 = vunpack.c.0.s8 %v1729
      %v1866 = vunpack.c.1.s8 %v1729
      %v1867 = vunpack.c.2.s8 %v1729
      %v1868 = vunpack.c.3.s8 %v1729
      %v1869 = vunpack.c.0.s8 %v1730
      %v1870 = vunpack.c.1.s8 %v1730
      %v1871 = vunpack.c.2.s8 %v1730
      %v1872 = vunpack.c.3.s8 %v1730
      %v1873 = vunpack.c.0.s8 %v1731
      %v1874 = vunpack.c.1.s8 %v1731
      %v1875 = vunpack.c.2.s8 %v1731
      %v1876 = vunpack.c.3.s8 %v1731
      %v1877 = vunpack.c.0.s8 %v1732
      %v1878 = vunpack.c.1.s8 %v1732
      %v1879 = vunpack.c.2.s8 %v1732
      %v1880 = vunpack.c.3.s8 %v1732
      %v1881 = vunpack.c.0.s8 %v1733
      %v1882 = vunpack.c.1.s8 %v1733
      %v1883 = vunpack.c.2.s8 %v1733
      %v1884 = vunpack.c.3.s8 %v1733
      %v1885 = vunpack.c.0.s8 %v1734
      %v1886 = vunpack.c.1.s8 %v1734
      %v1887 = vunpack.c.2.s8 %v1734
      %v1888 = vunpack.c.3.s8 %v1734
      %v1889 = vunpack.c.0.s8 %v1735
      %v1890 = vunpack.c.1.s8 %v1735
      %v1891 = vunpack.c.2.s8 %v1735
      %v1892 = vunpack.c.3.s8 %v1735
      %v1893 = vunpack.c.0.s8 %v1736
      %v1894 = vunpack.c.1.s8 %v1736
      %v1895 = vunpack.c.2.s8 %v1736
      %v1896 = vunpack.c.3.s8 %v1736
      %v1897 = vunpack.c.0.s8 %v1737
      %v1898 = vunpack.c.1.s8 %v1737
      %v1899 = vunpack.c.2.s8 %v1737
      %v1900 = vunpack.c.3.s8 %v1737
      %v1901 = vunpack.c.0.s8 %v1738
      %v1902 = vunpack.c.1.s8 %v1738
      %v1903 = vunpack.c.2.s8 %v1738
      %v1904 = vunpack.c.3.s8 %v1738
      %v1905 = vunpack.c.0.s8 %v1739
      %v1906 = vunpack.c.1.s8 %v1739
      %v1907 = vunpack.c.2.s8 %v1739
      %v1908 = vunpack.c.3.s8 %v1739
      %v1909 = vunpack.c.0.s8 %v1740
      %v1910 = vunpack.c.1.s8 %v1740
      %v1911 = vunpack.c.2.s8 %v1740
      %v1912 = vunpack.c.3.s8 %v1740
      %v1913 = vunpack.c.0.s8 %v1741
      %v1914 = vunpack.c.1.s8 %v1741
      %v1915 = vunpack.c.2.s8 %v1741
      %v1916 = vunpack.c.3.s8 %v1741
      %v1917 = vunpack.c.0.s8 %v1742
      %v1918 = vunpack.c.1.s8 %v1742
      %v1919 = vunpack.c.2.s8 %v1742
      %v1920 = vunpack.c.3.s8 %v1742
      %v1921 = vunpack.c.0.s8 %v1743
      %v1922 = vunpack.c.1.s8 %v1743
      %v1923 = vunpack.c.2.s8 %v1743
      %v1924 = vunpack.c.3.s8 %v1743
      %v1925 = vunpack.c.0.s8 %v1744
      %v1926 = vunpack.c.1.s8 %v1744
      %v1927 = vunpack.c.2.s8 %v1744
      %v1928 = vunpack.c.3.s8 %v1744
      %v1929 = vunpack.c.0.s8 %v1745
      %v1930 = vunpack.c.1.s8 %v1745
      %v1931 = vunpack.c.2.s8 %v1745
      %v1932 = vunpack.c.3.s8 %v1745
      %v1933 = vunpack.c.0.s8 %v1746
      %v1934 = vunpack.c.1.s8 %v1746
      %v1935 = vunpack.c.2.s8 %v1746
      %v1936 = vunpack.c.3.s8 %v1746
      %v1937 = vunpack.c.0.s8 %v1747
      %v1938 = vunpack.c.1.s8 %v1747
      %v1939 = vunpack.c.2.s8 %v1747
      %v1940 = vunpack.c.3.s8 %v1747
      %v1941 = vunpack.c.0.s8 %v1748
      %v1942 = vunpack.c.1.s8 %v1748
      %v1943 = vunpack.c.2.s8 %v1748
      %v1944 = vunpack.c.3.s8 %v1748
      %v1945 = vunpack.c.0.s8 %v1749
      %v1946 = vunpack.c.1.s8 %v1749
      %v1947 = vunpack.c.2.s8 %v1749
      %v1948 = vunpack.c.3.s8 %v1749
      %v1949 = vunpack.c.0.s8 %v1750
      %v1950 = vunpack.c.1.s8 %v1750
      %v1951 = vunpack.c.2.s8 %v1750
      %v1952 = vunpack.c.3.s8 %v1750
      %v1953 = vunpack.c.0.s8 %v1751
      %v1954 = vunpack.c.1.s8 %v1751
      %v1955 = vunpack.c.2.s8 %v1751
      %v1956 = vunpack.c.3.s8 %v1751
      %v1957 = vunpack.c.0.s8 %v1752
      %v1958 = vunpack.c.1.s8 %v1752
      %v1959 = vunpack.c.2.s8 %v1752
      %v1960 = vunpack.c.3.s8 %v1752
      %v1961 = vunpack.c.0.s8 %v1753
      %v1962 = vunpack.c.1.s8 %v1753
      %v1963 = vunpack.c.2.s8 %v1753
      %v1964 = vunpack.c.3.s8 %v1753
      %v1965 = vunpack.c.0.s8 %v1754
      %v1966 = vunpack.c.1.s8 %v1754
      %v1967 = vunpack.c.2.s8 %v1754
      %v1968 = vunpack.c.3.s8 %v1754
      %v1969 = vunpack.c.0.s8 %v1755
      %v1970 = vunpack.c.1.s8 %v1755
      %v1971 = vunpack.c.2.s8 %v1755
      %v1972 = vunpack.c.3.s8 %v1755
      %v1973 = vunpack.c.0.s8 %v1756
      %v1974 = vunpack.c.1.s8 %v1756
      %v1975 = vunpack.c.2.s8 %v1756
      %v1976 = vunpack.c.3.s8 %v1756
      %v1977 = vunpack.c.0.s8 %v1757
      %v1978 = vunpack.c.1.s8 %v1757
      %v1979 = vunpack.c.2.s8 %v1757
      %v1980 = vunpack.c.3.s8 %v1757
      %v1981 = vunpack.c.0.s8 %v1758
      %v1982 = vunpack.c.1.s8 %v1758
      %v1983 = vunpack.c.2.s8 %v1758
      %v1984 = vunpack.c.3.s8 %v1758
      %v1985 = vunpack.c.0.s8 %v1759
      %v1986 = vunpack.c.1.s8 %v1759
      %v1987 = vunpack.c.2.s8 %v1759
      %v1988 = vunpack.c.3.s8 %v1759
      %v1989 = vunpack.c.0.s8 %v1760
      %v1990 = vunpack.c.1.s8 %v1760
      %v1991 = vunpack.c.2.s8 %v1760
      %v1992 = vunpack.c.3.s8 %v1760
      %v1993 = vunpack.c.0.s8 %v1761
      %v1994 = vunpack.c.1.s8 %v1761
      %v1995 = vunpack.c.2.s8 %v1761
      %v1996 = vunpack.c.3.s8 %v1761
      %v1997 = vunpack.c.0.s8 %v1762
      %v1998 = vunpack.c.1.s8 %v1762
      %v1999 = vunpack.c.2.s8 %v1762
      %v2000 = vunpack.c.3.s8 %v1762
      %v2001 = vunpack.c.0.s8 %v1763
      %v2002 = vunpack.c.1.s8 %v1763
      %v2003 = vunpack.c.2.s8 %v1763
      %v2004 = vunpack.c.3.s8 %v1763
      %v2005 = vunpack.c.0.s8 %v1764
      %v2006 = vunpack.c.1.s8 %v1764
      %v2007 = vunpack.c.2.s8 %v1764
      %v2008 = vunpack.c.3.s8 %v1764
      %v2009 = vunpack.c.0.s8 %v1765
      %v2010 = vunpack.c.1.s8 %v1765
      %v2011 = vunpack.c.2.s8 %v1765
      %v2012 = vunpack.c.3.s8 %v1765
      %v2013 = vunpack.c.0.s8 %v1766
      %v2014 = vunpack.c.1.s8 %v1766
      %v2015 = vunpack.c.2.s8 %v1766
      %v2016 = vunpack.c.3.s8 %v1766
      %v2017 = vunpack.c.0.s8 %v1767
      %v2018 = vunpack.c.1.s8 %v1767
      %v2019 = vunpack.c.2.s8 %v1767
      %v2020 = vunpack.c.3.s8 %v1767
      %v2021 = vunpack.c.0.s8 %v1768
      %v2022 = vunpack.c.1.s8 %v1768
      %v2023 = vunpack.c.2.s8 %v1768
      %v2024 = vunpack.c.3.s8 %v1768
      %v2025 = vcvt.s32.f32 %v1769
      %v2026 = vcvt.s32.f32 %v1770
      %v2027 = vcvt.s32.f32 %v1771
      %v2028 = vcvt.s32.f32 %v1772
      %v2029 = vcvt.s32.f32 %v1773
      %v2030 = vcvt.s32.f32 %v1774
      %v2031 = vcvt.s32.f32 %v1775
      %v2032 = vcvt.s32.f32 %v1776
      %v2033 = vcvt.s32.f32 %v1777
      %v2034 = vcvt.s32.f32 %v1778
      %v2035 = vcvt.s32.f32 %v1779
      %v2036 = vcvt.s32.f32 %v1780
      %v2037 = vcvt.s32.f32 %v1781
      %v2038 = vcvt.s32.f32 %v1782
      %v2039 = vcvt.s32.f32 %v1783
      %v2040 = vcvt.s32.f32 %v1784
      %v2041 = vcvt.s32.f32 %v1785
      %v2042 = vcvt.s32.f32 %v1786
      %v2043 = vcvt.s32.f32 %v1787
      %v2044 = vcvt.s32.f32 %v1788
      %v2045 = vcvt.s32.f32 %v1789
      %v2046 = vcvt.s32.f32 %v1790
      %v2047 = vcvt.s32.f32 %v1791
      %v2048 = vcvt.s32.f32 %v1792
      %v2049 = vcvt.s32.f32 %v1793
      %v2050 = vcvt.s32.f32 %v1794
      %v2051 = vcvt.s32.f32 %v1795
      %v2052 = vcvt.s32.f32 %v1796
      %v2053 = vcvt.s32.f32 %v1797
      %v2054 = vcvt.s32.f32 %v1798
      %v2055 = vcvt.s32.f32 %v1799
      %v2056 = vcvt.s32.f32 %v1800
      %v2057 = vcvt.s32.f32 %v1801
      %v2058 = vcvt.s32.f32 %v1802
      %v2059 = vcvt.s32.f32 %v1803
      %v2060 = vcvt.s32.f32 %v1804
      %v2061 = vcvt.s32.f32 %v1805
      %v2062 = vcvt.s32.f32 %v1806
      %v2063 = vcvt.s32.f32 %v1807
      %v2064 = vcvt.s32.f32 %v1808
      %v2065 = vcvt.s32.f32 %v1809
      %v2066 = vcvt.s32.f32 %v1810
      %v2067 = vcvt.s32.f32 %v1811
      %v2068 = vcvt.s32.f32 %v1812
      %v2069 = vcvt.s32.f32 %v1813
      %v2070 = vcvt.s32.f32 %v1814
      %v2071 = vcvt.s32.f32 %v1815
      %v2072 = vcvt.s32.f32 %v1816
      %v2073 = vcvt.s32.f32 %v1817
      %v2074 = vcvt.s32.f32 %v1818
      %v2075 = vcvt.s32.f32 %v1819
      %v2076 = vcvt.s32.f32 %v1820
      %v2077 = vcvt.s32.f32 %v1821
      %v2078 = vcvt.s32.f32 %v1822
      %v2079 = vcvt.s32.f32 %v1823
      %v2080 = vcvt.s32.f32 %v1824
      %v2081 = vcvt.s32.f32 %v1825
      %v2082 = vcvt.s32.f32 %v1826
      %v2083 = vcvt.s32.f32 %v1827
      %v2084 = vcvt.s32.f32 %v1828
      %v2085 = vcvt.s32.f32 %v1829
      %v2086 = vcvt.s32.f32 %v1830
      %v2087 = vcvt.s32.f32 %v1831
      %v2088 = vcvt.s32.f32 %v1832
      %v2089 = vcvt.s32.f32 %v1833
      %v2090 = vcvt.s32.f32 %v1834
      %v2091 = vcvt.s32.f32 %v1835
      %v2092 = vcvt.s32.f32 %v1836
      %v2093 = vcvt.s32.f32 %v1837
      %v2094 = vcvt.s32.f32 %v1838
      %v2095 = vcvt.s32.f32 %v1839
      %v2096 = vcvt.s32.f32 %v1840
      %v2097 = vcvt.s32.f32 %v1841
      %v2098 = vcvt.s32.f32 %v1842
      %v2099 = vcvt.s32.f32 %v1843
      %v2100 = vcvt.s32.f32 %v1844
      %v2101 = vcvt.s32.f32 %v1845
      %v2102 = vcvt.s32.f32 %v1846
      %v2103 = vcvt.s32.f32 %v1847
      %v2104 = vcvt.s32.f32 %v1848
      %v2105 = vcvt.s32.f32 %v1849
      %v2106 = vcvt.s32.f32 %v1850
      %v2107 = vcvt.s32.f32 %v1851
      %v2108 = vcvt.s32.f32 %v1852
      %v2109 = vcvt.s32.f32 %v1853
      %v2110 = vcvt.s32.f32 %v1854
      %v2111 = vcvt.s32.f32 %v1855
      %v2112 = vcvt.s32.f32 %v1856
      %v2113 = vcvt.s32.f32 %v1857
      %v2114 = vcvt.s32.f32 %v1858
      %v2115 = vcvt.s32.f32 %v1859
      %v2116 = vcvt.s32.f32 %v1860
      %v2117 = vcvt.s32.f32 %v1861
      %v2118 = vcvt.s32.f32 %v1862
      %v2119 = vcvt.s32.f32 %v1863
      %v2120 = vcvt.s32.f32 %v1864
      %v2121 = vcvt.s32.f32 %v1865
      %v2122 = vcvt.s32.f32 %v1866
      %v2123 = vcvt.s32.f32 %v1867
      %v2124 = vcvt.s32.f32 %v1868
      %v2125 = vcvt.s32.f32 %v1869
      %v2126 = vcvt.s32.f32 %v1870
      %v2127 = vcvt.s32.f32 %v1871
      %v2128 = vcvt.s32.f32 %v1872
      %v2129 = vcvt.s32.f32 %v1873
      %v2130 = vcvt.s32.f32 %v1874
      %v2131 = vcvt.s32.f32 %v1875
      %v2132 = vcvt.s32.f32 %v1876
      %v2133 = vcvt.s32.f32 %v1877
      %v2134 = vcvt.s32.f32 %v1878
      %v2135 = vcvt.s32.f32 %v1879
      %v2136 = vcvt.s32.f32 %v1880
      %v2137 = vcvt.s32.f32 %v1881
      %v2138 = vcvt.s32.f32 %v1882
      %v2139 = vcvt.s32.f32 %v1883
      %v2140 = vcvt.s32.f32 %v1884
      %v2141 = vcvt.s32.f32 %v1885
      %v2142 = vcvt.s32.f32 %v1886
      %v2143 = vcvt.s32.f32 %v1887
      %v2144 = vcvt.s32.f32 %v1888
      %v2145 = vcvt.s32.f32 %v1889
      %v2146 = vcvt.s32.f32 %v1890
      %v2147 = vcvt.s32.f32 %v1891
      %v2148 = vcvt.s32.f32 %v1892
      %v2149 = vcvt.s32.f32 %v1893
      %v2150 = vcvt.s32.f32 %v1894
      %v2151 = vcvt.s32.f32 %v1895
      %v2152 = vcvt.s32.f32 %v1896
      %v2153 = vcvt.s32.f32 %v1897
      %v2154 = vcvt.s32.f32 %v1898
      %v2155 = vcvt.s32.f32 %v1899
      %v2156 = vcvt.s32.f32 %v1900
      %v2157 = vcvt.s32.f32 %v1901
      %v2158 = vcvt.s32.f32 %v1902
      %v2159 = vcvt.s32.f32 %v1903
      %v2160 = vcvt.s32.f32 %v1904
      %v2161 = vcvt.s32.f32 %v1905
      %v2162 = vcvt.s32.f32 %v1906
      %v2163 = vcvt.s32.f32 %v1907
      %v2164 = vcvt.s32.f32 %v1908
      %v2165 = vcvt.s32.f32 %v1909
      %v2166 = vcvt.s32.f32 %v1910
      %v2167 = vcvt.s32.f32 %v1911
      %v2168 = vcvt.s32.f32 %v1912
      %v2169 = vcvt.s32.f32 %v1913
      %v2170 = vcvt.s32.f32 %v1914
      %v2171 = vcvt.s32.f32 %v1915
      %v2172 = vcvt.s32.f32 %v1916
      %v2173 = vcvt.s32.f32 %v1917
      %v2174 = vcvt.s32.f32 %v1918
      %v2175 = vcvt.s32.f32 %v1919
      %v2176 = vcvt.s32.f32 %v1920
      %v2177 = vcvt.s32.f32 %v1921
      %v2178 = vcvt.s32.f32 %v1922
      %v2179 = vcvt.s32.f32 %v1923
      %v2180 = vcvt.s32.f32 %v1924
      %v2181 = vcvt.s32.f32 %v1925
      %v2182 = vcvt.s32.f32 %v1926
      %v2183 = vcvt.s32.f32 %v1927
      %v2184 = vcvt.s32.f32 %v1928
      %v2185 = vcvt.s32.f32 %v1929
      %v2186 = vcvt.s32.f32 %v1930
      %v2187 = vcvt.s32.f32 %v1931
      %v2188 = vcvt.s32.f32 %v1932
      %v2189 = vcvt.s32.f32 %v1933
      %v2190 = vcvt.s32.f32 %v1934
      %v2191 = vcvt.s32.f32 %v1935
      %v2192 = vcvt.s32.f32 %v1936
      %v2193 = vcvt.s32.f32 %v1937
      %v2194 = vcvt.s32.f32 %v1938
      %v2195 = vcvt.s32.f32 %v1939
      %v2196 = vcvt.s32.f32 %v1940
      %v2197 = vcvt.s32.f32 %v1941
      %v2198 = vcvt.s32.f32 %v1942
      %v2199 = vcvt.s32.f32 %v1943
      %v2200 = vcvt.s32.f32 %v1944
      %v2201 = vcvt.s32.f32 %v1945
      %v2202 = vcvt.s32.f32 %v1946
      %v2203 = vcvt.s32.f32 %v1947
      %v2204 = vcvt.s32.f32 %v1948
      %v2205 = vcvt.s32.f32 %v1949
      %v2206 = vcvt.s32.f32 %v1950
      %v2207 = vcvt.s32.f32 %v1951
      %v2208 = vcvt.s32.f32 %v1952
      %v2209 = vcvt.s32.f32 %v1953
      %v2210 = vcvt.s32.f32 %v1954
      %v2211 = vcvt.s32.f32 %v1955
      %v2212 = vcvt.s32.f32 %v1956
      %v2213 = vcvt.s32.f32 %v1957
      %v2214 = vcvt.s32.f32 %v1958
      %v2215 = vcvt.s32.f32 %v1959
      %v2216 = vcvt.s32.f32 %v1960
      %v2217 = vcvt.s32.f32 %v1961
      %v2218 = vcvt.s32.f32 %v1962
      %v2219 = vcvt.s32.f32 %v1963
      %v2220 = vcvt.s32.f32 %v1964
      %v2221 = vcvt.s32.f32 %v1965
      %v2222 = vcvt.s32.f32 %v1966
      %v2223 = vcvt.s32.f32 %v1967
      %v2224 = vcvt.s32.f32 %v1968
      %v2225 = vcvt.s32.f32 %v1969
      %v2226 = vcvt.s32.f32 %v1970
      %v2227 = vcvt.s32.f32 %v1971
      %v2228 = vcvt.s32.f32 %v1972
      %v2229 = vcvt.s32.f32 %v1973
      %v2230 = vcvt.s32.f32 %v1974
      %v2231 = vcvt.s32.f32 %v1975
      %v2232 = vcvt.s32.f32 %v1976
      %v2233 = vcvt.s32.f32 %v1977
      %v2234 = vcvt.s32.f32 %v1978
      %v2235 = vcvt.s32.f32 %v1979
      %v2236 = vcvt.s32.f32 %v1980
      %v2237 = vcvt.s32.f32 %v1981
      %v2238 = vcvt.s32.f32 %v1982
      %v2239 = vcvt.s32.f32 %v1983
      %v2240 = vcvt.s32.f32 %v1984
      %v2241 = vcvt.s32.f32 %v1985
      %v2242 = vcvt.s32.f32 %v1986
      %v2243 = vcvt.s32.f32 %v1987
      %v2244 = vcvt.s32.f32 %v1988
      %v2245 = vcvt.s32.f32 %v1989
      %v2246 = vcvt.s32.f32 %v1990
      %v2247 = vcvt.s32.f32 %v1991
      %v2248 = vcvt.s32.f32 %v1992
      %v2249 = vcvt.s32.f32 %v1993
      %v2250 = vcvt.s32.f32 %v1994
      %v2251 = vcvt.s32.f32 %v1995
      %v2252 = vcvt.s32.f32 %v1996
      %v2253 = vcvt.s32.f32 %v1997
      %v2254 = vcvt.s32.f32 %v1998
      %v2255 = vcvt.s32.f32 %v1999
      %v2256 = vcvt.s32.f32 %v2000
      %v2257 = vcvt.s32.f32 %v2001
      %v2258 = vcvt.s32.f32 %v2002
      %v2259 = vcvt.s32.f32 %v2003
      %v2260 = vcvt.s32.f32 %v2004
      %v2261 = vcvt.s32.f32 %v2005
      %v2262 = vcvt.s32.f32 %v2006
      %v2263 = vcvt.s32.f32 %v2007
      %v2264 = vcvt.s32.f32 %v2008
      %v2265 = vcvt.s32.f32 %v2009
      %v2266 = vcvt.s32.f32 %v2010
      %v2267 = vcvt.s32.f32 %v2011
      %v2268 = vcvt.s32.f32 %v2012
      %v2269 = vcvt.s32.f32 %v2013
      %v2270 = vcvt.s32.f32 %v2014
      %v2271 = vcvt.s32.f32 %v2015
      %v2272 = vcvt.s32.f32 %v2016
      %v2273 = vcvt.s32.f32 %v2017
      %v2274 = vcvt.s32.f32 %v2018
      %v2275 = vcvt.s32.f32 %v2019
      %v2276 = vcvt.s32.f32 %v2020
      %v2277 = vcvt.s32.f32 %v2021
      %v2278 = vcvt.s32.f32 %v2022
      %v2279 = vcvt.s32.f32 %v2023
      %v2280 = vcvt.s32.f32 %v2024
      %vm2281 = vcmp.eq.f32.partialorder %v2025, 1.0
      %vm2282 = vcmp.eq.f32.partialorder %v2026, 1.0
      %vm2283 = vcmp.eq.f32.partialorder %v2027, 1.0
      %vm2284 = vcmp.eq.f32.partialorder %v2028, 1.0
      %vm2285 = vcmp.eq.f32.partialorder %v2029, 1.0
      %vm2286 = vcmp.eq.f32.partialorder %v2030, 1.0
      %vm2287 = vcmp.eq.f32.partialorder %v2031, 1.0
      %vm2288 = vcmp.eq.f32.partialorder %v2032, 1.0
      %vm2289 = vcmp.eq.f32.partialorder %v2033, 1.0
      %vm2290 = vcmp.eq.f32.partialorder %v2034, 1.0
      %vm2291 = vcmp.eq.f32.partialorder %v2035, 1.0
      %vm2292 = vcmp.eq.f32.partialorder %v2036, 1.0
      %vm2293 = vcmp.eq.f32.partialorder %v2037, 1.0
      %vm2294 = vcmp.eq.f32.partialorder %v2038, 1.0
      %vm2295 = vcmp.eq.f32.partialorder %v2039, 1.0
      %vm2296 = vcmp.eq.f32.partialorder %v2040, 1.0
      %vm2297 = vcmp.eq.f32.partialorder %v2041, 1.0
      %vm2298 = vcmp.eq.f32.partialorder %v2042, 1.0
      %vm2299 = vcmp.eq.f32.partialorder %v2043, 1.0
      %vm2300 = vcmp.eq.f32.partialorder %v2044, 1.0
      %vm2301 = vcmp.eq.f32.partialorder %v2045, 1.0
      %vm2302 = vcmp.eq.f32.partialorder %v2046, 1.0
      %vm2303 = vcmp.eq.f32.partialorder %v2047, 1.0
      %vm2304 = vcmp.eq.f32.partialorder %v2048, 1.0
      %vm2305 = vcmp.eq.f32.partialorder %v2049, 1.0
      %vm2306 = vcmp.eq.f32.partialorder %v2050, 1.0
      %vm2307 = vcmp.eq.f32.partialorder %v2051, 1.0
      %vm2308 = vcmp.eq.f32.partialorder %v2052, 1.0
      %vm2309 = vcmp.eq.f32.partialorder %v2053, 1.0
      %vm2310 = vcmp.eq.f32.partialorder %v2054, 1.0
      %vm2311 = vcmp.eq.f32.partialorder %v2055, 1.0
      %vm2312 = vcmp.eq.f32.partialorder %v2056, 1.0
      %vm2313 = vcmp.eq.f32.partialorder %v2057, 1.0
      %vm2314 = vcmp.eq.f32.partialorder %v2058, 1.0
      %vm2315 = vcmp.eq.f32.partialorder %v2059, 1.0
      %vm2316 = vcmp.eq.f32.partialorder %v2060, 1.0
      %vm2317 = vcmp.eq.f32.partialorder %v2061, 1.0
      %vm2318 = vcmp.eq.f32.partialorder %v2062, 1.0
      %vm2319 = vcmp.eq.f32.partialorder %v2063, 1.0
      %vm2320 = vcmp.eq.f32.partialorder %v2064, 1.0
      %vm2321 = vcmp.eq.f32.partialorder %v2065, 1.0
      %vm2322 = vcmp.eq.f32.partialorder %v2066, 1.0
      %vm2323 = vcmp.eq.f32.partialorder %v2067, 1.0
      %vm2324 = vcmp.eq.f32.partialorder %v2068, 1.0
      %vm2325 = vcmp.eq.f32.partialorder %v2069, 1.0
      %vm2326 = vcmp.eq.f32.partialorder %v2070, 1.0
      %vm2327 = vcmp.eq.f32.partialorder %v2071, 1.0
      %vm2328 = vcmp.eq.f32.partialorder %v2072, 1.0
      %vm2329 = vcmp.eq.f32.partialorder %v2073, 1.0
      %vm2330 = vcmp.eq.f32.partialorder %v2074, 1.0
      %vm2331 = vcmp.eq.f32.partialorder %v2075, 1.0
      %vm2332 = vcmp.eq.f32.partialorder %v2076, 1.0
      %vm2333 = vcmp.eq.f32.partialorder %v2077, 1.0
      %vm2334 = vcmp.eq.f32.partialorder %v2078, 1.0
      %vm2335 = vcmp.eq.f32.partialorder %v2079, 1.0
      %vm2336 = vcmp.eq.f32.partialorder %v2080, 1.0
      %vm2337 = vcmp.eq.f32.partialorder %v2081, 1.0
      %vm2338 = vcmp.eq.f32.partialorder %v2082, 1.0
      %vm2339 = vcmp.eq.f32.partialorder %v2083, 1.0
      %vm2340 = vcmp.eq.f32.partialorder %v2084, 1.0
      %vm2341 = vcmp.eq.f32.partialorder %v2085, 1.0
      %vm2342 = vcmp.eq.f32.partialorder %v2086, 1.0
      %vm2343 = vcmp.eq.f32.partialorder %v2087, 1.0
      %vm2344 = vcmp.eq.f32.partialorder %v2088, 1.0
      %vm2345 = vcmp.eq.f32.partialorder %v2089, 1.0
      %vm2346 = vcmp.eq.f32.partialorder %v2090, 1.0
      %vm2347 = vcmp.eq.f32.partialorder %v2091, 1.0
      %vm2348 = vcmp.eq.f32.partialorder %v2092, 1.0
      %vm2349 = vcmp.eq.f32.partialorder %v2093, 1.0
      %vm2350 = vcmp.eq.f32.partialorder %v2094, 1.0
      %vm2351 = vcmp.eq.f32.partialorder %v2095, 1.0
      %vm2352 = vcmp.eq.f32.partialorder %v2096, 1.0
      %vm2353 = vcmp.eq.f32.partialorder %v2097, 1.0
      %vm2354 = vcmp.eq.f32.partialorder %v2098, 1.0
      %vm2355 = vcmp.eq.f32.partialorder %v2099, 1.0
      %vm2356 = vcmp.eq.f32.partialorder %v2100, 1.0
      %vm2357 = vcmp.eq.f32.partialorder %v2101, 1.0
      %vm2358 = vcmp.eq.f32.partialorder %v2102, 1.0
      %vm2359 = vcmp.eq.f32.partialorder %v2103, 1.0
      %vm2360 = vcmp.eq.f32.partialorder %v2104, 1.0
      %vm2361 = vcmp.eq.f32.partialorder %v2105, 1.0
      %vm2362 = vcmp.eq.f32.partialorder %v2106, 1.0
      %vm2363 = vcmp.eq.f32.partialorder %v2107, 1.0
      %vm2364 = vcmp.eq.f32.partialorder %v2108, 1.0
      %vm2365 = vcmp.eq.f32.partialorder %v2109, 1.0
      %vm2366 = vcmp.eq.f32.partialorder %v2110, 1.0
      %vm2367 = vcmp.eq.f32.partialorder %v2111, 1.0
      %vm2368 = vcmp.eq.f32.partialorder %v2112, 1.0
      %vm2369 = vcmp.eq.f32.partialorder %v2113, 1.0
      %vm2370 = vcmp.eq.f32.partialorder %v2114, 1.0
      %vm2371 = vcmp.eq.f32.partialorder %v2115, 1.0
      %vm2372 = vcmp.eq.f32.partialorder %v2116, 1.0
      %vm2373 = vcmp.eq.f32.partialorder %v2117, 1.0
      %vm2374 = vcmp.eq.f32.partialorder %v2118, 1.0
      %vm2375 = vcmp.eq.f32.partialorder %v2119, 1.0
      %vm2376 = vcmp.eq.f32.partialorder %v2120, 1.0
      %vm2377 = vcmp.eq.f32.partialorder %v2121, 1.0
      %vm2378 = vcmp.eq.f32.partialorder %v2122, 1.0
      %vm2379 = vcmp.eq.f32.partialorder %v2123, 1.0
      %vm2380 = vcmp.eq.f32.partialorder %v2124, 1.0
      %vm2381 = vcmp.eq.f32.partialorder %v2125, 1.0
      %vm2382 = vcmp.eq.f32.partialorder %v2126, 1.0
      %vm2383 = vcmp.eq.f32.partialorder %v2127, 1.0
      %vm2384 = vcmp.eq.f32.partialorder %v2128, 1.0
      %vm2385 = vcmp.eq.f32.partialorder %v2129, 1.0
      %vm2386 = vcmp.eq.f32.partialorder %v2130, 1.0
      %vm2387 = vcmp.eq.f32.partialorder %v2131, 1.0
      %vm2388 = vcmp.eq.f32.partialorder %v2132, 1.0
      %vm2389 = vcmp.eq.f32.partialorder %v2133, 1.0
      %vm2390 = vcmp.eq.f32.partialorder %v2134, 1.0
      %vm2391 = vcmp.eq.f32.partialorder %v2135, 1.0
      %vm2392 = vcmp.eq.f32.partialorder %v2136, 1.0
      %vm2393 = vcmp.eq.f32.partialorder %v2137, 1.0
      %vm2394 = vcmp.eq.f32.partialorder %v2138, 1.0
      %vm2395 = vcmp.eq.f32.partialorder %v2139, 1.0
      %vm2396 = vcmp.eq.f32.partialorder %v2140, 1.0
      %vm2397 = vcmp.eq.f32.partialorder %v2141, 1.0
      %vm2398 = vcmp.eq.f32.partialorder %v2142, 1.0
      %vm2399 = vcmp.eq.f32.partialorder %v2143, 1.0
      %vm2400 = vcmp.eq.f32.partialorder %v2144, 1.0
      %vm2401 = vcmp.eq.f32.partialorder %v2145, 1.0
      %vm2402 = vcmp.eq.f32.partialorder %v2146, 1.0
      %vm2403 = vcmp.eq.f32.partialorder %v2147, 1.0
      %vm2404 = vcmp.eq.f32.partialorder %v2148, 1.0
      %vm2405 = vcmp.eq.f32.partialorder %v2149, 1.0
      %vm2406 = vcmp.eq.f32.partialorder %v2150, 1.0
      %vm2407 = vcmp.eq.f32.partialorder %v2151, 1.0
      %vm2408 = vcmp.eq.f32.partialorder %v2152, 1.0
      %vm2409 = vcmp.eq.f32.partialorder %v2153, 1.0
      %vm2410 = vcmp.eq.f32.partialorder %v2154, 1.0
      %vm2411 = vcmp.eq.f32.partialorder %v2155, 1.0
      %vm2412 = vcmp.eq.f32.partialorder %v2156, 1.0
      %vm2413 = vcmp.eq.f32.partialorder %v2157, 1.0
      %vm2414 = vcmp.eq.f32.partialorder %v2158, 1.0
      %vm2415 = vcmp.eq.f32.partialorder %v2159, 1.0
      %vm2416 = vcmp.eq.f32.partialorder %v2160, 1.0
      %vm2417 = vcmp.eq.f32.partialorder %v2161, 1.0
      %vm2418 = vcmp.eq.f32.partialorder %v2162, 1.0
      %vm2419 = vcmp.eq.f32.partialorder %v2163, 1.0
      %vm2420 = vcmp.eq.f32.partialorder %v2164, 1.0
      %vm2421 = vcmp.eq.f32.partialorder %v2165, 1.0
      %vm2422 = vcmp.eq.f32.partialorder %v2166, 1.0
      %vm2423 = vcmp.eq.f32.partialorder %v2167, 1.0
      %vm2424 = vcmp.eq.f32.partialorder %v2168, 1.0
      %vm2425 = vcmp.eq.f32.partialorder %v2169, 1.0
      %vm2426 = vcmp.eq.f32.partialorder %v2170, 1.0
      %vm2427 = vcmp.eq.f32.partialorder %v2171, 1.0
      %vm2428 = vcmp.eq.f32.partialorder %v2172, 1.0
      %vm2429 = vcmp.eq.f32.partialorder %v2173, 1.0
      %vm2430 = vcmp.eq.f32.partialorder %v2174, 1.0
      %vm2431 = vcmp.eq.f32.partialorder %v2175, 1.0
      %vm2432 = vcmp.eq.f32.partialorder %v2176, 1.0
      %vm2433 = vcmp.eq.f32.partialorder %v2177, 1.0
      %vm2434 = vcmp.eq.f32.partialorder %v2178, 1.0
      %vm2435 = vcmp.eq.f32.partialorder %v2179, 1.0
      %vm2436 = vcmp.eq.f32.partialorder %v2180, 1.0
      %vm2437 = vcmp.eq.f32.partialorder %v2181, 1.0
      %vm2438 = vcmp.eq.f32.partialorder %v2182, 1.0
      %vm2439 = vcmp.eq.f32.partialorder %v2183, 1.0
      %vm2440 = vcmp.eq.f32.partialorder %v2184, 1.0
      %vm2441 = vcmp.eq.f32.partialorder %v2185, 1.0
      %vm2442 = vcmp.eq.f32.partialorder %v2186, 1.0
      %vm2443 = vcmp.eq.f32.partialorder %v2187, 1.0
      %vm2444 = vcmp.eq.f32.partialorder %v2188, 1.0
      %vm2445 = vcmp.eq.f32.partialorder %v2189, 1.0
      %vm2446 = vcmp.eq.f32.partialorder %v2190, 1.0
      %vm2447 = vcmp.eq.f32.partialorder %v2191, 1.0
      %vm2448 = vcmp.eq.f32.partialorder %v2192, 1.0
      %vm2449 = vcmp.eq.f32.partialorder %v2193, 1.0
      %vm2450 = vcmp.eq.f32.partialorder %v2194, 1.0
      %vm2451 = vcmp.eq.f32.partialorder %v2195, 1.0
      %vm2452 = vcmp.eq.f32.partialorder %v2196, 1.0
      %vm2453 = vcmp.eq.f32.partialorder %v2197, 1.0
      %vm2454 = vcmp.eq.f32.partialorder %v2198, 1.0
      %vm2455 = vcmp.eq.f32.partialorder %v2199, 1.0
      %vm2456 = vcmp.eq.f32.partialorder %v2200, 1.0
      %vm2457 = vcmp.eq.f32.partialorder %v2201, 1.0
      %vm2458 = vcmp.eq.f32.partialorder %v2202, 1.0
      %vm2459 = vcmp.eq.f32.partialorder %v2203, 1.0
      %vm2460 = vcmp.eq.f32.partialorder %v2204, 1.0
      %vm2461 = vcmp.eq.f32.partialorder %v2205, 1.0
      %vm2462 = vcmp.eq.f32.partialorder %v2206, 1.0
      %vm2463 = vcmp.eq.f32.partialorder %v2207, 1.0
      %vm2464 = vcmp.eq.f32.partialorder %v2208, 1.0
      %vm2465 = vcmp.eq.f32.partialorder %v2209, 1.0
      %vm2466 = vcmp.eq.f32.partialorder %v2210, 1.0
      %vm2467 = vcmp.eq.f32.partialorder %v2211, 1.0
      %vm2468 = vcmp.eq.f32.partialorder %v2212, 1.0
      %vm2469 = vcmp.eq.f32.partialorder %v2213, 1.0
      %vm2470 = vcmp.eq.f32.partialorder %v2214, 1.0
      %vm2471 = vcmp.eq.f32.partialorder %v2215, 1.0
      %vm2472 = vcmp.eq.f32.partialorder %v2216, 1.0
      %vm2473 = vcmp.eq.f32.partialorder %v2217, 1.0
      %vm2474 = vcmp.eq.f32.partialorder %v2218, 1.0
      %vm2475 = vcmp.eq.f32.partialorder %v2219, 1.0
      %vm2476 = vcmp.eq.f32.partialorder %v2220, 1.0
      %vm2477 = vcmp.eq.f32.partialorder %v2221, 1.0
      %vm2478 = vcmp.eq.f32.partialorder %v2222, 1.0
      %vm2479 = vcmp.eq.f32.partialorder %v2223, 1.0
      %vm2480 = vcmp.eq.f32.partialorder %v2224, 1.0
      %vm2481 = vcmp.eq.f32.partialorder %v2225, 1.0
      %vm2482 = vcmp.eq.f32.partialorder %v2226, 1.0
      %vm2483 = vcmp.eq.f32.partialorder %v2227, 1.0
      %vm2484 = vcmp.eq.f32.partialorder %v2228, 1.0
      %vm2485 = vcmp.eq.f32.partialorder %v2229, 1.0
      %vm2486 = vcmp.eq.f32.partialorder %v2230, 1.0
      %vm2487 = vcmp.eq.f32.partialorder %v2231, 1.0
      %vm2488 = vcmp.eq.f32.partialorder %v2232, 1.0
      %vm2489 = vcmp.eq.f32.partialorder %v2233, 1.0
      %vm2490 = vcmp.eq.f32.partialorder %v2234, 1.0
      %vm2491 = vcmp.eq.f32.partialorder %v2235, 1.0
      %vm2492 = vcmp.eq.f32.partialorder %v2236, 1.0
      %vm2493 = vcmp.eq.f32.partialorder %v2237, 1.0
      %vm2494 = vcmp.eq.f32.partialorder %v2238, 1.0
      %vm2495 = vcmp.eq.f32.partialorder %v2239, 1.0
      %vm2496 = vcmp.eq.f32.partialorder %v2240, 1.0
      %vm2497 = vcmp.eq.f32.partialorder %v2241, 1.0
      %vm2498 = vcmp.eq.f32.partialorder %v2242, 1.0
      %vm2499 = vcmp.eq.f32.partialorder %v2243, 1.0
      %vm2500 = vcmp.eq.f32.partialorder %v2244, 1.0
      %vm2501 = vcmp.eq.f32.partialorder %v2245, 1.0
      %vm2502 = vcmp.eq.f32.partialorder %v2246, 1.0
      %vm2503 = vcmp.eq.f32.partialorder %v2247, 1.0
      %vm2504 = vcmp.eq.f32.partialorder %v2248, 1.0
      %vm2505 = vcmp.eq.f32.partialorder %v2249, 1.0
      %vm2506 = vcmp.eq.f32.partialorder %v2250, 1.0
      %vm2507 = vcmp.eq.f32.partialorder %v2251, 1.0
      %vm2508 = vcmp.eq.f32.partialorder %v2252, 1.0
      %vm2509 = vcmp.eq.f32.partialorder %v2253, 1.0
      %vm2510 = vcmp.eq.f32.partialorder %v2254, 1.0
      %vm2511 = vcmp.eq.f32.partialorder %v2255, 1.0
      %vm2512 = vcmp.eq.f32.partialorder %v2256, 1.0
      %vm2513 = vcmp.eq.f32.partialorder %v2257, 1.0
      %vm2514 = vcmp.eq.f32.partialorder %v2258, 1.0
      %vm2515 = vcmp.eq.f32.partialorder %v2259, 1.0
      %vm2516 = vcmp.eq.f32.partialorder %v2260, 1.0
      %vm2517 = vcmp.eq.f32.partialorder %v2261, 1.0
      %vm2518 = vcmp.eq.f32.partialorder %v2262, 1.0
      %vm2519 = vcmp.eq.f32.partialorder %v2263, 1.0
      %vm2520 = vcmp.eq.f32.partialorder %v2264, 1.0
      %vm2521 = vcmp.eq.f32.partialorder %v2265, 1.0
      %vm2522 = vcmp.eq.f32.partialorder %v2266, 1.0
      %vm2523 = vcmp.eq.f32.partialorder %v2267, 1.0
      %vm2524 = vcmp.eq.f32.partialorder %v2268, 1.0
      %vm2525 = vcmp.eq.f32.partialorder %v2269, 1.0
      %vm2526 = vcmp.eq.f32.partialorder %v2270, 1.0
      %vm2527 = vcmp.eq.f32.partialorder %v2271, 1.0
      %vm2528 = vcmp.eq.f32.partialorder %v2272, 1.0
      %vm2529 = vcmp.eq.f32.partialorder %v2273, 1.0
      %vm2530 = vcmp.eq.f32.partialorder %v2274, 1.0
      %vm2531 = vcmp.eq.f32.partialorder %v2275, 1.0
      %vm2532 = vcmp.eq.f32.partialorder %v2276, 1.0
      %vm2533 = vcmp.eq.f32.partialorder %v2277, 1.0
      %vm2534 = vcmp.eq.f32.partialorder %v2278, 1.0
      %vm2535 = vcmp.eq.f32.partialorder %v2279, 1.0
      %vm2536 = vcmp.eq.f32.partialorder %v2280, 1.0
      %vm2537 = vmand %vm681, %vm2281
      %vm2538 = vmand %vm682, %vm2282
      %vm2539 = vmand %vm683, %vm2283
      %vm2540 = vmand %vm684, %vm2284
      %vm2541 = vmand %vm685, %vm2285
      %vm2542 = vmand %vm686, %vm2286
      %vm2543 = vmand %vm687, %vm2287
      %vm2544 = vmand %vm688, %vm2288
      %vm2545 = vmand %vm689, %vm2289
      %vm2546 = vmand %vm690, %vm2290
      %vm2547 = vmand %vm691, %vm2291
      %vm2548 = vmand %vm692, %vm2292
      %vm2549 = vmand %vm693, %vm2293
      %vm2550 = vmand %vm694, %vm2294
      %vm2551 = vmand %vm695, %vm2295
      %vm2552 = vmand %vm696, %vm2296
      %vm2553 = vmand %vm697, %vm2297
      %vm2554 = vmand %vm698, %vm2298
      %vm2555 = vmand %vm699, %vm2299
      %vm2556 = vmand %vm700, %vm2300
      %vm2557 = vmand %vm701, %vm2301
      %vm2558 = vmand %vm702, %vm2302
      %vm2559 = vmand %vm703, %vm2303
      %vm2560 = vmand %vm704, %vm2304
      %vm2561 = vmand %vm705, %vm2305
      %vm2562 = vmand %vm706, %vm2306
      %vm2563 = vmand %vm707, %vm2307
      %vm2564 = vmand %vm708, %vm2308
      %vm2565 = vmand %vm709, %vm2309
      %vm2566 = vmand %vm710, %vm2310
      %vm2567 = vmand %vm711, %vm2311
      %vm2568 = vmand %vm712, %vm2312
      %vm2569 = vmand %vm713, %vm2313
      %vm2570 = vmand %vm714, %vm2314
      %vm2571 = vmand %vm715, %vm2315
      %vm2572 = vmand %vm716, %vm2316
      %vm2573 = vmand %vm717, %vm2317
      %vm2574 = vmand %vm718, %vm2318
      %vm2575 = vmand %vm719, %vm2319
      %vm2576 = vmand %vm720, %vm2320
      %vm2577 = vmand %vm721, %vm2321
      %vm2578 = vmand %vm722, %vm2322
      %vm2579 = vmand %vm723, %vm2323
      %vm2580 = vmand %vm724, %vm2324
      %vm2581 = vmand %vm725, %vm2325
      %vm2582 = vmand %vm726, %vm2326
      %vm2583 = vmand %vm727, %vm2327
      %vm2584 = vmand %vm728, %vm2328
      %vm2585 = vmand %vm729, %vm2329
      %vm2586 = vmand %vm730, %vm2330
      %vm2587 = vmand %vm731, %vm2331
      %vm2588 = vmand %vm732, %vm2332
      %vm2589 = vmand %vm733, %vm2333
      %vm2590 = vmand %vm734, %vm2334
      %vm2591 = vmand %vm735, %vm2335
      %vm2592 = vmand %vm736, %vm2336
      %vm2593 = vmand %vm737, %vm2337
      %vm2594 = vmand %vm738, %vm2338
      %vm2595 = vmand %vm739, %vm2339
      %vm2596 = vmand %vm740, %vm2340
      %vm2597 = vmand %vm741, %vm2341
      %vm2598 = vmand %vm742, %vm2342
      %vm2599 = vmand %vm743, %vm2343
      %vm2600 = vmand %vm744, %vm2344
      %vm2601 = vmand %vm745, %vm2345
      %vm2602 = vmand %vm746, %vm2346
      %vm2603 = vmand %vm747, %vm2347
      %vm2604 = vmand %vm748, %vm2348
      %vm2605 = vmand %vm749, %vm2349
      %vm2606 = vmand %vm750, %vm2350
      %vm2607 = vmand %vm751, %vm2351
      %vm2608 = vmand %vm752, %vm2352
      %vm2609 = vmand %vm753, %vm2353
      %vm2610 = vmand %vm754, %vm2354
      %vm2611 = vmand %vm755, %vm2355
      %vm2612 = vmand %vm756, %vm2356
      %vm2613 = vmand %vm757, %vm2357
      %vm2614 = vmand %vm758, %vm2358
      %vm2615 = vmand %vm759, %vm2359
      %vm2616 = vmand %vm760, %vm2360
      %vm2617 = vmand %vm761, %vm2361
      %vm2618 = vmand %vm762, %vm2362
      %vm2619 = vmand %vm763, %vm2363
      %vm2620 = vmand %vm764, %vm2364
      %vm2621 = vmand %vm765, %vm2365
      %vm2622 = vmand %vm766, %vm2366
      %vm2623 = vmand %vm767, %vm2367
      %vm2624 = vmand %vm768, %vm2368
      %vm2625 = vmand %vm769, %vm2369
      %vm2626 = vmand %vm770, %vm2370
      %vm2627 = vmand %vm771, %vm2371
      %vm2628 = vmand %vm772, %vm2372
      %vm2629 = vmand %vm773, %vm2373
      %vm2630 = vmand %vm774, %vm2374
      %vm2631 = vmand %vm775, %vm2375
      %vm2632 = vmand %vm776, %vm2376
      %vm2633 = vmand %vm777, %vm2377
      %vm2634 = vmand %vm778, %vm2378
      %vm2635 = vmand %vm779, %vm2379
      %vm2636 = vmand %vm780, %vm2380
      %vm2637 = vmand %vm781, %vm2381
      %vm2638 = vmand %vm782, %vm2382
      %vm2639 = vmand %vm783, %vm2383
      %vm2640 = vmand %vm784, %vm2384
      %vm2641 = vmand %vm785, %vm2385
      %vm2642 = vmand %vm786, %vm2386
      %vm2643 = vmand %vm787, %vm2387
      %vm2644 = vmand %vm788, %vm2388
      %vm2645 = vmand %vm789, %vm2389
      %vm2646 = vmand %vm790, %vm2390
      %vm2647 = vmand %vm791, %vm2391
      %vm2648 = vmand %vm792, %vm2392
      %vm2649 = vmand %vm793, %vm2393
      %vm2650 = vmand %vm794, %vm2394
      %vm2651 = vmand %vm795, %vm2395
      %vm2652 = vmand %vm796, %vm2396
      %vm2653 = vmand %vm797, %vm2397
      %vm2654 = vmand %vm798, %vm2398
      %vm2655 = vmand %vm799, %vm2399
      %vm2656 = vmand %vm800, %vm2400
      %vm2657 = vmand %vm801, %vm2401
      %vm2658 = vmand %vm802, %vm2402
      %vm2659 = vmand %vm803, %vm2403
      %vm2660 = vmand %vm804, %vm2404
      %vm2661 = vmand %vm805, %vm2405
      %vm2662 = vmand %vm806, %vm2406
      %vm2663 = vmand %vm807, %vm2407
      %vm2664 = vmand %vm808, %vm2408
      %vm2665 = vmand %vm809, %vm2409
      %vm2666 = vmand %vm810, %vm2410
      %vm2667 = vmand %vm811, %vm2411
      %vm2668 = vmand %vm812, %vm2412
      %vm2669 = vmand %vm813, %vm2413
      %vm2670 = vmand %vm814, %vm2414
      %vm2671 = vmand %vm815, %vm2415
      %vm2672 = vmand %vm816, %vm2416
      %vm2673 = vmand %vm817, %vm2417
      %vm2674 = vmand %vm818, %vm2418
      %vm2675 = vmand %vm819, %vm2419
      %vm2676 = vmand %vm820, %vm2420
      %vm2677 = vmand %vm821, %vm2421
      %vm2678 = vmand %vm822, %vm2422
      %vm2679 = vmand %vm823, %vm2423
      %vm2680 = vmand %vm824, %vm2424
      %vm2681 = vmand %vm825, %vm2425
      %vm2682 = vmand %vm826, %vm2426
      %vm2683 = vmand %vm827, %vm2427
      %vm2684 = vmand %vm828, %vm2428
      %vm2685 = vmand %vm829, %vm2429
      %vm2686 = vmand %vm830, %vm2430
      %vm2687 = vmand %vm831, %vm2431
      %vm2688 = vmand %vm832, %vm2432
      %vm2689 = vmand %vm833, %vm2433
      %vm2690 = vmand %vm834, %vm2434
      %vm2691 = vmand %vm835, %vm2435
      %vm2692 = vmand %vm836, %vm2436
      %vm2693 = vmand %vm837, %vm2437
      %vm2694 = vmand %vm838, %vm2438
      %vm2695 = vmand %vm839, %vm2439
      %vm2696 = vmand %vm840, %vm2440
      %vm2697 = vmand %vm841, %vm2441
      %vm2698 = vmand %vm842, %vm2442
      %vm2699 = vmand %vm843, %vm2443
      %vm2700 = vmand %vm844, %vm2444
      %vm2701 = vmand %vm845, %vm2445
      %vm2702 = vmand %vm846, %vm2446
      %vm2703 = vmand %vm847, %vm2447
      %vm2704 = vmand %vm848, %vm2448
      %vm2705 = vmand %vm849, %vm2449
      %vm2706 = vmand %vm850, %vm2450
      %vm2707 = vmand %vm851, %vm2451
      %vm2708 = vmand %vm852, %vm2452
      %vm2709 = vmand %vm853, %vm2453
      %vm2710 = vmand %vm854, %vm2454
      %vm2711 = vmand %vm855, %vm2455
      %vm2712 = vmand %vm856, %vm2456
      %vm2713 = vmand %vm857, %vm2457
      %vm2714 = vmand %vm858, %vm2458
      %vm2715 = vmand %vm859, %vm2459
      %vm2716 = vmand %vm860, %vm2460
      %vm2717 = vmand %vm861, %vm2461
      %vm2718 = vmand %vm862, %vm2462
      %vm2719 = vmand %vm863, %vm2463
      %vm2720 = vmand %vm864, %vm2464
      %vm2721 = vmand %vm865, %vm2465
      %vm2722 = vmand %vm866, %vm2466
      %vm2723 = vmand %vm867, %vm2467
      %vm2724 = vmand %vm868, %vm2468
      %vm2725 = vmand %vm869, %vm2469
      %vm2726 = vmand %vm870, %vm2470
      %vm2727 = vmand %vm871, %vm2471
      %vm2728 = vmand %vm872, %vm2472
      %vm2729 = vmand %vm873, %vm2473
      %vm2730 = vmand %vm874, %vm2474
      %vm2731 = vmand %vm875, %vm2475
      %vm2732 = vmand %vm876, %vm2476
      %vm2733 = vmand %vm877, %vm2477
      %vm2734 = vmand %vm878, %vm2478
      %vm2735 = vmand %vm879, %vm2479
      %vm2736 = vmand %vm880, %vm2480
      %vm2737 = vmand %vm881, %vm2481
      %vm2738 = vmand %vm882, %vm2482
      %vm2739 = vmand %vm883, %vm2483
      %vm2740 = vmand %vm884, %vm2484
      %vm2741 = vmand %vm885, %vm2485
      %vm2742 = vmand %vm886, %vm2486
      %vm2743 = vmand %vm887, %vm2487
      %vm2744 = vmand %vm888, %vm2488
      %vm2745 = vmand %vm889, %vm2489
      %vm2746 = vmand %vm890, %vm2490
      %vm2747 = vmand %vm891, %vm2491
      %vm2748 = vmand %vm892, %vm2492
      %vm2749 = vmand %vm893, %vm2493
      %vm2750 = vmand %vm894, %vm2494
      %vm2751 = vmand %vm895, %vm2495
      %vm2752 = vmand %vm896, %vm2496
      %vm2753 = vmand %vm897, %vm2497
      %vm2754 = vmand %vm898, %vm2498
      %vm2755 = vmand %vm899, %vm2499
      %vm2756 = vmand %vm900, %vm2500
      %vm2757 = vmand %vm901, %vm2501
      %vm2758 = vmand %vm902, %vm2502
      %vm2759 = vmand %vm903, %vm2503
      %vm2760 = vmand %vm904, %vm2504
      %vm2761 = vmand %vm905, %vm2505
      %vm2762 = vmand %vm906, %vm2506
      %vm2763 = vmand %vm907, %vm2507
      %vm2764 = vmand %vm908, %vm2508
      %vm2765 = vmand %vm909, %vm2509
      %vm2766 = vmand %vm910, %vm2510
      %vm2767 = vmand %vm911, %vm2511
      %vm2768 = vmand %vm912, %vm2512
      %vm2769 = vmand %vm913, %vm2513
      %vm2770 = vmand %vm914, %vm2514
      %vm2771 = vmand %vm915, %vm2515
      %vm2772 = vmand %vm916, %vm2516
      %vm2773 = vmand %vm917, %vm2517
      %vm2774 = vmand %vm918, %vm2518
      %vm2775 = vmand %vm919, %vm2519
      %vm2776 = vmand %vm920, %vm2520
      %vm2777 = vmand %vm921, %vm2521
      %vm2778 = vmand %vm922, %vm2522
      %vm2779 = vmand %vm923, %vm2523
      %vm2780 = vmand %vm924, %vm2524
      %vm2781 = vmand %vm925, %vm2525
      %vm2782 = vmand %vm926, %vm2526
      %vm2783 = vmand %vm927, %vm2527
      %vm2784 = vmand %vm928, %vm2528
      %vm2785 = vmand %vm929, %vm2529
      %vm2786 = vmand %vm930, %vm2530
      %vm2787 = vmand %vm931, %vm2531
      %vm2788 = vmand %vm932, %vm2532
      %vm2789 = vmand %vm933, %vm2533
      %vm2790 = vmand %vm934, %vm2534
      %vm2791 = vmand %vm935, %vm2535
      %vm2792 = vmand %vm936, %vm2536
      %vm2793 = vcmp.eq.f32.partialorder %v2025, 0.0
      %vm2794 = vcmp.eq.f32.partialorder %v2026, 0.0
      %vm2795 = vcmp.eq.f32.partialorder %v2027, 0.0
      %vm2796 = vcmp.eq.f32.partialorder %v2028, 0.0
      %vm2797 = vcmp.eq.f32.partialorder %v2029, 0.0
      %vm2798 = vcmp.eq.f32.partialorder %v2030, 0.0
      %vm2799 = vcmp.eq.f32.partialorder %v2031, 0.0
      %vm2800 = vcmp.eq.f32.partialorder %v2032, 0.0
      %vm2801 = vcmp.eq.f32.partialorder %v2033, 0.0
      %vm2802 = vcmp.eq.f32.partialorder %v2034, 0.0
      %vm2803 = vcmp.eq.f32.partialorder %v2035, 0.0
      %vm2804 = vcmp.eq.f32.partialorder %v2036, 0.0
      %vm2805 = vcmp.eq.f32.partialorder %v2037, 0.0
      %vm2806 = vcmp.eq.f32.partialorder %v2038, 0.0
      %vm2807 = vcmp.eq.f32.partialorder %v2039, 0.0
      %vm2808 = vcmp.eq.f32.partialorder %v2040, 0.0
      %vm2809 = vcmp.eq.f32.partialorder %v2041, 0.0
      %vm2810 = vcmp.eq.f32.partialorder %v2042, 0.0
      %vm2811 = vcmp.eq.f32.partialorder %v2043, 0.0
      %vm2812 = vcmp.eq.f32.partialorder %v2044, 0.0
      %vm2813 = vcmp.eq.f32.partialorder %v2045, 0.0
      %vm2814 = vcmp.eq.f32.partialorder %v2046, 0.0
      %vm2815 = vcmp.eq.f32.partialorder %v2047, 0.0
      %vm2816 = vcmp.eq.f32.partialorder %v2048, 0.0
      %vm2817 = vcmp.eq.f32.partialorder %v2049, 0.0
      %vm2818 = vcmp.eq.f32.partialorder %v2050, 0.0
      %vm2819 = vcmp.eq.f32.partialorder %v2051, 0.0
      %vm2820 = vcmp.eq.f32.partialorder %v2052, 0.0
      %vm2821 = vcmp.eq.f32.partialorder %v2053, 0.0
      %vm2822 = vcmp.eq.f32.partialorder %v2054, 0.0
      %vm2823 = vcmp.eq.f32.partialorder %v2055, 0.0
      %vm2824 = vcmp.eq.f32.partialorder %v2056, 0.0
      %vm2825 = vcmp.eq.f32.partialorder %v2057, 0.0
      %vm2826 = vcmp.eq.f32.partialorder %v2058, 0.0
      %vm2827 = vcmp.eq.f32.partialorder %v2059, 0.0
      %vm2828 = vcmp.eq.f32.partialorder %v2060, 0.0
      %vm2829 = vcmp.eq.f32.partialorder %v2061, 0.0
      %vm2830 = vcmp.eq.f32.partialorder %v2062, 0.0
      %vm2831 = vcmp.eq.f32.partialorder %v2063, 0.0
      %vm2832 = vcmp.eq.f32.partialorder %v2064, 0.0
      %vm2833 = vcmp.eq.f32.partialorder %v2065, 0.0
      %vm2834 = vcmp.eq.f32.partialorder %v2066, 0.0
      %vm2835 = vcmp.eq.f32.partialorder %v2067, 0.0
      %vm2836 = vcmp.eq.f32.partialorder %v2068, 0.0
      %vm2837 = vcmp.eq.f32.partialorder %v2069, 0.0
      %vm2838 = vcmp.eq.f32.partialorder %v2070, 0.0
      %vm2839 = vcmp.eq.f32.partialorder %v2071, 0.0
      %vm2840 = vcmp.eq.f32.partialorder %v2072, 0.0
      %vm2841 = vcmp.eq.f32.partialorder %v2073, 0.0
      %vm2842 = vcmp.eq.f32.partialorder %v2074, 0.0
      %vm2843 = vcmp.eq.f32.partialorder %v2075, 0.0
      %vm2844 = vcmp.eq.f32.partialorder %v2076, 0.0
      %vm2845 = vcmp.eq.f32.partialorder %v2077, 0.0
      %vm2846 = vcmp.eq.f32.partialorder %v2078, 0.0
      %vm2847 = vcmp.eq.f32.partialorder %v2079, 0.0
      %vm2848 = vcmp.eq.f32.partialorder %v2080, 0.0
      %vm2849 = vcmp.eq.f32.partialorder %v2081, 0.0
      %vm2850 = vcmp.eq.f32.partialorder %v2082, 0.0
      %vm2851 = vcmp.eq.f32.partialorder %v2083, 0.0
      %vm2852 = vcmp.eq.f32.partialorder %v2084, 0.0
      %vm2853 = vcmp.eq.f32.partialorder %v2085, 0.0
      %vm2854 = vcmp.eq.f32.partialorder %v2086, 0.0
      %vm2855 = vcmp.eq.f32.partialorder %v2087, 0.0
      %vm2856 = vcmp.eq.f32.partialorder %v2088, 0.0
      %vm2857 = vcmp.eq.f32.partialorder %v2089, 0.0
      %vm2858 = vcmp.eq.f32.partialorder %v2090, 0.0
      %vm2859 = vcmp.eq.f32.partialorder %v2091, 0.0
      %vm2860 = vcmp.eq.f32.partialorder %v2092, 0.0
      %vm2861 = vcmp.eq.f32.partialorder %v2093, 0.0
      %vm2862 = vcmp.eq.f32.partialorder %v2094, 0.0
      %vm2863 = vcmp.eq.f32.partialorder %v2095, 0.0
      %vm2864 = vcmp.eq.f32.partialorder %v2096, 0.0
      %vm2865 = vcmp.eq.f32.partialorder %v2097, 0.0
      %vm2866 = vcmp.eq.f32.partialorder %v2098, 0.0
      %vm2867 = vcmp.eq.f32.partialorder %v2099, 0.0
      %vm2868 = vcmp.eq.f32.partialorder %v2100, 0.0
      %vm2869 = vcmp.eq.f32.partialorder %v2101, 0.0
      %vm2870 = vcmp.eq.f32.partialorder %v2102, 0.0
      %vm2871 = vcmp.eq.f32.partialorder %v2103, 0.0
      %vm2872 = vcmp.eq.f32.partialorder %v2104, 0.0
      %vm2873 = vcmp.eq.f32.partialorder %v2105, 0.0
      %vm2874 = vcmp.eq.f32.partialorder %v2106, 0.0
      %vm2875 = vcmp.eq.f32.partialorder %v2107, 0.0
      %vm2876 = vcmp.eq.f32.partialorder %v2108, 0.0
      %vm2877 = vcmp.eq.f32.partialorder %v2109, 0.0
      %vm2878 = vcmp.eq.f32.partialorder %v2110, 0.0
      %vm2879 = vcmp.eq.f32.partialorder %v2111, 0.0
      %vm2880 = vcmp.eq.f32.partialorder %v2112, 0.0
      %vm2881 = vcmp.eq.f32.partialorder %v2113, 0.0
      %vm2882 = vcmp.eq.f32.partialorder %v2114, 0.0
      %vm2883 = vcmp.eq.f32.partialorder %v2115, 0.0
      %vm2884 = vcmp.eq.f32.partialorder %v2116, 0.0
      %vm2885 = vcmp.eq.f32.partialorder %v2117, 0.0
      %vm2886 = vcmp.eq.f32.partialorder %v2118, 0.0
      %vm2887 = vcmp.eq.f32.partialorder %v2119, 0.0
      %vm2888 = vcmp.eq.f32.partialorder %v2120, 0.0
      %vm2889 = vcmp.eq.f32.partialorder %v2121, 0.0
      %vm2890 = vcmp.eq.f32.partialorder %v2122, 0.0
      %vm2891 = vcmp.eq.f32.partialorder %v2123, 0.0
      %vm2892 = vcmp.eq.f32.partialorder %v2124, 0.0
      %vm2893 = vcmp.eq.f32.partialorder %v2125, 0.0
      %vm2894 = vcmp.eq.f32.partialorder %v2126, 0.0
      %vm2895 = vcmp.eq.f32.partialorder %v2127, 0.0
      %vm2896 = vcmp.eq.f32.partialorder %v2128, 0.0
      %vm2897 = vcmp.eq.f32.partialorder %v2129, 0.0
      %vm2898 = vcmp.eq.f32.partialorder %v2130, 0.0
      %vm2899 = vcmp.eq.f32.partialorder %v2131, 0.0
      %vm2900 = vcmp.eq.f32.partialorder %v2132, 0.0
      %vm2901 = vcmp.eq.f32.partialorder %v2133, 0.0
      %vm2902 = vcmp.eq.f32.partialorder %v2134, 0.0
      %vm2903 = vcmp.eq.f32.partialorder %v2135, 0.0
      %vm2904 = vcmp.eq.f32.partialorder %v2136, 0.0
      %vm2905 = vcmp.eq.f32.partialorder %v2137, 0.0
      %vm2906 = vcmp.eq.f32.partialorder %v2138, 0.0
      %vm2907 = vcmp.eq.f32.partialorder %v2139, 0.0
      %vm2908 = vcmp.eq.f32.partialorder %v2140, 0.0
      %vm2909 = vcmp.eq.f32.partialorder %v2141, 0.0
      %vm2910 = vcmp.eq.f32.partialorder %v2142, 0.0
      %vm2911 = vcmp.eq.f32.partialorder %v2143, 0.0
      %vm2912 = vcmp.eq.f32.partialorder %v2144, 0.0
      %vm2913 = vcmp.eq.f32.partialorder %v2145, 0.0
      %vm2914 = vcmp.eq.f32.partialorder %v2146, 0.0
      %vm2915 = vcmp.eq.f32.partialorder %v2147, 0.0
      %vm2916 = vcmp.eq.f32.partialorder %v2148, 0.0
      %vm2917 = vcmp.eq.f32.partialorder %v2149, 0.0
      %vm2918 = vcmp.eq.f32.partialorder %v2150, 0.0
      %vm2919 = vcmp.eq.f32.partialorder %v2151, 0.0
      %vm2920 = vcmp.eq.f32.partialorder %v2152, 0.0
      %vm2921 = vcmp.eq.f32.partialorder %v2153, 0.0
      %vm2922 = vcmp.eq.f32.partialorder %v2154, 0.0
      %vm2923 = vcmp.eq.f32.partialorder %v2155, 0.0
      %vm2924 = vcmp.eq.f32.partialorder %v2156, 0.0
      %vm2925 = vcmp.eq.f32.partialorder %v2157, 0.0
      %vm2926 = vcmp.eq.f32.partialorder %v2158, 0.0
      %vm2927 = vcmp.eq.f32.partialorder %v2159, 0.0
      %vm2928 = vcmp.eq.f32.partialorder %v2160, 0.0
      %vm2929 = vcmp.eq.f32.partialorder %v2161, 0.0
      %vm2930 = vcmp.eq.f32.partialorder %v2162, 0.0
      %vm2931 = vcmp.eq.f32.partialorder %v2163, 0.0
      %vm2932 = vcmp.eq.f32.partialorder %v2164, 0.0
      %vm2933 = vcmp.eq.f32.partialorder %v2165, 0.0
      %vm2934 = vcmp.eq.f32.partialorder %v2166, 0.0
      %vm2935 = vcmp.eq.f32.partialorder %v2167, 0.0
      %vm2936 = vcmp.eq.f32.partialorder %v2168, 0.0
      %vm2937 = vcmp.eq.f32.partialorder %v2169, 0.0
      %vm2938 = vcmp.eq.f32.partialorder %v2170, 0.0
      %vm2939 = vcmp.eq.f32.partialorder %v2171, 0.0
      %vm2940 = vcmp.eq.f32.partialorder %v2172, 0.0
      %vm2941 = vcmp.eq.f32.partialorder %v2173, 0.0
      %vm2942 = vcmp.eq.f32.partialorder %v2174, 0.0
      %vm2943 = vcmp.eq.f32.partialorder %v2175, 0.0
      %vm2944 = vcmp.eq.f32.partialorder %v2176, 0.0
      %vm2945 = vcmp.eq.f32.partialorder %v2177, 0.0
      %vm2946 = vcmp.eq.f32.partialorder %v2178, 0.0
      %vm2947 = vcmp.eq.f32.partialorder %v2179, 0.0
      %vm2948 = vcmp.eq.f32.partialorder %v2180, 0.0
      %vm2949 = vcmp.eq.f32.partialorder %v2181, 0.0
      %vm2950 = vcmp.eq.f32.partialorder %v2182, 0.0
      %vm2951 = vcmp.eq.f32.partialorder %v2183, 0.0
      %vm2952 = vcmp.eq.f32.partialorder %v2184, 0.0
      %vm2953 = vcmp.eq.f32.partialorder %v2185, 0.0
      %vm2954 = vcmp.eq.f32.partialorder %v2186, 0.0
      %vm2955 = vcmp.eq.f32.partialorder %v2187, 0.0
      %vm2956 = vcmp.eq.f32.partialorder %v2188, 0.0
      %vm2957 = vcmp.eq.f32.partialorder %v2189, 0.0
      %vm2958 = vcmp.eq.f32.partialorder %v2190, 0.0
      %vm2959 = vcmp.eq.f32.partialorder %v2191, 0.0
      %vm2960 = vcmp.eq.f32.partialorder %v2192, 0.0
      %vm2961 = vcmp.eq.f32.partialorder %v2193, 0.0
      %vm2962 = vcmp.eq.f32.partialorder %v2194, 0.0
      %vm2963 = vcmp.eq.f32.partialorder %v2195, 0.0
      %vm2964 = vcmp.eq.f32.partialorder %v2196, 0.0
      %vm2965 = vcmp.eq.f32.partialorder %v2197, 0.0
      %vm2966 = vcmp.eq.f32.partialorder %v2198, 0.0
      %vm2967 = vcmp.eq.f32.partialorder %v2199, 0.0
      %vm2968 = vcmp.eq.f32.partialorder %v2200, 0.0
      %vm2969 = vcmp.eq.f32.partialorder %v2201, 0.0
      %vm2970 = vcmp.eq.f32.partialorder %v2202, 0.0
      %vm2971 = vcmp.eq.f32.partialorder %v2203, 0.0
      %vm2972 = vcmp.eq.f32.partialorder %v2204, 0.0
      %vm2973 = vcmp.eq.f32.partialorder %v2205, 0.0
      %vm2974 = vcmp.eq.f32.partialorder %v2206, 0.0
      %vm2975 = vcmp.eq.f32.partialorder %v2207, 0.0
      %vm2976 = vcmp.eq.f32.partialorder %v2208, 0.0
      %vm2977 = vcmp.eq.f32.partialorder %v2209, 0.0
      %vm2978 = vcmp.eq.f32.partialorder %v2210, 0.0
      %vm2979 = vcmp.eq.f32.partialorder %v2211, 0.0
      %vm2980 = vcmp.eq.f32.partialorder %v2212, 0.0
      %vm2981 = vcmp.eq.f32.partialorder %v2213, 0.0
      %vm2982 = vcmp.eq.f32.partialorder %v2214, 0.0
      %vm2983 = vcmp.eq.f32.partialorder %v2215, 0.0
      %vm2984 = vcmp.eq.f32.partialorder %v2216, 0.0
      %vm2985 = vcmp.eq.f32.partialorder %v2217, 0.0
      %vm2986 = vcmp.eq.f32.partialorder %v2218, 0.0
      %vm2987 = vcmp.eq.f32.partialorder %v2219, 0.0
      %vm2988 = vcmp.eq.f32.partialorder %v2220, 0.0
      %vm2989 = vcmp.eq.f32.partialorder %v2221, 0.0
      %vm2990 = vcmp.eq.f32.partialorder %v2222, 0.0
      %vm2991 = vcmp.eq.f32.partialorder %v2223, 0.0
      %vm2992 = vcmp.eq.f32.partialorder %v2224, 0.0
      %vm2993 = vcmp.eq.f32.partialorder %v2225, 0.0
      %vm2994 = vcmp.eq.f32.partialorder %v2226, 0.0
      %vm2995 = vcmp.eq.f32.partialorder %v2227, 0.0
      %vm2996 = vcmp.eq.f32.partialorder %v2228, 0.0
      %vm2997 = vcmp.eq.f32.partialorder %v2229, 0.0
      %vm2998 = vcmp.eq.f32.partialorder %v2230, 0.0
      %vm2999 = vcmp.eq.f32.partialorder %v2231, 0.0
      %vm3000 = vcmp.eq.f32.partialorder %v2232, 0.0
      %vm3001 = vcmp.eq.f32.partialorder %v2233, 0.0
      %vm3002 = vcmp.eq.f32.partialorder %v2234, 0.0
      %vm3003 = vcmp.eq.f32.partialorder %v2235, 0.0
      %vm3004 = vcmp.eq.f32.partialorder %v2236, 0.0
      %vm3005 = vcmp.eq.f32.partialorder %v2237, 0.0
      %vm3006 = vcmp.eq.f32.partialorder %v2238, 0.0
      %vm3007 = vcmp.eq.f32.partialorder %v2239, 0.0
      %vm3008 = vcmp.eq.f32.partialorder %v2240, 0.0
      %vm3009 = vcmp.eq.f32.partialorder %v2241, 0.0
      %vm3010 = vcmp.eq.f32.partialorder %v2242, 0.0
      %vm3011 = vcmp.eq.f32.partialorder %v2243, 0.0
      %vm3012 = vcmp.eq.f32.partialorder %v2244, 0.0
      %vm3013 = vcmp.eq.f32.partialorder %v2245, 0.0
      %vm3014 = vcmp.eq.f32.partialorder %v2246, 0.0
      %vm3015 = vcmp.eq.f32.partialorder %v2247, 0.0
      %vm3016 = vcmp.eq.f32.partialorder %v2248, 0.0
      %vm3017 = vcmp.eq.f32.partialorder %v2249, 0.0
      %vm3018 = vcmp.eq.f32.partialorder %v2250, 0.0
      %vm3019 = vcmp.eq.f32.partialorder %v2251, 0.0
      %vm3020 = vcmp.eq.f32.partialorder %v2252, 0.0
      %vm3021 = vcmp.eq.f32.partialorder %v2253, 0.0
      %vm3022 = vcmp.eq.f32.partialorder %v2254, 0.0
      %vm3023 = vcmp.eq.f32.partialorder %v2255, 0.0
      %vm3024 = vcmp.eq.f32.partialorder %v2256, 0.0
      %vm3025 = vcmp.eq.f32.partialorder %v2257, 0.0
      %vm3026 = vcmp.eq.f32.partialorder %v2258, 0.0
      %vm3027 = vcmp.eq.f32.partialorder %v2259, 0.0
      %vm3028 = vcmp.eq.f32.partialorder %v2260, 0.0
      %vm3029 = vcmp.eq.f32.partialorder %v2261, 0.0
      %vm3030 = vcmp.eq.f32.partialorder %v2262, 0.0
      %vm3031 = vcmp.eq.f32.partialorder %v2263, 0.0
      %vm3032 = vcmp.eq.f32.partialorder %v2264, 0.0
      %vm3033 = vcmp.eq.f32.partialorder %v2265, 0.0
      %vm3034 = vcmp.eq.f32.partialorder %v2266, 0.0
      %vm3035 = vcmp.eq.f32.partialorder %v2267, 0.0
      %vm3036 = vcmp.eq.f32.partialorder %v2268, 0.0
      %vm3037 = vcmp.eq.f32.partialorder %v2269, 0.0
      %vm3038 = vcmp.eq.f32.partialorder %v2270, 0.0
      %vm3039 = vcmp.eq.f32.partialorder %v2271, 0.0
      %vm3040 = vcmp.eq.f32.partialorder %v2272, 0.0
      %vm3041 = vcmp.eq.f32.partialorder %v2273, 0.0
      %vm3042 = vcmp.eq.f32.partialorder %v2274, 0.0
      %vm3043 = vcmp.eq.f32.partialorder %v2275, 0.0
      %vm3044 = vcmp.eq.f32.partialorder %v2276, 0.0
      %vm3045 = vcmp.eq.f32.partialorder %v2277, 0.0
      %vm3046 = vcmp.eq.f32.partialorder %v2278, 0.0
      %vm3047 = vcmp.eq.f32.partialorder %v2279, 0.0
      %vm3048 = vcmp.eq.f32.partialorder %v2280, 0.0
      %vm3049 = vmand %vm681, %vm2793
      %vm3050 = vmand %vm682, %vm2794
      %vm3051 = vmand %vm683, %vm2795
      %vm3052 = vmand %vm684, %vm2796
      %vm3053 = vmand %vm685, %vm2797
      %vm3054 = vmand %vm686, %vm2798
      %vm3055 = vmand %vm687, %vm2799
      %vm3056 = vmand %vm688, %vm2800
      %vm3057 = vmand %vm689, %vm2801
      %vm3058 = vmand %vm690, %vm2802
      %vm3059 = vmand %vm691, %vm2803
      %vm3060 = vmand %vm692, %vm2804
      %vm3061 = vmand %vm693, %vm2805
      %vm3062 = vmand %vm694, %vm2806
      %vm3063 = vmand %vm695, %vm2807
      %vm3064 = vmand %vm696, %vm2808
      %vm3065 = vmand %vm697, %vm2809
      %vm3066 = vmand %vm698, %vm2810
      %vm3067 = vmand %vm699, %vm2811
      %vm3068 = vmand %vm700, %vm2812
      %vm3069 = vmand %vm701, %vm2813
      %vm3070 = vmand %vm702, %vm2814
      %vm3071 = vmand %vm703, %vm2815
      %vm3072 = vmand %vm704, %vm2816
      %vm3073 = vmand %vm705, %vm2817
      %vm3074 = vmand %vm706, %vm2818
      %vm3075 = vmand %vm707, %vm2819
      %vm3076 = vmand %vm708, %vm2820
      %vm3077 = vmand %vm709, %vm2821
      %vm3078 = vmand %vm710, %vm2822
      %vm3079 = vmand %vm711, %vm2823
      %vm3080 = vmand %vm712, %vm2824
      %vm3081 = vmand %vm713, %vm2825
      %vm3082 = vmand %vm714, %vm2826
      %vm3083 = vmand %vm715, %vm2827
      %vm3084 = vmand %vm716, %vm2828
      %vm3085 = vmand %vm717, %vm2829
      %vm3086 = vmand %vm718, %vm2830
      %vm3087 = vmand %vm719, %vm2831
      %vm3088 = vmand %vm720, %vm2832
      %vm3089 = vmand %vm721, %vm2833
      %vm3090 = vmand %vm722, %vm2834
      %vm3091 = vmand %vm723, %vm2835
      %vm3092 = vmand %vm724, %vm2836
      %vm3093 = vmand %vm725, %vm2837
      %vm3094 = vmand %vm726, %vm2838
      %vm3095 = vmand %vm727, %vm2839
      %vm3096 = vmand %vm728, %vm2840
      %vm3097 = vmand %vm729, %vm2841
      %vm3098 = vmand %vm730, %vm2842
      %vm3099 = vmand %vm731, %vm2843
      %vm3100 = vmand %vm732, %vm2844
      %vm3101 = vmand %vm733, %vm2845
      %vm3102 = vmand %vm734, %vm2846
      %vm3103 = vmand %vm735, %vm2847
      %vm3104 = vmand %vm736, %vm2848
      %vm3105 = vmand %vm737, %vm2849
      %vm3106 = vmand %vm738, %vm2850
      %vm3107 = vmand %vm739, %vm2851
      %vm3108 = vmand %vm740, %vm2852
      %vm3109 = vmand %vm741, %vm2853
      %vm3110 = vmand %vm742, %vm2854
      %vm3111 = vmand %vm743, %vm2855
      %vm3112 = vmand %vm744, %vm2856
      %vm3113 = vmand %vm745, %vm2857
      %vm3114 = vmand %vm746, %vm2858
      %vm3115 = vmand %vm747, %vm2859
      %vm3116 = vmand %vm748, %vm2860
      %vm3117 = vmand %vm749, %vm2861
      %vm3118 = vmand %vm750, %vm2862
      %vm3119 = vmand %vm751, %vm2863
      %vm3120 = vmand %vm752, %vm2864
      %vm3121 = vmand %vm753, %vm2865
      %vm3122 = vmand %vm754, %vm2866
      %vm3123 = vmand %vm755, %vm2867
      %vm3124 = vmand %vm756, %vm2868
      %vm3125 = vmand %vm757, %vm2869
      %vm3126 = vmand %vm758, %vm2870
      %vm3127 = vmand %vm759, %vm2871
      %vm3128 = vmand %vm760, %vm2872
      %vm3129 = vmand %vm761, %vm2873
      %vm3130 = vmand %vm762, %vm2874
      %vm3131 = vmand %vm763, %vm2875
      %vm3132 = vmand %vm764, %vm2876
      %vm3133 = vmand %vm765, %vm2877
      %vm3134 = vmand %vm766, %vm2878
      %vm3135 = vmand %vm767, %vm2879
      %vm3136 = vmand %vm768, %vm2880
      %vm3137 = vmand %vm769, %vm2881
      %vm3138 = vmand %vm770, %vm2882
      %vm3139 = vmand %vm771, %vm2883
      %vm3140 = vmand %vm772, %vm2884
      %vm3141 = vmand %vm773, %vm2885
      %vm3142 = vmand %vm774, %vm2886
      %vm3143 = vmand %vm775, %vm2887
      %vm3144 = vmand %vm776, %vm2888
      %vm3145 = vmand %vm777, %vm2889
      %vm3146 = vmand %vm778, %vm2890
      %vm3147 = vmand %vm779, %vm2891
      %vm3148 = vmand %vm780, %vm2892
      %vm3149 = vmand %vm781, %vm2893
      %vm3150 = vmand %vm782, %vm2894
      %vm3151 = vmand %vm783, %vm2895
      %vm3152 = vmand %vm784, %vm2896
      %vm3153 = vmand %vm785, %vm2897
      %vm3154 = vmand %vm786, %vm2898
      %vm3155 = vmand %vm787, %vm2899
      %vm3156 = vmand %vm788, %vm2900
      %vm3157 = vmand %vm789, %vm2901
      %vm3158 = vmand %vm790, %vm2902
      %vm3159 = vmand %vm791, %vm2903
      %vm3160 = vmand %vm792, %vm2904
      %vm3161 = vmand %vm793, %vm2905
      %vm3162 = vmand %vm794, %vm2906
      %vm3163 = vmand %vm795, %vm2907
      %vm3164 = vmand %vm796, %vm2908
      %vm3165 = vmand %vm797, %vm2909
      %vm3166 = vmand %vm798, %vm2910
      %vm3167 = vmand %vm799, %vm2911
      %vm3168 = vmand %vm800, %vm2912
      %vm3169 = vmand %vm801, %vm2913
      %vm3170 = vmand %vm802, %vm2914
      %vm3171 = vmand %vm803, %vm2915
      %vm3172 = vmand %vm804, %vm2916
      %vm3173 = vmand %vm805, %vm2917
      %vm3174 = vmand %vm806, %vm2918
      %vm3175 = vmand %vm807, %vm2919
      %vm3176 = vmand %vm808, %vm2920
      %vm3177 = vmand %vm809, %vm2921
      %vm3178 = vmand %vm810, %vm2922
      %vm3179 = vmand %vm811, %vm2923
      %vm3180 = vmand %vm812, %vm2924
      %vm3181 = vmand %vm813, %vm2925
      %vm3182 = vmand %vm814, %vm2926
      %vm3183 = vmand %vm815, %vm2927
      %vm3184 = vmand %vm816, %vm2928
      %vm3185 = vmand %vm817, %vm2929
      %vm3186 = vmand %vm818, %vm2930
      %vm3187 = vmand %vm819, %vm2931
      %vm3188 = vmand %vm820, %vm2932
      %vm3189 = vmand %vm821, %vm2933
      %vm3190 = vmand %vm822, %vm2934
      %vm3191 = vmand %vm823, %vm2935
      %vm3192 = vmand %vm824, %vm2936
      %vm3193 = vmand %vm825, %vm2937
      %vm3194 = vmand %vm826, %vm2938
      %vm3195 = vmand %vm827, %vm2939
      %vm3196 = vmand %vm828, %vm2940
      %vm3197 = vmand %vm829, %vm2941
      %vm3198 = vmand %vm830, %vm2942
      %vm3199 = vmand %vm831, %vm2943
      %vm3200 = vmand %vm832, %vm2944
      %vm3201 = vmand %vm833, %vm2945
      %vm3202 = vmand %vm834, %vm2946
      %vm3203 = vmand %vm835, %vm2947
      %vm3204 = vmand %vm836, %vm2948
      %vm3205 = vmand %vm837, %vm2949
      %vm3206 = vmand %vm838, %vm2950
      %vm3207 = vmand %vm839, %vm2951
      %vm3208 = vmand %vm840, %vm2952
      %vm3209 = vmand %vm841, %vm2953
      %vm3210 = vmand %vm842, %vm2954
      %vm3211 = vmand %vm843, %vm2955
      %vm3212 = vmand %vm844, %vm2956
      %vm3213 = vmand %vm845, %vm2957
      %vm3214 = vmand %vm846, %vm2958
      %vm3215 = vmand %vm847, %vm2959
      %vm3216 = vmand %vm848, %vm2960
      %vm3217 = vmand %vm849, %vm2961
      %vm3218 = vmand %vm850, %vm2962
      %vm3219 = vmand %vm851, %vm2963
      %vm3220 = vmand %vm852, %vm2964
      %vm3221 = vmand %vm853, %vm2965
      %vm3222 = vmand %vm854, %vm2966
      %vm3223 = vmand %vm855, %vm2967
      %vm3224 = vmand %vm856, %vm2968
      %vm3225 = vmand %vm857, %vm2969
      %vm3226 = vmand %vm858, %vm2970
      %vm3227 = vmand %vm859, %vm2971
      %vm3228 = vmand %vm860, %vm2972
      %vm3229 = vmand %vm861, %vm2973
      %vm3230 = vmand %vm862, %vm2974
      %vm3231 = vmand %vm863, %vm2975
      %vm3232 = vmand %vm864, %vm2976
      %vm3233 = vmand %vm865, %vm2977
      %vm3234 = vmand %vm866, %vm2978
      %vm3235 = vmand %vm867, %vm2979
      %vm3236 = vmand %vm868, %vm2980
      %vm3237 = vmand %vm869, %vm2981
      %vm3238 = vmand %vm870, %vm2982
      %vm3239 = vmand %vm871, %vm2983
      %vm3240 = vmand %vm872, %vm2984
      %vm3241 = vmand %vm873, %vm2985
      %vm3242 = vmand %vm874, %vm2986
      %vm3243 = vmand %vm875, %vm2987
      %vm3244 = vmand %vm876, %vm2988
      %vm3245 = vmand %vm877, %vm2989
      %vm3246 = vmand %vm878, %vm2990
      %vm3247 = vmand %vm879, %vm2991
      %vm3248 = vmand %vm880, %vm2992
      %vm3249 = vmand %vm881, %vm2993
      %vm3250 = vmand %vm882, %vm2994
      %vm3251 = vmand %vm883, %vm2995
      %vm3252 = vmand %vm884, %vm2996
      %vm3253 = vmand %vm885, %vm2997
      %vm3254 = vmand %vm886, %vm2998
      %vm3255 = vmand %vm887, %vm2999
      %vm3256 = vmand %vm888, %vm3000
      %vm3257 = vmand %vm889, %vm3001
      %vm3258 = vmand %vm890, %vm3002
      %vm3259 = vmand %vm891, %vm3003
      %vm3260 = vmand %vm892, %vm3004
      %vm3261 = vmand %vm893, %vm3005
      %vm3262 = vmand %vm894, %vm3006
      %vm3263 = vmand %vm895, %vm3007
      %vm3264 = vmand %vm896, %vm3008
      %vm3265 = vmand %vm897, %vm3009
      %vm3266 = vmand %vm898, %vm3010
      %vm3267 = vmand %vm899, %vm3011
      %vm3268 = vmand %vm900, %vm3012
      %vm3269 = vmand %vm901, %vm3013
      %vm3270 = vmand %vm902, %vm3014
      %vm3271 = vmand %vm903, %vm3015
      %vm3272 = vmand %vm904, %vm3016
      %vm3273 = vmand %vm905, %vm3017
      %vm3274 = vmand %vm906, %vm3018
      %vm3275 = vmand %vm907, %vm3019
      %vm3276 = vmand %vm908, %vm3020
      %vm3277 = vmand %vm909, %vm3021
      %vm3278 = vmand %vm910, %vm3022
      %vm3279 = vmand %vm911, %vm3023
      %vm3280 = vmand %vm912, %vm3024
      %vm3281 = vmand %vm913, %vm3025
      %vm3282 = vmand %vm914, %vm3026
      %vm3283 = vmand %vm915, %vm3027
      %vm3284 = vmand %vm916, %vm3028
      %vm3285 = vmand %vm917, %vm3029
      %vm3286 = vmand %vm918, %vm3030
      %vm3287 = vmand %vm919, %vm3031
      %vm3288 = vmand %vm920, %vm3032
      %vm3289 = vmand %vm921, %vm3033
      %vm3290 = vmand %vm922, %vm3034
      %vm3291 = vmand %vm923, %vm3035
      %vm3292 = vmand %vm924, %vm3036
      %vm3293 = vmand %vm925, %vm3037
      %vm3294 = vmand %vm926, %vm3038
      %vm3295 = vmand %vm927, %vm3039
      %vm3296 = vmand %vm928, %vm3040
      %vm3297 = vmand %vm929, %vm3041
      %vm3298 = vmand %vm930, %vm3042
      %vm3299 = vmand %vm931, %vm3043
      %vm3300 = vmand %vm932, %vm3044
      %vm3301 = vmand %vm933, %vm3045
      %vm3302 = vmand %vm934, %vm3046
      %vm3303 = vmand %vm935, %vm3047
      %vm3304 = vmand %vm936, %vm3048
      %vm3305 = vcmp.lt.f32.partialorder %v937, %v1449
      %vm3306 = vcmp.lt.f32.partialorder %v938, %v1450
      %vm3307 = vcmp.lt.f32.partialorder %v939, %v1451
      %vm3308 = vcmp.lt.f32.partialorder %v940, %v1452
      %vm3309 = vcmp.lt.f32.partialorder %v941, %v1453
      %vm3310 = vcmp.lt.f32.partialorder %v942, %v1454
      %vm3311 = vcmp.lt.f32.partialorder %v943, %v1455
      %vm3312 = vcmp.lt.f32.partialorder %v944, %v1456
      %vm3313 = vcmp.lt.f32.partialorder %v945, %v1457
      %vm3314 = vcmp.lt.f32.partialorder %v946, %v1458
      %vm3315 = vcmp.lt.f32.partialorder %v947, %v1459
      %vm3316 = vcmp.lt.f32.partialorder %v948, %v1460
      %vm3317 = vcmp.lt.f32.partialorder %v949, %v1461
      %vm3318 = vcmp.lt.f32.partialorder %v950, %v1462
      %vm3319 = vcmp.lt.f32.partialorder %v951, %v1463
      %vm3320 = vcmp.lt.f32.partialorder %v952, %v1464
      %vm3321 = vcmp.lt.f32.partialorder %v953, %v1465
      %vm3322 = vcmp.lt.f32.partialorder %v954, %v1466
      %vm3323 = vcmp.lt.f32.partialorder %v955, %v1467
      %vm3324 = vcmp.lt.f32.partialorder %v956, %v1468
      %vm3325 = vcmp.lt.f32.partialorder %v957, %v1469
      %vm3326 = vcmp.lt.f32.partialorder %v958, %v1470
      %vm3327 = vcmp.lt.f32.partialorder %v959, %v1471
      %vm3328 = vcmp.lt.f32.partialorder %v960, %v1472
      %vm3329 = vcmp.lt.f32.partialorder %v961, %v1473
      %vm3330 = vcmp.lt.f32.partialorder %v962, %v1474
      %vm3331 = vcmp.lt.f32.partialorder %v963, %v1475
      %vm3332 = vcmp.lt.f32.partialorder %v964, %v1476
      %vm3333 = vcmp.lt.f32.partialorder %v965, %v1477
      %vm3334 = vcmp.lt.f32.partialorder %v966, %v1478
      %vm3335 = vcmp.lt.f32.partialorder %v967, %v1479
      %vm3336 = vcmp.lt.f32.partialorder %v968, %v1480
      %vm3337 = vcmp.lt.f32.partialorder %v969, %v1481
      %vm3338 = vcmp.lt.f32.partialorder %v970, %v1482
      %vm3339 = vcmp.lt.f32.partialorder %v971, %v1483
      %vm3340 = vcmp.lt.f32.partialorder %v972, %v1484
      %vm3341 = vcmp.lt.f32.partialorder %v973, %v1485
      %vm3342 = vcmp.lt.f32.partialorder %v974, %v1486
      %vm3343 = vcmp.lt.f32.partialorder %v975, %v1487
      %vm3344 = vcmp.lt.f32.partialorder %v976, %v1488
      %vm3345 = vcmp.lt.f32.partialorder %v977, %v1489
      %vm3346 = vcmp.lt.f32.partialorder %v978, %v1490
      %vm3347 = vcmp.lt.f32.partialorder %v979, %v1491
      %vm3348 = vcmp.lt.f32.partialorder %v980, %v1492
      %vm3349 = vcmp.lt.f32.partialorder %v981, %v1493
      %vm3350 = vcmp.lt.f32.partialorder %v982, %v1494
      %vm3351 = vcmp.lt.f32.partialorder %v983, %v1495
      %vm3352 = vcmp.lt.f32.partialorder %v984, %v1496
      %vm3353 = vcmp.lt.f32.partialorder %v985, %v1497
      %vm3354 = vcmp.lt.f32.partialorder %v986, %v1498
      %vm3355 = vcmp.lt.f32.partialorder %v987, %v1499
      %vm3356 = vcmp.lt.f32.partialorder %v988, %v1500
      %vm3357 = vcmp.lt.f32.partialorder %v989, %v1501
      %vm3358 = vcmp.lt.f32.partialorder %v990, %v1502
      %vm3359 = vcmp.lt.f32.partialorder %v991, %v1503
      %vm3360 = vcmp.lt.f32.partialorder %v992, %v1504
      %vm3361 = vcmp.lt.f32.partialorder %v993, %v1505
      %vm3362 = vcmp.lt.f32.partialorder %v994, %v1506
      %vm3363 = vcmp.lt.f32.partialorder %v995, %v1507
      %vm3364 = vcmp.lt.f32.partialorder %v996, %v1508
      %vm3365 = vcmp.lt.f32.partialorder %v997, %v1509
      %vm3366 = vcmp.lt.f32.partialorder %v998, %v1510
      %vm3367 = vcmp.lt.f32.partialorder %v999, %v1511
      %vm3368 = vcmp.lt.f32.partialorder %v1000, %v1512
      %vm3369 = vcmp.lt.f32.partialorder %v1001, %v1513
      %vm3370 = vcmp.lt.f32.partialorder %v1002, %v1514
      %vm3371 = vcmp.lt.f32.partialorder %v1003, %v1515
      %vm3372 = vcmp.lt.f32.partialorder %v1004, %v1516
      %vm3373 = vcmp.lt.f32.partialorder %v1005, %v1517
      %vm3374 = vcmp.lt.f32.partialorder %v1006, %v1518
      %vm3375 = vcmp.lt.f32.partialorder %v1007, %v1519
      %vm3376 = vcmp.lt.f32.partialorder %v1008, %v1520
      %vm3377 = vcmp.lt.f32.partialorder %v1009, %v1521
      %vm3378 = vcmp.lt.f32.partialorder %v1010, %v1522
      %vm3379 = vcmp.lt.f32.partialorder %v1011, %v1523
      %vm3380 = vcmp.lt.f32.partialorder %v1012, %v1524
      %vm3381 = vcmp.lt.f32.partialorder %v1013, %v1525
      %vm3382 = vcmp.lt.f32.partialorder %v1014, %v1526
      %vm3383 = vcmp.lt.f32.partialorder %v1015, %v1527
      %vm3384 = vcmp.lt.f32.partialorder %v1016, %v1528
      %vm3385 = vcmp.lt.f32.partialorder %v1017, %v1529
      %vm3386 = vcmp.lt.f32.partialorder %v1018, %v1530
      %vm3387 = vcmp.lt.f32.partialorder %v1019, %v1531
      %vm3388 = vcmp.lt.f32.partialorder %v1020, %v1532
      %vm3389 = vcmp.lt.f32.partialorder %v1021, %v1533
      %vm3390 = vcmp.lt.f32.partialorder %v1022, %v1534
      %vm3391 = vcmp.lt.f32.partialorder %v1023, %v1535
      %vm3392 = vcmp.lt.f32.partialorder %v1024, %v1536
      %vm3393 = vcmp.lt.f32.partialorder %v1025, %v1537
      %vm3394 = vcmp.lt.f32.partialorder %v1026, %v1538
      %vm3395 = vcmp.lt.f32.partialorder %v1027, %v1539
      %vm3396 = vcmp.lt.f32.partialorder %v1028, %v1540
      %vm3397 = vcmp.lt.f32.partialorder %v1029, %v1541
      %vm3398 = vcmp.lt.f32.partialorder %v1030, %v1542
      %vm3399 = vcmp.lt.f32.partialorder %v1031, %v1543
      %vm3400 = vcmp.lt.f32.partialorder %v1032, %v1544
      %vm3401 = vcmp.lt.f32.partialorder %v1033, %v1545
      %vm3402 = vcmp.lt.f32.partialorder %v1034, %v1546
      %vm3403 = vcmp.lt.f32.partialorder %v1035, %v1547
      %vm3404 = vcmp.lt.f32.partialorder %v1036, %v1548
      %vm3405 = vcmp.lt.f32.partialorder %v1037, %v1549
      %vm3406 = vcmp.lt.f32.partialorder %v1038, %v1550
      %vm3407 = vcmp.lt.f32.partialorder %v1039, %v1551
      %vm3408 = vcmp.lt.f32.partialorder %v1040, %v1552
      %vm3409 = vcmp.lt.f32.partialorder %v1041, %v1553
      %vm3410 = vcmp.lt.f32.partialorder %v1042, %v1554
      %vm3411 = vcmp.lt.f32.partialorder %v1043, %v1555
      %vm3412 = vcmp.lt.f32.partialorder %v1044, %v1556
      %vm3413 = vcmp.lt.f32.partialorder %v1045, %v1557
      %vm3414 = vcmp.lt.f32.partialorder %v1046, %v1558
      %vm3415 = vcmp.lt.f32.partialorder %v1047, %v1559
      %vm3416 = vcmp.lt.f32.partialorder %v1048, %v1560
      %vm3417 = vcmp.lt.f32.partialorder %v1049, %v1561
      %vm3418 = vcmp.lt.f32.partialorder %v1050, %v1562
      %vm3419 = vcmp.lt.f32.partialorder %v1051, %v1563
      %vm3420 = vcmp.lt.f32.partialorder %v1052, %v1564
      %vm3421 = vcmp.lt.f32.partialorder %v1053, %v1565
      %vm3422 = vcmp.lt.f32.partialorder %v1054, %v1566
      %vm3423 = vcmp.lt.f32.partialorder %v1055, %v1567
      %vm3424 = vcmp.lt.f32.partialorder %v1056, %v1568
      %vm3425 = vcmp.lt.f32.partialorder %v1057, %v1569
      %vm3426 = vcmp.lt.f32.partialorder %v1058, %v1570
      %vm3427 = vcmp.lt.f32.partialorder %v1059, %v1571
      %vm3428 = vcmp.lt.f32.partialorder %v1060, %v1572
      %vm3429 = vcmp.lt.f32.partialorder %v1061, %v1573
      %vm3430 = vcmp.lt.f32.partialorder %v1062, %v1574
      %vm3431 = vcmp.lt.f32.partialorder %v1063, %v1575
      %vm3432 = vcmp.lt.f32.partialorder %v1064, %v1576
      %vm3433 = vcmp.lt.f32.partialorder %v1065, %v1577
      %vm3434 = vcmp.lt.f32.partialorder %v1066, %v1578
      %vm3435 = vcmp.lt.f32.partialorder %v1067, %v1579
      %vm3436 = vcmp.lt.f32.partialorder %v1068, %v1580
      %vm3437 = vcmp.lt.f32.partialorder %v1069, %v1581
      %vm3438 = vcmp.lt.f32.partialorder %v1070, %v1582
      %vm3439 = vcmp.lt.f32.partialorder %v1071, %v1583
      %vm3440 = vcmp.lt.f32.partialorder %v1072, %v1584
      %vm3441 = vcmp.lt.f32.partialorder %v1073, %v1585
      %vm3442 = vcmp.lt.f32.partialorder %v1074, %v1586
      %vm3443 = vcmp.lt.f32.partialorder %v1075, %v1587
      %vm3444 = vcmp.lt.f32.partialorder %v1076, %v1588
      %vm3445 = vcmp.lt.f32.partialorder %v1077, %v1589
      %vm3446 = vcmp.lt.f32.partialorder %v1078, %v1590
      %vm3447 = vcmp.lt.f32.partialorder %v1079, %v1591
      %vm3448 = vcmp.lt.f32.partialorder %v1080, %v1592
      %vm3449 = vcmp.lt.f32.partialorder %v1081, %v1593
      %vm3450 = vcmp.lt.f32.partialorder %v1082, %v1594
      %vm3451 = vcmp.lt.f32.partialorder %v1083, %v1595
      %vm3452 = vcmp.lt.f32.partialorder %v1084, %v1596
      %vm3453 = vcmp.lt.f32.partialorder %v1085, %v1597
      %vm3454 = vcmp.lt.f32.partialorder %v1086, %v1598
      %vm3455 = vcmp.lt.f32.partialorder %v1087, %v1599
      %vm3456 = vcmp.lt.f32.partialorder %v1088, %v1600
      %vm3457 = vcmp.lt.f32.partialorder %v1089, %v1601
      %vm3458 = vcmp.lt.f32.partialorder %v1090, %v1602
      %vm3459 = vcmp.lt.f32.partialorder %v1091, %v1603
      %vm3460 = vcmp.lt.f32.partialorder %v1092, %v1604
      %vm3461 = vcmp.lt.f32.partialorder %v1093, %v1605
      %vm3462 = vcmp.lt.f32.partialorder %v1094, %v1606
      %vm3463 = vcmp.lt.f32.partialorder %v1095, %v1607
      %vm3464 = vcmp.lt.f32.partialorder %v1096, %v1608
      %vm3465 = vcmp.lt.f32.partialorder %v1097, %v1609
      %vm3466 = vcmp.lt.f32.partialorder %v1098, %v1610
      %vm3467 = vcmp.lt.f32.partialorder %v1099, %v1611
      %vm3468 = vcmp.lt.f32.partialorder %v1100, %v1612
      %vm3469 = vcmp.lt.f32.partialorder %v1101, %v1613
      %vm3470 = vcmp.lt.f32.partialorder %v1102, %v1614
      %vm3471 = vcmp.lt.f32.partialorder %v1103, %v1615
      %vm3472 = vcmp.lt.f32.partialorder %v1104, %v1616
      %vm3473 = vcmp.lt.f32.partialorder %v1105, %v1617
      %vm3474 = vcmp.lt.f32.partialorder %v1106, %v1618
      %vm3475 = vcmp.lt.f32.partialorder %v1107, %v1619
      %vm3476 = vcmp.lt.f32.partialorder %v1108, %v1620
      %vm3477 = vcmp.lt.f32.partialorder %v1109, %v1621
      %vm3478 = vcmp.lt.f32.partialorder %v1110, %v1622
      %vm3479 = vcmp.lt.f32.partialorder %v1111, %v1623
      %vm3480 = vcmp.lt.f32.partialorder %v1112, %v1624
      %vm3481 = vcmp.lt.f32.partialorder %v1113, %v1625
      %vm3482 = vcmp.lt.f32.partialorder %v1114, %v1626
      %vm3483 = vcmp.lt.f32.partialorder %v1115, %v1627
      %vm3484 = vcmp.lt.f32.partialorder %v1116, %v1628
      %vm3485 = vcmp.lt.f32.partialorder %v1117, %v1629
      %vm3486 = vcmp.lt.f32.partialorder %v1118, %v1630
      %vm3487 = vcmp.lt.f32.partialorder %v1119, %v1631
      %vm3488 = vcmp.lt.f32.partialorder %v1120, %v1632
      %vm3489 = vcmp.lt.f32.partialorder %v1121, %v1633
      %vm3490 = vcmp.lt.f32.partialorder %v1122, %v1634
      %vm3491 = vcmp.lt.f32.partialorder %v1123, %v1635
      %vm3492 = vcmp.lt.f32.partialorder %v1124, %v1636
      %vm3493 = vcmp.lt.f32.partialorder %v1125, %v1637
      %vm3494 = vcmp.lt.f32.partialorder %v1126, %v1638
      %vm3495 = vcmp.lt.f32.partialorder %v1127, %v1639
      %vm3496 = vcmp.lt.f32.partialorder %v1128, %v1640
      %vm3497 = vcmp.lt.f32.partialorder %v1129, %v1641
      %vm3498 = vcmp.lt.f32.partialorder %v1130, %v1642
      %vm3499 = vcmp.lt.f32.partialorder %v1131, %v1643
      %vm3500 = vcmp.lt.f32.partialorder %v1132, %v1644
      %vm3501 = vcmp.lt.f32.partialorder %v1133, %v1645
      %vm3502 = vcmp.lt.f32.partialorder %v1134, %v1646
      %vm3503 = vcmp.lt.f32.partialorder %v1135, %v1647
      %vm3504 = vcmp.lt.f32.partialorder %v1136, %v1648
      %vm3505 = vcmp.lt.f32.partialorder %v1137, %v1649
      %vm3506 = vcmp.lt.f32.partialorder %v1138, %v1650
      %vm3507 = vcmp.lt.f32.partialorder %v1139, %v1651
      %vm3508 = vcmp.lt.f32.partialorder %v1140, %v1652
      %vm3509 = vcmp.lt.f32.partialorder %v1141, %v1653
      %vm3510 = vcmp.lt.f32.partialorder %v1142, %v1654
      %vm3511 = vcmp.lt.f32.partialorder %v1143, %v1655
      %vm3512 = vcmp.lt.f32.partialorder %v1144, %v1656
      %vm3513 = vcmp.lt.f32.partialorder %v1145, %v1657
      %vm3514 = vcmp.lt.f32.partialorder %v1146, %v1658
      %vm3515 = vcmp.lt.f32.partialorder %v1147, %v1659
      %vm3516 = vcmp.lt.f32.partialorder %v1148, %v1660
      %vm3517 = vcmp.lt.f32.partialorder %v1149, %v1661
      %vm3518 = vcmp.lt.f32.partialorder %v1150, %v1662
      %vm3519 = vcmp.lt.f32.partialorder %v1151, %v1663
      %vm3520 = vcmp.lt.f32.partialorder %v1152, %v1664
      %vm3521 = vcmp.lt.f32.partialorder %v1153, %v1665
      %vm3522 = vcmp.lt.f32.partialorder %v1154, %v1666
      %vm3523 = vcmp.lt.f32.partialorder %v1155, %v1667
      %vm3524 = vcmp.lt.f32.partialorder %v1156, %v1668
      %vm3525 = vcmp.lt.f32.partialorder %v1157, %v1669
      %vm3526 = vcmp.lt.f32.partialorder %v1158, %v1670
      %vm3527 = vcmp.lt.f32.partialorder %v1159, %v1671
      %vm3528 = vcmp.lt.f32.partialorder %v1160, %v1672
      %vm3529 = vcmp.lt.f32.partialorder %v1161, %v1673
      %vm3530 = vcmp.lt.f32.partialorder %v1162, %v1674
      %vm3531 = vcmp.lt.f32.partialorder %v1163, %v1675
      %vm3532 = vcmp.lt.f32.partialorder %v1164, %v1676
      %vm3533 = vcmp.lt.f32.partialorder %v1165, %v1677
      %vm3534 = vcmp.lt.f32.partialorder %v1166, %v1678
      %vm3535 = vcmp.lt.f32.partialorder %v1167, %v1679
      %vm3536 = vcmp.lt.f32.partialorder %v1168, %v1680
      %vm3537 = vcmp.lt.f32.partialorder %v1169, %v1681
      %vm3538 = vcmp.lt.f32.partialorder %v1170, %v1682
      %vm3539 = vcmp.lt.f32.partialorder %v1171, %v1683
      %vm3540 = vcmp.lt.f32.partialorder %v1172, %v1684
      %vm3541 = vcmp.lt.f32.partialorder %v1173, %v1685
      %vm3542 = vcmp.lt.f32.partialorder %v1174, %v1686
      %vm3543 = vcmp.lt.f32.partialorder %v1175, %v1687
      %vm3544 = vcmp.lt.f32.partialorder %v1176, %v1688
      %vm3545 = vcmp.lt.f32.partialorder %v1177, %v1689
      %vm3546 = vcmp.lt.f32.partialorder %v1178, %v1690
      %vm3547 = vcmp.lt.f32.partialorder %v1179, %v1691
      %vm3548 = vcmp.lt.f32.partialorder %v1180, %v1692
      %vm3549 = vcmp.lt.f32.partialorder %v1181, %v1693
      %vm3550 = vcmp.lt.f32.partialorder %v1182, %v1694
      %vm3551 = vcmp.lt.f32.partialorder %v1183, %v1695
      %vm3552 = vcmp.lt.f32.partialorder %v1184, %v1696
      %vm3553 = vcmp.lt.f32.partialorder %v1185, %v1697
      %vm3554 = vcmp.lt.f32.partialorder %v1186, %v1698
      %vm3555 = vcmp.lt.f32.partialorder %v1187, %v1699
      %vm3556 = vcmp.lt.f32.partialorder %v1188, %v1700
      %vm3557 = vcmp.lt.f32.partialorder %v1189, %v1701
      %vm3558 = vcmp.lt.f32.partialorder %v1190, %v1702
      %vm3559 = vcmp.lt.f32.partialorder %v1191, %v1703
      %vm3560 = vcmp.lt.f32.partialorder %v1192, %v1704
      %vm3561 = vmand %vm3049, %vm3305
      %vm3562 = vmand %vm3050, %vm3306
      %vm3563 = vmand %vm3051, %vm3307
      %vm3564 = vmand %vm3052, %vm3308
      %vm3565 = vmand %vm3053, %vm3309
      %vm3566 = vmand %vm3054, %vm3310
      %vm3567 = vmand %vm3055, %vm3311
      %vm3568 = vmand %vm3056, %vm3312
      %vm3569 = vmand %vm3057, %vm3313
      %vm3570 = vmand %vm3058, %vm3314
      %vm3571 = vmand %vm3059, %vm3315
      %vm3572 = vmand %vm3060, %vm3316
      %vm3573 = vmand %vm3061, %vm3317
      %vm3574 = vmand %vm3062, %vm3318
      %vm3575 = vmand %vm3063, %vm3319
      %vm3576 = vmand %vm3064, %vm3320
      %vm3577 = vmand %vm3065, %vm3321
      %vm3578 = vmand %vm3066, %vm3322
      %vm3579 = vmand %vm3067, %vm3323
      %vm3580 = vmand %vm3068, %vm3324
      %vm3581 = vmand %vm3069, %vm3325
      %vm3582 = vmand %vm3070, %vm3326
      %vm3583 = vmand %vm3071, %vm3327
      %vm3584 = vmand %vm3072, %vm3328
      %vm3585 = vmand %vm3073, %vm3329
      %vm3586 = vmand %vm3074, %vm3330
      %vm3587 = vmand %vm3075, %vm3331
      %vm3588 = vmand %vm3076, %vm3332
      %vm3589 = vmand %vm3077, %vm3333
      %vm3590 = vmand %vm3078, %vm3334
      %vm3591 = vmand %vm3079, %vm3335
      %vm3592 = vmand %vm3080, %vm3336
      %vm3593 = vmand %vm3081, %vm3337
      %vm3594 = vmand %vm3082, %vm3338
      %vm3595 = vmand %vm3083, %vm3339
      %vm3596 = vmand %vm3084, %vm3340
      %vm3597 = vmand %vm3085, %vm3341
      %vm3598 = vmand %vm3086, %vm3342
      %vm3599 = vmand %vm3087, %vm3343
      %vm3600 = vmand %vm3088, %vm3344
      %vm3601 = vmand %vm3089, %vm3345
      %vm3602 = vmand %vm3090, %vm3346
      %vm3603 = vmand %vm3091, %vm3347
      %vm3604 = vmand %vm3092, %vm3348
      %vm3605 = vmand %vm3093, %vm3349
      %vm3606 = vmand %vm3094, %vm3350
      %vm3607 = vmand %vm3095, %vm3351
      %vm3608 = vmand %vm3096, %vm3352
      %vm3609 = vmand %vm3097, %vm3353
      %vm3610 = vmand %vm3098, %vm3354
      %vm3611 = vmand %vm3099, %vm3355
      %vm3612 = vmand %vm3100, %vm3356
      %vm3613 = vmand %vm3101, %vm3357
      %vm3614 = vmand %vm3102, %vm3358
      %vm3615 = vmand %vm3103, %vm3359
      %vm3616 = vmand %vm3104, %vm3360
      %vm3617 = vmand %vm3105, %vm3361
      %vm3618 = vmand %vm3106, %vm3362
      %vm3619 = vmand %vm3107, %vm3363
      %vm3620 = vmand %vm3108, %vm3364
      %vm3621 = vmand %vm3109, %vm3365
      %vm3622 = vmand %vm3110, %vm3366
      %vm3623 = vmand %vm3111, %vm3367
      %vm3624 = vmand %vm3112, %vm3368
      %vm3625 = vmand %vm3113, %vm3369
      %vm3626 = vmand %vm3114, %vm3370
      %vm3627 = vmand %vm3115, %vm3371
      %vm3628 = vmand %vm3116, %vm3372
      %vm3629 = vmand %vm3117, %vm3373
      %vm3630 = vmand %vm3118, %vm3374
      %vm3631 = vmand %vm3119, %vm3375
      %vm3632 = vmand %vm3120, %vm3376
      %vm3633 = vmand %vm3121, %vm3377
      %vm3634 = vmand %vm3122, %vm3378
      %vm3635 = vmand %vm3123, %vm3379
      %vm3636 = vmand %vm3124, %vm3380
      %vm3637 = vmand %vm3125, %vm3381
      %vm3638 = vmand %vm3126, %vm3382
      %vm3639 = vmand %vm3127, %vm3383
      %vm3640 = vmand %vm3128, %vm3384
      %vm3641 = vmand %vm3129, %vm3385
      %vm3642 = vmand %vm3130, %vm3386
      %vm3643 = vmand %vm3131, %vm3387
      %vm3644 = vmand %vm3132, %vm3388
      %vm3645 = vmand %vm3133, %vm3389
      %vm3646 = vmand %vm3134, %vm3390
      %vm3647 = vmand %vm3135, %vm3391
      %vm3648 = vmand %vm3136, %vm3392
      %vm3649 = vmand %vm3137, %vm3393
      %vm3650 = vmand %vm3138, %vm3394
      %vm3651 = vmand %vm3139, %vm3395
      %vm3652 = vmand %vm3140, %vm3396
      %vm3653 = vmand %vm3141, %vm3397
      %vm3654 = vmand %vm3142, %vm3398
      %vm3655 = vmand %vm3143, %vm3399
      %vm3656 = vmand %vm3144, %vm3400
      %vm3657 = vmand %vm3145, %vm3401
      %vm3658 = vmand %vm3146, %vm3402
      %vm3659 = vmand %vm3147, %vm3403
      %vm3660 = vmand %vm3148, %vm3404
      %vm3661 = vmand %vm3149, %vm3405
      %vm3662 = vmand %vm3150, %vm3406
      %vm3663 = vmand %vm3151, %vm3407
      %vm3664 = vmand %vm3152, %vm3408
      %vm3665 = vmand %vm3153, %vm3409
      %vm3666 = vmand %vm3154, %vm3410
      %vm3667 = vmand %vm3155, %vm3411
      %vm3668 = vmand %vm3156, %vm3412
      %vm3669 = vmand %vm3157, %vm3413
      %vm3670 = vmand %vm3158, %vm3414
      %vm3671 = vmand %vm3159, %vm3415
      %vm3672 = vmand %vm3160, %vm3416
      %vm3673 = vmand %vm3161, %vm3417
      %vm3674 = vmand %vm3162, %vm3418
      %vm3675 = vmand %vm3163, %vm3419
      %vm3676 = vmand %vm3164, %vm3420
      %vm3677 = vmand %vm3165, %vm3421
      %vm3678 = vmand %vm3166, %vm3422
      %vm3679 = vmand %vm3167, %vm3423
      %vm3680 = vmand %vm3168, %vm3424
      %vm3681 = vmand %vm3169, %vm3425
      %vm3682 = vmand %vm3170, %vm3426
      %vm3683 = vmand %vm3171, %vm3427
      %vm3684 = vmand %vm3172, %vm3428
      %vm3685 = vmand %vm3173, %vm3429
      %vm3686 = vmand %vm3174, %vm3430
      %vm3687 = vmand %vm3175, %vm3431
      %vm3688 = vmand %vm3176, %vm3432
      %vm3689 = vmand %vm3177, %vm3433
      %vm3690 = vmand %vm3178, %vm3434
      %vm3691 = vmand %vm3179, %vm3435
      %vm3692 = vmand %vm3180, %vm3436
      %vm3693 = vmand %vm3181, %vm3437
      %vm3694 = vmand %vm3182, %vm3438
      %vm3695 = vmand %vm3183, %vm3439
      %vm3696 = vmand %vm3184, %vm3440
      %vm3697 = vmand %vm3185, %vm3441
      %vm3698 = vmand %vm3186, %vm3442
      %vm3699 = vmand %vm3187, %vm3443
      %vm3700 = vmand %vm3188, %vm3444
      %vm3701 = vmand %vm3189, %vm3445
      %vm3702 = vmand %vm3190, %vm3446
      %vm3703 = vmand %vm3191, %vm3447
      %vm3704 = vmand %vm3192, %vm3448
      %vm3705 = vmand %vm3193, %vm3449
      %vm3706 = vmand %vm3194, %vm3450
      %vm3707 = vmand %vm3195, %vm3451
      %vm3708 = vmand %vm3196, %vm3452
      %vm3709 = vmand %vm3197, %vm3453
      %vm3710 = vmand %vm3198, %vm3454
      %vm3711 = vmand %vm3199, %vm3455
      %vm3712 = vmand %vm3200, %vm3456
      %vm3713 = vmand %vm3201, %vm3457
      %vm3714 = vmand %vm3202, %vm3458
      %vm3715 = vmand %vm3203, %vm3459
      %vm3716 = vmand %vm3204, %vm3460
      %vm3717 = vmand %vm3205, %vm3461
      %vm3718 = vmand %vm3206, %vm3462
      %vm3719 = vmand %vm3207, %vm3463
      %vm3720 = vmand %vm3208, %vm3464
      %vm3721 = vmand %vm3209, %vm3465
      %vm3722 = vmand %vm3210, %vm3466
      %vm3723 = vmand %vm3211, %vm3467
      %vm3724 = vmand %vm3212, %vm3468
      %vm3725 = vmand %vm3213, %vm3469
      %vm3726 = vmand %vm3214, %vm3470
      %vm3727 = vmand %vm3215, %vm3471
      %vm3728 = vmand %vm3216, %vm3472
      %vm3729 = vmand %vm3217, %vm3473
      %vm3730 = vmand %vm3218, %vm3474
      %vm3731 = vmand %vm3219, %vm3475
      %vm3732 = vmand %vm3220, %vm3476
      %vm3733 = vmand %vm3221, %vm3477
      %vm3734 = vmand %vm3222, %vm3478
      %vm3735 = vmand %vm3223, %vm3479
      %vm3736 = vmand %vm3224, %vm3480
      %vm3737 = vmand %vm3225, %vm3481
      %vm3738 = vmand %vm3226, %vm3482
      %vm3739 = vmand %vm3227, %vm3483
      %vm3740 = vmand %vm3228, %vm3484
      %vm3741 = vmand %vm3229, %vm3485
      %vm3742 = vmand %vm3230, %vm3486
      %vm3743 = vmand %vm3231, %vm3487
      %vm3744 = vmand %vm3232, %vm3488
      %vm3745 = vmand %vm3233, %vm3489
      %vm3746 = vmand %vm3234, %vm3490
      %vm3747 = vmand %vm3235, %vm3491
      %vm3748 = vmand %vm3236, %vm3492
      %vm3749 = vmand %vm3237, %vm3493
      %vm3750 = vmand %vm3238, %vm3494
      %vm3751 = vmand %vm3239, %vm3495
      %vm3752 = vmand %vm3240, %vm3496
      %vm3753 = vmand %vm3241, %vm3497
      %vm3754 = vmand %vm3242, %vm3498
      %vm3755 = vmand %vm3243, %vm3499
      %vm3756 = vmand %vm3244, %vm3500
      %vm3757 = vmand %vm3245, %vm3501
      %vm3758 = vmand %vm3246, %vm3502
      %vm3759 = vmand %vm3247, %vm3503
      %vm3760 = vmand %vm3248, %vm3504
      %vm3761 = vmand %vm3249, %vm3505
      %vm3762 = vmand %vm3250, %vm3506
      %vm3763 = vmand %vm3251, %vm3507
      %vm3764 = vmand %vm3252, %vm3508
      %vm3765 = vmand %vm3253, %vm3509
      %vm3766 = vmand %vm3254, %vm3510
      %vm3767 = vmand %vm3255, %vm3511
      %vm3768 = vmand %vm3256, %vm3512
      %vm3769 = vmand %vm3257, %vm3513
      %vm3770 = vmand %vm3258, %vm3514
      %vm3771 = vmand %vm3259, %vm3515
      %vm3772 = vmand %vm3260, %vm3516
      %vm3773 = vmand %vm3261, %vm3517
      %vm3774 = vmand %vm3262, %vm3518
      %vm3775 = vmand %vm3263, %vm3519
      %vm3776 = vmand %vm3264, %vm3520
      %vm3777 = vmand %vm3265, %vm3521
      %vm3778 = vmand %vm3266, %vm3522
      %vm3779 = vmand %vm3267, %vm3523
      %vm3780 = vmand %vm3268, %vm3524
      %vm3781 = vmand %vm3269, %vm3525
      %vm3782 = vmand %vm3270, %vm3526
      %vm3783 = vmand %vm3271, %vm3527
      %vm3784 = vmand %vm3272, %vm3528
      %vm3785 = vmand %vm3273, %vm3529
      %vm3786 = vmand %vm3274, %vm3530
      %vm3787 = vmand %vm3275, %vm3531
      %vm3788 = vmand %vm3276, %vm3532
      %vm3789 = vmand %vm3277, %vm3533
      %vm3790 = vmand %vm3278, %vm3534
      %vm3791 = vmand %vm3279, %vm3535
      %vm3792 = vmand %vm3280, %vm3536
      %vm3793 = vmand %vm3281, %vm3537
      %vm3794 = vmand %vm3282, %vm3538
      %vm3795 = vmand %vm3283, %vm3539
      %vm3796 = vmand %vm3284, %vm3540
      %vm3797 = vmand %vm3285, %vm3541
      %vm3798 = vmand %vm3286, %vm3542
      %vm3799 = vmand %vm3287, %vm3543
      %vm3800 = vmand %vm3288, %vm3544
      %vm3801 = vmand %vm3289, %vm3545
      %vm3802 = vmand %vm3290, %vm3546
      %vm3803 = vmand %vm3291, %vm3547
      %vm3804 = vmand %vm3292, %vm3548
      %vm3805 = vmand %vm3293, %vm3549
      %vm3806 = vmand %vm3294, %vm3550
      %vm3807 = vmand %vm3295, %vm3551
      %vm3808 = vmand %vm3296, %vm3552
      %vm3809 = vmand %vm3297, %vm3553
      %vm3810 = vmand %vm3298, %vm3554
      %vm3811 = vmand %vm3299, %vm3555
      %vm3812 = vmand %vm3300, %vm3556
      %vm3813 = vmand %vm3301, %vm3557
      %vm3814 = vmand %vm3302, %vm3558
      %vm3815 = vmand %vm3303, %vm3559
      %vm3816 = vmand %vm3304, %vm3560
      %s3817 = sld [smem:[#allocation3]]
      %s3818 = sld [smem:[#allocation3 + $0x1]]
      %v3819 = vsub.f32 %v937, %v1449
      %v3820 = vsub.f32 %v938, %v1450
      %v3821 = vsub.f32 %v939, %v1451
      %v3822 = vsub.f32 %v940, %v1452
      %v3823 = vsub.f32 %v941, %v1453
      %v3824 = vsub.f32 %v942, %v1454
      %v3825 = vsub.f32 %v943, %v1455
      %v3826 = vsub.f32 %v944, %v1456
      %v3827 = vsub.f32 %v945, %v1457
      %v3828 = vsub.f32 %v946, %v1458
      %v3829 = vsub.f32 %v947, %v1459
      %v3830 = vsub.f32 %v948, %v1460
      %v3831 = vsub.f32 %v949, %v1461
      %v3832 = vsub.f32 %v950, %v1462
      %v3833 = vsub.f32 %v951, %v1463
      %v3834 = vsub.f32 %v952, %v1464
      %v3835 = vsub.f32 %v953, %v1465
      %v3836 = vsub.f32 %v954, %v1466
      %v3837 = vsub.f32 %v955, %v1467
      %v3838 = vsub.f32 %v956, %v1468
      %v3839 = vsub.f32 %v957, %v1469
      %v3840 = vsub.f32 %v958, %v1470
      %v3841 = vsub.f32 %v959, %v1471
      %v3842 = vsub.f32 %v960, %v1472
      %v3843 = vsub.f32 %v961, %v1473
      %v3844 = vsub.f32 %v962, %v1474
      %v3845 = vsub.f32 %v963, %v1475
      %v3846 = vsub.f32 %v964, %v1476
      %v3847 = vsub.f32 %v965, %v1477
      %v3848 = vsub.f32 %v966, %v1478
      %v3849 = vsub.f32 %v967, %v1479
      %v3850 = vsub.f32 %v968, %v1480
      %v3851 = vsub.f32 %v969, %v1481
      %v3852 = vsub.f32 %v970, %v1482
      %v3853 = vsub.f32 %v971, %v1483
      %v3854 = vsub.f32 %v972, %v1484
      %v3855 = vsub.f32 %v973, %v1485
      %v3856 = vsub.f32 %v974, %v1486
      %v3857 = vsub.f32 %v975, %v1487
      %v3858 = vsub.f32 %v976, %v1488
      %v3859 = vsub.f32 %v977, %v1489
      %v3860 = vsub.f32 %v978, %v1490
      %v3861 = vsub.f32 %v979, %v1491
      %v3862 = vsub.f32 %v980, %v1492
      %v3863 = vsub.f32 %v981, %v1493
      %v3864 = vsub.f32 %v982, %v1494
      %v3865 = vsub.f32 %v983, %v1495
      %v3866 = vsub.f32 %v984, %v1496
      %v3867 = vsub.f32 %v985, %v1497
      %v3868 = vsub.f32 %v986, %v1498
      %v3869 = vsub.f32 %v987, %v1499
      %v3870 = vsub.f32 %v988, %v1500
      %v3871 = vsub.f32 %v989, %v1501
      %v3872 = vsub.f32 %v990, %v1502
      %v3873 = vsub.f32 %v991, %v1503
      %v3874 = vsub.f32 %v992, %v1504
      %v3875 = vsub.f32 %v993, %v1505
      %v3876 = vsub.f32 %v994, %v1506
      %v3877 = vsub.f32 %v995, %v1507
      %v3878 = vsub.f32 %v996, %v1508
      %v3879 = vsub.f32 %v997, %v1509
      %v3880 = vsub.f32 %v998, %v1510
      %v3881 = vsub.f32 %v999, %v1511
      %v3882 = vsub.f32 %v1000, %v1512
      %v3883 = vsub.f32 %v1001, %v1513
      %v3884 = vsub.f32 %v1002, %v1514
      %v3885 = vsub.f32 %v1003, %v1515
      %v3886 = vsub.f32 %v1004, %v1516
      %v3887 = vsub.f32 %v1005, %v1517
      %v3888 = vsub.f32 %v1006, %v1518
      %v3889 = vsub.f32 %v1007, %v1519
      %v3890 = vsub.f32 %v1008, %v1520
      %v3891 = vsub.f32 %v1009, %v1521
      %v3892 = vsub.f32 %v1010, %v1522
      %v3893 = vsub.f32 %v1011, %v1523
      %v3894 = vsub.f32 %v1012, %v1524
      %v3895 = vsub.f32 %v1013, %v1525
      %v3896 = vsub.f32 %v1014, %v1526
      %v3897 = vsub.f32 %v1015, %v1527
      %v3898 = vsub.f32 %v1016, %v1528
      %v3899 = vsub.f32 %v1017, %v1529
      %v3900 = vsub.f32 %v1018, %v1530
      %v3901 = vsub.f32 %v1019, %v1531
      %v3902 = vsub.f32 %v1020, %v1532
      %v3903 = vsub.f32 %v1021, %v1533
      %v3904 = vsub.f32 %v1022, %v1534
      %v3905 = vsub.f32 %v1023, %v1535
      %v3906 = vsub.f32 %v1024, %v1536
      %v3907 = vsub.f32 %v1025, %v1537
      %v3908 = vsub.f32 %v1026, %v1538
      %v3909 = vsub.f32 %v1027, %v1539
      %v3910 = vsub.f32 %v1028, %v1540
      %v3911 = vsub.f32 %v1029, %v1541
      %v3912 = vsub.f32 %v1030, %v1542
      %v3913 = vsub.f32 %v1031, %v1543
      %v3914 = vsub.f32 %v1032, %v1544
      %v3915 = vsub.f32 %v1033, %v1545
      %v3916 = vsub.f32 %v1034, %v1546
      %v3917 = vsub.f32 %v1035, %v1547
      %v3918 = vsub.f32 %v1036, %v1548
      %v3919 = vsub.f32 %v1037, %v1549
      %v3920 = vsub.f32 %v1038, %v1550
      %v3921 = vsub.f32 %v1039, %v1551
      %v3922 = vsub.f32 %v1040, %v1552
      %v3923 = vsub.f32 %v1041, %v1553
      %v3924 = vsub.f32 %v1042, %v1554
      %v3925 = vsub.f32 %v1043, %v1555
      %v3926 = vsub.f32 %v1044, %v1556
      %v3927 = vsub.f32 %v1045, %v1557
      %v3928 = vsub.f32 %v1046, %v1558
      %v3929 = vsub.f32 %v1047, %v1559
      %v3930 = vsub.f32 %v1048, %v1560
      %v3931 = vsub.f32 %v1049, %v1561
      %v3932 = vsub.f32 %v1050, %v1562
      %v3933 = vsub.f32 %v1051, %v1563
      %v3934 = vsub.f32 %v1052, %v1564
      %v3935 = vsub.f32 %v1053, %v1565
      %v3936 = vsub.f32 %v1054, %v1566
      %v3937 = vsub.f32 %v1055, %v1567
      %v3938 = vsub.f32 %v1056, %v1568
      %v3939 = vsub.f32 %v1057, %v1569
      %v3940 = vsub.f32 %v1058, %v1570
      %v3941 = vsub.f32 %v1059, %v1571
      %v3942 = vsub.f32 %v1060, %v1572
      %v3943 = vsub.f32 %v1061, %v1573
      %v3944 = vsub.f32 %v1062, %v1574
      %v3945 = vsub.f32 %v1063, %v1575
      %v3946 = vsub.f32 %v1064, %v1576
      %v3947 = vsub.f32 %v1065, %v1577
      %v3948 = vsub.f32 %v1066, %v1578
      %v3949 = vsub.f32 %v1067, %v1579
      %v3950 = vsub.f32 %v1068, %v1580
      %v3951 = vsub.f32 %v1069, %v1581
      %v3952 = vsub.f32 %v1070, %v1582
      %v3953 = vsub.f32 %v1071, %v1583
      %v3954 = vsub.f32 %v1072, %v1584
      %v3955 = vsub.f32 %v1073, %v1585
      %v3956 = vsub.f32 %v1074, %v1586
      %v3957 = vsub.f32 %v1075, %v1587
      %v3958 = vsub.f32 %v1076, %v1588
      %v3959 = vsub.f32 %v1077, %v1589
      %v3960 = vsub.f32 %v1078, %v1590
      %v3961 = vsub.f32 %v1079, %v1591
      %v3962 = vsub.f32 %v1080, %v1592
      %v3963 = vsub.f32 %v1081, %v1593
      %v3964 = vsub.f32 %v1082, %v1594
      %v3965 = vsub.f32 %v1083, %v1595
      %v3966 = vsub.f32 %v1084, %v1596
      %v3967 = vsub.f32 %v1085, %v1597
      %v3968 = vsub.f32 %v1086, %v1598
      %v3969 = vsub.f32 %v1087, %v1599
      %v3970 = vsub.f32 %v1088, %v1600
      %v3971 = vsub.f32 %v1089, %v1601
      %v3972 = vsub.f32 %v1090, %v1602
      %v3973 = vsub.f32 %v1091, %v1603
      %v3974 = vsub.f32 %v1092, %v1604
      %v3975 = vsub.f32 %v1093, %v1605
      %v3976 = vsub.f32 %v1094, %v1606
      %v3977 = vsub.f32 %v1095, %v1607
      %v3978 = vsub.f32 %v1096, %v1608
      %v3979 = vsub.f32 %v1097, %v1609
      %v3980 = vsub.f32 %v1098, %v1610
      %v3981 = vsub.f32 %v1099, %v1611
      %v3982 = vsub.f32 %v1100, %v1612
      %v3983 = vsub.f32 %v1101, %v1613
      %v3984 = vsub.f32 %v1102, %v1614
      %v3985 = vsub.f32 %v1103, %v1615
      %v3986 = vsub.f32 %v1104, %v1616
      %v3987 = vsub.f32 %v1105, %v1617
      %v3988 = vsub.f32 %v1106, %v1618
      %v3989 = vsub.f32 %v1107, %v1619
      %v3990 = vsub.f32 %v1108, %v1620
      %v3991 = vsub.f32 %v1109, %v1621
      %v3992 = vsub.f32 %v1110, %v1622
      %v3993 = vsub.f32 %v1111, %v1623
      %v3994 = vsub.f32 %v1112, %v1624
      %v3995 = vsub.f32 %v1113, %v1625
      %v3996 = vsub.f32 %v1114, %v1626
      %v3997 = vsub.f32 %v1115, %v1627
      %v3998 = vsub.f32 %v1116, %v1628
      %v3999 = vsub.f32 %v1117, %v1629
      %v4000 = vsub.f32 %v1118, %v1630
      %v4001 = vsub.f32 %v1119, %v1631
      %v4002 = vsub.f32 %v1120, %v1632
      %v4003 = vsub.f32 %v1121, %v1633
      %v4004 = vsub.f32 %v1122, %v1634
      %v4005 = vsub.f32 %v1123, %v1635
      %v4006 = vsub.f32 %v1124, %v1636
      %v4007 = vsub.f32 %v1125, %v1637
      %v4008 = vsub.f32 %v1126, %v1638
      %v4009 = vsub.f32 %v1127, %v1639
      %v4010 = vsub.f32 %v1128, %v1640
      %v4011 = vsub.f32 %v1129, %v1641
      %v4012 = vsub.f32 %v1130, %v1642
      %v4013 = vsub.f32 %v1131, %v1643
      %v4014 = vsub.f32 %v1132, %v1644
      %v4015 = vsub.f32 %v1133, %v1645
      %v4016 = vsub.f32 %v1134, %v1646
      %v4017 = vsub.f32 %v1135, %v1647
      %v4018 = vsub.f32 %v1136, %v1648
      %v4019 = vsub.f32 %v1137, %v1649
      %v4020 = vsub.f32 %v1138, %v1650
      %v4021 = vsub.f32 %v1139, %v1651
      %v4022 = vsub.f32 %v1140, %v1652
      %v4023 = vsub.f32 %v1141, %v1653
      %v4024 = vsub.f32 %v1142, %v1654
      %v4025 = vsub.f32 %v1143, %v1655
      %v4026 = vsub.f32 %v1144, %v1656
      %v4027 = vsub.f32 %v1145, %v1657
      %v4028 = vsub.f32 %v1146, %v1658
      %v4029 = vsub.f32 %v1147, %v1659
      %v4030 = vsub.f32 %v1148, %v1660
      %v4031 = vsub.f32 %v1149, %v1661
      %v4032 = vsub.f32 %v1150, %v1662
      %v4033 = vsub.f32 %v1151, %v1663
      %v4034 = vsub.f32 %v1152, %v1664
      %v4035 = vsub.f32 %v1153, %v1665
      %v4036 = vsub.f32 %v1154, %v1666
      %v4037 = vsub.f32 %v1155, %v1667
      %v4038 = vsub.f32 %v1156, %v1668
      %v4039 = vsub.f32 %v1157, %v1669
      %v4040 = vsub.f32 %v1158, %v1670
      %v4041 = vsub.f32 %v1159, %v1671
      %v4042 = vsub.f32 %v1160, %v1672
      %v4043 = vsub.f32 %v1161, %v1673
      %v4044 = vsub.f32 %v1162, %v1674
      %v4045 = vsub.f32 %v1163, %v1675
      %v4046 = vsub.f32 %v1164, %v1676
      %v4047 = vsub.f32 %v1165, %v1677
      %v4048 = vsub.f32 %v1166, %v1678
      %v4049 = vsub.f32 %v1167, %v1679
      %v4050 = vsub.f32 %v1168, %v1680
      %v4051 = vsub.f32 %v1169, %v1681
      %v4052 = vsub.f32 %v1170, %v1682
      %v4053 = vsub.f32 %v1171, %v1683
      %v4054 = vsub.f32 %v1172, %v1684
      %v4055 = vsub.f32 %v1173, %v1685
      %v4056 = vsub.f32 %v1174, %v1686
      %v4057 = vsub.f32 %v1175, %v1687
      %v4058 = vsub.f32 %v1176, %v1688
      %v4059 = vsub.f32 %v1177, %v1689
      %v4060 = vsub.f32 %v1178, %v1690
      %v4061 = vsub.f32 %v1179, %v1691
      %v4062 = vsub.f32 %v1180, %v1692
      %v4063 = vsub.f32 %v1181, %v1693
      %v4064 = vsub.f32 %v1182, %v1694
      %v4065 = vsub.f32 %v1183, %v1695
      %v4066 = vsub.f32 %v1184, %v1696
      %v4067 = vsub.f32 %v1185, %v1697
      %v4068 = vsub.f32 %v1186, %v1698
      %v4069 = vsub.f32 %v1187, %v1699
      %v4070 = vsub.f32 %v1188, %v1700
      %v4071 = vsub.f32 %v1189, %v1701
      %v4072 = vsub.f32 %v1190, %v1702
      %v4073 = vsub.f32 %v1191, %v1703
      %v4074 = vsub.f32 %v1192, %v1704
      %v4075 = vmul.f32 %v3819, %v3819
      %v4076 = vmul.f32 %v3820, %v3820
      %v4077 = vmul.f32 %v3821, %v3821
      %v4078 = vmul.f32 %v3822, %v3822
      %v4079 = vmul.f32 %v3823, %v3823
      %v4080 = vmul.f32 %v3824, %v3824
      %v4081 = vmul.f32 %v3825, %v3825
      %v4082 = vmul.f32 %v3826, %v3826
      %v4083 = vmul.f32 %v3827, %v3827
      %v4084 = vmul.f32 %v3828, %v3828
      %v4085 = vmul.f32 %v3829, %v3829
      %v4086 = vmul.f32 %v3830, %v3830
      %v4087 = vmul.f32 %v3831, %v3831
      %v4088 = vmul.f32 %v3832, %v3832
      %v4089 = vmul.f32 %v3833, %v3833
      %v4090 = vmul.f32 %v3834, %v3834
      %v4091 = vmul.f32 %v3835, %v3835
      %v4092 = vmul.f32 %v3836, %v3836
      %v4093 = vmul.f32 %v3837, %v3837
      %v4094 = vmul.f32 %v3838, %v3838
      %v4095 = vmul.f32 %v3839, %v3839
      %v4096 = vmul.f32 %v3840, %v3840
      %v4097 = vmul.f32 %v3841, %v3841
      %v4098 = vmul.f32 %v3842, %v3842
      %v4099 = vmul.f32 %v3843, %v3843
      %v4100 = vmul.f32 %v3844, %v3844
      %v4101 = vmul.f32 %v3845, %v3845
      %v4102 = vmul.f32 %v3846, %v3846
      %v4103 = vmul.f32 %v3847, %v3847
      %v4104 = vmul.f32 %v3848, %v3848
      %v4105 = vmul.f32 %v3849, %v3849
      %v4106 = vmul.f32 %v3850, %v3850
      %v4107 = vmul.f32 %v3851, %v3851
      %v4108 = vmul.f32 %v3852, %v3852
      %v4109 = vmul.f32 %v3853, %v3853
      %v4110 = vmul.f32 %v3854, %v3854
      %v4111 = vmul.f32 %v3855, %v3855
      %v4112 = vmul.f32 %v3856, %v3856
      %v4113 = vmul.f32 %v3857, %v3857
      %v4114 = vmul.f32 %v3858, %v3858
      %v4115 = vmul.f32 %v3859, %v3859
      %v4116 = vmul.f32 %v3860, %v3860
      %v4117 = vmul.f32 %v3861, %v3861
      %v4118 = vmul.f32 %v3862, %v3862
      %v4119 = vmul.f32 %v3863, %v3863
      %v4120 = vmul.f32 %v3864, %v3864
      %v4121 = vmul.f32 %v3865, %v3865
      %v4122 = vmul.f32 %v3866, %v3866
      %v4123 = vmul.f32 %v3867, %v3867
      %v4124 = vmul.f32 %v3868, %v3868
      %v4125 = vmul.f32 %v3869, %v3869
      %v4126 = vmul.f32 %v3870, %v3870
      %v4127 = vmul.f32 %v3871, %v3871
      %v4128 = vmul.f32 %v3872, %v3872
      %v4129 = vmul.f32 %v3873, %v3873
      %v4130 = vmul.f32 %v3874, %v3874
      %v4131 = vmul.f32 %v3875, %v3875
      %v4132 = vmul.f32 %v3876, %v3876
      %v4133 = vmul.f32 %v3877, %v3877
      %v4134 = vmul.f32 %v3878, %v3878
      %v4135 = vmul.f32 %v3879, %v3879
      %v4136 = vmul.f32 %v3880, %v3880
      %v4137 = vmul.f32 %v3881, %v3881
      %v4138 = vmul.f32 %v3882, %v3882
      %v4139 = vmul.f32 %v3883, %v3883
      %v4140 = vmul.f32 %v3884, %v3884
      %v4141 = vmul.f32 %v3885, %v3885
      %v4142 = vmul.f32 %v3886, %v3886
      %v4143 = vmul.f32 %v3887, %v3887
      %v4144 = vmul.f32 %v3888, %v3888
      %v4145 = vmul.f32 %v3889, %v3889
      %v4146 = vmul.f32 %v3890, %v3890
      %v4147 = vmul.f32 %v3891, %v3891
      %v4148 = vmul.f32 %v3892, %v3892
      %v4149 = vmul.f32 %v3893, %v3893
      %v4150 = vmul.f32 %v3894, %v3894
      %v4151 = vmul.f32 %v3895, %v3895
      %v4152 = vmul.f32 %v3896, %v3896
      %v4153 = vmul.f32 %v3897, %v3897
      %v4154 = vmul.f32 %v3898, %v3898
      %v4155 = vmul.f32 %v3899, %v3899
      %v4156 = vmul.f32 %v3900, %v3900
      %v4157 = vmul.f32 %v3901, %v3901
      %v4158 = vmul.f32 %v3902, %v3902
      %v4159 = vmul.f32 %v3903, %v3903
      %v4160 = vmul.f32 %v3904, %v3904
      %v4161 = vmul.f32 %v3905, %v3905
      %v4162 = vmul.f32 %v3906, %v3906
      %v4163 = vmul.f32 %v3907, %v3907
      %v4164 = vmul.f32 %v3908, %v3908
      %v4165 = vmul.f32 %v3909, %v3909
      %v4166 = vmul.f32 %v3910, %v3910
      %v4167 = vmul.f32 %v3911, %v3911
      %v4168 = vmul.f32 %v3912, %v3912
      %v4169 = vmul.f32 %v3913, %v3913
      %v4170 = vmul.f32 %v3914, %v3914
      %v4171 = vmul.f32 %v3915, %v3915
      %v4172 = vmul.f32 %v3916, %v3916
      %v4173 = vmul.f32 %v3917, %v3917
      %v4174 = vmul.f32 %v3918, %v3918
      %v4175 = vmul.f32 %v3919, %v3919
      %v4176 = vmul.f32 %v3920, %v3920
      %v4177 = vmul.f32 %v3921, %v3921
      %v4178 = vmul.f32 %v3922, %v3922
      %v4179 = vmul.f32 %v3923, %v3923
      %v4180 = vmul.f32 %v3924, %v3924
      %v4181 = vmul.f32 %v3925, %v3925
      %v4182 = vmul.f32 %v3926, %v3926
      %v4183 = vmul.f32 %v3927, %v3927
      %v4184 = vmul.f32 %v3928, %v3928
      %v4185 = vmul.f32 %v3929, %v3929
      %v4186 = vmul.f32 %v3930, %v3930
      %v4187 = vmul.f32 %v3931, %v3931
      %v4188 = vmul.f32 %v3932, %v3932
      %v4189 = vmul.f32 %v3933, %v3933
      %v4190 = vmul.f32 %v3934, %v3934
      %v4191 = vmul.f32 %v3935, %v3935
      %v4192 = vmul.f32 %v3936, %v3936
      %v4193 = vmul.f32 %v3937, %v3937
      %v4194 = vmul.f32 %v3938, %v3938
      %v4195 = vmul.f32 %v3939, %v3939
      %v4196 = vmul.f32 %v3940, %v3940
      %v4197 = vmul.f32 %v3941, %v3941
      %v4198 = vmul.f32 %v3942, %v3942
      %v4199 = vmul.f32 %v3943, %v3943
      %v4200 = vmul.f32 %v3944, %v3944
      %v4201 = vmul.f32 %v3945, %v3945
      %v4202 = vmul.f32 %v3946, %v3946
      %v4203 = vmul.f32 %v3947, %v3947
      %v4204 = vmul.f32 %v3948, %v3948
      %v4205 = vmul.f32 %v3949, %v3949
      %v4206 = vmul.f32 %v3950, %v3950
      %v4207 = vmul.f32 %v3951, %v3951
      %v4208 = vmul.f32 %v3952, %v3952
      %v4209 = vmul.f32 %v3953, %v3953
      %v4210 = vmul.f32 %v3954, %v3954
      %v4211 = vmul.f32 %v3955, %v3955
      %v4212 = vmul.f32 %v3956, %v3956
      %v4213 = vmul.f32 %v3957, %v3957
      %v4214 = vmul.f32 %v3958, %v3958
      %v4215 = vmul.f32 %v3959, %v3959
      %v4216 = vmul.f32 %v3960, %v3960
      %v4217 = vmul.f32 %v3961, %v3961
      %v4218 = vmul.f32 %v3962, %v3962
      %v4219 = vmul.f32 %v3963, %v3963
      %v4220 = vmul.f32 %v3964, %v3964
      %v4221 = vmul.f32 %v3965, %v3965
      %v4222 = vmul.f32 %v3966, %v3966
      %v4223 = vmul.f32 %v3967, %v3967
      %v4224 = vmul.f32 %v3968, %v3968
      %v4225 = vmul.f32 %v3969, %v3969
      %v4226 = vmul.f32 %v3970, %v3970
      %v4227 = vmul.f32 %v3971, %v3971
      %v4228 = vmul.f32 %v3972, %v3972
      %v4229 = vmul.f32 %v3973, %v3973
      %v4230 = vmul.f32 %v3974, %v3974
      %v4231 = vmul.f32 %v3975, %v3975
      %v4232 = vmul.f32 %v3976, %v3976
      %v4233 = vmul.f32 %v3977, %v3977
      %v4234 = vmul.f32 %v3978, %v3978
      %v4235 = vmul.f32 %v3979, %v3979
      %v4236 = vmul.f32 %v3980, %v3980
      %v4237 = vmul.f32 %v3981, %v3981
      %v4238 = vmul.f32 %v3982, %v3982
      %v4239 = vmul.f32 %v3983, %v3983
      %v4240 = vmul.f32 %v3984, %v3984
      %v4241 = vmul.f32 %v3985, %v3985
      %v4242 = vmul.f32 %v3986, %v3986
      %v4243 = vmul.f32 %v3987, %v3987
      %v4244 = vmul.f32 %v3988, %v3988
      %v4245 = vmul.f32 %v3989, %v3989
      %v4246 = vmul.f32 %v3990, %v3990
      %v4247 = vmul.f32 %v3991, %v3991
      %v4248 = vmul.f32 %v3992, %v3992
      %v4249 = vmul.f32 %v3993, %v3993
      %v4250 = vmul.f32 %v3994, %v3994
      %v4251 = vmul.f32 %v3995, %v3995
      %v4252 = vmul.f32 %v3996, %v3996
      %v4253 = vmul.f32 %v3997, %v3997
      %v4254 = vmul.f32 %v3998, %v3998
      %v4255 = vmul.f32 %v3999, %v3999
      %v4256 = vmul.f32 %v4000, %v4000
      %v4257 = vmul.f32 %v4001, %v4001
      %v4258 = vmul.f32 %v4002, %v4002
      %v4259 = vmul.f32 %v4003, %v4003
      %v4260 = vmul.f32 %v4004, %v4004
      %v4261 = vmul.f32 %v4005, %v4005
      %v4262 = vmul.f32 %v4006, %v4006
      %v4263 = vmul.f32 %v4007, %v4007
      %v4264 = vmul.f32 %v4008, %v4008
      %v4265 = vmul.f32 %v4009, %v4009
      %v4266 = vmul.f32 %v4010, %v4010
      %v4267 = vmul.f32 %v4011, %v4011
      %v4268 = vmul.f32 %v4012, %v4012
      %v4269 = vmul.f32 %v4013, %v4013
      %v4270 = vmul.f32 %v4014, %v4014
      %v4271 = vmul.f32 %v4015, %v4015
      %v4272 = vmul.f32 %v4016, %v4016
      %v4273 = vmul.f32 %v4017, %v4017
      %v4274 = vmul.f32 %v4018, %v4018
      %v4275 = vmul.f32 %v4019, %v4019
      %v4276 = vmul.f32 %v4020, %v4020
      %v4277 = vmul.f32 %v4021, %v4021
      %v4278 = vmul.f32 %v4022, %v4022
      %v4279 = vmul.f32 %v4023, %v4023
      %v4280 = vmul.f32 %v4024, %v4024
      %v4281 = vmul.f32 %v4025, %v4025
      %v4282 = vmul.f32 %v4026, %v4026
      %v4283 = vmul.f32 %v4027, %v4027
      %v4284 = vmul.f32 %v4028, %v4028
      %v4285 = vmul.f32 %v4029, %v4029
      %v4286 = vmul.f32 %v4030, %v4030
      %v4287 = vmul.f32 %v4031, %v4031
      %v4288 = vmul.f32 %v4032, %v4032
      %v4289 = vmul.f32 %v4033, %v4033
      %v4290 = vmul.f32 %v4034, %v4034
      %v4291 = vmul.f32 %v4035, %v4035
      %v4292 = vmul.f32 %v4036, %v4036
      %v4293 = vmul.f32 %v4037, %v4037
      %v4294 = vmul.f32 %v4038, %v4038
      %v4295 = vmul.f32 %v4039, %v4039
      %v4296 = vmul.f32 %v4040, %v4040
      %v4297 = vmul.f32 %v4041, %v4041
      %v4298 = vmul.f32 %v4042, %v4042
      %v4299 = vmul.f32 %v4043, %v4043
      %v4300 = vmul.f32 %v4044, %v4044
      %v4301 = vmul.f32 %v4045, %v4045
      %v4302 = vmul.f32 %v4046, %v4046
      %v4303 = vmul.f32 %v4047, %v4047
      %v4304 = vmul.f32 %v4048, %v4048
      %v4305 = vmul.f32 %v4049, %v4049
      %v4306 = vmul.f32 %v4050, %v4050
      %v4307 = vmul.f32 %v4051, %v4051
      %v4308 = vmul.f32 %v4052, %v4052
      %v4309 = vmul.f32 %v4053, %v4053
      %v4310 = vmul.f32 %v4054, %v4054
      %v4311 = vmul.f32 %v4055, %v4055
      %v4312 = vmul.f32 %v4056, %v4056
      %v4313 = vmul.f32 %v4057, %v4057
      %v4314 = vmul.f32 %v4058, %v4058
      %v4315 = vmul.f32 %v4059, %v4059
      %v4316 = vmul.f32 %v4060, %v4060
      %v4317 = vmul.f32 %v4061, %v4061
      %v4318 = vmul.f32 %v4062, %v4062
      %v4319 = vmul.f32 %v4063, %v4063
      %v4320 = vmul.f32 %v4064, %v4064
      %v4321 = vmul.f32 %v4065, %v4065
      %v4322 = vmul.f32 %v4066, %v4066
      %v4323 = vmul.f32 %v4067, %v4067
      %v4324 = vmul.f32 %v4068, %v4068
      %v4325 = vmul.f32 %v4069, %v4069
      %v4326 = vmul.f32 %v4070, %v4070
      %v4327 = vmul.f32 %v4071, %v4071
      %v4328 = vmul.f32 %v4072, %v4072
      %v4329 = vmul.f32 %v4073, %v4073
      %v4330 = vmul.f32 %v4074, %v4074
      %v4331 = vstv %s3817
      %v4332 = vsub.f32 %v1449, %v4331
      %v4333 = vsub.f32 %v1450, %v4331
      %v4334 = vsub.f32 %v1451, %v4331
      %v4335 = vsub.f32 %v1452, %v4331
      %v4336 = vsub.f32 %v1453, %v4331
      %v4337 = vsub.f32 %v1454, %v4331
      %v4338 = vsub.f32 %v1455, %v4331
      %v4339 = vsub.f32 %v1456, %v4331
      %v4340 = vsub.f32 %v1457, %v4331
      %v4341 = vsub.f32 %v1458, %v4331
      %v4342 = vsub.f32 %v1459, %v4331
      %v4343 = vsub.f32 %v1460, %v4331
      %v4344 = vsub.f32 %v1461, %v4331
      %v4345 = vsub.f32 %v1462, %v4331
      %v4346 = vsub.f32 %v1463, %v4331
      %v4347 = vsub.f32 %v1464, %v4331
      %v4348 = vsub.f32 %v1465, %v4331
      %v4349 = vsub.f32 %v1466, %v4331
      %v4350 = vsub.f32 %v1467, %v4331
      %v4351 = vsub.f32 %v1468, %v4331
      %v4352 = vsub.f32 %v1469, %v4331
      %v4353 = vsub.f32 %v1470, %v4331
      %v4354 = vsub.f32 %v1471, %v4331
      %v4355 = vsub.f32 %v1472, %v4331
      %v4356 = vsub.f32 %v1473, %v4331
      %v4357 = vsub.f32 %v1474, %v4331
      %v4358 = vsub.f32 %v1475, %v4331
      %v4359 = vsub.f32 %v1476, %v4331
      %v4360 = vsub.f32 %v1477, %v4331
      %v4361 = vsub.f32 %v1478, %v4331
      %v4362 = vsub.f32 %v1479, %v4331
      %v4363 = vsub.f32 %v1480, %v4331
      %v4364 = vsub.f32 %v1481, %v4331
      %v4365 = vsub.f32 %v1482, %v4331
      %v4366 = vsub.f32 %v1483, %v4331
      %v4367 = vsub.f32 %v1484, %v4331
      %v4368 = vsub.f32 %v1485, %v4331
      %v4369 = vsub.f32 %v1486, %v4331
      %v4370 = vsub.f32 %v1487, %v4331
      %v4371 = vsub.f32 %v1488, %v4331
      %v4372 = vsub.f32 %v1489, %v4331
      %v4373 = vsub.f32 %v1490, %v4331
      %v4374 = vsub.f32 %v1491, %v4331
      %v4375 = vsub.f32 %v1492, %v4331
      %v4376 = vsub.f32 %v1493, %v4331
      %v4377 = vsub.f32 %v1494, %v4331
      %v4378 = vsub.f32 %v1495, %v4331
      %v4379 = vsub.f32 %v1496, %v4331
      %v4380 = vsub.f32 %v1497, %v4331
      %v4381 = vsub.f32 %v1498, %v4331
      %v4382 = vsub.f32 %v1499, %v4331
      %v4383 = vsub.f32 %v1500, %v4331
      %v4384 = vsub.f32 %v1501, %v4331
      %v4385 = vsub.f32 %v1502, %v4331
      %v4386 = vsub.f32 %v1503, %v4331
      %v4387 = vsub.f32 %v1504, %v4331
      %v4388 = vsub.f32 %v1505, %v4331
      %v4389 = vsub.f32 %v1506, %v4331
      %v4390 = vsub.f32 %v1507, %v4331
      %v4391 = vsub.f32 %v1508, %v4331
      %v4392 = vsub.f32 %v1509, %v4331
      %v4393 = vsub.f32 %v1510, %v4331
      %v4394 = vsub.f32 %v1511, %v4331
      %v4395 = vsub.f32 %v1512, %v4331
      %v4396 = vsub.f32 %v1513, %v4331
      %v4397 = vsub.f32 %v1514, %v4331
      %v4398 = vsub.f32 %v1515, %v4331
      %v4399 = vsub.f32 %v1516, %v4331
      %v4400 = vsub.f32 %v1517, %v4331
      %v4401 = vsub.f32 %v1518, %v4331
      %v4402 = vsub.f32 %v1519, %v4331
      %v4403 = vsub.f32 %v1520, %v4331
      %v4404 = vsub.f32 %v1521, %v4331
      %v4405 = vsub.f32 %v1522, %v4331
      %v4406 = vsub.f32 %v1523, %v4331
      %v4407 = vsub.f32 %v1524, %v4331
      %v4408 = vsub.f32 %v1525, %v4331
      %v4409 = vsub.f32 %v1526, %v4331
      %v4410 = vsub.f32 %v1527, %v4331
      %v4411 = vsub.f32 %v1528, %v4331
      %v4412 = vsub.f32 %v1529, %v4331
      %v4413 = vsub.f32 %v1530, %v4331
      %v4414 = vsub.f32 %v1531, %v4331
      %v4415 = vsub.f32 %v1532, %v4331
      %v4416 = vsub.f32 %v1533, %v4331
      %v4417 = vsub.f32 %v1534, %v4331
      %v4418 = vsub.f32 %v1535, %v4331
      %v4419 = vsub.f32 %v1536, %v4331
      %v4420 = vsub.f32 %v1537, %v4331
      %v4421 = vsub.f32 %v1538, %v4331
      %v4422 = vsub.f32 %v1539, %v4331
      %v4423 = vsub.f32 %v1540, %v4331
      %v4424 = vsub.f32 %v1541, %v4331
      %v4425 = vsub.f32 %v1542, %v4331
      %v4426 = vsub.f32 %v1543, %v4331
      %v4427 = vsub.f32 %v1544, %v4331
      %v4428 = vsub.f32 %v1545, %v4331
      %v4429 = vsub.f32 %v1546, %v4331
      %v4430 = vsub.f32 %v1547, %v4331
      %v4431 = vsub.f32 %v1548, %v4331
      %v4432 = vsub.f32 %v1549, %v4331
      %v4433 = vsub.f32 %v1550, %v4331
      %v4434 = vsub.f32 %v1551, %v4331
      %v4435 = vsub.f32 %v1552, %v4331
      %v4436 = vsub.f32 %v1553, %v4331
      %v4437 = vsub.f32 %v1554, %v4331
      %v4438 = vsub.f32 %v1555, %v4331
      %v4439 = vsub.f32 %v1556, %v4331
      %v4440 = vsub.f32 %v1557, %v4331
      %v4441 = vsub.f32 %v1558, %v4331
      %v4442 = vsub.f32 %v1559, %v4331
      %v4443 = vsub.f32 %v1560, %v4331
      %v4444 = vsub.f32 %v1561, %v4331
      %v4445 = vsub.f32 %v1562, %v4331
      %v4446 = vsub.f32 %v1563, %v4331
      %v4447 = vsub.f32 %v1564, %v4331
      %v4448 = vsub.f32 %v1565, %v4331
      %v4449 = vsub.f32 %v1566, %v4331
      %v4450 = vsub.f32 %v1567, %v4331
      %v4451 = vsub.f32 %v1568, %v4331
      %v4452 = vsub.f32 %v1569, %v4331
      %v4453 = vsub.f32 %v1570, %v4331
      %v4454 = vsub.f32 %v1571, %v4331
      %v4455 = vsub.f32 %v1572, %v4331
      %v4456 = vsub.f32 %v1573, %v4331
      %v4457 = vsub.f32 %v1574, %v4331
      %v4458 = vsub.f32 %v1575, %v4331
      %v4459 = vsub.f32 %v1576, %v4331
      %v4460 = vsub.f32 %v1577, %v4331
      %v4461 = vsub.f32 %v1578, %v4331
      %v4462 = vsub.f32 %v1579, %v4331
      %v4463 = vsub.f32 %v1580, %v4331
      %v4464 = vsub.f32 %v1581, %v4331
      %v4465 = vsub.f32 %v1582, %v4331
      %v4466 = vsub.f32 %v1583, %v4331
      %v4467 = vsub.f32 %v1584, %v4331
      %v4468 = vsub.f32 %v1585, %v4331
      %v4469 = vsub.f32 %v1586, %v4331
      %v4470 = vsub.f32 %v1587, %v4331
      %v4471 = vsub.f32 %v1588, %v4331
      %v4472 = vsub.f32 %v1589, %v4331
      %v4473 = vsub.f32 %v1590, %v4331
      %v4474 = vsub.f32 %v1591, %v4331
      %v4475 = vsub.f32 %v1592, %v4331
      %v4476 = vsub.f32 %v1593, %v4331
      %v4477 = vsub.f32 %v1594, %v4331
      %v4478 = vsub.f32 %v1595, %v4331
      %v4479 = vsub.f32 %v1596, %v4331
      %v4480 = vsub.f32 %v1597, %v4331
      %v4481 = vsub.f32 %v1598, %v4331
      %v4482 = vsub.f32 %v1599, %v4331
      %v4483 = vsub.f32 %v1600, %v4331
      %v4484 = vsub.f32 %v1601, %v4331
      %v4485 = vsub.f32 %v1602, %v4331
      %v4486 = vsub.f32 %v1603, %v4331
      %v4487 = vsub.f32 %v1604, %v4331
      %v4488 = vsub.f32 %v1605, %v4331
      %v4489 = vsub.f32 %v1606, %v4331
      %v4490 = vsub.f32 %v1607, %v4331
      %v4491 = vsub.f32 %v1608, %v4331
      %v4492 = vsub.f32 %v1609, %v4331
      %v4493 = vsub.f32 %v1610, %v4331
      %v4494 = vsub.f32 %v1611, %v4331
      %v4495 = vsub.f32 %v1612, %v4331
      %v4496 = vsub.f32 %v1613, %v4331
      %v4497 = vsub.f32 %v1614, %v4331
      %v4498 = vsub.f32 %v1615, %v4331
      %v4499 = vsub.f32 %v1616, %v4331
      %v4500 = vsub.f32 %v1617, %v4331
      %v4501 = vsub.f32 %v1618, %v4331
      %v4502 = vsub.f32 %v1619, %v4331
      %v4503 = vsub.f32 %v1620, %v4331
      %v4504 = vsub.f32 %v1621, %v4331
      %v4505 = vsub.f32 %v1622, %v4331
      %v4506 = vsub.f32 %v1623, %v4331
      %v4507 = vsub.f32 %v1624, %v4331
      %v4508 = vsub.f32 %v1625, %v4331
      %v4509 = vsub.f32 %v1626, %v4331
      %v4510 = vsub.f32 %v1627, %v4331
      %v4511 = vsub.f32 %v1628, %v4331
      %v4512 = vsub.f32 %v1629, %v4331
      %v4513 = vsub.f32 %v1630, %v4331
      %v4514 = vsub.f32 %v1631, %v4331
      %v4515 = vsub.f32 %v1632, %v4331
      %v4516 = vsub.f32 %v1633, %v4331
      %v4517 = vsub.f32 %v1634, %v4331
      %v4518 = vsub.f32 %v1635, %v4331
      %v4519 = vsub.f32 %v1636, %v4331
      %v4520 = vsub.f32 %v1637, %v4331
      %v4521 = vsub.f32 %v1638, %v4331
      %v4522 = vsub.f32 %v1639, %v4331
      %v4523 = vsub.f32 %v1640, %v4331
      %v4524 = vsub.f32 %v1641, %v4331
      %v4525 = vsub.f32 %v1642, %v4331
      %v4526 = vsub.f32 %v1643, %v4331
      %v4527 = vsub.f32 %v1644, %v4331
      %v4528 = vsub.f32 %v1645, %v4331
      %v4529 = vsub.f32 %v1646, %v4331
      %v4530 = vsub.f32 %v1647, %v4331
      %v4531 = vsub.f32 %v1648, %v4331
      %v4532 = vsub.f32 %v1649, %v4331
      %v4533 = vsub.f32 %v1650, %v4331
      %v4534 = vsub.f32 %v1651, %v4331
      %v4535 = vsub.f32 %v1652, %v4331
      %v4536 = vsub.f32 %v1653, %v4331
      %v4537 = vsub.f32 %v1654, %v4331
      %v4538 = vsub.f32 %v1655, %v4331
      %v4539 = vsub.f32 %v1656, %v4331
      %v4540 = vsub.f32 %v1657, %v4331
      %v4541 = vsub.f32 %v1658, %v4331
      %v4542 = vsub.f32 %v1659, %v4331
      %v4543 = vsub.f32 %v1660, %v4331
      %v4544 = vsub.f32 %v1661, %v4331
      %v4545 = vsub.f32 %v1662, %v4331
      %v4546 = vsub.f32 %v1663, %v4331
      %v4547 = vsub.f32 %v1664, %v4331
      %v4548 = vsub.f32 %v1665, %v4331
      %v4549 = vsub.f32 %v1666, %v4331
      %v4550 = vsub.f32 %v1667, %v4331
      %v4551 = vsub.f32 %v1668, %v4331
      %v4552 = vsub.f32 %v1669, %v4331
      %v4553 = vsub.f32 %v1670, %v4331
      %v4554 = vsub.f32 %v1671, %v4331
      %v4555 = vsub.f32 %v1672, %v4331
      %v4556 = vsub.f32 %v1673, %v4331
      %v4557 = vsub.f32 %v1674, %v4331
      %v4558 = vsub.f32 %v1675, %v4331
      %v4559 = vsub.f32 %v1676, %v4331
      %v4560 = vsub.f32 %v1677, %v4331
      %v4561 = vsub.f32 %v1678, %v4331
      %v4562 = vsub.f32 %v1679, %v4331
      %v4563 = vsub.f32 %v1680, %v4331
      %v4564 = vsub.f32 %v1681, %v4331
      %v4565 = vsub.f32 %v1682, %v4331
      %v4566 = vsub.f32 %v1683, %v4331
      %v4567 = vsub.f32 %v1684, %v4331
      %v4568 = vsub.f32 %v1685, %v4331
      %v4569 = vsub.f32 %v1686, %v4331
      %v4570 = vsub.f32 %v1687, %v4331
      %v4571 = vsub.f32 %v1688, %v4331
      %v4572 = vsub.f32 %v1689, %v4331
      %v4573 = vsub.f32 %v1690, %v4331
      %v4574 = vsub.f32 %v1691, %v4331
      %v4575 = vsub.f32 %v1692, %v4331
      %v4576 = vsub.f32 %v1693, %v4331
      %v4577 = vsub.f32 %v1694, %v4331
      %v4578 = vsub.f32 %v1695, %v4331
      %v4579 = vsub.f32 %v1696, %v4331
      %v4580 = vsub.f32 %v1697, %v4331
      %v4581 = vsub.f32 %v1698, %v4331
      %v4582 = vsub.f32 %v1699, %v4331
      %v4583 = vsub.f32 %v1700, %v4331
      %v4584 = vsub.f32 %v1701, %v4331
      %v4585 = vsub.f32 %v1702, %v4331
      %v4586 = vsub.f32 %v1703, %v4331
      %v4587 = vsub.f32 %v1704, %v4331
      %v4588 = vstv %s3818
      %v4589 = vsub.f32 %v1449, %v4588
      %v4590 = vsub.f32 %v1450, %v4588
      %v4591 = vsub.f32 %v1451, %v4588
      %v4592 = vsub.f32 %v1452, %v4588
      %v4593 = vsub.f32 %v1453, %v4588
      %v4594 = vsub.f32 %v1454, %v4588
      %v4595 = vsub.f32 %v1455, %v4588
      %v4596 = vsub.f32 %v1456, %v4588
      %v4597 = vsub.f32 %v1457, %v4588
      %v4598 = vsub.f32 %v1458, %v4588
      %v4599 = vsub.f32 %v1459, %v4588
      %v4600 = vsub.f32 %v1460, %v4588
      %v4601 = vsub.f32 %v1461, %v4588
      %v4602 = vsub.f32 %v1462, %v4588
      %v4603 = vsub.f32 %v1463, %v4588
      %v4604 = vsub.f32 %v1464, %v4588
      %v4605 = vsub.f32 %v1465, %v4588
      %v4606 = vsub.f32 %v1466, %v4588
      %v4607 = vsub.f32 %v1467, %v4588
      %v4608 = vsub.f32 %v1468, %v4588
      %v4609 = vsub.f32 %v1469, %v4588
      %v4610 = vsub.f32 %v1470, %v4588
      %v4611 = vsub.f32 %v1471, %v4588
      %v4612 = vsub.f32 %v1472, %v4588
      %v4613 = vsub.f32 %v1473, %v4588
      %v4614 = vsub.f32 %v1474, %v4588
      %v4615 = vsub.f32 %v1475, %v4588
      %v4616 = vsub.f32 %v1476, %v4588
      %v4617 = vsub.f32 %v1477, %v4588
      %v4618 = vsub.f32 %v1478, %v4588
      %v4619 = vsub.f32 %v1479, %v4588
      %v4620 = vsub.f32 %v1480, %v4588
      %v4621 = vsub.f32 %v1481, %v4588
      %v4622 = vsub.f32 %v1482, %v4588
      %v4623 = vsub.f32 %v1483, %v4588
      %v4624 = vsub.f32 %v1484, %v4588
      %v4625 = vsub.f32 %v1485, %v4588
      %v4626 = vsub.f32 %v1486, %v4588
      %v4627 = vsub.f32 %v1487, %v4588
      %v4628 = vsub.f32 %v1488, %v4588
      %v4629 = vsub.f32 %v1489, %v4588
      %v4630 = vsub.f32 %v1490, %v4588
      %v4631 = vsub.f32 %v1491, %v4588
      %v4632 = vsub.f32 %v1492, %v4588
      %v4633 = vsub.f32 %v1493, %v4588
      %v4634 = vsub.f32 %v1494, %v4588
      %v4635 = vsub.f32 %v1495, %v4588
      %v4636 = vsub.f32 %v1496, %v4588
      %v4637 = vsub.f32 %v1497, %v4588
      %v4638 = vsub.f32 %v1498, %v4588
      %v4639 = vsub.f32 %v1499, %v4588
      %v4640 = vsub.f32 %v1500, %v4588
      %v4641 = vsub.f32 %v1501, %v4588
      %v4642 = vsub.f32 %v1502, %v4588
      %v4643 = vsub.f32 %v1503, %v4588
      %v4644 = vsub.f32 %v1504, %v4588
      %v4645 = vsub.f32 %v1505, %v4588
      %v4646 = vsub.f32 %v1506, %v4588
      %v4647 = vsub.f32 %v1507, %v4588
      %v4648 = vsub.f32 %v1508, %v4588
      %v4649 = vsub.f32 %v1509, %v4588
      %v4650 = vsub.f32 %v1510, %v4588
      %v4651 = vsub.f32 %v1511, %v4588
      %v4652 = vsub.f32 %v1512, %v4588
      %v4653 = vsub.f32 %v1513, %v4588
      %v4654 = vsub.f32 %v1514, %v4588
      %v4655 = vsub.f32 %v1515, %v4588
      %v4656 = vsub.f32 %v1516, %v4588
      %v4657 = vsub.f32 %v1517, %v4588
      %v4658 = vsub.f32 %v1518, %v4588
      %v4659 = vsub.f32 %v1519, %v4588
      %v4660 = vsub.f32 %v1520, %v4588
      %v4661 = vsub.f32 %v1521, %v4588
      %v4662 = vsub.f32 %v1522, %v4588
      %v4663 = vsub.f32 %v1523, %v4588
      %v4664 = vsub.f32 %v1524, %v4588
      %v4665 = vsub.f32 %v1525, %v4588
      %v4666 = vsub.f32 %v1526, %v4588
      %v4667 = vsub.f32 %v1527, %v4588
      %v4668 = vsub.f32 %v1528, %v4588
      %v4669 = vsub.f32 %v1529, %v4588
      %v4670 = vsub.f32 %v1530, %v4588
      %v4671 = vsub.f32 %v1531, %v4588
      %v4672 = vsub.f32 %v1532, %v4588
      %v4673 = vsub.f32 %v1533, %v4588
      %v4674 = vsub.f32 %v1534, %v4588
      %v4675 = vsub.f32 %v1535, %v4588
      %v4676 = vsub.f32 %v1536, %v4588
      %v4677 = vsub.f32 %v1537, %v4588
      %v4678 = vsub.f32 %v1538, %v4588
      %v4679 = vsub.f32 %v1539, %v4588
      %v4680 = vsub.f32 %v1540, %v4588
      %v4681 = vsub.f32 %v1541, %v4588
      %v4682 = vsub.f32 %v1542, %v4588
      %v4683 = vsub.f32 %v1543, %v4588
      %v4684 = vsub.f32 %v1544, %v4588
      %v4685 = vsub.f32 %v1545, %v4588
      %v4686 = vsub.f32 %v1546, %v4588
      %v4687 = vsub.f32 %v1547, %v4588
      %v4688 = vsub.f32 %v1548, %v4588
      %v4689 = vsub.f32 %v1549, %v4588
      %v4690 = vsub.f32 %v1550, %v4588
      %v4691 = vsub.f32 %v1551, %v4588
      %v4692 = vsub.f32 %v1552, %v4588
      %v4693 = vsub.f32 %v1553, %v4588
      %v4694 = vsub.f32 %v1554, %v4588
      %v4695 = vsub.f32 %v1555, %v4588
      %v4696 = vsub.f32 %v1556, %v4588
      %v4697 = vsub.f32 %v1557, %v4588
      %v4698 = vsub.f32 %v1558, %v4588
      %v4699 = vsub.f32 %v1559, %v4588
      %v4700 = vsub.f32 %v1560, %v4588
      %v4701 = vsub.f32 %v1561, %v4588
      %v4702 = vsub.f32 %v1562, %v4588
      %v4703 = vsub.f32 %v1563, %v4588
      %v4704 = vsub.f32 %v1564, %v4588
      %v4705 = vsub.f32 %v1565, %v4588
      %v4706 = vsub.f32 %v1566, %v4588
      %v4707 = vsub.f32 %v1567, %v4588
      %v4708 = vsub.f32 %v1568, %v4588
      %v4709 = vsub.f32 %v1569, %v4588
      %v4710 = vsub.f32 %v1570, %v4588
      %v4711 = vsub.f32 %v1571, %v4588
      %v4712 = vsub.f32 %v1572, %v4588
      %v4713 = vsub.f32 %v1573, %v4588
      %v4714 = vsub.f32 %v1574, %v4588
      %v4715 = vsub.f32 %v1575, %v4588
      %v4716 = vsub.f32 %v1576, %v4588
      %v4717 = vsub.f32 %v1577, %v4588
      %v4718 = vsub.f32 %v1578, %v4588
      %v4719 = vsub.f32 %v1579, %v4588
      %v4720 = vsub.f32 %v1580, %v4588
      %v4721 = vsub.f32 %v1581, %v4588
      %v4722 = vsub.f32 %v1582, %v4588
      %v4723 = vsub.f32 %v1583, %v4588
      %v4724 = vsub.f32 %v1584, %v4588
      %v4725 = vsub.f32 %v1585, %v4588
      %v4726 = vsub.f32 %v1586, %v4588
      %v4727 = vsub.f32 %v1587, %v4588
      %v4728 = vsub.f32 %v1588, %v4588
      %v4729 = vsub.f32 %v1589, %v4588
      %v4730 = vsub.f32 %v1590, %v4588
      %v4731 = vsub.f32 %v1591, %v4588
      %v4732 = vsub.f32 %v1592, %v4588
      %v4733 = vsub.f32 %v1593, %v4588
      %v4734 = vsub.f32 %v1594, %v4588
      %v4735 = vsub.f32 %v1595, %v4588
      %v4736 = vsub.f32 %v1596, %v4588
      %v4737 = vsub.f32 %v1597, %v4588
      %v4738 = vsub.f32 %v1598, %v4588
      %v4739 = vsub.f32 %v1599, %v4588
      %v4740 = vsub.f32 %v1600, %v4588
      %v4741 = vsub.f32 %v1601, %v4588
      %v4742 = vsub.f32 %v1602, %v4588
      %v4743 = vsub.f32 %v1603, %v4588
      %v4744 = vsub.f32 %v1604, %v4588
      %v4745 = vsub.f32 %v1605, %v4588
      %v4746 = vsub.f32 %v1606, %v4588
      %v4747 = vsub.f32 %v1607, %v4588
      %v4748 = vsub.f32 %v1608, %v4588
      %v4749 = vsub.f32 %v1609, %v4588
      %v4750 = vsub.f32 %v1610, %v4588
      %v4751 = vsub.f32 %v1611, %v4588
      %v4752 = vsub.f32 %v1612, %v4588
      %v4753 = vsub.f32 %v1613, %v4588
      %v4754 = vsub.f32 %v1614, %v4588
      %v4755 = vsub.f32 %v1615, %v4588
      %v4756 = vsub.f32 %v1616, %v4588
      %v4757 = vsub.f32 %v1617, %v4588
      %v4758 = vsub.f32 %v1618, %v4588
      %v4759 = vsub.f32 %v1619, %v4588
      %v4760 = vsub.f32 %v1620, %v4588
      %v4761 = vsub.f32 %v1621, %v4588
      %v4762 = vsub.f32 %v1622, %v4588
      %v4763 = vsub.f32 %v1623, %v4588
      %v4764 = vsub.f32 %v1624, %v4588
      %v4765 = vsub.f32 %v1625, %v4588
      %v4766 = vsub.f32 %v1626, %v4588
      %v4767 = vsub.f32 %v1627, %v4588
      %v4768 = vsub.f32 %v1628, %v4588
      %v4769 = vsub.f32 %v1629, %v4588
      %v4770 = vsub.f32 %v1630, %v4588
      %v4771 = vsub.f32 %v1631, %v4588
      %v4772 = vsub.f32 %v1632, %v4588
      %v4773 = vsub.f32 %v1633, %v4588
      %v4774 = vsub.f32 %v1634, %v4588
      %v4775 = vsub.f32 %v1635, %v4588
      %v4776 = vsub.f32 %v1636, %v4588
      %v4777 = vsub.f32 %v1637, %v4588
      %v4778 = vsub.f32 %v1638, %v4588
      %v4779 = vsub.f32 %v1639, %v4588
      %v4780 = vsub.f32 %v1640, %v4588
      %v4781 = vsub.f32 %v1641, %v4588
      %v4782 = vsub.f32 %v1642, %v4588
      %v4783 = vsub.f32 %v1643, %v4588
      %v4784 = vsub.f32 %v1644, %v4588
      %v4785 = vsub.f32 %v1645, %v4588
      %v4786 = vsub.f32 %v1646, %v4588
      %v4787 = vsub.f32 %v1647, %v4588
      %v4788 = vsub.f32 %v1648, %v4588
      %v4789 = vsub.f32 %v1649, %v4588
      %v4790 = vsub.f32 %v1650, %v4588
      %v4791 = vsub.f32 %v1651, %v4588
      %v4792 = vsub.f32 %v1652, %v4588
      %v4793 = vsub.f32 %v1653, %v4588
      %v4794 = vsub.f32 %v1654, %v4588
      %v4795 = vsub.f32 %v1655, %v4588
      %v4796 = vsub.f32 %v1656, %v4588
      %v4797 = vsub.f32 %v1657, %v4588
      %v4798 = vsub.f32 %v1658, %v4588
      %v4799 = vsub.f32 %v1659, %v4588
      %v4800 = vsub.f32 %v1660, %v4588
      %v4801 = vsub.f32 %v1661, %v4588
      %v4802 = vsub.f32 %v1662, %v4588
      %v4803 = vsub.f32 %v1663, %v4588
      %v4804 = vsub.f32 %v1664, %v4588
      %v4805 = vsub.f32 %v1665, %v4588
      %v4806 = vsub.f32 %v1666, %v4588
      %v4807 = vsub.f32 %v1667, %v4588
      %v4808 = vsub.f32 %v1668, %v4588
      %v4809 = vsub.f32 %v1669, %v4588
      %v4810 = vsub.f32 %v1670, %v4588
      %v4811 = vsub.f32 %v1671, %v4588
      %v4812 = vsub.f32 %v1672, %v4588
      %v4813 = vsub.f32 %v1673, %v4588
      %v4814 = vsub.f32 %v1674, %v4588
      %v4815 = vsub.f32 %v1675, %v4588
      %v4816 = vsub.f32 %v1676, %v4588
      %v4817 = vsub.f32 %v1677, %v4588
      %v4818 = vsub.f32 %v1678, %v4588
      %v4819 = vsub.f32 %v1679, %v4588
      %v4820 = vsub.f32 %v1680, %v4588
      %v4821 = vsub.f32 %v1681, %v4588
      %v4822 = vsub.f32 %v1682, %v4588
      %v4823 = vsub.f32 %v1683, %v4588
      %v4824 = vsub.f32 %v1684, %v4588
      %v4825 = vsub.f32 %v1685, %v4588
      %v4826 = vsub.f32 %v1686, %v4588
      %v4827 = vsub.f32 %v1687, %v4588
      %v4828 = vsub.f32 %v1688, %v4588
      %v4829 = vsub.f32 %v1689, %v4588
      %v4830 = vsub.f32 %v1690, %v4588
      %v4831 = vsub.f32 %v1691, %v4588
      %v4832 = vsub.f32 %v1692, %v4588
      %v4833 = vsub.f32 %v1693, %v4588
      %v4834 = vsub.f32 %v1694, %v4588
      %v4835 = vsub.f32 %v1695, %v4588
      %v4836 = vsub.f32 %v1696, %v4588
      %v4837 = vsub.f32 %v1697, %v4588
      %v4838 = vsub.f32 %v1698, %v4588
      %v4839 = vsub.f32 %v1699, %v4588
      %v4840 = vsub.f32 %v1700, %v4588
      %v4841 = vsub.f32 %v1701, %v4588
      %v4842 = vsub.f32 %v1702, %v4588
      %v4843 = vsub.f32 %v1703, %v4588
      %v4844 = vsub.f32 %v1704, %v4588
      %v4845 = vld [vmem:[%s408] sm:$0xff]
      %v4846 = vsel %vm2537, 1.0, 0.0
      %v4847 = vsel %vm2538, 1.0, 0.0
      %v4848 = vsel %vm2539, 1.0, 0.0
      %v4849 = vsel %vm2540, 1.0, 0.0
      %v4850 = vsel %vm2541, 1.0, 0.0
      %v4851 = vsel %vm2542, 1.0, 0.0
      %v4852 = vsel %vm2543, 1.0, 0.0
      %v4853 = vsel %vm2544, 1.0, 0.0
      %v4854 = vsel %vm2545, 1.0, 0.0
      %v4855 = vsel %vm2546, 1.0, 0.0
      %v4856 = vsel %vm2547, 1.0, 0.0
      %v4857 = vsel %vm2548, 1.0, 0.0
      %v4858 = vsel %vm2549, 1.0, 0.0
      %v4859 = vsel %vm2550, 1.0, 0.0
      %v4860 = vsel %vm2551, 1.0, 0.0
      %v4861 = vsel %vm2552, 1.0, 0.0
      %v4862 = vsel %vm2553, 1.0, 0.0
      %v4863 = vsel %vm2554, 1.0, 0.0
      %v4864 = vsel %vm2555, 1.0, 0.0
      %v4865 = vsel %vm2556, 1.0, 0.0
      %v4866 = vsel %vm2557, 1.0, 0.0
      %v4867 = vsel %vm2558, 1.0, 0.0
      %v4868 = vsel %vm2559, 1.0, 0.0
      %v4869 = vsel %vm2560, 1.0, 0.0
      %v4870 = vsel %vm2561, 1.0, 0.0
      %v4871 = vsel %vm2562, 1.0, 0.0
      %v4872 = vsel %vm2563, 1.0, 0.0
      %v4873 = vsel %vm2564, 1.0, 0.0
      %v4874 = vsel %vm2565, 1.0, 0.0
      %v4875 = vsel %vm2566, 1.0, 0.0
      %v4876 = vsel %vm2567, 1.0, 0.0
      %v4877 = vsel %vm2568, 1.0, 0.0
      %v4878 = vsel %vm2569, 1.0, 0.0
      %v4879 = vsel %vm2570, 1.0, 0.0
      %v4880 = vsel %vm2571, 1.0, 0.0
      %v4881 = vsel %vm2572, 1.0, 0.0
      %v4882 = vsel %vm2573, 1.0, 0.0
      %v4883 = vsel %vm2574, 1.0, 0.0
      %v4884 = vsel %vm2575, 1.0, 0.0
      %v4885 = vsel %vm2576, 1.0, 0.0
      %v4886 = vsel %vm2577, 1.0, 0.0
      %v4887 = vsel %vm2578, 1.0, 0.0
      %v4888 = vsel %vm2579, 1.0, 0.0
      %v4889 = vsel %vm2580, 1.0, 0.0
      %v4890 = vsel %vm2581, 1.0, 0.0
      %v4891 = vsel %vm2582, 1.0, 0.0
      %v4892 = vsel %vm2583, 1.0, 0.0
      %v4893 = vsel %vm2584, 1.0, 0.0
      %v4894 = vsel %vm2585, 1.0, 0.0
      %v4895 = vsel %vm2586, 1.0, 0.0
      %v4896 = vsel %vm2587, 1.0, 0.0
      %v4897 = vsel %vm2588, 1.0, 0.0
      %v4898 = vsel %vm2589, 1.0, 0.0
      %v4899 = vsel %vm2590, 1.0, 0.0
      %v4900 = vsel %vm2591, 1.0, 0.0
      %v4901 = vsel %vm2592, 1.0, 0.0
      %v4902 = vsel %vm2593, 1.0, 0.0
      %v4903 = vsel %vm2594, 1.0, 0.0
      %v4904 = vsel %vm2595, 1.0, 0.0
      %v4905 = vsel %vm2596, 1.0, 0.0
      %v4906 = vsel %vm2597, 1.0, 0.0
      %v4907 = vsel %vm2598, 1.0, 0.0
      %v4908 = vsel %vm2599, 1.0, 0.0
      %v4909 = vsel %vm2600, 1.0, 0.0
      %v4910 = vsel %vm2601, 1.0, 0.0
      %v4911 = vsel %vm2602, 1.0, 0.0
      %v4912 = vsel %vm2603, 1.0, 0.0
      %v4913 = vsel %vm2604, 1.0, 0.0
      %v4914 = vsel %vm2605, 1.0, 0.0
      %v4915 = vsel %vm2606, 1.0, 0.0
      %v4916 = vsel %vm2607, 1.0, 0.0
      %v4917 = vsel %vm2608, 1.0, 0.0
      %v4918 = vsel %vm2609, 1.0, 0.0
      %v4919 = vsel %vm2610, 1.0, 0.0
      %v4920 = vsel %vm2611, 1.0, 0.0
      %v4921 = vsel %vm2612, 1.0, 0.0
      %v4922 = vsel %vm2613, 1.0, 0.0
      %v4923 = vsel %vm2614, 1.0, 0.0
      %v4924 = vsel %vm2615, 1.0, 0.0
      %v4925 = vsel %vm2616, 1.0, 0.0
      %v4926 = vsel %vm2617, 1.0, 0.0
      %v4927 = vsel %vm2618, 1.0, 0.0
      %v4928 = vsel %vm2619, 1.0, 0.0
      %v4929 = vsel %vm2620, 1.0, 0.0
      %v4930 = vsel %vm2621, 1.0, 0.0
      %v4931 = vsel %vm2622, 1.0, 0.0
      %v4932 = vsel %vm2623, 1.0, 0.0
      %v4933 = vsel %vm2624, 1.0, 0.0
      %v4934 = vsel %vm2625, 1.0, 0.0
      %v4935 = vsel %vm2626, 1.0, 0.0
      %v4936 = vsel %vm2627, 1.0, 0.0
      %v4937 = vsel %vm2628, 1.0, 0.0
      %v4938 = vsel %vm2629, 1.0, 0.0
      %v4939 = vsel %vm2630, 1.0, 0.0
      %v4940 = vsel %vm2631, 1.0, 0.0
      %v4941 = vsel %vm2632, 1.0, 0.0
      %v4942 = vsel %vm2633, 1.0, 0.0
      %v4943 = vsel %vm2634, 1.0, 0.0
      %v4944 = vsel %vm2635, 1.0, 0.0
      %v4945 = vsel %vm2636, 1.0, 0.0
      %v4946 = vsel %vm2637, 1.0, 0.0
      %v4947 = vsel %vm2638, 1.0, 0.0
      %v4948 = vsel %vm2639, 1.0, 0.0
      %v4949 = vsel %vm2640, 1.0, 0.0
      %v4950 = vsel %vm2641, 1.0, 0.0
      %v4951 = vsel %vm2642, 1.0, 0.0
      %v4952 = vsel %vm2643, 1.0, 0.0
      %v4953 = vsel %vm2644, 1.0, 0.0
      %v4954 = vsel %vm2645, 1.0, 0.0
      %v4955 = vsel %vm2646, 1.0, 0.0
      %v4956 = vsel %vm2647, 1.0, 0.0
      %v4957 = vsel %vm2648, 1.0, 0.0
      %v4958 = vsel %vm2649, 1.0, 0.0
      %v4959 = vsel %vm2650, 1.0, 0.0
      %v4960 = vsel %vm2651, 1.0, 0.0
      %v4961 = vsel %vm2652, 1.0, 0.0
      %v4962 = vsel %vm2653, 1.0, 0.0
      %v4963 = vsel %vm2654, 1.0, 0.0
      %v4964 = vsel %vm2655, 1.0, 0.0
      %v4965 = vsel %vm2656, 1.0, 0.0
      %v4966 = vsel %vm2657, 1.0, 0.0
      %v4967 = vsel %vm2658, 1.0, 0.0
      %v4968 = vsel %vm2659, 1.0, 0.0
      %v4969 = vsel %vm2660, 1.0, 0.0
      %v4970 = vsel %vm2661, 1.0, 0.0
      %v4971 = vsel %vm2662, 1.0, 0.0
      %v4972 = vsel %vm2663, 1.0, 0.0
      %v4973 = vsel %vm2664, 1.0, 0.0
      %v4974 = vsel %vm2665, 1.0, 0.0
      %v4975 = vsel %vm2666, 1.0, 0.0
      %v4976 = vsel %vm2667, 1.0, 0.0
      %v4977 = vsel %vm2668, 1.0, 0.0
      %v4978 = vsel %vm2669, 1.0, 0.0
      %v4979 = vsel %vm2670, 1.0, 0.0
      %v4980 = vsel %vm2671, 1.0, 0.0
      %v4981 = vsel %vm2672, 1.0, 0.0
      %v4982 = vsel %vm2673, 1.0, 0.0
      %v4983 = vsel %vm2674, 1.0, 0.0
      %v4984 = vsel %vm2675, 1.0, 0.0
      %v4985 = vsel %vm2676, 1.0, 0.0
      %v4986 = vsel %vm2677, 1.0, 0.0
      %v4987 = vsel %vm2678, 1.0, 0.0
      %v4988 = vsel %vm2679, 1.0, 0.0
      %v4989 = vsel %vm2680, 1.0, 0.0
      %v4990 = vsel %vm2681, 1.0, 0.0
      %v4991 = vsel %vm2682, 1.0, 0.0
      %v4992 = vsel %vm2683, 1.0, 0.0
      %v4993 = vsel %vm2684, 1.0, 0.0
      %v4994 = vsel %vm2685, 1.0, 0.0
      %v4995 = vsel %vm2686, 1.0, 0.0
      %v4996 = vsel %vm2687, 1.0, 0.0
      %v4997 = vsel %vm2688, 1.0, 0.0
      %v4998 = vsel %vm2689, 1.0, 0.0
      %v4999 = vsel %vm2690, 1.0, 0.0
      %v5000 = vsel %vm2691, 1.0, 0.0
      %v5001 = vsel %vm2692, 1.0, 0.0
      %v5002 = vsel %vm2693, 1.0, 0.0
      %v5003 = vsel %vm2694, 1.0, 0.0
      %v5004 = vsel %vm2695, 1.0, 0.0
      %v5005 = vsel %vm2696, 1.0, 0.0
      %v5006 = vsel %vm2697, 1.0, 0.0
      %v5007 = vsel %vm2698, 1.0, 0.0
      %v5008 = vsel %vm2699, 1.0, 0.0
      %v5009 = vsel %vm2700, 1.0, 0.0
      %v5010 = vsel %vm2701, 1.0, 0.0
      %v5011 = vsel %vm2702, 1.0, 0.0
      %v5012 = vsel %vm2703, 1.0, 0.0
      %v5013 = vsel %vm2704, 1.0, 0.0
      %v5014 = vsel %vm2705, 1.0, 0.0
      %v5015 = vsel %vm2706, 1.0, 0.0
      %v5016 = vsel %vm2707, 1.0, 0.0
      %v5017 = vsel %vm2708, 1.0, 0.0
      %v5018 = vsel %vm2709, 1.0, 0.0
      %v5019 = vsel %vm2710, 1.0, 0.0
      %v5020 = vsel %vm2711, 1.0, 0.0
      %v5021 = vsel %vm2712, 1.0, 0.0
      %v5022 = vsel %vm2713, 1.0, 0.0
      %v5023 = vsel %vm2714, 1.0, 0.0
      %v5024 = vsel %vm2715, 1.0, 0.0
      %v5025 = vsel %vm2716, 1.0, 0.0
      %v5026 = vsel %vm2717, 1.0, 0.0
      %v5027 = vsel %vm2718, 1.0, 0.0
      %v5028 = vsel %vm2719, 1.0, 0.0
      %v5029 = vsel %vm2720, 1.0, 0.0
      %v5030 = vsel %vm2721, 1.0, 0.0
      %v5031 = vsel %vm2722, 1.0, 0.0
      %v5032 = vsel %vm2723, 1.0, 0.0
      %v5033 = vsel %vm2724, 1.0, 0.0
      %v5034 = vsel %vm2725, 1.0, 0.0
      %v5035 = vsel %vm2726, 1.0, 0.0
      %v5036 = vsel %vm2727, 1.0, 0.0
      %v5037 = vsel %vm2728, 1.0, 0.0
      %v5038 = vsel %vm2729, 1.0, 0.0
      %v5039 = vsel %vm2730, 1.0, 0.0
      %v5040 = vsel %vm2731, 1.0, 0.0
      %v5041 = vsel %vm2732, 1.0, 0.0
      %v5042 = vsel %vm2733, 1.0, 0.0
      %v5043 = vsel %vm2734, 1.0, 0.0
      %v5044 = vsel %vm2735, 1.0, 0.0
      %v5045 = vsel %vm2736, 1.0, 0.0
      %v5046 = vsel %vm2737, 1.0, 0.0
      %v5047 = vsel %vm2738, 1.0, 0.0
      %v5048 = vsel %vm2739, 1.0, 0.0
      %v5049 = vsel %vm2740, 1.0, 0.0
      %v5050 = vsel %vm2741, 1.0, 0.0
      %v5051 = vsel %vm2742, 1.0, 0.0
      %v5052 = vsel %vm2743, 1.0, 0.0
      %v5053 = vsel %vm2744, 1.0, 0.0
      %v5054 = vsel %vm2745, 1.0, 0.0
      %v5055 = vsel %vm2746, 1.0, 0.0
      %v5056 = vsel %vm2747, 1.0, 0.0
      %v5057 = vsel %vm2748, 1.0, 0.0
      %v5058 = vsel %vm2749, 1.0, 0.0
      %v5059 = vsel %vm2750, 1.0, 0.0
      %v5060 = vsel %vm2751, 1.0, 0.0
      %v5061 = vsel %vm2752, 1.0, 0.0
      %v5062 = vsel %vm2753, 1.0, 0.0
      %v5063 = vsel %vm2754, 1.0, 0.0
      %v5064 = vsel %vm2755, 1.0, 0.0
      %v5065 = vsel %vm2756, 1.0, 0.0
      %v5066 = vsel %vm2757, 1.0, 0.0
      %v5067 = vsel %vm2758, 1.0, 0.0
      %v5068 = vsel %vm2759, 1.0, 0.0
      %v5069 = vsel %vm2760, 1.0, 0.0
      %v5070 = vsel %vm2761, 1.0, 0.0
      %v5071 = vsel %vm2762, 1.0, 0.0
      %v5072 = vsel %vm2763, 1.0, 0.0
      %v5073 = vsel %vm2764, 1.0, 0.0
      %v5074 = vsel %vm2765, 1.0, 0.0
      %v5075 = vsel %vm2766, 1.0, 0.0
      %v5076 = vsel %vm2767, 1.0, 0.0
      %v5077 = vsel %vm2768, 1.0, 0.0
      %v5078 = vsel %vm2769, 1.0, 0.0
      %v5079 = vsel %vm2770, 1.0, 0.0
      %v5080 = vsel %vm2771, 1.0, 0.0
      %v5081 = vsel %vm2772, 1.0, 0.0
      %v5082 = vsel %vm2773, 1.0, 0.0
      %v5083 = vsel %vm2774, 1.0, 0.0
      %v5084 = vsel %vm2775, 1.0, 0.0
      %v5085 = vsel %vm2776, 1.0, 0.0
      %v5086 = vsel %vm2777, 1.0, 0.0
      %v5087 = vsel %vm2778, 1.0, 0.0
      %v5088 = vsel %vm2779, 1.0, 0.0
      %v5089 = vsel %vm2780, 1.0, 0.0
      %v5090 = vsel %vm2781, 1.0, 0.0
      %v5091 = vsel %vm2782, 1.0, 0.0
      %v5092 = vsel %vm2783, 1.0, 0.0
      %v5093 = vsel %vm2784, 1.0, 0.0
      %v5094 = vsel %vm2785, 1.0, 0.0
      %v5095 = vsel %vm2786, 1.0, 0.0
      %v5096 = vsel %vm2787, 1.0, 0.0
      %v5097 = vsel %vm2788, 1.0, 0.0
      %v5098 = vsel %vm2789, 1.0, 0.0
      %v5099 = vsel %vm2790, 1.0, 0.0
      %v5100 = vsel %vm2791, 1.0, 0.0
      %v5101 = vsel %vm2792, 1.0, 0.0
      %v5102 = vadd.f32 %v4846, %v4847
      %v5103 = vadd.f32 %v5102, %v4848
      %v5104 = vadd.f32 %v5103, %v4849
      %v5105 = vadd.f32 %v5104, %v4850
      %v5106 = vadd.f32 %v5105, %v4851
      %v5107 = vadd.f32 %v5106, %v4852
      %v5108 = vadd.f32 %v5107, %v4853
      %v5109 = vadd.f32 %v5108, %v4854
      %v5110 = vadd.f32 %v5109, %v4855
      %v5111 = vadd.f32 %v5110, %v4856
      %v5112 = vadd.f32 %v5111, %v4857
      %v5113 = vadd.f32 %v5112, %v4858
      %v5114 = vadd.f32 %v5113, %v4859
      %v5115 = vadd.f32 %v5114, %v4860
      %v5116 = vadd.f32 %v5115, %v4861
      %v5117 = vadd.f32 %v5116, %v4862
      %v5118 = vadd.f32 %v5117, %v4863
      %v5119 = vadd.f32 %v5118, %v4864
      %v5120 = vadd.f32 %v5119, %v4865
      %v5121 = vadd.f32 %v5120, %v4866
      %v5122 = vadd.f32 %v5121, %v4867
      %v5123 = vadd.f32 %v5122, %v4868
      %v5124 = vadd.f32 %v5123, %v4869
      %v5125 = vadd.f32 %v5124, %v4870
      %v5126 = vadd.f32 %v5125, %v4871
      %v5127 = vadd.f32 %v5126, %v4872
      %v5128 = vadd.f32 %v5127, %v4873
      %v5129 = vadd.f32 %v5128, %v4874
      %v5130 = vadd.f32 %v5129, %v4875
      %v5131 = vadd.f32 %v5130, %v4876
      %v5132 = vadd.f32 %v5131, %v4877
      %v5133 = vadd.f32 %v5132, %v4878
      %v5134 = vadd.f32 %v5133, %v4879
      %v5135 = vadd.f32 %v5134, %v4880
      %v5136 = vadd.f32 %v5135, %v4881
      %v5137 = vadd.f32 %v5136, %v4882
      %v5138 = vadd.f32 %v5137, %v4883
      %v5139 = vadd.f32 %v5138, %v4884
      %v5140 = vadd.f32 %v5139, %v4885
      %v5141 = vadd.f32 %v5140, %v4886
      %v5142 = vadd.f32 %v5141, %v4887
      %v5143 = vadd.f32 %v5142, %v4888
      %v5144 = vadd.f32 %v5143, %v4889
      %v5145 = vadd.f32 %v5144, %v4890
      %v5146 = vadd.f32 %v5145, %v4891
      %v5147 = vadd.f32 %v5146, %v4892
      %v5148 = vadd.f32 %v5147, %v4893
      %v5149 = vadd.f32 %v5148, %v4894
      %v5150 = vadd.f32 %v5149, %v4895
      %v5151 = vadd.f32 %v5150, %v4896
      %v5152 = vadd.f32 %v5151, %v4897
      %v5153 = vadd.f32 %v5152, %v4898
      %v5154 = vadd.f32 %v5153, %v4899
      %v5155 = vadd.f32 %v5154, %v4900
      %v5156 = vadd.f32 %v5155, %v4901
      %v5157 = vadd.f32 %v5156, %v4902
      %v5158 = vadd.f32 %v5157, %v4903
      %v5159 = vadd.f32 %v5158, %v4904
      %v5160 = vadd.f32 %v5159, %v4905
      %v5161 = vadd.f32 %v5160, %v4906
      %v5162 = vadd.f32 %v5161, %v4907
      %v5163 = vadd.f32 %v5162, %v4908
      %v5164 = vadd.f32 %v5163, %v4909
      %v5165 = vadd.f32 %v5164, %v4910
      %v5166 = vadd.f32 %v5165, %v4911
      %v5167 = vadd.f32 %v5166, %v4912
      %v5168 = vadd.f32 %v5167, %v4913
      %v5169 = vadd.f32 %v5168, %v4914
      %v5170 = vadd.f32 %v5169, %v4915
      %v5171 = vadd.f32 %v5170, %v4916
      %v5172 = vadd.f32 %v5171, %v4917
      %v5173 = vadd.f32 %v5172, %v4918
      %v5174 = vadd.f32 %v5173, %v4919
      %v5175 = vadd.f32 %v5174, %v4920
      %v5176 = vadd.f32 %v5175, %v4921
      %v5177 = vadd.f32 %v5176, %v4922
      %v5178 = vadd.f32 %v5177, %v4923
      %v5179 = vadd.f32 %v5178, %v4924
      %v5180 = vadd.f32 %v5179, %v4925
      %v5181 = vadd.f32 %v5180, %v4926
      %v5182 = vadd.f32 %v5181, %v4927
      %v5183 = vadd.f32 %v5182, %v4928
      %v5184 = vadd.f32 %v5183, %v4929
      %v5185 = vadd.f32 %v5184, %v4930
      %v5186 = vadd.f32 %v5185, %v4931
      %v5187 = vadd.f32 %v5186, %v4932
      %v5188 = vadd.f32 %v5187, %v4933
      %v5189 = vadd.f32 %v5188, %v4934
      %v5190 = vadd.f32 %v5189, %v4935
      %v5191 = vadd.f32 %v5190, %v4936
      %v5192 = vadd.f32 %v5191, %v4937
      %v5193 = vadd.f32 %v5192, %v4938
      %v5194 = vadd.f32 %v5193, %v4939
      %v5195 = vadd.f32 %v5194, %v4940
      %v5196 = vadd.f32 %v5195, %v4941
      %v5197 = vadd.f32 %v5196, %v4942
      %v5198 = vadd.f32 %v5197, %v4943
      %v5199 = vadd.f32 %v5198, %v4944
      %v5200 = vadd.f32 %v5199, %v4945
      %v5201 = vadd.f32 %v5200, %v4946
      %v5202 = vadd.f32 %v5201, %v4947
      %v5203 = vadd.f32 %v5202, %v4948
      %v5204 = vadd.f32 %v5203, %v4949
      %v5205 = vadd.f32 %v5204, %v4950
      %v5206 = vadd.f32 %v5205, %v4951
      %v5207 = vadd.f32 %v5206, %v4952
      %v5208 = vadd.f32 %v5207, %v4953
      %v5209 = vadd.f32 %v5208, %v4954
      %v5210 = vadd.f32 %v5209, %v4955
      %v5211 = vadd.f32 %v5210, %v4956
      %v5212 = vadd.f32 %v5211, %v4957
      %v5213 = vadd.f32 %v5212, %v4958
      %v5214 = vadd.f32 %v5213, %v4959
      %v5215 = vadd.f32 %v5214, %v4960
      %v5216 = vadd.f32 %v5215, %v4961
      %v5217 = vadd.f32 %v5216, %v4962
      %v5218 = vadd.f32 %v5217, %v4963
      %v5219 = vadd.f32 %v5218, %v4964
      %v5220 = vadd.f32 %v5219, %v4965
      %v5221 = vadd.f32 %v5220, %v4966
      %v5222 = vadd.f32 %v5221, %v4967
      %v5223 = vadd.f32 %v5222, %v4968
      %v5224 = vadd.f32 %v5223, %v4969
      %v5225 = vadd.f32 %v5224, %v4970
      %v5226 = vadd.f32 %v5225, %v4971
      %v5227 = vadd.f32 %v5226, %v4972
      %v5228 = vadd.f32 %v5227, %v4973
      %v5229 = vadd.f32 %v5228, %v4974
      %v5230 = vadd.f32 %v5229, %v4975
      %v5231 = vadd.f32 %v5230, %v4976
      %v5232 = vadd.f32 %v5231, %v4977
      %v5233 = vadd.f32 %v5232, %v4978
      %v5234 = vadd.f32 %v5233, %v4979
      %v5235 = vadd.f32 %v5234, %v4980
      %v5236 = vadd.f32 %v5235, %v4981
      %v5237 = vadd.f32 %v5236, %v4982
      %v5238 = vadd.f32 %v5237, %v4983
      %v5239 = vadd.f32 %v5238, %v4984
      %v5240 = vadd.f32 %v5239, %v4985
      %v5241 = vadd.f32 %v5240, %v4986
      %v5242 = vadd.f32 %v5241, %v4987
      %v5243 = vadd.f32 %v5242, %v4988
      %v5244 = vadd.f32 %v5243, %v4989
      %v5245 = vadd.f32 %v5244, %v4990
      %v5246 = vadd.f32 %v5245, %v4991
      %v5247 = vadd.f32 %v5246, %v4992
      %v5248 = vadd.f32 %v5247, %v4993
      %v5249 = vadd.f32 %v5248, %v4994
      %v5250 = vadd.f32 %v5249, %v4995
      %v5251 = vadd.f32 %v5250, %v4996
      %v5252 = vadd.f32 %v5251, %v4997
      %v5253 = vadd.f32 %v5252, %v4998
      %v5254 = vadd.f32 %v5253, %v4999
      %v5255 = vadd.f32 %v5254, %v5000
      %v5256 = vadd.f32 %v5255, %v5001
      %v5257 = vadd.f32 %v5256, %v5002
      %v5258 = vadd.f32 %v5257, %v5003
      %v5259 = vadd.f32 %v5258, %v5004
      %v5260 = vadd.f32 %v5259, %v5005
      %v5261 = vadd.f32 %v5260, %v5006
      %v5262 = vadd.f32 %v5261, %v5007
      %v5263 = vadd.f32 %v5262, %v5008
      %v5264 = vadd.f32 %v5263, %v5009
      %v5265 = vadd.f32 %v5264, %v5010
      %v5266 = vadd.f32 %v5265, %v5011
      %v5267 = vadd.f32 %v5266, %v5012
      %v5268 = vadd.f32 %v5267, %v5013
      %v5269 = vadd.f32 %v5268, %v5014
      %v5270 = vadd.f32 %v5269, %v5015
      %v5271 = vadd.f32 %v5270, %v5016
      %v5272 = vadd.f32 %v5271, %v5017
      %v5273 = vadd.f32 %v5272, %v5018
      %v5274 = vadd.f32 %v5273, %v5019
      %v5275 = vadd.f32 %v5274, %v5020
      %v5276 = vadd.f32 %v5275, %v5021
      %v5277 = vadd.f32 %v5276, %v5022
      %v5278 = vadd.f32 %v5277, %v5023
      %v5279 = vadd.f32 %v5278, %v5024
      %v5280 = vadd.f32 %v5279, %v5025
      %v5281 = vadd.f32 %v5280, %v5026
      %v5282 = vadd.f32 %v5281, %v5027
      %v5283 = vadd.f32 %v5282, %v5028
      %v5284 = vadd.f32 %v5283, %v5029
      %v5285 = vadd.f32 %v5284, %v5030
      %v5286 = vadd.f32 %v5285, %v5031
      %v5287 = vadd.f32 %v5286, %v5032
      %v5288 = vadd.f32 %v5287, %v5033
      %v5289 = vadd.f32 %v5288, %v5034
      %v5290 = vadd.f32 %v5289, %v5035
      %v5291 = vadd.f32 %v5290, %v5036
      %v5292 = vadd.f32 %v5291, %v5037
      %v5293 = vadd.f32 %v5292, %v5038
      %v5294 = vadd.f32 %v5293, %v5039
      %v5295 = vadd.f32 %v5294, %v5040
      %v5296 = vadd.f32 %v5295, %v5041
      %v5297 = vadd.f32 %v5296, %v5042
      %v5298 = vadd.f32 %v5297, %v5043
      %v5299 = vadd.f32 %v5298, %v5044
      %v5300 = vadd.f32 %v5299, %v5045
      %v5301 = vadd.f32 %v5300, %v5046
      %v5302 = vadd.f32 %v5301, %v5047
      %v5303 = vadd.f32 %v5302, %v5048
      %v5304 = vadd.f32 %v5303, %v5049
      %v5305 = vadd.f32 %v5304, %v5050
      %v5306 = vadd.f32 %v5305, %v5051
      %v5307 = vadd.f32 %v5306, %v5052
      %v5308 = vadd.f32 %v5307, %v5053
      %v5309 = vadd.f32 %v5308, %v5054
      %v5310 = vadd.f32 %v5309, %v5055
      %v5311 = vadd.f32 %v5310, %v5056
      %v5312 = vadd.f32 %v5311, %v5057
      %v5313 = vadd.f32 %v5312, %v5058
      %v5314 = vadd.f32 %v5313, %v5059
      %v5315 = vadd.f32 %v5314, %v5060
      %v5316 = vadd.f32 %v5315, %v5061
      %v5317 = vadd.f32 %v5316, %v5062
      %v5318 = vadd.f32 %v5317, %v5063
      %v5319 = vadd.f32 %v5318, %v5064
      %v5320 = vadd.f32 %v5319, %v5065
      %v5321 = vadd.f32 %v5320, %v5066
      %v5322 = vadd.f32 %v5321, %v5067
      %v5323 = vadd.f32 %v5322, %v5068
      %v5324 = vadd.f32 %v5323, %v5069
      %v5325 = vadd.f32 %v5324, %v5070
      %v5326 = vadd.f32 %v5325, %v5071
      %v5327 = vadd.f32 %v5326, %v5072
      %v5328 = vadd.f32 %v5327, %v5073
      %v5329 = vadd.f32 %v5328, %v5074
      %v5330 = vadd.f32 %v5329, %v5075
      %v5331 = vadd.f32 %v5330, %v5076
      %v5332 = vadd.f32 %v5331, %v5077
      %v5333 = vadd.f32 %v5332, %v5078
      %v5334 = vadd.f32 %v5333, %v5079
      %v5335 = vadd.f32 %v5334, %v5080
      %v5336 = vadd.f32 %v5335, %v5081
      %v5337 = vadd.f32 %v5336, %v5082
      %v5338 = vadd.f32 %v5337, %v5083
      %v5339 = vadd.f32 %v5338, %v5084
      %v5340 = vadd.f32 %v5339, %v5085
      %v5341 = vadd.f32 %v5340, %v5086
      %v5342 = vadd.f32 %v5341, %v5087
      %v5343 = vadd.f32 %v5342, %v5088
      %v5344 = vadd.f32 %v5343, %v5089
      %v5345 = vadd.f32 %v5344, %v5090
      %v5346 = vadd.f32 %v5345, %v5091
      %v5347 = vadd.f32 %v5346, %v5092
      %v5348 = vadd.f32 %v5347, %v5093
      %v5349 = vadd.f32 %v5348, %v5094
      %v5350 = vadd.f32 %v5349, %v5095
      %v5351 = vadd.f32 %v5350, %v5096
      %v5352 = vadd.f32 %v5351, %v5097
      %v5353 = vadd.f32 %v5352, %v5098
      %v5354 = vadd.f32 %v5353, %v5099
      %v5355 = vadd.f32 %v5354, %v5100
      %v5356 = vadd.f32 %v5355, %v5101
      %v5357 = vadd.f32 %v4845, %v5356
      %5358 = vst [vmem:[%s408] sm:$0xff] %v5357
      %s5359 = scalar_lea.vmem %s408, 8
      %v5360 = vld [vmem:[%s5359] sm:$0xff]
      %v5361 = vsel %vm2537, %v4075, 0.0
      %v5362 = vsel %vm2538, %v4076, 0.0
      %v5363 = vsel %vm2539, %v4077, 0.0
      %v5364 = vsel %vm2540, %v4078, 0.0
      %v5365 = vsel %vm2541, %v4079, 0.0
      %v5366 = vsel %vm2542, %v4080, 0.0
      %v5367 = vsel %vm2543, %v4081, 0.0
      %v5368 = vsel %vm2544, %v4082, 0.0
      %v5369 = vsel %vm2545, %v4083, 0.0
      %v5370 = vsel %vm2546, %v4084, 0.0
      %v5371 = vsel %vm2547, %v4085, 0.0
      %v5372 = vsel %vm2548, %v4086, 0.0
      %v5373 = vsel %vm2549, %v4087, 0.0
      %v5374 = vsel %vm2550, %v4088, 0.0
      %v5375 = vsel %vm2551, %v4089, 0.0
      %v5376 = vsel %vm2552, %v4090, 0.0
      %v5377 = vsel %vm2553, %v4091, 0.0
      %v5378 = vsel %vm2554, %v4092, 0.0
      %v5379 = vsel %vm2555, %v4093, 0.0
      %v5380 = vsel %vm2556, %v4094, 0.0
      %v5381 = vsel %vm2557, %v4095, 0.0
      %v5382 = vsel %vm2558, %v4096, 0.0
      %v5383 = vsel %vm2559, %v4097, 0.0
      %v5384 = vsel %vm2560, %v4098, 0.0
      %v5385 = vsel %vm2561, %v4099, 0.0
      %v5386 = vsel %vm2562, %v4100, 0.0
      %v5387 = vsel %vm2563, %v4101, 0.0
      %v5388 = vsel %vm2564, %v4102, 0.0
      %v5389 = vsel %vm2565, %v4103, 0.0
      %v5390 = vsel %vm2566, %v4104, 0.0
      %v5391 = vsel %vm2567, %v4105, 0.0
      %v5392 = vsel %vm2568, %v4106, 0.0
      %v5393 = vsel %vm2569, %v4107, 0.0
      %v5394 = vsel %vm2570, %v4108, 0.0
      %v5395 = vsel %vm2571, %v4109, 0.0
      %v5396 = vsel %vm2572, %v4110, 0.0
      %v5397 = vsel %vm2573, %v4111, 0.0
      %v5398 = vsel %vm2574, %v4112, 0.0
      %v5399 = vsel %vm2575, %v4113, 0.0
      %v5400 = vsel %vm2576, %v4114, 0.0
      %v5401 = vsel %vm2577, %v4115, 0.0
      %v5402 = vsel %vm2578, %v4116, 0.0
      %v5403 = vsel %vm2579, %v4117, 0.0
      %v5404 = vsel %vm2580, %v4118, 0.0
      %v5405 = vsel %vm2581, %v4119, 0.0
      %v5406 = vsel %vm2582, %v4120, 0.0
      %v5407 = vsel %vm2583, %v4121, 0.0
      %v5408 = vsel %vm2584, %v4122, 0.0
      %v5409 = vsel %vm2585, %v4123, 0.0
      %v5410 = vsel %vm2586, %v4124, 0.0
      %v5411 = vsel %vm2587, %v4125, 0.0
      %v5412 = vsel %vm2588, %v4126, 0.0
      %v5413 = vsel %vm2589, %v4127, 0.0
      %v5414 = vsel %vm2590, %v4128, 0.0
      %v5415 = vsel %vm2591, %v4129, 0.0
      %v5416 = vsel %vm2592, %v4130, 0.0
      %v5417 = vsel %vm2593, %v4131, 0.0
      %v5418 = vsel %vm2594, %v4132, 0.0
      %v5419 = vsel %vm2595, %v4133, 0.0
      %v5420 = vsel %vm2596, %v4134, 0.0
      %v5421 = vsel %vm2597, %v4135, 0.0
      %v5422 = vsel %vm2598, %v4136, 0.0
      %v5423 = vsel %vm2599, %v4137, 0.0
      %v5424 = vsel %vm2600, %v4138, 0.0
      %v5425 = vsel %vm2601, %v4139, 0.0
      %v5426 = vsel %vm2602, %v4140, 0.0
      %v5427 = vsel %vm2603, %v4141, 0.0
      %v5428 = vsel %vm2604, %v4142, 0.0
      %v5429 = vsel %vm2605, %v4143, 0.0
      %v5430 = vsel %vm2606, %v4144, 0.0
      %v5431 = vsel %vm2607, %v4145, 0.0
      %v5432 = vsel %vm2608, %v4146, 0.0
      %v5433 = vsel %vm2609, %v4147, 0.0
      %v5434 = vsel %vm2610, %v4148, 0.0
      %v5435 = vsel %vm2611, %v4149, 0.0
      %v5436 = vsel %vm2612, %v4150, 0.0
      %v5437 = vsel %vm2613, %v4151, 0.0
      %v5438 = vsel %vm2614, %v4152, 0.0
      %v5439 = vsel %vm2615, %v4153, 0.0
      %v5440 = vsel %vm2616, %v4154, 0.0
      %v5441 = vsel %vm2617, %v4155, 0.0
      %v5442 = vsel %vm2618, %v4156, 0.0
      %v5443 = vsel %vm2619, %v4157, 0.0
      %v5444 = vsel %vm2620, %v4158, 0.0
      %v5445 = vsel %vm2621, %v4159, 0.0
      %v5446 = vsel %vm2622, %v4160, 0.0
      %v5447 = vsel %vm2623, %v4161, 0.0
      %v5448 = vsel %vm2624, %v4162, 0.0
      %v5449 = vsel %vm2625, %v4163, 0.0
      %v5450 = vsel %vm2626, %v4164, 0.0
      %v5451 = vsel %vm2627, %v4165, 0.0
      %v5452 = vsel %vm2628, %v4166, 0.0
      %v5453 = vsel %vm2629, %v4167, 0.0
      %v5454 = vsel %vm2630, %v4168, 0.0
      %v5455 = vsel %vm2631, %v4169, 0.0
      %v5456 = vsel %vm2632, %v4170, 0.0
      %v5457 = vsel %vm2633, %v4171, 0.0
      %v5458 = vsel %vm2634, %v4172, 0.0
      %v5459 = vsel %vm2635, %v4173, 0.0
      %v5460 = vsel %vm2636, %v4174, 0.0
      %v5461 = vsel %vm2637, %v4175, 0.0
      %v5462 = vsel %vm2638, %v4176, 0.0
      %v5463 = vsel %vm2639, %v4177, 0.0
      %v5464 = vsel %vm2640, %v4178, 0.0
      %v5465 = vsel %vm2641, %v4179, 0.0
      %v5466 = vsel %vm2642, %v4180, 0.0
      %v5467 = vsel %vm2643, %v4181, 0.0
      %v5468 = vsel %vm2644, %v4182, 0.0
      %v5469 = vsel %vm2645, %v4183, 0.0
      %v5470 = vsel %vm2646, %v4184, 0.0
      %v5471 = vsel %vm2647, %v4185, 0.0
      %v5472 = vsel %vm2648, %v4186, 0.0
      %v5473 = vsel %vm2649, %v4187, 0.0
      %v5474 = vsel %vm2650, %v4188, 0.0
      %v5475 = vsel %vm2651, %v4189, 0.0
      %v5476 = vsel %vm2652, %v4190, 0.0
      %v5477 = vsel %vm2653, %v4191, 0.0
      %v5478 = vsel %vm2654, %v4192, 0.0
      %v5479 = vsel %vm2655, %v4193, 0.0
      %v5480 = vsel %vm2656, %v4194, 0.0
      %v5481 = vsel %vm2657, %v4195, 0.0
      %v5482 = vsel %vm2658, %v4196, 0.0
      %v5483 = vsel %vm2659, %v4197, 0.0
      %v5484 = vsel %vm2660, %v4198, 0.0
      %v5485 = vsel %vm2661, %v4199, 0.0
      %v5486 = vsel %vm2662, %v4200, 0.0
      %v5487 = vsel %vm2663, %v4201, 0.0
      %v5488 = vsel %vm2664, %v4202, 0.0
      %v5489 = vsel %vm2665, %v4203, 0.0
      %v5490 = vsel %vm2666, %v4204, 0.0
      %v5491 = vsel %vm2667, %v4205, 0.0
      %v5492 = vsel %vm2668, %v4206, 0.0
      %v5493 = vsel %vm2669, %v4207, 0.0
      %v5494 = vsel %vm2670, %v4208, 0.0
      %v5495 = vsel %vm2671, %v4209, 0.0
      %v5496 = vsel %vm2672, %v4210, 0.0
      %v5497 = vsel %vm2673, %v4211, 0.0
      %v5498 = vsel %vm2674, %v4212, 0.0
      %v5499 = vsel %vm2675, %v4213, 0.0
      %v5500 = vsel %vm2676, %v4214, 0.0
      %v5501 = vsel %vm2677, %v4215, 0.0
      %v5502 = vsel %vm2678, %v4216, 0.0
      %v5503 = vsel %vm2679, %v4217, 0.0
      %v5504 = vsel %vm2680, %v4218, 0.0
      %v5505 = vsel %vm2681, %v4219, 0.0
      %v5506 = vsel %vm2682, %v4220, 0.0
      %v5507 = vsel %vm2683, %v4221, 0.0
      %v5508 = vsel %vm2684, %v4222, 0.0
      %v5509 = vsel %vm2685, %v4223, 0.0
      %v5510 = vsel %vm2686, %v4224, 0.0
      %v5511 = vsel %vm2687, %v4225, 0.0
      %v5512 = vsel %vm2688, %v4226, 0.0
      %v5513 = vsel %vm2689, %v4227, 0.0
      %v5514 = vsel %vm2690, %v4228, 0.0
      %v5515 = vsel %vm2691, %v4229, 0.0
      %v5516 = vsel %vm2692, %v4230, 0.0
      %v5517 = vsel %vm2693, %v4231, 0.0
      %v5518 = vsel %vm2694, %v4232, 0.0
      %v5519 = vsel %vm2695, %v4233, 0.0
      %v5520 = vsel %vm2696, %v4234, 0.0
      %v5521 = vsel %vm2697, %v4235, 0.0
      %v5522 = vsel %vm2698, %v4236, 0.0
      %v5523 = vsel %vm2699, %v4237, 0.0
      %v5524 = vsel %vm2700, %v4238, 0.0
      %v5525 = vsel %vm2701, %v4239, 0.0
      %v5526 = vsel %vm2702, %v4240, 0.0
      %v5527 = vsel %vm2703, %v4241, 0.0
      %v5528 = vsel %vm2704, %v4242, 0.0
      %v5529 = vsel %vm2705, %v4243, 0.0
      %v5530 = vsel %vm2706, %v4244, 0.0
      %v5531 = vsel %vm2707, %v4245, 0.0
      %v5532 = vsel %vm2708, %v4246, 0.0
      %v5533 = vsel %vm2709, %v4247, 0.0
      %v5534 = vsel %vm2710, %v4248, 0.0
      %v5535 = vsel %vm2711, %v4249, 0.0
      %v5536 = vsel %vm2712, %v4250, 0.0
      %v5537 = vsel %vm2713, %v4251, 0.0
      %v5538 = vsel %vm2714, %v4252, 0.0
      %v5539 = vsel %vm2715, %v4253, 0.0
      %v5540 = vsel %vm2716, %v4254, 0.0
      %v5541 = vsel %vm2717, %v4255, 0.0
      %v5542 = vsel %vm2718, %v4256, 0.0
      %v5543 = vsel %vm2719, %v4257, 0.0
      %v5544 = vsel %vm2720, %v4258, 0.0
      %v5545 = vsel %vm2721, %v4259, 0.0
      %v5546 = vsel %vm2722, %v4260, 0.0
      %v5547 = vsel %vm2723, %v4261, 0.0
      %v5548 = vsel %vm2724, %v4262, 0.0
      %v5549 = vsel %vm2725, %v4263, 0.0
      %v5550 = vsel %vm2726, %v4264, 0.0
      %v5551 = vsel %vm2727, %v4265, 0.0
      %v5552 = vsel %vm2728, %v4266, 0.0
      %v5553 = vsel %vm2729, %v4267, 0.0
      %v5554 = vsel %vm2730, %v4268, 0.0
      %v5555 = vsel %vm2731, %v4269, 0.0
      %v5556 = vsel %vm2732, %v4270, 0.0
      %v5557 = vsel %vm2733, %v4271, 0.0
      %v5558 = vsel %vm2734, %v4272, 0.0
      %v5559 = vsel %vm2735, %v4273, 0.0
      %v5560 = vsel %vm2736, %v4274, 0.0
      %v5561 = vsel %vm2737, %v4275, 0.0
      %v5562 = vsel %vm2738, %v4276, 0.0
      %v5563 = vsel %vm2739, %v4277, 0.0
      %v5564 = vsel %vm2740, %v4278, 0.0
      %v5565 = vsel %vm2741, %v4279, 0.0
      %v5566 = vsel %vm2742, %v4280, 0.0
      %v5567 = vsel %vm2743, %v4281, 0.0
      %v5568 = vsel %vm2744, %v4282, 0.0
      %v5569 = vsel %vm2745, %v4283, 0.0
      %v5570 = vsel %vm2746, %v4284, 0.0
      %v5571 = vsel %vm2747, %v4285, 0.0
      %v5572 = vsel %vm2748, %v4286, 0.0
      %v5573 = vsel %vm2749, %v4287, 0.0
      %v5574 = vsel %vm2750, %v4288, 0.0
      %v5575 = vsel %vm2751, %v4289, 0.0
      %v5576 = vsel %vm2752, %v4290, 0.0
      %v5577 = vsel %vm2753, %v4291, 0.0
      %v5578 = vsel %vm2754, %v4292, 0.0
      %v5579 = vsel %vm2755, %v4293, 0.0
      %v5580 = vsel %vm2756, %v4294, 0.0
      %v5581 = vsel %vm2757, %v4295, 0.0
      %v5582 = vsel %vm2758, %v4296, 0.0
      %v5583 = vsel %vm2759, %v4297, 0.0
      %v5584 = vsel %vm2760, %v4298, 0.0
      %v5585 = vsel %vm2761, %v4299, 0.0
      %v5586 = vsel %vm2762, %v4300, 0.0
      %v5587 = vsel %vm2763, %v4301, 0.0
      %v5588 = vsel %vm2764, %v4302, 0.0
      %v5589 = vsel %vm2765, %v4303, 0.0
      %v5590 = vsel %vm2766, %v4304, 0.0
      %v5591 = vsel %vm2767, %v4305, 0.0
      %v5592 = vsel %vm2768, %v4306, 0.0
      %v5593 = vsel %vm2769, %v4307, 0.0
      %v5594 = vsel %vm2770, %v4308, 0.0
      %v5595 = vsel %vm2771, %v4309, 0.0
      %v5596 = vsel %vm2772, %v4310, 0.0
      %v5597 = vsel %vm2773, %v4311, 0.0
      %v5598 = vsel %vm2774, %v4312, 0.0
      %v5599 = vsel %vm2775, %v4313, 0.0
      %v5600 = vsel %vm2776, %v4314, 0.0
      %v5601 = vsel %vm2777, %v4315, 0.0
      %v5602 = vsel %vm2778, %v4316, 0.0
      %v5603 = vsel %vm2779, %v4317, 0.0
      %v5604 = vsel %vm2780, %v4318, 0.0
      %v5605 = vsel %vm2781, %v4319, 0.0
      %v5606 = vsel %vm2782, %v4320, 0.0
      %v5607 = vsel %vm2783, %v4321, 0.0
      %v5608 = vsel %vm2784, %v4322, 0.0
      %v5609 = vsel %vm2785, %v4323, 0.0
      %v5610 = vsel %vm2786, %v4324, 0.0
      %v5611 = vsel %vm2787, %v4325, 0.0
      %v5612 = vsel %vm2788, %v4326, 0.0
      %v5613 = vsel %vm2789, %v4327, 0.0
      %v5614 = vsel %vm2790, %v4328, 0.0
      %v5615 = vsel %vm2791, %v4329, 0.0
      %v5616 = vsel %vm2792, %v4330, 0.0
      %v5617 = vadd.f32 %v5361, %v5362
      %v5618 = vadd.f32 %v5617, %v5363
      %v5619 = vadd.f32 %v5618, %v5364
      %v5620 = vadd.f32 %v5619, %v5365
      %v5621 = vadd.f32 %v5620, %v5366
      %v5622 = vadd.f32 %v5621, %v5367
      %v5623 = vadd.f32 %v5622, %v5368
      %v5624 = vadd.f32 %v5623, %v5369
      %v5625 = vadd.f32 %v5624, %v5370
      %v5626 = vadd.f32 %v5625, %v5371
      %v5627 = vadd.f32 %v5626, %v5372
      %v5628 = vadd.f32 %v5627, %v5373
      %v5629 = vadd.f32 %v5628, %v5374
      %v5630 = vadd.f32 %v5629, %v5375
      %v5631 = vadd.f32 %v5630, %v5376
      %v5632 = vadd.f32 %v5631, %v5377
      %v5633 = vadd.f32 %v5632, %v5378
      %v5634 = vadd.f32 %v5633, %v5379
      %v5635 = vadd.f32 %v5634, %v5380
      %v5636 = vadd.f32 %v5635, %v5381
      %v5637 = vadd.f32 %v5636, %v5382
      %v5638 = vadd.f32 %v5637, %v5383
      %v5639 = vadd.f32 %v5638, %v5384
      %v5640 = vadd.f32 %v5639, %v5385
      %v5641 = vadd.f32 %v5640, %v5386
      %v5642 = vadd.f32 %v5641, %v5387
      %v5643 = vadd.f32 %v5642, %v5388
      %v5644 = vadd.f32 %v5643, %v5389
      %v5645 = vadd.f32 %v5644, %v5390
      %v5646 = vadd.f32 %v5645, %v5391
      %v5647 = vadd.f32 %v5646, %v5392
      %v5648 = vadd.f32 %v5647, %v5393
      %v5649 = vadd.f32 %v5648, %v5394
      %v5650 = vadd.f32 %v5649, %v5395
      %v5651 = vadd.f32 %v5650, %v5396
      %v5652 = vadd.f32 %v5651, %v5397
      %v5653 = vadd.f32 %v5652, %v5398
      %v5654 = vadd.f32 %v5653, %v5399
      %v5655 = vadd.f32 %v5654, %v5400
      %v5656 = vadd.f32 %v5655, %v5401
      %v5657 = vadd.f32 %v5656, %v5402
      %v5658 = vadd.f32 %v5657, %v5403
      %v5659 = vadd.f32 %v5658, %v5404
      %v5660 = vadd.f32 %v5659, %v5405
      %v5661 = vadd.f32 %v5660, %v5406
      %v5662 = vadd.f32 %v5661, %v5407
      %v5663 = vadd.f32 %v5662, %v5408
      %v5664 = vadd.f32 %v5663, %v5409
      %v5665 = vadd.f32 %v5664, %v5410
      %v5666 = vadd.f32 %v5665, %v5411
      %v5667 = vadd.f32 %v5666, %v5412
      %v5668 = vadd.f32 %v5667, %v5413
      %v5669 = vadd.f32 %v5668, %v5414
      %v5670 = vadd.f32 %v5669, %v5415
      %v5671 = vadd.f32 %v5670, %v5416
      %v5672 = vadd.f32 %v5671, %v5417
      %v5673 = vadd.f32 %v5672, %v5418
      %v5674 = vadd.f32 %v5673, %v5419
      %v5675 = vadd.f32 %v5674, %v5420
      %v5676 = vadd.f32 %v5675, %v5421
      %v5677 = vadd.f32 %v5676, %v5422
      %v5678 = vadd.f32 %v5677, %v5423
      %v5679 = vadd.f32 %v5678, %v5424
      %v5680 = vadd.f32 %v5679, %v5425
      %v5681 = vadd.f32 %v5680, %v5426
      %v5682 = vadd.f32 %v5681, %v5427
      %v5683 = vadd.f32 %v5682, %v5428
      %v5684 = vadd.f32 %v5683, %v5429
      %v5685 = vadd.f32 %v5684, %v5430
      %v5686 = vadd.f32 %v5685, %v5431
      %v5687 = vadd.f32 %v5686, %v5432
      %v5688 = vadd.f32 %v5687, %v5433
      %v5689 = vadd.f32 %v5688, %v5434
      %v5690 = vadd.f32 %v5689, %v5435
      %v5691 = vadd.f32 %v5690, %v5436
      %v5692 = vadd.f32 %v5691, %v5437
      %v5693 = vadd.f32 %v5692, %v5438
      %v5694 = vadd.f32 %v5693, %v5439
      %v5695 = vadd.f32 %v5694, %v5440
      %v5696 = vadd.f32 %v5695, %v5441
      %v5697 = vadd.f32 %v5696, %v5442
      %v5698 = vadd.f32 %v5697, %v5443
      %v5699 = vadd.f32 %v5698, %v5444
      %v5700 = vadd.f32 %v5699, %v5445
      %v5701 = vadd.f32 %v5700, %v5446
      %v5702 = vadd.f32 %v5701, %v5447
      %v5703 = vadd.f32 %v5702, %v5448
      %v5704 = vadd.f32 %v5703, %v5449
      %v5705 = vadd.f32 %v5704, %v5450
      %v5706 = vadd.f32 %v5705, %v5451
      %v5707 = vadd.f32 %v5706, %v5452
      %v5708 = vadd.f32 %v5707, %v5453
      %v5709 = vadd.f32 %v5708, %v5454
      %v5710 = vadd.f32 %v5709, %v5455
      %v5711 = vadd.f32 %v5710, %v5456
      %v5712 = vadd.f32 %v5711, %v5457
      %v5713 = vadd.f32 %v5712, %v5458
      %v5714 = vadd.f32 %v5713, %v5459
      %v5715 = vadd.f32 %v5714, %v5460
      %v5716 = vadd.f32 %v5715, %v5461
      %v5717 = vadd.f32 %v5716, %v5462
      %v5718 = vadd.f32 %v5717, %v5463
      %v5719 = vadd.f32 %v5718, %v5464
      %v5720 = vadd.f32 %v5719, %v5465
      %v5721 = vadd.f32 %v5720, %v5466
      %v5722 = vadd.f32 %v5721, %v5467
      %v5723 = vadd.f32 %v5722, %v5468
      %v5724 = vadd.f32 %v5723, %v5469
      %v5725 = vadd.f32 %v5724, %v5470
      %v5726 = vadd.f32 %v5725, %v5471
      %v5727 = vadd.f32 %v5726, %v5472
      %v5728 = vadd.f32 %v5727, %v5473
      %v5729 = vadd.f32 %v5728, %v5474
      %v5730 = vadd.f32 %v5729, %v5475
      %v5731 = vadd.f32 %v5730, %v5476
      %v5732 = vadd.f32 %v5731, %v5477
      %v5733 = vadd.f32 %v5732, %v5478
      %v5734 = vadd.f32 %v5733, %v5479
      %v5735 = vadd.f32 %v5734, %v5480
      %v5736 = vadd.f32 %v5735, %v5481
      %v5737 = vadd.f32 %v5736, %v5482
      %v5738 = vadd.f32 %v5737, %v5483
      %v5739 = vadd.f32 %v5738, %v5484
      %v5740 = vadd.f32 %v5739, %v5485
      %v5741 = vadd.f32 %v5740, %v5486
      %v5742 = vadd.f32 %v5741, %v5487
      %v5743 = vadd.f32 %v5742, %v5488
      %v5744 = vadd.f32 %v5743, %v5489
      %v5745 = vadd.f32 %v5744, %v5490
      %v5746 = vadd.f32 %v5745, %v5491
      %v5747 = vadd.f32 %v5746, %v5492
      %v5748 = vadd.f32 %v5747, %v5493
      %v5749 = vadd.f32 %v5748, %v5494
      %v5750 = vadd.f32 %v5749, %v5495
      %v5751 = vadd.f32 %v5750, %v5496
      %v5752 = vadd.f32 %v5751, %v5497
      %v5753 = vadd.f32 %v5752, %v5498
      %v5754 = vadd.f32 %v5753, %v5499
      %v5755 = vadd.f32 %v5754, %v5500
      %v5756 = vadd.f32 %v5755, %v5501
      %v5757 = vadd.f32 %v5756, %v5502
      %v5758 = vadd.f32 %v5757, %v5503
      %v5759 = vadd.f32 %v5758, %v5504
      %v5760 = vadd.f32 %v5759, %v5505
      %v5761 = vadd.f32 %v5760, %v5506
      %v5762 = vadd.f32 %v5761, %v5507
      %v5763 = vadd.f32 %v5762, %v5508
      %v5764 = vadd.f32 %v5763, %v5509
      %v5765 = vadd.f32 %v5764, %v5510
      %v5766 = vadd.f32 %v5765, %v5511
      %v5767 = vadd.f32 %v5766, %v5512
      %v5768 = vadd.f32 %v5767, %v5513
      %v5769 = vadd.f32 %v5768, %v5514
      %v5770 = vadd.f32 %v5769, %v5515
      %v5771 = vadd.f32 %v5770, %v5516
      %v5772 = vadd.f32 %v5771, %v5517
      %v5773 = vadd.f32 %v5772, %v5518
      %v5774 = vadd.f32 %v5773, %v5519
      %v5775 = vadd.f32 %v5774, %v5520
      %v5776 = vadd.f32 %v5775, %v5521
      %v5777 = vadd.f32 %v5776, %v5522
      %v5778 = vadd.f32 %v5777, %v5523
      %v5779 = vadd.f32 %v5778, %v5524
      %v5780 = vadd.f32 %v5779, %v5525
      %v5781 = vadd.f32 %v5780, %v5526
      %v5782 = vadd.f32 %v5781, %v5527
      %v5783 = vadd.f32 %v5782, %v5528
      %v5784 = vadd.f32 %v5783, %v5529
      %v5785 = vadd.f32 %v5784, %v5530
      %v5786 = vadd.f32 %v5785, %v5531
      %v5787 = vadd.f32 %v5786, %v5532
      %v5788 = vadd.f32 %v5787, %v5533
      %v5789 = vadd.f32 %v5788, %v5534
      %v5790 = vadd.f32 %v5789, %v5535
      %v5791 = vadd.f32 %v5790, %v5536
      %v5792 = vadd.f32 %v5791, %v5537
      %v5793 = vadd.f32 %v5792, %v5538
      %v5794 = vadd.f32 %v5793, %v5539
      %v5795 = vadd.f32 %v5794, %v5540
      %v5796 = vadd.f32 %v5795, %v5541
      %v5797 = vadd.f32 %v5796, %v5542
      %v5798 = vadd.f32 %v5797, %v5543
      %v5799 = vadd.f32 %v5798, %v5544
      %v5800 = vadd.f32 %v5799, %v5545
      %v5801 = vadd.f32 %v5800, %v5546
      %v5802 = vadd.f32 %v5801, %v5547
      %v5803 = vadd.f32 %v5802, %v5548
      %v5804 = vadd.f32 %v5803, %v5549
      %v5805 = vadd.f32 %v5804, %v5550
      %v5806 = vadd.f32 %v5805, %v5551
      %v5807 = vadd.f32 %v5806, %v5552
      %v5808 = vadd.f32 %v5807, %v5553
      %v5809 = vadd.f32 %v5808, %v5554
      %v5810 = vadd.f32 %v5809, %v5555
      %v5811 = vadd.f32 %v5810, %v5556
      %v5812 = vadd.f32 %v5811, %v5557
      %v5813 = vadd.f32 %v5812, %v5558
      %v5814 = vadd.f32 %v5813, %v5559
      %v5815 = vadd.f32 %v5814, %v5560
      %v5816 = vadd.f32 %v5815, %v5561
      %v5817 = vadd.f32 %v5816, %v5562
      %v5818 = vadd.f32 %v5817, %v5563
      %v5819 = vadd.f32 %v5818, %v5564
      %v5820 = vadd.f32 %v5819, %v5565
      %v5821 = vadd.f32 %v5820, %v5566
      %v5822 = vadd.f32 %v5821, %v5567
      %v5823 = vadd.f32 %v5822, %v5568
      %v5824 = vadd.f32 %v5823, %v5569
      %v5825 = vadd.f32 %v5824, %v5570
      %v5826 = vadd.f32 %v5825, %v5571
      %v5827 = vadd.f32 %v5826, %v5572
      %v5828 = vadd.f32 %v5827, %v5573
      %v5829 = vadd.f32 %v5828, %v5574
      %v5830 = vadd.f32 %v5829, %v5575
      %v5831 = vadd.f32 %v5830, %v5576
      %v5832 = vadd.f32 %v5831, %v5577
      %v5833 = vadd.f32 %v5832, %v5578
      %v5834 = vadd.f32 %v5833, %v5579
      %v5835 = vadd.f32 %v5834, %v5580
      %v5836 = vadd.f32 %v5835, %v5581
      %v5837 = vadd.f32 %v5836, %v5582
      %v5838 = vadd.f32 %v5837, %v5583
      %v5839 = vadd.f32 %v5838, %v5584
      %v5840 = vadd.f32 %v5839, %v5585
      %v5841 = vadd.f32 %v5840, %v5586
      %v5842 = vadd.f32 %v5841, %v5587
      %v5843 = vadd.f32 %v5842, %v5588
      %v5844 = vadd.f32 %v5843, %v5589
      %v5845 = vadd.f32 %v5844, %v5590
      %v5846 = vadd.f32 %v5845, %v5591
      %v5847 = vadd.f32 %v5846, %v5592
      %v5848 = vadd.f32 %v5847, %v5593
      %v5849 = vadd.f32 %v5848, %v5594
      %v5850 = vadd.f32 %v5849, %v5595
      %v5851 = vadd.f32 %v5850, %v5596
      %v5852 = vadd.f32 %v5851, %v5597
      %v5853 = vadd.f32 %v5852, %v5598
      %v5854 = vadd.f32 %v5853, %v5599
      %v5855 = vadd.f32 %v5854, %v5600
      %v5856 = vadd.f32 %v5855, %v5601
      %v5857 = vadd.f32 %v5856, %v5602
      %v5858 = vadd.f32 %v5857, %v5603
      %v5859 = vadd.f32 %v5858, %v5604
      %v5860 = vadd.f32 %v5859, %v5605
      %v5861 = vadd.f32 %v5860, %v5606
      %v5862 = vadd.f32 %v5861, %v5607
      %v5863 = vadd.f32 %v5862, %v5608
      %v5864 = vadd.f32 %v5863, %v5609
      %v5865 = vadd.f32 %v5864, %v5610
      %v5866 = vadd.f32 %v5865, %v5611
      %v5867 = vadd.f32 %v5866, %v5612
      %v5868 = vadd.f32 %v5867, %v5613
      %v5869 = vadd.f32 %v5868, %v5614
      %v5870 = vadd.f32 %v5869, %v5615
      %v5871 = vadd.f32 %v5870, %v5616
      %v5872 = vadd.f32 %v5360, %v5871
      %5873 = vst [vmem:[%s5359] sm:$0xff] %v5872
      %s5874 = scalar_lea.vmem %s408, 16
      %v5875 = vld [vmem:[%s5874] sm:$0xff]
      %v5876 = vmul.f32 %v4332, %v4332
      %v5877 = vmul.f32 %v4333, %v4333
      %v5878 = vmul.f32 %v4334, %v4334
      %v5879 = vmul.f32 %v4335, %v4335
      %v5880 = vmul.f32 %v4336, %v4336
      %v5881 = vmul.f32 %v4337, %v4337
      %v5882 = vmul.f32 %v4338, %v4338
      %v5883 = vmul.f32 %v4339, %v4339
      %v5884 = vmul.f32 %v4340, %v4340
      %v5885 = vmul.f32 %v4341, %v4341
      %v5886 = vmul.f32 %v4342, %v4342
      %v5887 = vmul.f32 %v4343, %v4343
      %v5888 = vmul.f32 %v4344, %v4344
      %v5889 = vmul.f32 %v4345, %v4345
      %v5890 = vmul.f32 %v4346, %v4346
      %v5891 = vmul.f32 %v4347, %v4347
      %v5892 = vmul.f32 %v4348, %v4348
      %v5893 = vmul.f32 %v4349, %v4349
      %v5894 = vmul.f32 %v4350, %v4350
      %v5895 = vmul.f32 %v4351, %v4351
      %v5896 = vmul.f32 %v4352, %v4352
      %v5897 = vmul.f32 %v4353, %v4353
      %v5898 = vmul.f32 %v4354, %v4354
      %v5899 = vmul.f32 %v4355, %v4355
      %v5900 = vmul.f32 %v4356, %v4356
      %v5901 = vmul.f32 %v4357, %v4357
      %v5902 = vmul.f32 %v4358, %v4358
      %v5903 = vmul.f32 %v4359, %v4359
      %v5904 = vmul.f32 %v4360, %v4360
      %v5905 = vmul.f32 %v4361, %v4361
      %v5906 = vmul.f32 %v4362, %v4362
      %v5907 = vmul.f32 %v4363, %v4363
      %v5908 = vmul.f32 %v4364, %v4364
      %v5909 = vmul.f32 %v4365, %v4365
      %v5910 = vmul.f32 %v4366, %v4366
      %v5911 = vmul.f32 %v4367, %v4367
      %v5912 = vmul.f32 %v4368, %v4368
      %v5913 = vmul.f32 %v4369, %v4369
      %v5914 = vmul.f32 %v4370, %v4370
      %v5915 = vmul.f32 %v4371, %v4371
      %v5916 = vmul.f32 %v4372, %v4372
      %v5917 = vmul.f32 %v4373, %v4373
      %v5918 = vmul.f32 %v4374, %v4374
      %v5919 = vmul.f32 %v4375, %v4375
      %v5920 = vmul.f32 %v4376, %v4376
      %v5921 = vmul.f32 %v4377, %v4377
      %v5922 = vmul.f32 %v4378, %v4378
      %v5923 = vmul.f32 %v4379, %v4379
      %v5924 = vmul.f32 %v4380, %v4380
      %v5925 = vmul.f32 %v4381, %v4381
      %v5926 = vmul.f32 %v4382, %v4382
      %v5927 = vmul.f32 %v4383, %v4383
      %v5928 = vmul.f32 %v4384, %v4384
      %v5929 = vmul.f32 %v4385, %v4385
      %v5930 = vmul.f32 %v4386, %v4386
      %v5931 = vmul.f32 %v4387, %v4387
      %v5932 = vmul.f32 %v4388, %v4388
      %v5933 = vmul.f32 %v4389, %v4389
      %v5934 = vmul.f32 %v4390, %v4390
      %v5935 = vmul.f32 %v4391, %v4391
      %v5936 = vmul.f32 %v4392, %v4392
      %v5937 = vmul.f32 %v4393, %v4393
      %v5938 = vmul.f32 %v4394, %v4394
      %v5939 = vmul.f32 %v4395, %v4395
      %v5940 = vmul.f32 %v4396, %v4396
      %v5941 = vmul.f32 %v4397, %v4397
      %v5942 = vmul.f32 %v4398, %v4398
      %v5943 = vmul.f32 %v4399, %v4399
      %v5944 = vmul.f32 %v4400, %v4400
      %v5945 = vmul.f32 %v4401, %v4401
      %v5946 = vmul.f32 %v4402, %v4402
      %v5947 = vmul.f32 %v4403, %v4403
      %v5948 = vmul.f32 %v4404, %v4404
      %v5949 = vmul.f32 %v4405, %v4405
      %v5950 = vmul.f32 %v4406, %v4406
      %v5951 = vmul.f32 %v4407, %v4407
      %v5952 = vmul.f32 %v4408, %v4408
      %v5953 = vmul.f32 %v4409, %v4409
      %v5954 = vmul.f32 %v4410, %v4410
      %v5955 = vmul.f32 %v4411, %v4411
      %v5956 = vmul.f32 %v4412, %v4412
      %v5957 = vmul.f32 %v4413, %v4413
      %v5958 = vmul.f32 %v4414, %v4414
      %v5959 = vmul.f32 %v4415, %v4415
      %v5960 = vmul.f32 %v4416, %v4416
      %v5961 = vmul.f32 %v4417, %v4417
      %v5962 = vmul.f32 %v4418, %v4418
      %v5963 = vmul.f32 %v4419, %v4419
      %v5964 = vmul.f32 %v4420, %v4420
      %v5965 = vmul.f32 %v4421, %v4421
      %v5966 = vmul.f32 %v4422, %v4422
      %v5967 = vmul.f32 %v4423, %v4423
      %v5968 = vmul.f32 %v4424, %v4424
      %v5969 = vmul.f32 %v4425, %v4425
      %v5970 = vmul.f32 %v4426, %v4426
      %v5971 = vmul.f32 %v4427, %v4427
      %v5972 = vmul.f32 %v4428, %v4428
      %v5973 = vmul.f32 %v4429, %v4429
      %v5974 = vmul.f32 %v4430, %v4430
      %v5975 = vmul.f32 %v4431, %v4431
      %v5976 = vmul.f32 %v4432, %v4432
      %v5977 = vmul.f32 %v4433, %v4433
      %v5978 = vmul.f32 %v4434, %v4434
      %v5979 = vmul.f32 %v4435, %v4435
      %v5980 = vmul.f32 %v4436, %v4436
      %v5981 = vmul.f32 %v4437, %v4437
      %v5982 = vmul.f32 %v4438, %v4438
      %v5983 = vmul.f32 %v4439, %v4439
      %v5984 = vmul.f32 %v4440, %v4440
      %v5985 = vmul.f32 %v4441, %v4441
      %v5986 = vmul.f32 %v4442, %v4442
      %v5987 = vmul.f32 %v4443, %v4443
      %v5988 = vmul.f32 %v4444, %v4444
      %v5989 = vmul.f32 %v4445, %v4445
      %v5990 = vmul.f32 %v4446, %v4446
      %v5991 = vmul.f32 %v4447, %v4447
      %v5992 = vmul.f32 %v4448, %v4448
      %v5993 = vmul.f32 %v4449, %v4449
      %v5994 = vmul.f32 %v4450, %v4450
      %v5995 = vmul.f32 %v4451, %v4451
      %v5996 = vmul.f32 %v4452, %v4452
      %v5997 = vmul.f32 %v4453, %v4453
      %v5998 = vmul.f32 %v4454, %v4454
      %v5999 = vmul.f32 %v4455, %v4455
      %v6000 = vmul.f32 %v4456, %v4456
      %v6001 = vmul.f32 %v4457, %v4457
      %v6002 = vmul.f32 %v4458, %v4458
      %v6003 = vmul.f32 %v4459, %v4459
      %v6004 = vmul.f32 %v4460, %v4460
      %v6005 = vmul.f32 %v4461, %v4461
      %v6006 = vmul.f32 %v4462, %v4462
      %v6007 = vmul.f32 %v4463, %v4463
      %v6008 = vmul.f32 %v4464, %v4464
      %v6009 = vmul.f32 %v4465, %v4465
      %v6010 = vmul.f32 %v4466, %v4466
      %v6011 = vmul.f32 %v4467, %v4467
      %v6012 = vmul.f32 %v4468, %v4468
      %v6013 = vmul.f32 %v4469, %v4469
      %v6014 = vmul.f32 %v4470, %v4470
      %v6015 = vmul.f32 %v4471, %v4471
      %v6016 = vmul.f32 %v4472, %v4472
      %v6017 = vmul.f32 %v4473, %v4473
      %v6018 = vmul.f32 %v4474, %v4474
      %v6019 = vmul.f32 %v4475, %v4475
      %v6020 = vmul.f32 %v4476, %v4476
      %v6021 = vmul.f32 %v4477, %v4477
      %v6022 = vmul.f32 %v4478, %v4478
      %v6023 = vmul.f32 %v4479, %v4479
      %v6024 = vmul.f32 %v4480, %v4480
      %v6025 = vmul.f32 %v4481, %v4481
      %v6026 = vmul.f32 %v4482, %v4482
      %v6027 = vmul.f32 %v4483, %v4483
      %v6028 = vmul.f32 %v4484, %v4484
      %v6029 = vmul.f32 %v4485, %v4485
      %v6030 = vmul.f32 %v4486, %v4486
      %v6031 = vmul.f32 %v4487, %v4487
      %v6032 = vmul.f32 %v4488, %v4488
      %v6033 = vmul.f32 %v4489, %v4489
      %v6034 = vmul.f32 %v4490, %v4490
      %v6035 = vmul.f32 %v4491, %v4491
      %v6036 = vmul.f32 %v4492, %v4492
      %v6037 = vmul.f32 %v4493, %v4493
      %v6038 = vmul.f32 %v4494, %v4494
      %v6039 = vmul.f32 %v4495, %v4495
      %v6040 = vmul.f32 %v4496, %v4496
      %v6041 = vmul.f32 %v4497, %v4497
      %v6042 = vmul.f32 %v4498, %v4498
      %v6043 = vmul.f32 %v4499, %v4499
      %v6044 = vmul.f32 %v4500, %v4500
      %v6045 = vmul.f32 %v4501, %v4501
      %v6046 = vmul.f32 %v4502, %v4502
      %v6047 = vmul.f32 %v4503, %v4503
      %v6048 = vmul.f32 %v4504, %v4504
      %v6049 = vmul.f32 %v4505, %v4505
      %v6050 = vmul.f32 %v4506, %v4506
      %v6051 = vmul.f32 %v4507, %v4507
      %v6052 = vmul.f32 %v4508, %v4508
      %v6053 = vmul.f32 %v4509, %v4509
      %v6054 = vmul.f32 %v4510, %v4510
      %v6055 = vmul.f32 %v4511, %v4511
      %v6056 = vmul.f32 %v4512, %v4512
      %v6057 = vmul.f32 %v4513, %v4513
      %v6058 = vmul.f32 %v4514, %v4514
      %v6059 = vmul.f32 %v4515, %v4515
      %v6060 = vmul.f32 %v4516, %v4516
      %v6061 = vmul.f32 %v4517, %v4517
      %v6062 = vmul.f32 %v4518, %v4518
      %v6063 = vmul.f32 %v4519, %v4519
      %v6064 = vmul.f32 %v4520, %v4520
      %v6065 = vmul.f32 %v4521, %v4521
      %v6066 = vmul.f32 %v4522, %v4522
      %v6067 = vmul.f32 %v4523, %v4523
      %v6068 = vmul.f32 %v4524, %v4524
      %v6069 = vmul.f32 %v4525, %v4525
      %v6070 = vmul.f32 %v4526, %v4526
      %v6071 = vmul.f32 %v4527, %v4527
      %v6072 = vmul.f32 %v4528, %v4528
      %v6073 = vmul.f32 %v4529, %v4529
      %v6074 = vmul.f32 %v4530, %v4530
      %v6075 = vmul.f32 %v4531, %v4531
      %v6076 = vmul.f32 %v4532, %v4532
      %v6077 = vmul.f32 %v4533, %v4533
      %v6078 = vmul.f32 %v4534, %v4534
      %v6079 = vmul.f32 %v4535, %v4535
      %v6080 = vmul.f32 %v4536, %v4536
      %v6081 = vmul.f32 %v4537, %v4537
      %v6082 = vmul.f32 %v4538, %v4538
      %v6083 = vmul.f32 %v4539, %v4539
      %v6084 = vmul.f32 %v4540, %v4540
      %v6085 = vmul.f32 %v4541, %v4541
      %v6086 = vmul.f32 %v4542, %v4542
      %v6087 = vmul.f32 %v4543, %v4543
      %v6088 = vmul.f32 %v4544, %v4544
      %v6089 = vmul.f32 %v4545, %v4545
      %v6090 = vmul.f32 %v4546, %v4546
      %v6091 = vmul.f32 %v4547, %v4547
      %v6092 = vmul.f32 %v4548, %v4548
      %v6093 = vmul.f32 %v4549, %v4549
      %v6094 = vmul.f32 %v4550, %v4550
      %v6095 = vmul.f32 %v4551, %v4551
      %v6096 = vmul.f32 %v4552, %v4552
      %v6097 = vmul.f32 %v4553, %v4553
      %v6098 = vmul.f32 %v4554, %v4554
      %v6099 = vmul.f32 %v4555, %v4555
      %v6100 = vmul.f32 %v4556, %v4556
      %v6101 = vmul.f32 %v4557, %v4557
      %v6102 = vmul.f32 %v4558, %v4558
      %v6103 = vmul.f32 %v4559, %v4559
      %v6104 = vmul.f32 %v4560, %v4560
      %v6105 = vmul.f32 %v4561, %v4561
      %v6106 = vmul.f32 %v4562, %v4562
      %v6107 = vmul.f32 %v4563, %v4563
      %v6108 = vmul.f32 %v4564, %v4564
      %v6109 = vmul.f32 %v4565, %v4565
      %v6110 = vmul.f32 %v4566, %v4566
      %v6111 = vmul.f32 %v4567, %v4567
      %v6112 = vmul.f32 %v4568, %v4568
      %v6113 = vmul.f32 %v4569, %v4569
      %v6114 = vmul.f32 %v4570, %v4570
      %v6115 = vmul.f32 %v4571, %v4571
      %v6116 = vmul.f32 %v4572, %v4572
      %v6117 = vmul.f32 %v4573, %v4573
      %v6118 = vmul.f32 %v4574, %v4574
      %v6119 = vmul.f32 %v4575, %v4575
      %v6120 = vmul.f32 %v4576, %v4576
      %v6121 = vmul.f32 %v4577, %v4577
      %v6122 = vmul.f32 %v4578, %v4578
      %v6123 = vmul.f32 %v4579, %v4579
      %v6124 = vmul.f32 %v4580, %v4580
      %v6125 = vmul.f32 %v4581, %v4581
      %v6126 = vmul.f32 %v4582, %v4582
      %v6127 = vmul.f32 %v4583, %v4583
      %v6128 = vmul.f32 %v4584, %v4584
      %v6129 = vmul.f32 %v4585, %v4585
      %v6130 = vmul.f32 %v4586, %v4586
      %v6131 = vmul.f32 %v4587, %v4587
      %v6132 = vsel %vm2537, %v5876, 0.0
      %v6133 = vsel %vm2538, %v5877, 0.0
      %v6134 = vsel %vm2539, %v5878, 0.0
      %v6135 = vsel %vm2540, %v5879, 0.0
      %v6136 = vsel %vm2541, %v5880, 0.0
      %v6137 = vsel %vm2542, %v5881, 0.0
      %v6138 = vsel %vm2543, %v5882, 0.0
      %v6139 = vsel %vm2544, %v5883, 0.0
      %v6140 = vsel %vm2545, %v5884, 0.0
      %v6141 = vsel %vm2546, %v5885, 0.0
      %v6142 = vsel %vm2547, %v5886, 0.0
      %v6143 = vsel %vm2548, %v5887, 0.0
      %v6144 = vsel %vm2549, %v5888, 0.0
      %v6145 = vsel %vm2550, %v5889, 0.0
      %v6146 = vsel %vm2551, %v5890, 0.0
      %v6147 = vsel %vm2552, %v5891, 0.0
      %v6148 = vsel %vm2553, %v5892, 0.0
      %v6149 = vsel %vm2554, %v5893, 0.0
      %v6150 = vsel %vm2555, %v5894, 0.0
      %v6151 = vsel %vm2556, %v5895, 0.0
      %v6152 = vsel %vm2557, %v5896, 0.0
      %v6153 = vsel %vm2558, %v5897, 0.0
      %v6154 = vsel %vm2559, %v5898, 0.0
      %v6155 = vsel %vm2560, %v5899, 0.0
      %v6156 = vsel %vm2561, %v5900, 0.0
      %v6157 = vsel %vm2562, %v5901, 0.0
      %v6158 = vsel %vm2563, %v5902, 0.0
      %v6159 = vsel %vm2564, %v5903, 0.0
      %v6160 = vsel %vm2565, %v5904, 0.0
      %v6161 = vsel %vm2566, %v5905, 0.0
      %v6162 = vsel %vm2567, %v5906, 0.0
      %v6163 = vsel %vm2568, %v5907, 0.0
      %v6164 = vsel %vm2569, %v5908, 0.0
      %v6165 = vsel %vm2570, %v5909, 0.0
      %v6166 = vsel %vm2571, %v5910, 0.0
      %v6167 = vsel %vm2572, %v5911, 0.0
      %v6168 = vsel %vm2573, %v5912, 0.0
      %v6169 = vsel %vm2574, %v5913, 0.0
      %v6170 = vsel %vm2575, %v5914, 0.0
      %v6171 = vsel %vm2576, %v5915, 0.0
      %v6172 = vsel %vm2577, %v5916, 0.0
      %v6173 = vsel %vm2578, %v5917, 0.0
      %v6174 = vsel %vm2579, %v5918, 0.0
      %v6175 = vsel %vm2580, %v5919, 0.0
      %v6176 = vsel %vm2581, %v5920, 0.0
      %v6177 = vsel %vm2582, %v5921, 0.0
      %v6178 = vsel %vm2583, %v5922, 0.0
      %v6179 = vsel %vm2584, %v5923, 0.0
      %v6180 = vsel %vm2585, %v5924, 0.0
      %v6181 = vsel %vm2586, %v5925, 0.0
      %v6182 = vsel %vm2587, %v5926, 0.0
      %v6183 = vsel %vm2588, %v5927, 0.0
      %v6184 = vsel %vm2589, %v5928, 0.0
      %v6185 = vsel %vm2590, %v5929, 0.0
      %v6186 = vsel %vm2591, %v5930, 0.0
      %v6187 = vsel %vm2592, %v5931, 0.0
      %v6188 = vsel %vm2593, %v5932, 0.0
      %v6189 = vsel %vm2594, %v5933, 0.0
      %v6190 = vsel %vm2595, %v5934, 0.0
      %v6191 = vsel %vm2596, %v5935, 0.0
      %v6192 = vsel %vm2597, %v5936, 0.0
      %v6193 = vsel %vm2598, %v5937, 0.0
      %v6194 = vsel %vm2599, %v5938, 0.0
      %v6195 = vsel %vm2600, %v5939, 0.0
      %v6196 = vsel %vm2601, %v5940, 0.0
      %v6197 = vsel %vm2602, %v5941, 0.0
      %v6198 = vsel %vm2603, %v5942, 0.0
      %v6199 = vsel %vm2604, %v5943, 0.0
      %v6200 = vsel %vm2605, %v5944, 0.0
      %v6201 = vsel %vm2606, %v5945, 0.0
      %v6202 = vsel %vm2607, %v5946, 0.0
      %v6203 = vsel %vm2608, %v5947, 0.0
      %v6204 = vsel %vm2609, %v5948, 0.0
      %v6205 = vsel %vm2610, %v5949, 0.0
      %v6206 = vsel %vm2611, %v5950, 0.0
      %v6207 = vsel %vm2612, %v5951, 0.0
      %v6208 = vsel %vm2613, %v5952, 0.0
      %v6209 = vsel %vm2614, %v5953, 0.0
      %v6210 = vsel %vm2615, %v5954, 0.0
      %v6211 = vsel %vm2616, %v5955, 0.0
      %v6212 = vsel %vm2617, %v5956, 0.0
      %v6213 = vsel %vm2618, %v5957, 0.0
      %v6214 = vsel %vm2619, %v5958, 0.0
      %v6215 = vsel %vm2620, %v5959, 0.0
      %v6216 = vsel %vm2621, %v5960, 0.0
      %v6217 = vsel %vm2622, %v5961, 0.0
      %v6218 = vsel %vm2623, %v5962, 0.0
      %v6219 = vsel %vm2624, %v5963, 0.0
      %v6220 = vsel %vm2625, %v5964, 0.0
      %v6221 = vsel %vm2626, %v5965, 0.0
      %v6222 = vsel %vm2627, %v5966, 0.0
      %v6223 = vsel %vm2628, %v5967, 0.0
      %v6224 = vsel %vm2629, %v5968, 0.0
      %v6225 = vsel %vm2630, %v5969, 0.0
      %v6226 = vsel %vm2631, %v5970, 0.0
      %v6227 = vsel %vm2632, %v5971, 0.0
      %v6228 = vsel %vm2633, %v5972, 0.0
      %v6229 = vsel %vm2634, %v5973, 0.0
      %v6230 = vsel %vm2635, %v5974, 0.0
      %v6231 = vsel %vm2636, %v5975, 0.0
      %v6232 = vsel %vm2637, %v5976, 0.0
      %v6233 = vsel %vm2638, %v5977, 0.0
      %v6234 = vsel %vm2639, %v5978, 0.0
      %v6235 = vsel %vm2640, %v5979, 0.0
      %v6236 = vsel %vm2641, %v5980, 0.0
      %v6237 = vsel %vm2642, %v5981, 0.0
      %v6238 = vsel %vm2643, %v5982, 0.0
      %v6239 = vsel %vm2644, %v5983, 0.0
      %v6240 = vsel %vm2645, %v5984, 0.0
      %v6241 = vsel %vm2646, %v5985, 0.0
      %v6242 = vsel %vm2647, %v5986, 0.0
      %v6243 = vsel %vm2648, %v5987, 0.0
      %v6244 = vsel %vm2649, %v5988, 0.0
      %v6245 = vsel %vm2650, %v5989, 0.0
      %v6246 = vsel %vm2651, %v5990, 0.0
      %v6247 = vsel %vm2652, %v5991, 0.0
      %v6248 = vsel %vm2653, %v5992, 0.0
      %v6249 = vsel %vm2654, %v5993, 0.0
      %v6250 = vsel %vm2655, %v5994, 0.0
      %v6251 = vsel %vm2656, %v5995, 0.0
      %v6252 = vsel %vm2657, %v5996, 0.0
      %v6253 = vsel %vm2658, %v5997, 0.0
      %v6254 = vsel %vm2659, %v5998, 0.0
      %v6255 = vsel %vm2660, %v5999, 0.0
      %v6256 = vsel %vm2661, %v6000, 0.0
      %v6257 = vsel %vm2662, %v6001, 0.0
      %v6258 = vsel %vm2663, %v6002, 0.0
      %v6259 = vsel %vm2664, %v6003, 0.0
      %v6260 = vsel %vm2665, %v6004, 0.0
      %v6261 = vsel %vm2666, %v6005, 0.0
      %v6262 = vsel %vm2667, %v6006, 0.0
      %v6263 = vsel %vm2668, %v6007, 0.0
      %v6264 = vsel %vm2669, %v6008, 0.0
      %v6265 = vsel %vm2670, %v6009, 0.0
      %v6266 = vsel %vm2671, %v6010, 0.0
      %v6267 = vsel %vm2672, %v6011, 0.0
      %v6268 = vsel %vm2673, %v6012, 0.0
      %v6269 = vsel %vm2674, %v6013, 0.0
      %v6270 = vsel %vm2675, %v6014, 0.0
      %v6271 = vsel %vm2676, %v6015, 0.0
      %v6272 = vsel %vm2677, %v6016, 0.0
      %v6273 = vsel %vm2678, %v6017, 0.0
      %v6274 = vsel %vm2679, %v6018, 0.0
      %v6275 = vsel %vm2680, %v6019, 0.0
      %v6276 = vsel %vm2681, %v6020, 0.0
      %v6277 = vsel %vm2682, %v6021, 0.0
      %v6278 = vsel %vm2683, %v6022, 0.0
      %v6279 = vsel %vm2684, %v6023, 0.0
      %v6280 = vsel %vm2685, %v6024, 0.0
      %v6281 = vsel %vm2686, %v6025, 0.0
      %v6282 = vsel %vm2687, %v6026, 0.0
      %v6283 = vsel %vm2688, %v6027, 0.0
      %v6284 = vsel %vm2689, %v6028, 0.0
      %v6285 = vsel %vm2690, %v6029, 0.0
      %v6286 = vsel %vm2691, %v6030, 0.0
      %v6287 = vsel %vm2692, %v6031, 0.0
      %v6288 = vsel %vm2693, %v6032, 0.0
      %v6289 = vsel %vm2694, %v6033, 0.0
      %v6290 = vsel %vm2695, %v6034, 0.0
      %v6291 = vsel %vm2696, %v6035, 0.0
      %v6292 = vsel %vm2697, %v6036, 0.0
      %v6293 = vsel %vm2698, %v6037, 0.0
      %v6294 = vsel %vm2699, %v6038, 0.0
      %v6295 = vsel %vm2700, %v6039, 0.0
      %v6296 = vsel %vm2701, %v6040, 0.0
      %v6297 = vsel %vm2702, %v6041, 0.0
      %v6298 = vsel %vm2703, %v6042, 0.0
      %v6299 = vsel %vm2704, %v6043, 0.0
      %v6300 = vsel %vm2705, %v6044, 0.0
      %v6301 = vsel %vm2706, %v6045, 0.0
      %v6302 = vsel %vm2707, %v6046, 0.0
      %v6303 = vsel %vm2708, %v6047, 0.0
      %v6304 = vsel %vm2709, %v6048, 0.0
      %v6305 = vsel %vm2710, %v6049, 0.0
      %v6306 = vsel %vm2711, %v6050, 0.0
      %v6307 = vsel %vm2712, %v6051, 0.0
      %v6308 = vsel %vm2713, %v6052, 0.0
      %v6309 = vsel %vm2714, %v6053, 0.0
      %v6310 = vsel %vm2715, %v6054, 0.0
      %v6311 = vsel %vm2716, %v6055, 0.0
      %v6312 = vsel %vm2717, %v6056, 0.0
      %v6313 = vsel %vm2718, %v6057, 0.0
      %v6314 = vsel %vm2719, %v6058, 0.0
      %v6315 = vsel %vm2720, %v6059, 0.0
      %v6316 = vsel %vm2721, %v6060, 0.0
      %v6317 = vsel %vm2722, %v6061, 0.0
      %v6318 = vsel %vm2723, %v6062, 0.0
      %v6319 = vsel %vm2724, %v6063, 0.0
      %v6320 = vsel %vm2725, %v6064, 0.0
      %v6321 = vsel %vm2726, %v6065, 0.0
      %v6322 = vsel %vm2727, %v6066, 0.0
      %v6323 = vsel %vm2728, %v6067, 0.0
      %v6324 = vsel %vm2729, %v6068, 0.0
      %v6325 = vsel %vm2730, %v6069, 0.0
      %v6326 = vsel %vm2731, %v6070, 0.0
      %v6327 = vsel %vm2732, %v6071, 0.0
      %v6328 = vsel %vm2733, %v6072, 0.0
      %v6329 = vsel %vm2734, %v6073, 0.0
      %v6330 = vsel %vm2735, %v6074, 0.0
      %v6331 = vsel %vm2736, %v6075, 0.0
      %v6332 = vsel %vm2737, %v6076, 0.0
      %v6333 = vsel %vm2738, %v6077, 0.0
      %v6334 = vsel %vm2739, %v6078, 0.0
      %v6335 = vsel %vm2740, %v6079, 0.0
      %v6336 = vsel %vm2741, %v6080, 0.0
      %v6337 = vsel %vm2742, %v6081, 0.0
      %v6338 = vsel %vm2743, %v6082, 0.0
      %v6339 = vsel %vm2744, %v6083, 0.0
      %v6340 = vsel %vm2745, %v6084, 0.0
      %v6341 = vsel %vm2746, %v6085, 0.0
      %v6342 = vsel %vm2747, %v6086, 0.0
      %v6343 = vsel %vm2748, %v6087, 0.0
      %v6344 = vsel %vm2749, %v6088, 0.0
      %v6345 = vsel %vm2750, %v6089, 0.0
      %v6346 = vsel %vm2751, %v6090, 0.0
      %v6347 = vsel %vm2752, %v6091, 0.0
      %v6348 = vsel %vm2753, %v6092, 0.0
      %v6349 = vsel %vm2754, %v6093, 0.0
      %v6350 = vsel %vm2755, %v6094, 0.0
      %v6351 = vsel %vm2756, %v6095, 0.0
      %v6352 = vsel %vm2757, %v6096, 0.0
      %v6353 = vsel %vm2758, %v6097, 0.0
      %v6354 = vsel %vm2759, %v6098, 0.0
      %v6355 = vsel %vm2760, %v6099, 0.0
      %v6356 = vsel %vm2761, %v6100, 0.0
      %v6357 = vsel %vm2762, %v6101, 0.0
      %v6358 = vsel %vm2763, %v6102, 0.0
      %v6359 = vsel %vm2764, %v6103, 0.0
      %v6360 = vsel %vm2765, %v6104, 0.0
      %v6361 = vsel %vm2766, %v6105, 0.0
      %v6362 = vsel %vm2767, %v6106, 0.0
      %v6363 = vsel %vm2768, %v6107, 0.0
      %v6364 = vsel %vm2769, %v6108, 0.0
      %v6365 = vsel %vm2770, %v6109, 0.0
      %v6366 = vsel %vm2771, %v6110, 0.0
      %v6367 = vsel %vm2772, %v6111, 0.0
      %v6368 = vsel %vm2773, %v6112, 0.0
      %v6369 = vsel %vm2774, %v6113, 0.0
      %v6370 = vsel %vm2775, %v6114, 0.0
      %v6371 = vsel %vm2776, %v6115, 0.0
      %v6372 = vsel %vm2777, %v6116, 0.0
      %v6373 = vsel %vm2778, %v6117, 0.0
      %v6374 = vsel %vm2779, %v6118, 0.0
      %v6375 = vsel %vm2780, %v6119, 0.0
      %v6376 = vsel %vm2781, %v6120, 0.0
      %v6377 = vsel %vm2782, %v6121, 0.0
      %v6378 = vsel %vm2783, %v6122, 0.0
      %v6379 = vsel %vm2784, %v6123, 0.0
      %v6380 = vsel %vm2785, %v6124, 0.0
      %v6381 = vsel %vm2786, %v6125, 0.0
      %v6382 = vsel %vm2787, %v6126, 0.0
      %v6383 = vsel %vm2788, %v6127, 0.0
      %v6384 = vsel %vm2789, %v6128, 0.0
      %v6385 = vsel %vm2790, %v6129, 0.0
      %v6386 = vsel %vm2791, %v6130, 0.0
      %v6387 = vsel %vm2792, %v6131, 0.0
      %v6388 = vadd.f32 %v6132, %v6133
      %v6389 = vadd.f32 %v6388, %v6134
      %v6390 = vadd.f32 %v6389, %v6135
      %v6391 = vadd.f32 %v6390, %v6136
      %v6392 = vadd.f32 %v6391, %v6137
      %v6393 = vadd.f32 %v6392, %v6138
      %v6394 = vadd.f32 %v6393, %v6139
      %v6395 = vadd.f32 %v6394, %v6140
      %v6396 = vadd.f32 %v6395, %v6141
      %v6397 = vadd.f32 %v6396, %v6142
      %v6398 = vadd.f32 %v6397, %v6143
      %v6399 = vadd.f32 %v6398, %v6144
      %v6400 = vadd.f32 %v6399, %v6145
      %v6401 = vadd.f32 %v6400, %v6146
      %v6402 = vadd.f32 %v6401, %v6147
      %v6403 = vadd.f32 %v6402, %v6148
      %v6404 = vadd.f32 %v6403, %v6149
      %v6405 = vadd.f32 %v6404, %v6150
      %v6406 = vadd.f32 %v6405, %v6151
      %v6407 = vadd.f32 %v6406, %v6152
      %v6408 = vadd.f32 %v6407, %v6153
      %v6409 = vadd.f32 %v6408, %v6154
      %v6410 = vadd.f32 %v6409, %v6155
      %v6411 = vadd.f32 %v6410, %v6156
      %v6412 = vadd.f32 %v6411, %v6157
      %v6413 = vadd.f32 %v6412, %v6158
      %v6414 = vadd.f32 %v6413, %v6159
      %v6415 = vadd.f32 %v6414, %v6160
      %v6416 = vadd.f32 %v6415, %v6161
      %v6417 = vadd.f32 %v6416, %v6162
      %v6418 = vadd.f32 %v6417, %v6163
      %v6419 = vadd.f32 %v6418, %v6164
      %v6420 = vadd.f32 %v6419, %v6165
      %v6421 = vadd.f32 %v6420, %v6166
      %v6422 = vadd.f32 %v6421, %v6167
      %v6423 = vadd.f32 %v6422, %v6168
      %v6424 = vadd.f32 %v6423, %v6169
      %v6425 = vadd.f32 %v6424, %v6170
      %v6426 = vadd.f32 %v6425, %v6171
      %v6427 = vadd.f32 %v6426, %v6172
      %v6428 = vadd.f32 %v6427, %v6173
      %v6429 = vadd.f32 %v6428, %v6174
      %v6430 = vadd.f32 %v6429, %v6175
      %v6431 = vadd.f32 %v6430, %v6176
      %v6432 = vadd.f32 %v6431, %v6177
      %v6433 = vadd.f32 %v6432, %v6178
      %v6434 = vadd.f32 %v6433, %v6179
      %v6435 = vadd.f32 %v6434, %v6180
      %v6436 = vadd.f32 %v6435, %v6181
      %v6437 = vadd.f32 %v6436, %v6182
      %v6438 = vadd.f32 %v6437, %v6183
      %v6439 = vadd.f32 %v6438, %v6184
      %v6440 = vadd.f32 %v6439, %v6185
      %v6441 = vadd.f32 %v6440, %v6186
      %v6442 = vadd.f32 %v6441, %v6187
      %v6443 = vadd.f32 %v6442, %v6188
      %v6444 = vadd.f32 %v6443, %v6189
      %v6445 = vadd.f32 %v6444, %v6190
      %v6446 = vadd.f32 %v6445, %v6191
      %v6447 = vadd.f32 %v6446, %v6192
      %v6448 = vadd.f32 %v6447, %v6193
      %v6449 = vadd.f32 %v6448, %v6194
      %v6450 = vadd.f32 %v6449, %v6195
      %v6451 = vadd.f32 %v6450, %v6196
      %v6452 = vadd.f32 %v6451, %v6197
      %v6453 = vadd.f32 %v6452, %v6198
      %v6454 = vadd.f32 %v6453, %v6199
      %v6455 = vadd.f32 %v6454, %v6200
      %v6456 = vadd.f32 %v6455, %v6201
      %v6457 = vadd.f32 %v6456, %v6202
      %v6458 = vadd.f32 %v6457, %v6203
      %v6459 = vadd.f32 %v6458, %v6204
      %v6460 = vadd.f32 %v6459, %v6205
      %v6461 = vadd.f32 %v6460, %v6206
      %v6462 = vadd.f32 %v6461, %v6207
      %v6463 = vadd.f32 %v6462, %v6208
      %v6464 = vadd.f32 %v6463, %v6209
      %v6465 = vadd.f32 %v6464, %v6210
      %v6466 = vadd.f32 %v6465, %v6211
      %v6467 = vadd.f32 %v6466, %v6212
      %v6468 = vadd.f32 %v6467, %v6213
      %v6469 = vadd.f32 %v6468, %v6214
      %v6470 = vadd.f32 %v6469, %v6215
      %v6471 = vadd.f32 %v6470, %v6216
      %v6472 = vadd.f32 %v6471, %v6217
      %v6473 = vadd.f32 %v6472, %v6218
      %v6474 = vadd.f32 %v6473, %v6219
      %v6475 = vadd.f32 %v6474, %v6220
      %v6476 = vadd.f32 %v6475, %v6221
      %v6477 = vadd.f32 %v6476, %v6222
      %v6478 = vadd.f32 %v6477, %v6223
      %v6479 = vadd.f32 %v6478, %v6224
      %v6480 = vadd.f32 %v6479, %v6225
      %v6481 = vadd.f32 %v6480, %v6226
      %v6482 = vadd.f32 %v6481, %v6227
      %v6483 = vadd.f32 %v6482, %v6228
      %v6484 = vadd.f32 %v6483, %v6229
      %v6485 = vadd.f32 %v6484, %v6230
      %v6486 = vadd.f32 %v6485, %v6231
      %v6487 = vadd.f32 %v6486, %v6232
      %v6488 = vadd.f32 %v6487, %v6233
      %v6489 = vadd.f32 %v6488, %v6234
      %v6490 = vadd.f32 %v6489, %v6235
      %v6491 = vadd.f32 %v6490, %v6236
      %v6492 = vadd.f32 %v6491, %v6237
      %v6493 = vadd.f32 %v6492, %v6238
      %v6494 = vadd.f32 %v6493, %v6239
      %v6495 = vadd.f32 %v6494, %v6240
      %v6496 = vadd.f32 %v6495, %v6241
      %v6497 = vadd.f32 %v6496, %v6242
      %v6498 = vadd.f32 %v6497, %v6243
      %v6499 = vadd.f32 %v6498, %v6244
      %v6500 = vadd.f32 %v6499, %v6245
      %v6501 = vadd.f32 %v6500, %v6246
      %v6502 = vadd.f32 %v6501, %v6247
      %v6503 = vadd.f32 %v6502, %v6248
      %v6504 = vadd.f32 %v6503, %v6249
      %v6505 = vadd.f32 %v6504, %v6250
      %v6506 = vadd.f32 %v6505, %v6251
      %v6507 = vadd.f32 %v6506, %v6252
      %v6508 = vadd.f32 %v6507, %v6253
      %v6509 = vadd.f32 %v6508, %v6254
      %v6510 = vadd.f32 %v6509, %v6255
      %v6511 = vadd.f32 %v6510, %v6256
      %v6512 = vadd.f32 %v6511, %v6257
      %v6513 = vadd.f32 %v6512, %v6258
      %v6514 = vadd.f32 %v6513, %v6259
      %v6515 = vadd.f32 %v6514, %v6260
      %v6516 = vadd.f32 %v6515, %v6261
      %v6517 = vadd.f32 %v6516, %v6262
      %v6518 = vadd.f32 %v6517, %v6263
      %v6519 = vadd.f32 %v6518, %v6264
      %v6520 = vadd.f32 %v6519, %v6265
      %v6521 = vadd.f32 %v6520, %v6266
      %v6522 = vadd.f32 %v6521, %v6267
      %v6523 = vadd.f32 %v6522, %v6268
      %v6524 = vadd.f32 %v6523, %v6269
      %v6525 = vadd.f32 %v6524, %v6270
      %v6526 = vadd.f32 %v6525, %v6271
      %v6527 = vadd.f32 %v6526, %v6272
      %v6528 = vadd.f32 %v6527, %v6273
      %v6529 = vadd.f32 %v6528, %v6274
      %v6530 = vadd.f32 %v6529, %v6275
      %v6531 = vadd.f32 %v6530, %v6276
      %v6532 = vadd.f32 %v6531, %v6277
      %v6533 = vadd.f32 %v6532, %v6278
      %v6534 = vadd.f32 %v6533, %v6279
      %v6535 = vadd.f32 %v6534, %v6280
      %v6536 = vadd.f32 %v6535, %v6281
      %v6537 = vadd.f32 %v6536, %v6282
      %v6538 = vadd.f32 %v6537, %v6283
      %v6539 = vadd.f32 %v6538, %v6284
      %v6540 = vadd.f32 %v6539, %v6285
      %v6541 = vadd.f32 %v6540, %v6286
      %v6542 = vadd.f32 %v6541, %v6287
      %v6543 = vadd.f32 %v6542, %v6288
      %v6544 = vadd.f32 %v6543, %v6289
      %v6545 = vadd.f32 %v6544, %v6290
      %v6546 = vadd.f32 %v6545, %v6291
      %v6547 = vadd.f32 %v6546, %v6292
      %v6548 = vadd.f32 %v6547, %v6293
      %v6549 = vadd.f32 %v6548, %v6294
      %v6550 = vadd.f32 %v6549, %v6295
      %v6551 = vadd.f32 %v6550, %v6296
      %v6552 = vadd.f32 %v6551, %v6297
      %v6553 = vadd.f32 %v6552, %v6298
      %v6554 = vadd.f32 %v6553, %v6299
      %v6555 = vadd.f32 %v6554, %v6300
      %v6556 = vadd.f32 %v6555, %v6301
      %v6557 = vadd.f32 %v6556, %v6302
      %v6558 = vadd.f32 %v6557, %v6303
      %v6559 = vadd.f32 %v6558, %v6304
      %v6560 = vadd.f32 %v6559, %v6305
      %v6561 = vadd.f32 %v6560, %v6306
      %v6562 = vadd.f32 %v6561, %v6307
      %v6563 = vadd.f32 %v6562, %v6308
      %v6564 = vadd.f32 %v6563, %v6309
      %v6565 = vadd.f32 %v6564, %v6310
      %v6566 = vadd.f32 %v6565, %v6311
      %v6567 = vadd.f32 %v6566, %v6312
      %v6568 = vadd.f32 %v6567, %v6313
      %v6569 = vadd.f32 %v6568, %v6314
      %v6570 = vadd.f32 %v6569, %v6315
      %v6571 = vadd.f32 %v6570, %v6316
      %v6572 = vadd.f32 %v6571, %v6317
      %v6573 = vadd.f32 %v6572, %v6318
      %v6574 = vadd.f32 %v6573, %v6319
      %v6575 = vadd.f32 %v6574, %v6320
      %v6576 = vadd.f32 %v6575, %v6321
      %v6577 = vadd.f32 %v6576, %v6322
      %v6578 = vadd.f32 %v6577, %v6323
      %v6579 = vadd.f32 %v6578, %v6324
      %v6580 = vadd.f32 %v6579, %v6325
      %v6581 = vadd.f32 %v6580, %v6326
      %v6582 = vadd.f32 %v6581, %v6327
      %v6583 = vadd.f32 %v6582, %v6328
      %v6584 = vadd.f32 %v6583, %v6329
      %v6585 = vadd.f32 %v6584, %v6330
      %v6586 = vadd.f32 %v6585, %v6331
      %v6587 = vadd.f32 %v6586, %v6332
      %v6588 = vadd.f32 %v6587, %v6333
      %v6589 = vadd.f32 %v6588, %v6334
      %v6590 = vadd.f32 %v6589, %v6335
      %v6591 = vadd.f32 %v6590, %v6336
      %v6592 = vadd.f32 %v6591, %v6337
      %v6593 = vadd.f32 %v6592, %v6338
      %v6594 = vadd.f32 %v6593, %v6339
      %v6595 = vadd.f32 %v6594, %v6340
      %v6596 = vadd.f32 %v6595, %v6341
      %v6597 = vadd.f32 %v6596, %v6342
      %v6598 = vadd.f32 %v6597, %v6343
      %v6599 = vadd.f32 %v6598, %v6344
      %v6600 = vadd.f32 %v6599, %v6345
      %v6601 = vadd.f32 %v6600, %v6346
      %v6602 = vadd.f32 %v6601, %v6347
      %v6603 = vadd.f32 %v6602, %v6348
      %v6604 = vadd.f32 %v6603, %v6349
      %v6605 = vadd.f32 %v6604, %v6350
      %v6606 = vadd.f32 %v6605, %v6351
      %v6607 = vadd.f32 %v6606, %v6352
      %v6608 = vadd.f32 %v6607, %v6353
      %v6609 = vadd.f32 %v6608, %v6354
      %v6610 = vadd.f32 %v6609, %v6355
      %v6611 = vadd.f32 %v6610, %v6356
      %v6612 = vadd.f32 %v6611, %v6357
      %v6613 = vadd.f32 %v6612, %v6358
      %v6614 = vadd.f32 %v6613, %v6359
      %v6615 = vadd.f32 %v6614, %v6360
      %v6616 = vadd.f32 %v6615, %v6361
      %v6617 = vadd.f32 %v6616, %v6362
      %v6618 = vadd.f32 %v6617, %v6363
      %v6619 = vadd.f32 %v6618, %v6364
      %v6620 = vadd.f32 %v6619, %v6365
      %v6621 = vadd.f32 %v6620, %v6366
      %v6622 = vadd.f32 %v6621, %v6367
      %v6623 = vadd.f32 %v6622, %v6368
      %v6624 = vadd.f32 %v6623, %v6369
      %v6625 = vadd.f32 %v6624, %v6370
      %v6626 = vadd.f32 %v6625, %v6371
      %v6627 = vadd.f32 %v6626, %v6372
      %v6628 = vadd.f32 %v6627, %v6373
      %v6629 = vadd.f32 %v6628, %v6374
      %v6630 = vadd.f32 %v6629, %v6375
      %v6631 = vadd.f32 %v6630, %v6376
      %v6632 = vadd.f32 %v6631, %v6377
      %v6633 = vadd.f32 %v6632, %v6378
      %v6634 = vadd.f32 %v6633, %v6379
      %v6635 = vadd.f32 %v6634, %v6380
      %v6636 = vadd.f32 %v6635, %v6381
      %v6637 = vadd.f32 %v6636, %v6382
      %v6638 = vadd.f32 %v6637, %v6383
      %v6639 = vadd.f32 %v6638, %v6384
      %v6640 = vadd.f32 %v6639, %v6385
      %v6641 = vadd.f32 %v6640, %v6386
      %v6642 = vadd.f32 %v6641, %v6387
      %v6643 = vadd.f32 %v5875, %v6642
      %6644 = vst [vmem:[%s5874] sm:$0xff] %v6643
      %s6645 = scalar_lea.vmem %s408, 24
      %v6646 = vld [vmem:[%s6645] sm:$0xff]
      %v6647 = vlog2.pop %v1193
      %v6648 = vmul.f32 %v6647, 0.6931472
      %v6649 = vlog2.pop %v1194
      %v6650 = vmul.f32 %v6649, 0.6931472
      %v6651 = vlog2.pop %v1195
      %v6652 = vmul.f32 %v6651, 0.6931472
      %v6653 = vlog2.pop %v1196
      %v6654 = vmul.f32 %v6653, 0.6931472
      %v6655 = vlog2.pop %v1197
      %v6656 = vmul.f32 %v6655, 0.6931472
      %v6657 = vlog2.pop %v1198
      %v6658 = vmul.f32 %v6657, 0.6931472
      %v6659 = vlog2.pop %v1199
      %v6660 = vmul.f32 %v6659, 0.6931472
      %v6661 = vlog2.pop %v1200
      %v6662 = vmul.f32 %v6661, 0.6931472
      %v6663 = vlog2.pop %v1201
      %v6664 = vmul.f32 %v6663, 0.6931472
      %v6665 = vlog2.pop %v1202
      %v6666 = vmul.f32 %v6665, 0.6931472
      %v6667 = vlog2.pop %v1203
      %v6668 = vmul.f32 %v6667, 0.6931472
      %v6669 = vlog2.pop %v1204
      %v6670 = vmul.f32 %v6669, 0.6931472
      %v6671 = vlog2.pop %v1205
      %v6672 = vmul.f32 %v6671, 0.6931472
      %v6673 = vlog2.pop %v1206
      %v6674 = vmul.f32 %v6673, 0.6931472
      %v6675 = vlog2.pop %v1207
      %v6676 = vmul.f32 %v6675, 0.6931472
      %v6677 = vlog2.pop %v1208
      %v6678 = vmul.f32 %v6677, 0.6931472
      %v6679 = vlog2.pop %v1209
      %v6680 = vmul.f32 %v6679, 0.6931472
      %v6681 = vlog2.pop %v1210
      %v6682 = vmul.f32 %v6681, 0.6931472
      %v6683 = vlog2.pop %v1211
      %v6684 = vmul.f32 %v6683, 0.6931472
      %v6685 = vlog2.pop %v1212
      %v6686 = vmul.f32 %v6685, 0.6931472
      %v6687 = vlog2.pop %v1213
      %v6688 = vmul.f32 %v6687, 0.6931472
      %v6689 = vlog2.pop %v1214
      %v6690 = vmul.f32 %v6689, 0.6931472
      %v6691 = vlog2.pop %v1215
      %v6692 = vmul.f32 %v6691, 0.6931472
      %v6693 = vlog2.pop %v1216
      %v6694 = vmul.f32 %v6693, 0.6931472
      %v6695 = vlog2.pop %v1217
      %v6696 = vmul.f32 %v6695, 0.6931472
      %v6697 = vlog2.pop %v1218
      %v6698 = vmul.f32 %v6697, 0.6931472
      %v6699 = vlog2.pop %v1219
      %v6700 = vmul.f32 %v6699, 0.6931472
      %v6701 = vlog2.pop %v1220
      %v6702 = vmul.f32 %v6701, 0.6931472
      %v6703 = vlog2.pop %v1221
      %v6704 = vmul.f32 %v6703, 0.6931472
      %v6705 = vlog2.pop %v1222
      %v6706 = vmul.f32 %v6705, 0.6931472
      %v6707 = vlog2.pop %v1223
      %v6708 = vmul.f32 %v6707, 0.6931472
      %v6709 = vlog2.pop %v1224
      %v6710 = vmul.f32 %v6709, 0.6931472
      %v6711 = vlog2.pop %v1225
      %v6712 = vmul.f32 %v6711, 0.6931472
      %v6713 = vlog2.pop %v1226
      %v6714 = vmul.f32 %v6713, 0.6931472
      %v6715 = vlog2.pop %v1227
      %v6716 = vmul.f32 %v6715, 0.6931472
      %v6717 = vlog2.pop %v1228
      %v6718 = vmul.f32 %v6717, 0.6931472
      %v6719 = vlog2.pop %v1229
      %v6720 = vmul.f32 %v6719, 0.6931472
      %v6721 = vlog2.pop %v1230
      %v6722 = vmul.f32 %v6721, 0.6931472
      %v6723 = vlog2.pop %v1231
      %v6724 = vmul.f32 %v6723, 0.6931472
      %v6725 = vlog2.pop %v1232
      %v6726 = vmul.f32 %v6725, 0.6931472
      %v6727 = vlog2.pop %v1233
      %v6728 = vmul.f32 %v6727, 0.6931472
      %v6729 = vlog2.pop %v1234
      %v6730 = vmul.f32 %v6729, 0.6931472
      %v6731 = vlog2.pop %v1235
      %v6732 = vmul.f32 %v6731, 0.6931472
      %v6733 = vlog2.pop %v1236
      %v6734 = vmul.f32 %v6733, 0.6931472
      %v6735 = vlog2.pop %v1237
      %v6736 = vmul.f32 %v6735, 0.6931472
      %v6737 = vlog2.pop %v1238
      %v6738 = vmul.f32 %v6737, 0.6931472
      %v6739 = vlog2.pop %v1239
      %v6740 = vmul.f32 %v6739, 0.6931472
      %v6741 = vlog2.pop %v1240
      %v6742 = vmul.f32 %v6741, 0.6931472
      %v6743 = vlog2.pop %v1241
      %v6744 = vmul.f32 %v6743, 0.6931472
      %v6745 = vlog2.pop %v1242
      %v6746 = vmul.f32 %v6745, 0.6931472
      %v6747 = vlog2.pop %v1243
      %v6748 = vmul.f32 %v6747, 0.6931472
      %v6749 = vlog2.pop %v1244
      %v6750 = vmul.f32 %v6749, 0.6931472
      %v6751 = vlog2.pop %v1245
      %v6752 = vmul.f32 %v6751, 0.6931472
      %v6753 = vlog2.pop %v1246
      %v6754 = vmul.f32 %v6753, 0.6931472
      %v6755 = vlog2.pop %v1247
      %v6756 = vmul.f32 %v6755, 0.6931472
      %v6757 = vlog2.pop %v1248
      %v6758 = vmul.f32 %v6757, 0.6931472
      %v6759 = vlog2.pop %v1249
      %v6760 = vmul.f32 %v6759, 0.6931472
      %v6761 = vlog2.pop %v1250
      %v6762 = vmul.f32 %v6761, 0.6931472
      %v6763 = vlog2.pop %v1251
      %v6764 = vmul.f32 %v6763, 0.6931472
      %v6765 = vlog2.pop %v1252
      %v6766 = vmul.f32 %v6765, 0.6931472
      %v6767 = vlog2.pop %v1253
      %v6768 = vmul.f32 %v6767, 0.6931472
      %v6769 = vlog2.pop %v1254
      %v6770 = vmul.f32 %v6769, 0.6931472
      %v6771 = vlog2.pop %v1255
      %v6772 = vmul.f32 %v6771, 0.6931472
      %v6773 = vlog2.pop %v1256
      %v6774 = vmul.f32 %v6773, 0.6931472
      %v6775 = vlog2.pop %v1257
      %v6776 = vmul.f32 %v6775, 0.6931472
      %v6777 = vlog2.pop %v1258
      %v6778 = vmul.f32 %v6777, 0.6931472
      %v6779 = vlog2.pop %v1259
      %v6780 = vmul.f32 %v6779, 0.6931472
      %v6781 = vlog2.pop %v1260
      %v6782 = vmul.f32 %v6781, 0.6931472
      %v6783 = vlog2.pop %v1261
      %v6784 = vmul.f32 %v6783, 0.6931472
      %v6785 = vlog2.pop %v1262
      %v6786 = vmul.f32 %v6785, 0.6931472
      %v6787 = vlog2.pop %v1263
      %v6788 = vmul.f32 %v6787, 0.6931472
      %v6789 = vlog2.pop %v1264
      %v6790 = vmul.f32 %v6789, 0.6931472
      %v6791 = vlog2.pop %v1265
      %v6792 = vmul.f32 %v6791, 0.6931472
      %v6793 = vlog2.pop %v1266
      %v6794 = vmul.f32 %v6793, 0.6931472
      %v6795 = vlog2.pop %v1267
      %v6796 = vmul.f32 %v6795, 0.6931472
      %v6797 = vlog2.pop %v1268
      %v6798 = vmul.f32 %v6797, 0.6931472
      %v6799 = vlog2.pop %v1269
      %v6800 = vmul.f32 %v6799, 0.6931472
      %v6801 = vlog2.pop %v1270
      %v6802 = vmul.f32 %v6801, 0.6931472
      %v6803 = vlog2.pop %v1271
      %v6804 = vmul.f32 %v6803, 0.6931472
      %v6805 = vlog2.pop %v1272
      %v6806 = vmul.f32 %v6805, 0.6931472
      %v6807 = vlog2.pop %v1273
      %v6808 = vmul.f32 %v6807, 0.6931472
      %v6809 = vlog2.pop %v1274
      %v6810 = vmul.f32 %v6809, 0.6931472
      %v6811 = vlog2.pop %v1275
      %v6812 = vmul.f32 %v6811, 0.6931472
      %v6813 = vlog2.pop %v1276
      %v6814 = vmul.f32 %v6813, 0.6931472
      %v6815 = vlog2.pop %v1277
      %v6816 = vmul.f32 %v6815, 0.6931472
      %v6817 = vlog2.pop %v1278
      %v6818 = vmul.f32 %v6817, 0.6931472
      %v6819 = vlog2.pop %v1279
      %v6820 = vmul.f32 %v6819, 0.6931472
      %v6821 = vlog2.pop %v1280
      %v6822 = vmul.f32 %v6821, 0.6931472
      %v6823 = vlog2.pop %v1281
      %v6824 = vmul.f32 %v6823, 0.6931472
      %v6825 = vlog2.pop %v1282
      %v6826 = vmul.f32 %v6825, 0.6931472
      %v6827 = vlog2.pop %v1283
      %v6828 = vmul.f32 %v6827, 0.6931472
      %v6829 = vlog2.pop %v1284
      %v6830 = vmul.f32 %v6829, 0.6931472
      %v6831 = vlog2.pop %v1285
      %v6832 = vmul.f32 %v6831, 0.6931472
      %v6833 = vlog2.pop %v1286
      %v6834 = vmul.f32 %v6833, 0.6931472
      %v6835 = vlog2.pop %v1287
      %v6836 = vmul.f32 %v6835, 0.6931472
      %v6837 = vlog2.pop %v1288
      %v6838 = vmul.f32 %v6837, 0.6931472
      %v6839 = vlog2.pop %v1289
      %v6840 = vmul.f32 %v6839, 0.6931472
      %v6841 = vlog2.pop %v1290
      %v6842 = vmul.f32 %v6841, 0.6931472
      %v6843 = vlog2.pop %v1291
      %v6844 = vmul.f32 %v6843, 0.6931472
      %v6845 = vlog2.pop %v1292
      %v6846 = vmul.f32 %v6845, 0.6931472
      %v6847 = vlog2.pop %v1293
      %v6848 = vmul.f32 %v6847, 0.6931472
      %v6849 = vlog2.pop %v1294
      %v6850 = vmul.f32 %v6849, 0.6931472
      %v6851 = vlog2.pop %v1295
      %v6852 = vmul.f32 %v6851, 0.6931472
      %v6853 = vlog2.pop %v1296
      %v6854 = vmul.f32 %v6853, 0.6931472
      %v6855 = vlog2.pop %v1297
      %v6856 = vmul.f32 %v6855, 0.6931472
      %v6857 = vlog2.pop %v1298
      %v6858 = vmul.f32 %v6857, 0.6931472
      %v6859 = vlog2.pop %v1299
      %v6860 = vmul.f32 %v6859, 0.6931472
      %v6861 = vlog2.pop %v1300
      %v6862 = vmul.f32 %v6861, 0.6931472
      %v6863 = vlog2.pop %v1301
      %v6864 = vmul.f32 %v6863, 0.6931472
      %v6865 = vlog2.pop %v1302
      %v6866 = vmul.f32 %v6865, 0.6931472
      %v6867 = vlog2.pop %v1303
      %v6868 = vmul.f32 %v6867, 0.6931472
      %v6869 = vlog2.pop %v1304
      %v6870 = vmul.f32 %v6869, 0.6931472
      %v6871 = vlog2.pop %v1305
      %v6872 = vmul.f32 %v6871, 0.6931472
      %v6873 = vlog2.pop %v1306
      %v6874 = vmul.f32 %v6873, 0.6931472
      %v6875 = vlog2.pop %v1307
      %v6876 = vmul.f32 %v6875, 0.6931472
      %v6877 = vlog2.pop %v1308
      %v6878 = vmul.f32 %v6877, 0.6931472
      %v6879 = vlog2.pop %v1309
      %v6880 = vmul.f32 %v6879, 0.6931472
      %v6881 = vlog2.pop %v1310
      %v6882 = vmul.f32 %v6881, 0.6931472
      %v6883 = vlog2.pop %v1311
      %v6884 = vmul.f32 %v6883, 0.6931472
      %v6885 = vlog2.pop %v1312
      %v6886 = vmul.f32 %v6885, 0.6931472
      %v6887 = vlog2.pop %v1313
      %v6888 = vmul.f32 %v6887, 0.6931472
      %v6889 = vlog2.pop %v1314
      %v6890 = vmul.f32 %v6889, 0.6931472
      %v6891 = vlog2.pop %v1315
      %v6892 = vmul.f32 %v6891, 0.6931472
      %v6893 = vlog2.pop %v1316
      %v6894 = vmul.f32 %v6893, 0.6931472
      %v6895 = vlog2.pop %v1317
      %v6896 = vmul.f32 %v6895, 0.6931472
      %v6897 = vlog2.pop %v1318
      %v6898 = vmul.f32 %v6897, 0.6931472
      %v6899 = vlog2.pop %v1319
      %v6900 = vmul.f32 %v6899, 0.6931472
      %v6901 = vlog2.pop %v1320
      %v6902 = vmul.f32 %v6901, 0.6931472
      %v6903 = vlog2.pop %v1321
      %v6904 = vmul.f32 %v6903, 0.6931472
      %v6905 = vlog2.pop %v1322
      %v6906 = vmul.f32 %v6905, 0.6931472
      %v6907 = vlog2.pop %v1323
      %v6908 = vmul.f32 %v6907, 0.6931472
      %v6909 = vlog2.pop %v1324
      %v6910 = vmul.f32 %v6909, 0.6931472
      %v6911 = vlog2.pop %v1325
      %v6912 = vmul.f32 %v6911, 0.6931472
      %v6913 = vlog2.pop %v1326
      %v6914 = vmul.f32 %v6913, 0.6931472
      %v6915 = vlog2.pop %v1327
      %v6916 = vmul.f32 %v6915, 0.6931472
      %v6917 = vlog2.pop %v1328
      %v6918 = vmul.f32 %v6917, 0.6931472
      %v6919 = vlog2.pop %v1329
      %v6920 = vmul.f32 %v6919, 0.6931472
      %v6921 = vlog2.pop %v1330
      %v6922 = vmul.f32 %v6921, 0.6931472
      %v6923 = vlog2.pop %v1331
      %v6924 = vmul.f32 %v6923, 0.6931472
      %v6925 = vlog2.pop %v1332
      %v6926 = vmul.f32 %v6925, 0.6931472
      %v6927 = vlog2.pop %v1333
      %v6928 = vmul.f32 %v6927, 0.6931472
      %v6929 = vlog2.pop %v1334
      %v6930 = vmul.f32 %v6929, 0.6931472
      %v6931 = vlog2.pop %v1335
      %v6932 = vmul.f32 %v6931, 0.6931472
      %v6933 = vlog2.pop %v1336
      %v6934 = vmul.f32 %v6933, 0.6931472
      %v6935 = vlog2.pop %v1337
      %v6936 = vmul.f32 %v6935, 0.6931472
      %v6937 = vlog2.pop %v1338
      %v6938 = vmul.f32 %v6937, 0.6931472
      %v6939 = vlog2.pop %v1339
      %v6940 = vmul.f32 %v6939, 0.6931472
      %v6941 = vlog2.pop %v1340
      %v6942 = vmul.f32 %v6941, 0.6931472
      %v6943 = vlog2.pop %v1341
      %v6944 = vmul.f32 %v6943, 0.6931472
      %v6945 = vlog2.pop %v1342
      %v6946 = vmul.f32 %v6945, 0.6931472
      %v6947 = vlog2.pop %v1343
      %v6948 = vmul.f32 %v6947, 0.6931472
      %v6949 = vlog2.pop %v1344
      %v6950 = vmul.f32 %v6949, 0.6931472
      %v6951 = vlog2.pop %v1345
      %v6952 = vmul.f32 %v6951, 0.6931472
      %v6953 = vlog2.pop %v1346
      %v6954 = vmul.f32 %v6953, 0.6931472
      %v6955 = vlog2.pop %v1347
      %v6956 = vmul.f32 %v6955, 0.6931472
      %v6957 = vlog2.pop %v1348
      %v6958 = vmul.f32 %v6957, 0.6931472
      %v6959 = vlog2.pop %v1349
      %v6960 = vmul.f32 %v6959, 0.6931472
      %v6961 = vlog2.pop %v1350
      %v6962 = vmul.f32 %v6961, 0.6931472
      %v6963 = vlog2.pop %v1351
      %v6964 = vmul.f32 %v6963, 0.6931472
      %v6965 = vlog2.pop %v1352
      %v6966 = vmul.f32 %v6965, 0.6931472
      %v6967 = vlog2.pop %v1353
      %v6968 = vmul.f32 %v6967, 0.6931472
      %v6969 = vlog2.pop %v1354
      %v6970 = vmul.f32 %v6969, 0.6931472
      %v6971 = vlog2.pop %v1355
      %v6972 = vmul.f32 %v6971, 0.6931472
      %v6973 = vlog2.pop %v1356
      %v6974 = vmul.f32 %v6973, 0.6931472
      %v6975 = vlog2.pop %v1357
      %v6976 = vmul.f32 %v6975, 0.6931472
      %v6977 = vlog2.pop %v1358
      %v6978 = vmul.f32 %v6977, 0.6931472
      %v6979 = vlog2.pop %v1359
      %v6980 = vmul.f32 %v6979, 0.6931472
      %v6981 = vlog2.pop %v1360
      %v6982 = vmul.f32 %v6981, 0.6931472
      %v6983 = vlog2.pop %v1361
      %v6984 = vmul.f32 %v6983, 0.6931472
      %v6985 = vlog2.pop %v1362
      %v6986 = vmul.f32 %v6985, 0.6931472
      %v6987 = vlog2.pop %v1363
      %v6988 = vmul.f32 %v6987, 0.6931472
      %v6989 = vlog2.pop %v1364
      %v6990 = vmul.f32 %v6989, 0.6931472
      %v6991 = vlog2.pop %v1365
      %v6992 = vmul.f32 %v6991, 0.6931472
      %v6993 = vlog2.pop %v1366
      %v6994 = vmul.f32 %v6993, 0.6931472
      %v6995 = vlog2.pop %v1367
      %v6996 = vmul.f32 %v6995, 0.6931472
      %v6997 = vlog2.pop %v1368
      %v6998 = vmul.f32 %v6997, 0.6931472
      %v6999 = vlog2.pop %v1369
      %v7000 = vmul.f32 %v6999, 0.6931472
      %v7001 = vlog2.pop %v1370
      %v7002 = vmul.f32 %v7001, 0.6931472
      %v7003 = vlog2.pop %v1371
      %v7004 = vmul.f32 %v7003, 0.6931472
      %v7005 = vlog2.pop %v1372
      %v7006 = vmul.f32 %v7005, 0.6931472
      %v7007 = vlog2.pop %v1373
      %v7008 = vmul.f32 %v7007, 0.6931472
      %v7009 = vlog2.pop %v1374
      %v7010 = vmul.f32 %v7009, 0.6931472
      %v7011 = vlog2.pop %v1375
      %v7012 = vmul.f32 %v7011, 0.6931472
      %v7013 = vlog2.pop %v1376
      %v7014 = vmul.f32 %v7013, 0.6931472
      %v7015 = vlog2.pop %v1377
      %v7016 = vmul.f32 %v7015, 0.6931472
      %v7017 = vlog2.pop %v1378
      %v7018 = vmul.f32 %v7017, 0.6931472
      %v7019 = vlog2.pop %v1379
      %v7020 = vmul.f32 %v7019, 0.6931472
      %v7021 = vlog2.pop %v1380
      %v7022 = vmul.f32 %v7021, 0.6931472
      %v7023 = vlog2.pop %v1381
      %v7024 = vmul.f32 %v7023, 0.6931472
      %v7025 = vlog2.pop %v1382
      %v7026 = vmul.f32 %v7025, 0.6931472
      %v7027 = vlog2.pop %v1383
      %v7028 = vmul.f32 %v7027, 0.6931472
      %v7029 = vlog2.pop %v1384
      %v7030 = vmul.f32 %v7029, 0.6931472
      %v7031 = vlog2.pop %v1385
      %v7032 = vmul.f32 %v7031, 0.6931472
      %v7033 = vlog2.pop %v1386
      %v7034 = vmul.f32 %v7033, 0.6931472
      %v7035 = vlog2.pop %v1387
      %v7036 = vmul.f32 %v7035, 0.6931472
      %v7037 = vlog2.pop %v1388
      %v7038 = vmul.f32 %v7037, 0.6931472
      %v7039 = vlog2.pop %v1389
      %v7040 = vmul.f32 %v7039, 0.6931472
      %v7041 = vlog2.pop %v1390
      %v7042 = vmul.f32 %v7041, 0.6931472
      %v7043 = vlog2.pop %v1391
      %v7044 = vmul.f32 %v7043, 0.6931472
      %v7045 = vlog2.pop %v1392
      %v7046 = vmul.f32 %v7045, 0.6931472
      %v7047 = vlog2.pop %v1393
      %v7048 = vmul.f32 %v7047, 0.6931472
      %v7049 = vlog2.pop %v1394
      %v7050 = vmul.f32 %v7049, 0.6931472
      %v7051 = vlog2.pop %v1395
      %v7052 = vmul.f32 %v7051, 0.6931472
      %v7053 = vlog2.pop %v1396
      %v7054 = vmul.f32 %v7053, 0.6931472
      %v7055 = vlog2.pop %v1397
      %v7056 = vmul.f32 %v7055, 0.6931472
      %v7057 = vlog2.pop %v1398
      %v7058 = vmul.f32 %v7057, 0.6931472
      %v7059 = vlog2.pop %v1399
      %v7060 = vmul.f32 %v7059, 0.6931472
      %v7061 = vlog2.pop %v1400
      %v7062 = vmul.f32 %v7061, 0.6931472
      %v7063 = vlog2.pop %v1401
      %v7064 = vmul.f32 %v7063, 0.6931472
      %v7065 = vlog2.pop %v1402
      %v7066 = vmul.f32 %v7065, 0.6931472
      %v7067 = vlog2.pop %v1403
      %v7068 = vmul.f32 %v7067, 0.6931472
      %v7069 = vlog2.pop %v1404
      %v7070 = vmul.f32 %v7069, 0.6931472
      %v7071 = vlog2.pop %v1405
      %v7072 = vmul.f32 %v7071, 0.6931472
      %v7073 = vlog2.pop %v1406
      %v7074 = vmul.f32 %v7073, 0.6931472
      %v7075 = vlog2.pop %v1407
      %v7076 = vmul.f32 %v7075, 0.6931472
      %v7077 = vlog2.pop %v1408
      %v7078 = vmul.f32 %v7077, 0.6931472
      %v7079 = vlog2.pop %v1409
      %v7080 = vmul.f32 %v7079, 0.6931472
      %v7081 = vlog2.pop %v1410
      %v7082 = vmul.f32 %v7081, 0.6931472
      %v7083 = vlog2.pop %v1411
      %v7084 = vmul.f32 %v7083, 0.6931472
      %v7085 = vlog2.pop %v1412
      %v7086 = vmul.f32 %v7085, 0.6931472
      %v7087 = vlog2.pop %v1413
      %v7088 = vmul.f32 %v7087, 0.6931472
      %v7089 = vlog2.pop %v1414
      %v7090 = vmul.f32 %v7089, 0.6931472
      %v7091 = vlog2.pop %v1415
      %v7092 = vmul.f32 %v7091, 0.6931472
      %v7093 = vlog2.pop %v1416
      %v7094 = vmul.f32 %v7093, 0.6931472
      %v7095 = vlog2.pop %v1417
      %v7096 = vmul.f32 %v7095, 0.6931472
      %v7097 = vlog2.pop %v1418
      %v7098 = vmul.f32 %v7097, 0.6931472
      %v7099 = vlog2.pop %v1419
      %v7100 = vmul.f32 %v7099, 0.6931472
      %v7101 = vlog2.pop %v1420
      %v7102 = vmul.f32 %v7101, 0.6931472
      %v7103 = vlog2.pop %v1421
      %v7104 = vmul.f32 %v7103, 0.6931472
      %v7105 = vlog2.pop %v1422
      %v7106 = vmul.f32 %v7105, 0.6931472
      %v7107 = vlog2.pop %v1423
      %v7108 = vmul.f32 %v7107, 0.6931472
      %v7109 = vlog2.pop %v1424
      %v7110 = vmul.f32 %v7109, 0.6931472
      %v7111 = vlog2.pop %v1425
      %v7112 = vmul.f32 %v7111, 0.6931472
      %v7113 = vlog2.pop %v1426
      %v7114 = vmul.f32 %v7113, 0.6931472
      %v7115 = vlog2.pop %v1427
      %v7116 = vmul.f32 %v7115, 0.6931472
      %v7117 = vlog2.pop %v1428
      %v7118 = vmul.f32 %v7117, 0.6931472
      %v7119 = vlog2.pop %v1429
      %v7120 = vmul.f32 %v7119, 0.6931472
      %v7121 = vlog2.pop %v1430
      %v7122 = vmul.f32 %v7121, 0.6931472
      %v7123 = vlog2.pop %v1431
      %v7124 = vmul.f32 %v7123, 0.6931472
      %v7125 = vlog2.pop %v1432
      %v7126 = vmul.f32 %v7125, 0.6931472
      %v7127 = vlog2.pop %v1433
      %v7128 = vmul.f32 %v7127, 0.6931472
      %v7129 = vlog2.pop %v1434
      %v7130 = vmul.f32 %v7129, 0.6931472
      %v7131 = vlog2.pop %v1435
      %v7132 = vmul.f32 %v7131, 0.6931472
      %v7133 = vlog2.pop %v1436
      %v7134 = vmul.f32 %v7133, 0.6931472
      %v7135 = vlog2.pop %v1437
      %v7136 = vmul.f32 %v7135, 0.6931472
      %v7137 = vlog2.pop %v1438
      %v7138 = vmul.f32 %v7137, 0.6931472
      %v7139 = vlog2.pop %v1439
      %v7140 = vmul.f32 %v7139, 0.6931472
      %v7141 = vlog2.pop %v1440
      %v7142 = vmul.f32 %v7141, 0.6931472
      %v7143 = vlog2.pop %v1441
      %v7144 = vmul.f32 %v7143, 0.6931472
      %v7145 = vlog2.pop %v1442
      %v7146 = vmul.f32 %v7145, 0.6931472
      %v7147 = vlog2.pop %v1443
      %v7148 = vmul.f32 %v7147, 0.6931472
      %v7149 = vlog2.pop %v1444
      %v7150 = vmul.f32 %v7149, 0.6931472
      %v7151 = vlog2.pop %v1445
      %v7152 = vmul.f32 %v7151, 0.6931472
      %v7153 = vlog2.pop %v1446
      %v7154 = vmul.f32 %v7153, 0.6931472
      %v7155 = vlog2.pop %v1447
      %v7156 = vmul.f32 %v7155, 0.6931472
      %v7157 = vlog2.pop %v1448
      %v7158 = vmul.f32 %v7157, 0.6931472
      %v7159 = vsel %vm2537, %v6648, 0.0
      %v7160 = vsel %vm2538, %v6650, 0.0
      %v7161 = vsel %vm2539, %v6652, 0.0
      %v7162 = vsel %vm2540, %v6654, 0.0
      %v7163 = vsel %vm2541, %v6656, 0.0
      %v7164 = vsel %vm2542, %v6658, 0.0
      %v7165 = vsel %vm2543, %v6660, 0.0
      %v7166 = vsel %vm2544, %v6662, 0.0
      %v7167 = vsel %vm2545, %v6664, 0.0
      %v7168 = vsel %vm2546, %v6666, 0.0
      %v7169 = vsel %vm2547, %v6668, 0.0
      %v7170 = vsel %vm2548, %v6670, 0.0
      %v7171 = vsel %vm2549, %v6672, 0.0
      %v7172 = vsel %vm2550, %v6674, 0.0
      %v7173 = vsel %vm2551, %v6676, 0.0
      %v7174 = vsel %vm2552, %v6678, 0.0
      %v7175 = vsel %vm2553, %v6680, 0.0
      %v7176 = vsel %vm2554, %v6682, 0.0
      %v7177 = vsel %vm2555, %v6684, 0.0
      %v7178 = vsel %vm2556, %v6686, 0.0
      %v7179 = vsel %vm2557, %v6688, 0.0
      %v7180 = vsel %vm2558, %v6690, 0.0
      %v7181 = vsel %vm2559, %v6692, 0.0
      %v7182 = vsel %vm2560, %v6694, 0.0
      %v7183 = vsel %vm2561, %v6696, 0.0
      %v7184 = vsel %vm2562, %v6698, 0.0
      %v7185 = vsel %vm2563, %v6700, 0.0
      %v7186 = vsel %vm2564, %v6702, 0.0
      %v7187 = vsel %vm2565, %v6704, 0.0
      %v7188 = vsel %vm2566, %v6706, 0.0
      %v7189 = vsel %vm2567, %v6708, 0.0
      %v7190 = vsel %vm2568, %v6710, 0.0
      %v7191 = vsel %vm2569, %v6712, 0.0
      %v7192 = vsel %vm2570, %v6714, 0.0
      %v7193 = vsel %vm2571, %v6716, 0.0
      %v7194 = vsel %vm2572, %v6718, 0.0
      %v7195 = vsel %vm2573, %v6720, 0.0
      %v7196 = vsel %vm2574, %v6722, 0.0
      %v7197 = vsel %vm2575, %v6724, 0.0
      %v7198 = vsel %vm2576, %v6726, 0.0
      %v7199 = vsel %vm2577, %v6728, 0.0
      %v7200 = vsel %vm2578, %v6730, 0.0
      %v7201 = vsel %vm2579, %v6732, 0.0
      %v7202 = vsel %vm2580, %v6734, 0.0
      %v7203 = vsel %vm2581, %v6736, 0.0
      %v7204 = vsel %vm2582, %v6738, 0.0
      %v7205 = vsel %vm2583, %v6740, 0.0
      %v7206 = vsel %vm2584, %v6742, 0.0
      %v7207 = vsel %vm2585, %v6744, 0.0
      %v7208 = vsel %vm2586, %v6746, 0.0
      %v7209 = vsel %vm2587, %v6748, 0.0
      %v7210 = vsel %vm2588, %v6750, 0.0
      %v7211 = vsel %vm2589, %v6752, 0.0
      %v7212 = vsel %vm2590, %v6754, 0.0
      %v7213 = vsel %vm2591, %v6756, 0.0
      %v7214 = vsel %vm2592, %v6758, 0.0
      %v7215 = vsel %vm2593, %v6760, 0.0
      %v7216 = vsel %vm2594, %v6762, 0.0
      %v7217 = vsel %vm2595, %v6764, 0.0
      %v7218 = vsel %vm2596, %v6766, 0.0
      %v7219 = vsel %vm2597, %v6768, 0.0
      %v7220 = vsel %vm2598, %v6770, 0.0
      %v7221 = vsel %vm2599, %v6772, 0.0
      %v7222 = vsel %vm2600, %v6774, 0.0
      %v7223 = vsel %vm2601, %v6776, 0.0
      %v7224 = vsel %vm2602, %v6778, 0.0
      %v7225 = vsel %vm2603, %v6780, 0.0
      %v7226 = vsel %vm2604, %v6782, 0.0
      %v7227 = vsel %vm2605, %v6784, 0.0
      %v7228 = vsel %vm2606, %v6786, 0.0
      %v7229 = vsel %vm2607, %v6788, 0.0
      %v7230 = vsel %vm2608, %v6790, 0.0
      %v7231 = vsel %vm2609, %v6792, 0.0
      %v7232 = vsel %vm2610, %v6794, 0.0
      %v7233 = vsel %vm2611, %v6796, 0.0
      %v7234 = vsel %vm2612, %v6798, 0.0
      %v7235 = vsel %vm2613, %v6800, 0.0
      %v7236 = vsel %vm2614, %v6802, 0.0
      %v7237 = vsel %vm2615, %v6804, 0.0
      %v7238 = vsel %vm2616, %v6806, 0.0
      %v7239 = vsel %vm2617, %v6808, 0.0
      %v7240 = vsel %vm2618, %v6810, 0.0
      %v7241 = vsel %vm2619, %v6812, 0.0
      %v7242 = vsel %vm2620, %v6814, 0.0
      %v7243 = vsel %vm2621, %v6816, 0.0
      %v7244 = vsel %vm2622, %v6818, 0.0
      %v7245 = vsel %vm2623, %v6820, 0.0
      %v7246 = vsel %vm2624, %v6822, 0.0
      %v7247 = vsel %vm2625, %v6824, 0.0
      %v7248 = vsel %vm2626, %v6826, 0.0
      %v7249 = vsel %vm2627, %v6828, 0.0
      %v7250 = vsel %vm2628, %v6830, 0.0
      %v7251 = vsel %vm2629, %v6832, 0.0
      %v7252 = vsel %vm2630, %v6834, 0.0
      %v7253 = vsel %vm2631, %v6836, 0.0
      %v7254 = vsel %vm2632, %v6838, 0.0
      %v7255 = vsel %vm2633, %v6840, 0.0
      %v7256 = vsel %vm2634, %v6842, 0.0
      %v7257 = vsel %vm2635, %v6844, 0.0
      %v7258 = vsel %vm2636, %v6846, 0.0
      %v7259 = vsel %vm2637, %v6848, 0.0
      %v7260 = vsel %vm2638, %v6850, 0.0
      %v7261 = vsel %vm2639, %v6852, 0.0
      %v7262 = vsel %vm2640, %v6854, 0.0
      %v7263 = vsel %vm2641, %v6856, 0.0
      %v7264 = vsel %vm2642, %v6858, 0.0
      %v7265 = vsel %vm2643, %v6860, 0.0
      %v7266 = vsel %vm2644, %v6862, 0.0
      %v7267 = vsel %vm2645, %v6864, 0.0
      %v7268 = vsel %vm2646, %v6866, 0.0
      %v7269 = vsel %vm2647, %v6868, 0.0
      %v7270 = vsel %vm2648, %v6870, 0.0
      %v7271 = vsel %vm2649, %v6872, 0.0
      %v7272 = vsel %vm2650, %v6874, 0.0
      %v7273 = vsel %vm2651, %v6876, 0.0
      %v7274 = vsel %vm2652, %v6878, 0.0
      %v7275 = vsel %vm2653, %v6880, 0.0
      %v7276 = vsel %vm2654, %v6882, 0.0
      %v7277 = vsel %vm2655, %v6884, 0.0
      %v7278 = vsel %vm2656, %v6886, 0.0
      %v7279 = vsel %vm2657, %v6888, 0.0
      %v7280 = vsel %vm2658, %v6890, 0.0
      %v7281 = vsel %vm2659, %v6892, 0.0
      %v7282 = vsel %vm2660, %v6894, 0.0
      %v7283 = vsel %vm2661, %v6896, 0.0
      %v7284 = vsel %vm2662, %v6898, 0.0
      %v7285 = vsel %vm2663, %v6900, 0.0
      %v7286 = vsel %vm2664, %v6902, 0.0
      %v7287 = vsel %vm2665, %v6904, 0.0
      %v7288 = vsel %vm2666, %v6906, 0.0
      %v7289 = vsel %vm2667, %v6908, 0.0
      %v7290 = vsel %vm2668, %v6910, 0.0
      %v7291 = vsel %vm2669, %v6912, 0.0
      %v7292 = vsel %vm2670, %v6914, 0.0
      %v7293 = vsel %vm2671, %v6916, 0.0
      %v7294 = vsel %vm2672, %v6918, 0.0
      %v7295 = vsel %vm2673, %v6920, 0.0
      %v7296 = vsel %vm2674, %v6922, 0.0
      %v7297 = vsel %vm2675, %v6924, 0.0
      %v7298 = vsel %vm2676, %v6926, 0.0
      %v7299 = vsel %vm2677, %v6928, 0.0
      %v7300 = vsel %vm2678, %v6930, 0.0
      %v7301 = vsel %vm2679, %v6932, 0.0
      %v7302 = vsel %vm2680, %v6934, 0.0
      %v7303 = vsel %vm2681, %v6936, 0.0
      %v7304 = vsel %vm2682, %v6938, 0.0
      %v7305 = vsel %vm2683, %v6940, 0.0
      %v7306 = vsel %vm2684, %v6942, 0.0
      %v7307 = vsel %vm2685, %v6944, 0.0
      %v7308 = vsel %vm2686, %v6946, 0.0
      %v7309 = vsel %vm2687, %v6948, 0.0
      %v7310 = vsel %vm2688, %v6950, 0.0
      %v7311 = vsel %vm2689, %v6952, 0.0
      %v7312 = vsel %vm2690, %v6954, 0.0
      %v7313 = vsel %vm2691, %v6956, 0.0
      %v7314 = vsel %vm2692, %v6958, 0.0
      %v7315 = vsel %vm2693, %v6960, 0.0
      %v7316 = vsel %vm2694, %v6962, 0.0
      %v7317 = vsel %vm2695, %v6964, 0.0
      %v7318 = vsel %vm2696, %v6966, 0.0
      %v7319 = vsel %vm2697, %v6968, 0.0
      %v7320 = vsel %vm2698, %v6970, 0.0
      %v7321 = vsel %vm2699, %v6972, 0.0
      %v7322 = vsel %vm2700, %v6974, 0.0
      %v7323 = vsel %vm2701, %v6976, 0.0
      %v7324 = vsel %vm2702, %v6978, 0.0
      %v7325 = vsel %vm2703, %v6980, 0.0
      %v7326 = vsel %vm2704, %v6982, 0.0
      %v7327 = vsel %vm2705, %v6984, 0.0
      %v7328 = vsel %vm2706, %v6986, 0.0
      %v7329 = vsel %vm2707, %v6988, 0.0
      %v7330 = vsel %vm2708, %v6990, 0.0
      %v7331 = vsel %vm2709, %v6992, 0.0
      %v7332 = vsel %vm2710, %v6994, 0.0
      %v7333 = vsel %vm2711, %v6996, 0.0
      %v7334 = vsel %vm2712, %v6998, 0.0
      %v7335 = vsel %vm2713, %v7000, 0.0
      %v7336 = vsel %vm2714, %v7002, 0.0
      %v7337 = vsel %vm2715, %v7004, 0.0
      %v7338 = vsel %vm2716, %v7006, 0.0
      %v7339 = vsel %vm2717, %v7008, 0.0
      %v7340 = vsel %vm2718, %v7010, 0.0
      %v7341 = vsel %vm2719, %v7012, 0.0
      %v7342 = vsel %vm2720, %v7014, 0.0
      %v7343 = vsel %vm2721, %v7016, 0.0
      %v7344 = vsel %vm2722, %v7018, 0.0
      %v7345 = vsel %vm2723, %v7020, 0.0
      %v7346 = vsel %vm2724, %v7022, 0.0
      %v7347 = vsel %vm2725, %v7024, 0.0
      %v7348 = vsel %vm2726, %v7026, 0.0
      %v7349 = vsel %vm2727, %v7028, 0.0
      %v7350 = vsel %vm2728, %v7030, 0.0
      %v7351 = vsel %vm2729, %v7032, 0.0
      %v7352 = vsel %vm2730, %v7034, 0.0
      %v7353 = vsel %vm2731, %v7036, 0.0
      %v7354 = vsel %vm2732, %v7038, 0.0
      %v7355 = vsel %vm2733, %v7040, 0.0
      %v7356 = vsel %vm2734, %v7042, 0.0
      %v7357 = vsel %vm2735, %v7044, 0.0
      %v7358 = vsel %vm2736, %v7046, 0.0
      %v7359 = vsel %vm2737, %v7048, 0.0
      %v7360 = vsel %vm2738, %v7050, 0.0
      %v7361 = vsel %vm2739, %v7052, 0.0
      %v7362 = vsel %vm2740, %v7054, 0.0
      %v7363 = vsel %vm2741, %v7056, 0.0
      %v7364 = vsel %vm2742, %v7058, 0.0
      %v7365 = vsel %vm2743, %v7060, 0.0
      %v7366 = vsel %vm2744, %v7062, 0.0
      %v7367 = vsel %vm2745, %v7064, 0.0
      %v7368 = vsel %vm2746, %v7066, 0.0
      %v7369 = vsel %vm2747, %v7068, 0.0
      %v7370 = vsel %vm2748, %v7070, 0.0
      %v7371 = vsel %vm2749, %v7072, 0.0
      %v7372 = vsel %vm2750, %v7074, 0.0
      %v7373 = vsel %vm2751, %v7076, 0.0
      %v7374 = vsel %vm2752, %v7078, 0.0
      %v7375 = vsel %vm2753, %v7080, 0.0
      %v7376 = vsel %vm2754, %v7082, 0.0
      %v7377 = vsel %vm2755, %v7084, 0.0
      %v7378 = vsel %vm2756, %v7086, 0.0
      %v7379 = vsel %vm2757, %v7088, 0.0
      %v7380 = vsel %vm2758, %v7090, 0.0
      %v7381 = vsel %vm2759, %v7092, 0.0
      %v7382 = vsel %vm2760, %v7094, 0.0
      %v7383 = vsel %vm2761, %v7096, 0.0
      %v7384 = vsel %vm2762, %v7098, 0.0
      %v7385 = vsel %vm2763, %v7100, 0.0
      %v7386 = vsel %vm2764, %v7102, 0.0
      %v7387 = vsel %vm2765, %v7104, 0.0
      %v7388 = vsel %vm2766, %v7106, 0.0
      %v7389 = vsel %vm2767, %v7108, 0.0
      %v7390 = vsel %vm2768, %v7110, 0.0
      %v7391 = vsel %vm2769, %v7112, 0.0
      %v7392 = vsel %vm2770, %v7114, 0.0
      %v7393 = vsel %vm2771, %v7116, 0.0
      %v7394 = vsel %vm2772, %v7118, 0.0
      %v7395 = vsel %vm2773, %v7120, 0.0
      %v7396 = vsel %vm2774, %v7122, 0.0
      %v7397 = vsel %vm2775, %v7124, 0.0
      %v7398 = vsel %vm2776, %v7126, 0.0
      %v7399 = vsel %vm2777, %v7128, 0.0
      %v7400 = vsel %vm2778, %v7130, 0.0
      %v7401 = vsel %vm2779, %v7132, 0.0
      %v7402 = vsel %vm2780, %v7134, 0.0
      %v7403 = vsel %vm2781, %v7136, 0.0
      %v7404 = vsel %vm2782, %v7138, 0.0
      %v7405 = vsel %vm2783, %v7140, 0.0
      %v7406 = vsel %vm2784, %v7142, 0.0
      %v7407 = vsel %vm2785, %v7144, 0.0
      %v7408 = vsel %vm2786, %v7146, 0.0
      %v7409 = vsel %vm2787, %v7148, 0.0
      %v7410 = vsel %vm2788, %v7150, 0.0
      %v7411 = vsel %vm2789, %v7152, 0.0
      %v7412 = vsel %vm2790, %v7154, 0.0
      %v7413 = vsel %vm2791, %v7156, 0.0
      %v7414 = vsel %vm2792, %v7158, 0.0
      %v7415 = vadd.f32 %v7159, %v7160
      %v7416 = vadd.f32 %v7415, %v7161
      %v7417 = vadd.f32 %v7416, %v7162
      %v7418 = vadd.f32 %v7417, %v7163
      %v7419 = vadd.f32 %v7418, %v7164
      %v7420 = vadd.f32 %v7419, %v7165
      %v7421 = vadd.f32 %v7420, %v7166
      %v7422 = vadd.f32 %v7421, %v7167
      %v7423 = vadd.f32 %v7422, %v7168
      %v7424 = vadd.f32 %v7423, %v7169
      %v7425 = vadd.f32 %v7424, %v7170
      %v7426 = vadd.f32 %v7425, %v7171
      %v7427 = vadd.f32 %v7426, %v7172
      %v7428 = vadd.f32 %v7427, %v7173
      %v7429 = vadd.f32 %v7428, %v7174
      %v7430 = vadd.f32 %v7429, %v7175
      %v7431 = vadd.f32 %v7430, %v7176
      %v7432 = vadd.f32 %v7431, %v7177
      %v7433 = vadd.f32 %v7432, %v7178
      %v7434 = vadd.f32 %v7433, %v7179
      %v7435 = vadd.f32 %v7434, %v7180
      %v7436 = vadd.f32 %v7435, %v7181
      %v7437 = vadd.f32 %v7436, %v7182
      %v7438 = vadd.f32 %v7437, %v7183
      %v7439 = vadd.f32 %v7438, %v7184
      %v7440 = vadd.f32 %v7439, %v7185
      %v7441 = vadd.f32 %v7440, %v7186
      %v7442 = vadd.f32 %v7441, %v7187
      %v7443 = vadd.f32 %v7442, %v7188
      %v7444 = vadd.f32 %v7443, %v7189
      %v7445 = vadd.f32 %v7444, %v7190
      %v7446 = vadd.f32 %v7445, %v7191
      %v7447 = vadd.f32 %v7446, %v7192
      %v7448 = vadd.f32 %v7447, %v7193
      %v7449 = vadd.f32 %v7448, %v7194
      %v7450 = vadd.f32 %v7449, %v7195
      %v7451 = vadd.f32 %v7450, %v7196
      %v7452 = vadd.f32 %v7451, %v7197
      %v7453 = vadd.f32 %v7452, %v7198
      %v7454 = vadd.f32 %v7453, %v7199
      %v7455 = vadd.f32 %v7454, %v7200
      %v7456 = vadd.f32 %v7455, %v7201
      %v7457 = vadd.f32 %v7456, %v7202
      %v7458 = vadd.f32 %v7457, %v7203
      %v7459 = vadd.f32 %v7458, %v7204
      %v7460 = vadd.f32 %v7459, %v7205
      %v7461 = vadd.f32 %v7460, %v7206
      %v7462 = vadd.f32 %v7461, %v7207
      %v7463 = vadd.f32 %v7462, %v7208
      %v7464 = vadd.f32 %v7463, %v7209
      %v7465 = vadd.f32 %v7464, %v7210
      %v7466 = vadd.f32 %v7465, %v7211
      %v7467 = vadd.f32 %v7466, %v7212
      %v7468 = vadd.f32 %v7467, %v7213
      %v7469 = vadd.f32 %v7468, %v7214
      %v7470 = vadd.f32 %v7469, %v7215
      %v7471 = vadd.f32 %v7470, %v7216
      %v7472 = vadd.f32 %v7471, %v7217
      %v7473 = vadd.f32 %v7472, %v7218
      %v7474 = vadd.f32 %v7473, %v7219
      %v7475 = vadd.f32 %v7474, %v7220
      %v7476 = vadd.f32 %v7475, %v7221
      %v7477 = vadd.f32 %v7476, %v7222
      %v7478 = vadd.f32 %v7477, %v7223
      %v7479 = vadd.f32 %v7478, %v7224
      %v7480 = vadd.f32 %v7479, %v7225
      %v7481 = vadd.f32 %v7480, %v7226
      %v7482 = vadd.f32 %v7481, %v7227
      %v7483 = vadd.f32 %v7482, %v7228
      %v7484 = vadd.f32 %v7483, %v7229
      %v7485 = vadd.f32 %v7484, %v7230
      %v7486 = vadd.f32 %v7485, %v7231
      %v7487 = vadd.f32 %v7486, %v7232
      %v7488 = vadd.f32 %v7487, %v7233
      %v7489 = vadd.f32 %v7488, %v7234
      %v7490 = vadd.f32 %v7489, %v7235
      %v7491 = vadd.f32 %v7490, %v7236
      %v7492 = vadd.f32 %v7491, %v7237
      %v7493 = vadd.f32 %v7492, %v7238
      %v7494 = vadd.f32 %v7493, %v7239
      %v7495 = vadd.f32 %v7494, %v7240
      %v7496 = vadd.f32 %v7495, %v7241
      %v7497 = vadd.f32 %v7496, %v7242
      %v7498 = vadd.f32 %v7497, %v7243
      %v7499 = vadd.f32 %v7498, %v7244
      %v7500 = vadd.f32 %v7499, %v7245
      %v7501 = vadd.f32 %v7500, %v7246
      %v7502 = vadd.f32 %v7501, %v7247
      %v7503 = vadd.f32 %v7502, %v7248
      %v7504 = vadd.f32 %v7503, %v7249
      %v7505 = vadd.f32 %v7504, %v7250
      %v7506 = vadd.f32 %v7505, %v7251
      %v7507 = vadd.f32 %v7506, %v7252
      %v7508 = vadd.f32 %v7507, %v7253
      %v7509 = vadd.f32 %v7508, %v7254
      %v7510 = vadd.f32 %v7509, %v7255
      %v7511 = vadd.f32 %v7510, %v7256
      %v7512 = vadd.f32 %v7511, %v7257
      %v7513 = vadd.f32 %v7512, %v7258
      %v7514 = vadd.f32 %v7513, %v7259
      %v7515 = vadd.f32 %v7514, %v7260
      %v7516 = vadd.f32 %v7515, %v7261
      %v7517 = vadd.f32 %v7516, %v7262
      %v7518 = vadd.f32 %v7517, %v7263
      %v7519 = vadd.f32 %v7518, %v7264
      %v7520 = vadd.f32 %v7519, %v7265
      %v7521 = vadd.f32 %v7520, %v7266
      %v7522 = vadd.f32 %v7521, %v7267
      %v7523 = vadd.f32 %v7522, %v7268
      %v7524 = vadd.f32 %v7523, %v7269
      %v7525 = vadd.f32 %v7524, %v7270
      %v7526 = vadd.f32 %v7525, %v7271
      %v7527 = vadd.f32 %v7526, %v7272
      %v7528 = vadd.f32 %v7527, %v7273
      %v7529 = vadd.f32 %v7528, %v7274
      %v7530 = vadd.f32 %v7529, %v7275
      %v7531 = vadd.f32 %v7530, %v7276
      %v7532 = vadd.f32 %v7531, %v7277
      %v7533 = vadd.f32 %v7532, %v7278
      %v7534 = vadd.f32 %v7533, %v7279
      %v7535 = vadd.f32 %v7534, %v7280
      %v7536 = vadd.f32 %v7535, %v7281
      %v7537 = vadd.f32 %v7536, %v7282
      %v7538 = vadd.f32 %v7537, %v7283
      %v7539 = vadd.f32 %v7538, %v7284
      %v7540 = vadd.f32 %v7539, %v7285
      %v7541 = vadd.f32 %v7540, %v7286
      %v7542 = vadd.f32 %v7541, %v7287
      %v7543 = vadd.f32 %v7542, %v7288
      %v7544 = vadd.f32 %v7543, %v7289
      %v7545 = vadd.f32 %v7544, %v7290
      %v7546 = vadd.f32 %v7545, %v7291
      %v7547 = vadd.f32 %v7546, %v7292
      %v7548 = vadd.f32 %v7547, %v7293
      %v7549 = vadd.f32 %v7548, %v7294
      %v7550 = vadd.f32 %v7549, %v7295
      %v7551 = vadd.f32 %v7550, %v7296
      %v7552 = vadd.f32 %v7551, %v7297
      %v7553 = vadd.f32 %v7552, %v7298
      %v7554 = vadd.f32 %v7553, %v7299
      %v7555 = vadd.f32 %v7554, %v7300
      %v7556 = vadd.f32 %v7555, %v7301
      %v7557 = vadd.f32 %v7556, %v7302
      %v7558 = vadd.f32 %v7557, %v7303
      %v7559 = vadd.f32 %v7558, %v7304
      %v7560 = vadd.f32 %v7559, %v7305
      %v7561 = vadd.f32 %v7560, %v7306
      %v7562 = vadd.f32 %v7561, %v7307
      %v7563 = vadd.f32 %v7562, %v7308
      %v7564 = vadd.f32 %v7563, %v7309
      %v7565 = vadd.f32 %v7564, %v7310
      %v7566 = vadd.f32 %v7565, %v7311
      %v7567 = vadd.f32 %v7566, %v7312
      %v7568 = vadd.f32 %v7567, %v7313
      %v7569 = vadd.f32 %v7568, %v7314
      %v7570 = vadd.f32 %v7569, %v7315
      %v7571 = vadd.f32 %v7570, %v7316
      %v7572 = vadd.f32 %v7571, %v7317
      %v7573 = vadd.f32 %v7572, %v7318
      %v7574 = vadd.f32 %v7573, %v7319
      %v7575 = vadd.f32 %v7574, %v7320
      %v7576 = vadd.f32 %v7575, %v7321
      %v7577 = vadd.f32 %v7576, %v7322
      %v7578 = vadd.f32 %v7577, %v7323
      %v7579 = vadd.f32 %v7578, %v7324
      %v7580 = vadd.f32 %v7579, %v7325
      %v7581 = vadd.f32 %v7580, %v7326
      %v7582 = vadd.f32 %v7581, %v7327
      %v7583 = vadd.f32 %v7582, %v7328
      %v7584 = vadd.f32 %v7583, %v7329
      %v7585 = vadd.f32 %v7584, %v7330
      %v7586 = vadd.f32 %v7585, %v7331
      %v7587 = vadd.f32 %v7586, %v7332
      %v7588 = vadd.f32 %v7587, %v7333
      %v7589 = vadd.f32 %v7588, %v7334
      %v7590 = vadd.f32 %v7589, %v7335
      %v7591 = vadd.f32 %v7590, %v7336
      %v7592 = vadd.f32 %v7591, %v7337
      %v7593 = vadd.f32 %v7592, %v7338
      %v7594 = vadd.f32 %v7593, %v7339
      %v7595 = vadd.f32 %v7594, %v7340
      %v7596 = vadd.f32 %v7595, %v7341
      %v7597 = vadd.f32 %v7596, %v7342
      %v7598 = vadd.f32 %v7597, %v7343
      %v7599 = vadd.f32 %v7598, %v7344
      %v7600 = vadd.f32 %v7599, %v7345
      %v7601 = vadd.f32 %v7600, %v7346
      %v7602 = vadd.f32 %v7601, %v7347
      %v7603 = vadd.f32 %v7602, %v7348
      %v7604 = vadd.f32 %v7603, %v7349
      %v7605 = vadd.f32 %v7604, %v7350
      %v7606 = vadd.f32 %v7605, %v7351
      %v7607 = vadd.f32 %v7606, %v7352
      %v7608 = vadd.f32 %v7607, %v7353
      %v7609 = vadd.f32 %v7608, %v7354
      %v7610 = vadd.f32 %v7609, %v7355
      %v7611 = vadd.f32 %v7610, %v7356
      %v7612 = vadd.f32 %v7611, %v7357
      %v7613 = vadd.f32 %v7612, %v7358
      %v7614 = vadd.f32 %v7613, %v7359
      %v7615 = vadd.f32 %v7614, %v7360
      %v7616 = vadd.f32 %v7615, %v7361
      %v7617 = vadd.f32 %v7616, %v7362
      %v7618 = vadd.f32 %v7617, %v7363
      %v7619 = vadd.f32 %v7618, %v7364
      %v7620 = vadd.f32 %v7619, %v7365
      %v7621 = vadd.f32 %v7620, %v7366
      %v7622 = vadd.f32 %v7621, %v7367
      %v7623 = vadd.f32 %v7622, %v7368
      %v7624 = vadd.f32 %v7623, %v7369
      %v7625 = vadd.f32 %v7624, %v7370
      %v7626 = vadd.f32 %v7625, %v7371
      %v7627 = vadd.f32 %v7626, %v7372
      %v7628 = vadd.f32 %v7627, %v7373
      %v7629 = vadd.f32 %v7628, %v7374
      %v7630 = vadd.f32 %v7629, %v7375
      %v7631 = vadd.f32 %v7630, %v7376
      %v7632 = vadd.f32 %v7631, %v7377
      %v7633 = vadd.f32 %v7632, %v7378
      %v7634 = vadd.f32 %v7633, %v7379
      %v7635 = vadd.f32 %v7634, %v7380
      %v7636 = vadd.f32 %v7635, %v7381
      %v7637 = vadd.f32 %v7636, %v7382
      %v7638 = vadd.f32 %v7637, %v7383
      %v7639 = vadd.f32 %v7638, %v7384
      %v7640 = vadd.f32 %v7639, %v7385
      %v7641 = vadd.f32 %v7640, %v7386
      %v7642 = vadd.f32 %v7641, %v7387
      %v7643 = vadd.f32 %v7642, %v7388
      %v7644 = vadd.f32 %v7643, %v7389
      %v7645 = vadd.f32 %v7644, %v7390
      %v7646 = vadd.f32 %v7645, %v7391
      %v7647 = vadd.f32 %v7646, %v7392
      %v7648 = vadd.f32 %v7647, %v7393
      %v7649 = vadd.f32 %v7648, %v7394
      %v7650 = vadd.f32 %v7649, %v7395
      %v7651 = vadd.f32 %v7650, %v7396
      %v7652 = vadd.f32 %v7651, %v7397
      %v7653 = vadd.f32 %v7652, %v7398
      %v7654 = vadd.f32 %v7653, %v7399
      %v7655 = vadd.f32 %v7654, %v7400
      %v7656 = vadd.f32 %v7655, %v7401
      %v7657 = vadd.f32 %v7656, %v7402
      %v7658 = vadd.f32 %v7657, %v7403
      %v7659 = vadd.f32 %v7658, %v7404
      %v7660 = vadd.f32 %v7659, %v7405
      %v7661 = vadd.f32 %v7660, %v7406
      %v7662 = vadd.f32 %v7661, %v7407
      %v7663 = vadd.f32 %v7662, %v7408
      %v7664 = vadd.f32 %v7663, %v7409
      %v7665 = vadd.f32 %v7664, %v7410
      %v7666 = vadd.f32 %v7665, %v7411
      %v7667 = vadd.f32 %v7666, %v7412
      %v7668 = vadd.f32 %v7667, %v7413
      %v7669 = vadd.f32 %v7668, %v7414
      %v7670 = vadd.f32 %v6646, %v7669
      %7671 = vst [vmem:[%s6645] sm:$0xff] %v7670
      %s7672 = scalar_lea.vmem %s408, 32
      %v7673 = vld [vmem:[%s7672] sm:$0xff]
      %v7674 = vsel %vm3561, 1.0, 0.0
      %v7675 = vsel %vm3562, 1.0, 0.0
      %v7676 = vsel %vm3563, 1.0, 0.0
      %v7677 = vsel %vm3564, 1.0, 0.0
      %v7678 = vsel %vm3565, 1.0, 0.0
      %v7679 = vsel %vm3566, 1.0, 0.0
      %v7680 = vsel %vm3567, 1.0, 0.0
      %v7681 = vsel %vm3568, 1.0, 0.0
      %v7682 = vsel %vm3569, 1.0, 0.0
      %v7683 = vsel %vm3570, 1.0, 0.0
      %v7684 = vsel %vm3571, 1.0, 0.0
      %v7685 = vsel %vm3572, 1.0, 0.0
      %v7686 = vsel %vm3573, 1.0, 0.0
      %v7687 = vsel %vm3574, 1.0, 0.0
      %v7688 = vsel %vm3575, 1.0, 0.0
      %v7689 = vsel %vm3576, 1.0, 0.0
      %v7690 = vsel %vm3577, 1.0, 0.0
      %v7691 = vsel %vm3578, 1.0, 0.0
      %v7692 = vsel %vm3579, 1.0, 0.0
      %v7693 = vsel %vm3580, 1.0, 0.0
      %v7694 = vsel %vm3581, 1.0, 0.0
      %v7695 = vsel %vm3582, 1.0, 0.0
      %v7696 = vsel %vm3583, 1.0, 0.0
      %v7697 = vsel %vm3584, 1.0, 0.0
      %v7698 = vsel %vm3585, 1.0, 0.0
      %v7699 = vsel %vm3586, 1.0, 0.0
      %v7700 = vsel %vm3587, 1.0, 0.0
      %v7701 = vsel %vm3588, 1.0, 0.0
      %v7702 = vsel %vm3589, 1.0, 0.0
      %v7703 = vsel %vm3590, 1.0, 0.0
      %v7704 = vsel %vm3591, 1.0, 0.0
      %v7705 = vsel %vm3592, 1.0, 0.0
      %v7706 = vsel %vm3593, 1.0, 0.0
      %v7707 = vsel %vm3594, 1.0, 0.0
      %v7708 = vsel %vm3595, 1.0, 0.0
      %v7709 = vsel %vm3596, 1.0, 0.0
      %v7710 = vsel %vm3597, 1.0, 0.0
      %v7711 = vsel %vm3598, 1.0, 0.0
      %v7712 = vsel %vm3599, 1.0, 0.0
      %v7713 = vsel %vm3600, 1.0, 0.0
      %v7714 = vsel %vm3601, 1.0, 0.0
      %v7715 = vsel %vm3602, 1.0, 0.0
      %v7716 = vsel %vm3603, 1.0, 0.0
      %v7717 = vsel %vm3604, 1.0, 0.0
      %v7718 = vsel %vm3605, 1.0, 0.0
      %v7719 = vsel %vm3606, 1.0, 0.0
      %v7720 = vsel %vm3607, 1.0, 0.0
      %v7721 = vsel %vm3608, 1.0, 0.0
      %v7722 = vsel %vm3609, 1.0, 0.0
      %v7723 = vsel %vm3610, 1.0, 0.0
      %v7724 = vsel %vm3611, 1.0, 0.0
      %v7725 = vsel %vm3612, 1.0, 0.0
      %v7726 = vsel %vm3613, 1.0, 0.0
      %v7727 = vsel %vm3614, 1.0, 0.0
      %v7728 = vsel %vm3615, 1.0, 0.0
      %v7729 = vsel %vm3616, 1.0, 0.0
      %v7730 = vsel %vm3617, 1.0, 0.0
      %v7731 = vsel %vm3618, 1.0, 0.0
      %v7732 = vsel %vm3619, 1.0, 0.0
      %v7733 = vsel %vm3620, 1.0, 0.0
      %v7734 = vsel %vm3621, 1.0, 0.0
      %v7735 = vsel %vm3622, 1.0, 0.0
      %v7736 = vsel %vm3623, 1.0, 0.0
      %v7737 = vsel %vm3624, 1.0, 0.0
      %v7738 = vsel %vm3625, 1.0, 0.0
      %v7739 = vsel %vm3626, 1.0, 0.0
      %v7740 = vsel %vm3627, 1.0, 0.0
      %v7741 = vsel %vm3628, 1.0, 0.0
      %v7742 = vsel %vm3629, 1.0, 0.0
      %v7743 = vsel %vm3630, 1.0, 0.0
      %v7744 = vsel %vm3631, 1.0, 0.0
      %v7745 = vsel %vm3632, 1.0, 0.0
      %v7746 = vsel %vm3633, 1.0, 0.0
      %v7747 = vsel %vm3634, 1.0, 0.0
      %v7748 = vsel %vm3635, 1.0, 0.0
      %v7749 = vsel %vm3636, 1.0, 0.0
      %v7750 = vsel %vm3637, 1.0, 0.0
      %v7751 = vsel %vm3638, 1.0, 0.0
      %v7752 = vsel %vm3639, 1.0, 0.0
      %v7753 = vsel %vm3640, 1.0, 0.0
      %v7754 = vsel %vm3641, 1.0, 0.0
      %v7755 = vsel %vm3642, 1.0, 0.0
      %v7756 = vsel %vm3643, 1.0, 0.0
      %v7757 = vsel %vm3644, 1.0, 0.0
      %v7758 = vsel %vm3645, 1.0, 0.0
      %v7759 = vsel %vm3646, 1.0, 0.0
      %v7760 = vsel %vm3647, 1.0, 0.0
      %v7761 = vsel %vm3648, 1.0, 0.0
      %v7762 = vsel %vm3649, 1.0, 0.0
      %v7763 = vsel %vm3650, 1.0, 0.0
      %v7764 = vsel %vm3651, 1.0, 0.0
      %v7765 = vsel %vm3652, 1.0, 0.0
      %v7766 = vsel %vm3653, 1.0, 0.0
      %v7767 = vsel %vm3654, 1.0, 0.0
      %v7768 = vsel %vm3655, 1.0, 0.0
      %v7769 = vsel %vm3656, 1.0, 0.0
      %v7770 = vsel %vm3657, 1.0, 0.0
      %v7771 = vsel %vm3658, 1.0, 0.0
      %v7772 = vsel %vm3659, 1.0, 0.0
      %v7773 = vsel %vm3660, 1.0, 0.0
      %v7774 = vsel %vm3661, 1.0, 0.0
      %v7775 = vsel %vm3662, 1.0, 0.0
      %v7776 = vsel %vm3663, 1.0, 0.0
      %v7777 = vsel %vm3664, 1.0, 0.0
      %v7778 = vsel %vm3665, 1.0, 0.0
      %v7779 = vsel %vm3666, 1.0, 0.0
      %v7780 = vsel %vm3667, 1.0, 0.0
      %v7781 = vsel %vm3668, 1.0, 0.0
      %v7782 = vsel %vm3669, 1.0, 0.0
      %v7783 = vsel %vm3670, 1.0, 0.0
      %v7784 = vsel %vm3671, 1.0, 0.0
      %v7785 = vsel %vm3672, 1.0, 0.0
      %v7786 = vsel %vm3673, 1.0, 0.0
      %v7787 = vsel %vm3674, 1.0, 0.0
      %v7788 = vsel %vm3675, 1.0, 0.0
      %v7789 = vsel %vm3676, 1.0, 0.0
      %v7790 = vsel %vm3677, 1.0, 0.0
      %v7791 = vsel %vm3678, 1.0, 0.0
      %v7792 = vsel %vm3679, 1.0, 0.0
      %v7793 = vsel %vm3680, 1.0, 0.0
      %v7794 = vsel %vm3681, 1.0, 0.0
      %v7795 = vsel %vm3682, 1.0, 0.0
      %v7796 = vsel %vm3683, 1.0, 0.0
      %v7797 = vsel %vm3684, 1.0, 0.0
      %v7798 = vsel %vm3685, 1.0, 0.0
      %v7799 = vsel %vm3686, 1.0, 0.0
      %v7800 = vsel %vm3687, 1.0, 0.0
      %v7801 = vsel %vm3688, 1.0, 0.0
      %v7802 = vsel %vm3689, 1.0, 0.0
      %v7803 = vsel %vm3690, 1.0, 0.0
      %v7804 = vsel %vm3691, 1.0, 0.0
      %v7805 = vsel %vm3692, 1.0, 0.0
      %v7806 = vsel %vm3693, 1.0, 0.0
      %v7807 = vsel %vm3694, 1.0, 0.0
      %v7808 = vsel %vm3695, 1.0, 0.0
      %v7809 = vsel %vm3696, 1.0, 0.0
      %v7810 = vsel %vm3697, 1.0, 0.0
      %v7811 = vsel %vm3698, 1.0, 0.0
      %v7812 = vsel %vm3699, 1.0, 0.0
      %v7813 = vsel %vm3700, 1.0, 0.0
      %v7814 = vsel %vm3701, 1.0, 0.0
      %v7815 = vsel %vm3702, 1.0, 0.0
      %v7816 = vsel %vm3703, 1.0, 0.0
      %v7817 = vsel %vm3704, 1.0, 0.0
      %v7818 = vsel %vm3705, 1.0, 0.0
      %v7819 = vsel %vm3706, 1.0, 0.0
      %v7820 = vsel %vm3707, 1.0, 0.0
      %v7821 = vsel %vm3708, 1.0, 0.0
      %v7822 = vsel %vm3709, 1.0, 0.0
      %v7823 = vsel %vm3710, 1.0, 0.0
      %v7824 = vsel %vm3711, 1.0, 0.0
      %v7825 = vsel %vm3712, 1.0, 0.0
      %v7826 = vsel %vm3713, 1.0, 0.0
      %v7827 = vsel %vm3714, 1.0, 0.0
      %v7828 = vsel %vm3715, 1.0, 0.0
      %v7829 = vsel %vm3716, 1.0, 0.0
      %v7830 = vsel %vm3717, 1.0, 0.0
      %v7831 = vsel %vm3718, 1.0, 0.0
      %v7832 = vsel %vm3719, 1.0, 0.0
      %v7833 = vsel %vm3720, 1.0, 0.0
      %v7834 = vsel %vm3721, 1.0, 0.0
      %v7835 = vsel %vm3722, 1.0, 0.0
      %v7836 = vsel %vm3723, 1.0, 0.0
      %v7837 = vsel %vm3724, 1.0, 0.0
      %v7838 = vsel %vm3725, 1.0, 0.0
      %v7839 = vsel %vm3726, 1.0, 0.0
      %v7840 = vsel %vm3727, 1.0, 0.0
      %v7841 = vsel %vm3728, 1.0, 0.0
      %v7842 = vsel %vm3729, 1.0, 0.0
      %v7843 = vsel %vm3730, 1.0, 0.0
      %v7844 = vsel %vm3731, 1.0, 0.0
      %v7845 = vsel %vm3732, 1.0, 0.0
      %v7846 = vsel %vm3733, 1.0, 0.0
      %v7847 = vsel %vm3734, 1.0, 0.0
      %v7848 = vsel %vm3735, 1.0, 0.0
      %v7849 = vsel %vm3736, 1.0, 0.0
      %v7850 = vsel %vm3737, 1.0, 0.0
      %v7851 = vsel %vm3738, 1.0, 0.0
      %v7852 = vsel %vm3739, 1.0, 0.0
      %v7853 = vsel %vm3740, 1.0, 0.0
      %v7854 = vsel %vm3741, 1.0, 0.0
      %v7855 = vsel %vm3742, 1.0, 0.0
      %v7856 = vsel %vm3743, 1.0, 0.0
      %v7857 = vsel %vm3744, 1.0, 0.0
      %v7858 = vsel %vm3745, 1.0, 0.0
      %v7859 = vsel %vm3746, 1.0, 0.0
      %v7860 = vsel %vm3747, 1.0, 0.0
      %v7861 = vsel %vm3748, 1.0, 0.0
      %v7862 = vsel %vm3749, 1.0, 0.0
      %v7863 = vsel %vm3750, 1.0, 0.0
      %v7864 = vsel %vm3751, 1.0, 0.0
      %v7865 = vsel %vm3752, 1.0, 0.0
      %v7866 = vsel %vm3753, 1.0, 0.0
      %v7867 = vsel %vm3754, 1.0, 0.0
      %v7868 = vsel %vm3755, 1.0, 0.0
      %v7869 = vsel %vm3756, 1.0, 0.0
      %v7870 = vsel %vm3757, 1.0, 0.0
      %v7871 = vsel %vm3758, 1.0, 0.0
      %v7872 = vsel %vm3759, 1.0, 0.0
      %v7873 = vsel %vm3760, 1.0, 0.0
      %v7874 = vsel %vm3761, 1.0, 0.0
      %v7875 = vsel %vm3762, 1.0, 0.0
      %v7876 = vsel %vm3763, 1.0, 0.0
      %v7877 = vsel %vm3764, 1.0, 0.0
      %v7878 = vsel %vm3765, 1.0, 0.0
      %v7879 = vsel %vm3766, 1.0, 0.0
      %v7880 = vsel %vm3767, 1.0, 0.0
      %v7881 = vsel %vm3768, 1.0, 0.0
      %v7882 = vsel %vm3769, 1.0, 0.0
      %v7883 = vsel %vm3770, 1.0, 0.0
      %v7884 = vsel %vm3771, 1.0, 0.0
      %v7885 = vsel %vm3772, 1.0, 0.0
      %v7886 = vsel %vm3773, 1.0, 0.0
      %v7887 = vsel %vm3774, 1.0, 0.0
      %v7888 = vsel %vm3775, 1.0, 0.0
      %v7889 = vsel %vm3776, 1.0, 0.0
      %v7890 = vsel %vm3777, 1.0, 0.0
      %v7891 = vsel %vm3778, 1.0, 0.0
      %v7892 = vsel %vm3779, 1.0, 0.0
      %v7893 = vsel %vm3780, 1.0, 0.0
      %v7894 = vsel %vm3781, 1.0, 0.0
      %v7895 = vsel %vm3782, 1.0, 0.0
      %v7896 = vsel %vm3783, 1.0, 0.0
      %v7897 = vsel %vm3784, 1.0, 0.0
      %v7898 = vsel %vm3785, 1.0, 0.0
      %v7899 = vsel %vm3786, 1.0, 0.0
      %v7900 = vsel %vm3787, 1.0, 0.0
      %v7901 = vsel %vm3788, 1.0, 0.0
      %v7902 = vsel %vm3789, 1.0, 0.0
      %v7903 = vsel %vm3790, 1.0, 0.0
      %v7904 = vsel %vm3791, 1.0, 0.0
      %v7905 = vsel %vm3792, 1.0, 0.0
      %v7906 = vsel %vm3793, 1.0, 0.0
      %v7907 = vsel %vm3794, 1.0, 0.0
      %v7908 = vsel %vm3795, 1.0, 0.0
      %v7909 = vsel %vm3796, 1.0, 0.0
      %v7910 = vsel %vm3797, 1.0, 0.0
      %v7911 = vsel %vm3798, 1.0, 0.0
      %v7912 = vsel %vm3799, 1.0, 0.0
      %v7913 = vsel %vm3800, 1.0, 0.0
      %v7914 = vsel %vm3801, 1.0, 0.0
      %v7915 = vsel %vm3802, 1.0, 0.0
      %v7916 = vsel %vm3803, 1.0, 0.0
      %v7917 = vsel %vm3804, 1.0, 0.0
      %v7918 = vsel %vm3805, 1.0, 0.0
      %v7919 = vsel %vm3806, 1.0, 0.0
      %v7920 = vsel %vm3807, 1.0, 0.0
      %v7921 = vsel %vm3808, 1.0, 0.0
      %v7922 = vsel %vm3809, 1.0, 0.0
      %v7923 = vsel %vm3810, 1.0, 0.0
      %v7924 = vsel %vm3811, 1.0, 0.0
      %v7925 = vsel %vm3812, 1.0, 0.0
      %v7926 = vsel %vm3813, 1.0, 0.0
      %v7927 = vsel %vm3814, 1.0, 0.0
      %v7928 = vsel %vm3815, 1.0, 0.0
      %v7929 = vsel %vm3816, 1.0, 0.0
      %v7930 = vadd.f32 %v7674, %v7675
      %v7931 = vadd.f32 %v7930, %v7676
      %v7932 = vadd.f32 %v7931, %v7677
      %v7933 = vadd.f32 %v7932, %v7678
      %v7934 = vadd.f32 %v7933, %v7679
      %v7935 = vadd.f32 %v7934, %v7680
      %v7936 = vadd.f32 %v7935, %v7681
      %v7937 = vadd.f32 %v7936, %v7682
      %v7938 = vadd.f32 %v7937, %v7683
      %v7939 = vadd.f32 %v7938, %v7684
      %v7940 = vadd.f32 %v7939, %v7685
      %v7941 = vadd.f32 %v7940, %v7686
      %v7942 = vadd.f32 %v7941, %v7687
      %v7943 = vadd.f32 %v7942, %v7688
      %v7944 = vadd.f32 %v7943, %v7689
      %v7945 = vadd.f32 %v7944, %v7690
      %v7946 = vadd.f32 %v7945, %v7691
      %v7947 = vadd.f32 %v7946, %v7692
      %v7948 = vadd.f32 %v7947, %v7693
      %v7949 = vadd.f32 %v7948, %v7694
      %v7950 = vadd.f32 %v7949, %v7695
      %v7951 = vadd.f32 %v7950, %v7696
      %v7952 = vadd.f32 %v7951, %v7697
      %v7953 = vadd.f32 %v7952, %v7698
      %v7954 = vadd.f32 %v7953, %v7699
      %v7955 = vadd.f32 %v7954, %v7700
      %v7956 = vadd.f32 %v7955, %v7701
      %v7957 = vadd.f32 %v7956, %v7702
      %v7958 = vadd.f32 %v7957, %v7703
      %v7959 = vadd.f32 %v7958, %v7704
      %v7960 = vadd.f32 %v7959, %v7705
      %v7961 = vadd.f32 %v7960, %v7706
      %v7962 = vadd.f32 %v7961, %v7707
      %v7963 = vadd.f32 %v7962, %v7708
      %v7964 = vadd.f32 %v7963, %v7709
      %v7965 = vadd.f32 %v7964, %v7710
      %v7966 = vadd.f32 %v7965, %v7711
      %v7967 = vadd.f32 %v7966, %v7712
      %v7968 = vadd.f32 %v7967, %v7713
      %v7969 = vadd.f32 %v7968, %v7714
      %v7970 = vadd.f32 %v7969, %v7715
      %v7971 = vadd.f32 %v7970, %v7716
      %v7972 = vadd.f32 %v7971, %v7717
      %v7973 = vadd.f32 %v7972, %v7718
      %v7974 = vadd.f32 %v7973, %v7719
      %v7975 = vadd.f32 %v7974, %v7720
      %v7976 = vadd.f32 %v7975, %v7721
      %v7977 = vadd.f32 %v7976, %v7722
      %v7978 = vadd.f32 %v7977, %v7723
      %v7979 = vadd.f32 %v7978, %v7724
      %v7980 = vadd.f32 %v7979, %v7725
      %v7981 = vadd.f32 %v7980, %v7726
      %v7982 = vadd.f32 %v7981, %v7727
      %v7983 = vadd.f32 %v7982, %v7728
      %v7984 = vadd.f32 %v7983, %v7729
      %v7985 = vadd.f32 %v7984, %v7730
      %v7986 = vadd.f32 %v7985, %v7731
      %v7987 = vadd.f32 %v7986, %v7732
      %v7988 = vadd.f32 %v7987, %v7733
      %v7989 = vadd.f32 %v7988, %v7734
      %v7990 = vadd.f32 %v7989, %v7735
      %v7991 = vadd.f32 %v7990, %v7736
      %v7992 = vadd.f32 %v7991, %v7737
      %v7993 = vadd.f32 %v7992, %v7738
      %v7994 = vadd.f32 %v7993, %v7739
      %v7995 = vadd.f32 %v7994, %v7740
      %v7996 = vadd.f32 %v7995, %v7741
      %v7997 = vadd.f32 %v7996, %v7742
      %v7998 = vadd.f32 %v7997, %v7743
      %v7999 = vadd.f32 %v7998, %v7744
      %v8000 = vadd.f32 %v7999, %v7745
      %v8001 = vadd.f32 %v8000, %v7746
      %v8002 = vadd.f32 %v8001, %v7747
      %v8003 = vadd.f32 %v8002, %v7748
      %v8004 = vadd.f32 %v8003, %v7749
      %v8005 = vadd.f32 %v8004, %v7750
      %v8006 = vadd.f32 %v8005, %v7751
      %v8007 = vadd.f32 %v8006, %v7752
      %v8008 = vadd.f32 %v8007, %v7753
      %v8009 = vadd.f32 %v8008, %v7754
      %v8010 = vadd.f32 %v8009, %v7755
      %v8011 = vadd.f32 %v8010, %v7756
      %v8012 = vadd.f32 %v8011, %v7757
      %v8013 = vadd.f32 %v8012, %v7758
      %v8014 = vadd.f32 %v8013, %v7759
      %v8015 = vadd.f32 %v8014, %v7760
      %v8016 = vadd.f32 %v8015, %v7761
      %v8017 = vadd.f32 %v8016, %v7762
      %v8018 = vadd.f32 %v8017, %v7763
      %v8019 = vadd.f32 %v8018, %v7764
      %v8020 = vadd.f32 %v8019, %v7765
      %v8021 = vadd.f32 %v8020, %v7766
      %v8022 = vadd.f32 %v8021, %v7767
      %v8023 = vadd.f32 %v8022, %v7768
      %v8024 = vadd.f32 %v8023, %v7769
      %v8025 = vadd.f32 %v8024, %v7770
      %v8026 = vadd.f32 %v8025, %v7771
      %v8027 = vadd.f32 %v8026, %v7772
      %v8028 = vadd.f32 %v8027, %v7773
      %v8029 = vadd.f32 %v8028, %v7774
      %v8030 = vadd.f32 %v8029, %v7775
      %v8031 = vadd.f32 %v8030, %v7776
      %v8032 = vadd.f32 %v8031, %v7777
      %v8033 = vadd.f32 %v8032, %v7778
      %v8034 = vadd.f32 %v8033, %v7779
      %v8035 = vadd.f32 %v8034, %v7780
      %v8036 = vadd.f32 %v8035, %v7781
      %v8037 = vadd.f32 %v8036, %v7782
      %v8038 = vadd.f32 %v8037, %v7783
      %v8039 = vadd.f32 %v8038, %v7784
      %v8040 = vadd.f32 %v8039, %v7785
      %v8041 = vadd.f32 %v8040, %v7786
      %v8042 = vadd.f32 %v8041, %v7787
      %v8043 = vadd.f32 %v8042, %v7788
      %v8044 = vadd.f32 %v8043, %v7789
      %v8045 = vadd.f32 %v8044, %v7790
      %v8046 = vadd.f32 %v8045, %v7791
      %v8047 = vadd.f32 %v8046, %v7792
      %v8048 = vadd.f32 %v8047, %v7793
      %v8049 = vadd.f32 %v8048, %v7794
      %v8050 = vadd.f32 %v8049, %v7795
      %v8051 = vadd.f32 %v8050, %v7796
      %v8052 = vadd.f32 %v8051, %v7797
      %v8053 = vadd.f32 %v8052, %v7798
      %v8054 = vadd.f32 %v8053, %v7799
      %v8055 = vadd.f32 %v8054, %v7800
      %v8056 = vadd.f32 %v8055, %v7801
      %v8057 = vadd.f32 %v8056, %v7802
      %v8058 = vadd.f32 %v8057, %v7803
      %v8059 = vadd.f32 %v8058, %v7804
      %v8060 = vadd.f32 %v8059, %v7805
      %v8061 = vadd.f32 %v8060, %v7806
      %v8062 = vadd.f32 %v8061, %v7807
      %v8063 = vadd.f32 %v8062, %v7808
      %v8064 = vadd.f32 %v8063, %v7809
      %v8065 = vadd.f32 %v8064, %v7810
      %v8066 = vadd.f32 %v8065, %v7811
      %v8067 = vadd.f32 %v8066, %v7812
      %v8068 = vadd.f32 %v8067, %v7813
      %v8069 = vadd.f32 %v8068, %v7814
      %v8070 = vadd.f32 %v8069, %v7815
      %v8071 = vadd.f32 %v8070, %v7816
      %v8072 = vadd.f32 %v8071, %v7817
      %v8073 = vadd.f32 %v8072, %v7818
      %v8074 = vadd.f32 %v8073, %v7819
      %v8075 = vadd.f32 %v8074, %v7820
      %v8076 = vadd.f32 %v8075, %v7821
      %v8077 = vadd.f32 %v8076, %v7822
      %v8078 = vadd.f32 %v8077, %v7823
      %v8079 = vadd.f32 %v8078, %v7824
      %v8080 = vadd.f32 %v8079, %v7825
      %v8081 = vadd.f32 %v8080, %v7826
      %v8082 = vadd.f32 %v8081, %v7827
      %v8083 = vadd.f32 %v8082, %v7828
      %v8084 = vadd.f32 %v8083, %v7829
      %v8085 = vadd.f32 %v8084, %v7830
      %v8086 = vadd.f32 %v8085, %v7831
      %v8087 = vadd.f32 %v8086, %v7832
      %v8088 = vadd.f32 %v8087, %v7833
      %v8089 = vadd.f32 %v8088, %v7834
      %v8090 = vadd.f32 %v8089, %v7835
      %v8091 = vadd.f32 %v8090, %v7836
      %v8092 = vadd.f32 %v8091, %v7837
      %v8093 = vadd.f32 %v8092, %v7838
      %v8094 = vadd.f32 %v8093, %v7839
      %v8095 = vadd.f32 %v8094, %v7840
      %v8096 = vadd.f32 %v8095, %v7841
      %v8097 = vadd.f32 %v8096, %v7842
      %v8098 = vadd.f32 %v8097, %v7843
      %v8099 = vadd.f32 %v8098, %v7844
      %v8100 = vadd.f32 %v8099, %v7845
      %v8101 = vadd.f32 %v8100, %v7846
      %v8102 = vadd.f32 %v8101, %v7847
      %v8103 = vadd.f32 %v8102, %v7848
      %v8104 = vadd.f32 %v8103, %v7849
      %v8105 = vadd.f32 %v8104, %v7850
      %v8106 = vadd.f32 %v8105, %v7851
      %v8107 = vadd.f32 %v8106, %v7852
      %v8108 = vadd.f32 %v8107, %v7853
      %v8109 = vadd.f32 %v8108, %v7854
      %v8110 = vadd.f32 %v8109, %v7855
      %v8111 = vadd.f32 %v8110, %v7856
      %v8112 = vadd.f32 %v8111, %v7857
      %v8113 = vadd.f32 %v8112, %v7858
      %v8114 = vadd.f32 %v8113, %v7859
      %v8115 = vadd.f32 %v8114, %v7860
      %v8116 = vadd.f32 %v8115, %v7861
      %v8117 = vadd.f32 %v8116, %v7862
      %v8118 = vadd.f32 %v8117, %v7863
      %v8119 = vadd.f32 %v8118, %v7864
      %v8120 = vadd.f32 %v8119, %v7865
      %v8121 = vadd.f32 %v8120, %v7866
      %v8122 = vadd.f32 %v8121, %v7867
      %v8123 = vadd.f32 %v8122, %v7868
      %v8124 = vadd.f32 %v8123, %v7869
      %v8125 = vadd.f32 %v8124, %v7870
      %v8126 = vadd.f32 %v8125, %v7871
      %v8127 = vadd.f32 %v8126, %v7872
      %v8128 = vadd.f32 %v8127, %v7873
      %v8129 = vadd.f32 %v8128, %v7874
      %v8130 = vadd.f32 %v8129, %v7875
      %v8131 = vadd.f32 %v8130, %v7876
      %v8132 = vadd.f32 %v8131, %v7877
      %v8133 = vadd.f32 %v8132, %v7878
      %v8134 = vadd.f32 %v8133, %v7879
      %v8135 = vadd.f32 %v8134, %v7880
      %v8136 = vadd.f32 %v8135, %v7881
      %v8137 = vadd.f32 %v8136, %v7882
      %v8138 = vadd.f32 %v8137, %v7883
      %v8139 = vadd.f32 %v8138, %v7884
      %v8140 = vadd.f32 %v8139, %v7885
      %v8141 = vadd.f32 %v8140, %v7886
      %v8142 = vadd.f32 %v8141, %v7887
      %v8143 = vadd.f32 %v8142, %v7888
      %v8144 = vadd.f32 %v8143, %v7889
      %v8145 = vadd.f32 %v8144, %v7890
      %v8146 = vadd.f32 %v8145, %v7891
      %v8147 = vadd.f32 %v8146, %v7892
      %v8148 = vadd.f32 %v8147, %v7893
      %v8149 = vadd.f32 %v8148, %v7894
      %v8150 = vadd.f32 %v8149, %v7895
      %v8151 = vadd.f32 %v8150, %v7896
      %v8152 = vadd.f32 %v8151, %v7897
      %v8153 = vadd.f32 %v8152, %v7898
      %v8154 = vadd.f32 %v8153, %v7899
      %v8155 = vadd.f32 %v8154, %v7900
      %v8156 = vadd.f32 %v8155, %v7901
      %v8157 = vadd.f32 %v8156, %v7902
      %v8158 = vadd.f32 %v8157, %v7903
      %v8159 = vadd.f32 %v8158, %v7904
      %v8160 = vadd.f32 %v8159, %v7905
      %v8161 = vadd.f32 %v8160, %v7906
      %v8162 = vadd.f32 %v8161, %v7907
      %v8163 = vadd.f32 %v8162, %v7908
      %v8164 = vadd.f32 %v8163, %v7909
      %v8165 = vadd.f32 %v8164, %v7910
      %v8166 = vadd.f32 %v8165, %v7911
      %v8167 = vadd.f32 %v8166, %v7912
      %v8168 = vadd.f32 %v8167, %v7913
      %v8169 = vadd.f32 %v8168, %v7914
      %v8170 = vadd.f32 %v8169, %v7915
      %v8171 = vadd.f32 %v8170, %v7916
      %v8172 = vadd.f32 %v8171, %v7917
      %v8173 = vadd.f32 %v8172, %v7918
      %v8174 = vadd.f32 %v8173, %v7919
      %v8175 = vadd.f32 %v8174, %v7920
      %v8176 = vadd.f32 %v8175, %v7921
      %v8177 = vadd.f32 %v8176, %v7922
      %v8178 = vadd.f32 %v8177, %v7923
      %v8179 = vadd.f32 %v8178, %v7924
      %v8180 = vadd.f32 %v8179, %v7925
      %v8181 = vadd.f32 %v8180, %v7926
      %v8182 = vadd.f32 %v8181, %v7927
      %v8183 = vadd.f32 %v8182, %v7928
      %v8184 = vadd.f32 %v8183, %v7929
      %v8185 = vadd.f32 %v7673, %v8184
      %8186 = vst [vmem:[%s7672] sm:$0xff] %v8185
      %s8187 = scalar_lea.vmem %s408, 40
      %v8188 = vld [vmem:[%s8187] sm:$0xff]
      %v8189 = vmul.f32 %v4075, %v1193
      %v8190 = vmul.f32 %v4076, %v1194
      %v8191 = vmul.f32 %v4077, %v1195
      %v8192 = vmul.f32 %v4078, %v1196
      %v8193 = vmul.f32 %v4079, %v1197
      %v8194 = vmul.f32 %v4080, %v1198
      %v8195 = vmul.f32 %v4081, %v1199
      %v8196 = vmul.f32 %v4082, %v1200
      %v8197 = vmul.f32 %v4083, %v1201
      %v8198 = vmul.f32 %v4084, %v1202
      %v8199 = vmul.f32 %v4085, %v1203
      %v8200 = vmul.f32 %v4086, %v1204
      %v8201 = vmul.f32 %v4087, %v1205
      %v8202 = vmul.f32 %v4088, %v1206
      %v8203 = vmul.f32 %v4089, %v1207
      %v8204 = vmul.f32 %v4090, %v1208
      %v8205 = vmul.f32 %v4091, %v1209
      %v8206 = vmul.f32 %v4092, %v1210
      %v8207 = vmul.f32 %v4093, %v1211
      %v8208 = vmul.f32 %v4094, %v1212
      %v8209 = vmul.f32 %v4095, %v1213
      %v8210 = vmul.f32 %v4096, %v1214
      %v8211 = vmul.f32 %v4097, %v1215
      %v8212 = vmul.f32 %v4098, %v1216
      %v8213 = vmul.f32 %v4099, %v1217
      %v8214 = vmul.f32 %v4100, %v1218
      %v8215 = vmul.f32 %v4101, %v1219
      %v8216 = vmul.f32 %v4102, %v1220
      %v8217 = vmul.f32 %v4103, %v1221
      %v8218 = vmul.f32 %v4104, %v1222
      %v8219 = vmul.f32 %v4105, %v1223
      %v8220 = vmul.f32 %v4106, %v1224
      %v8221 = vmul.f32 %v4107, %v1225
      %v8222 = vmul.f32 %v4108, %v1226
      %v8223 = vmul.f32 %v4109, %v1227
      %v8224 = vmul.f32 %v4110, %v1228
      %v8225 = vmul.f32 %v4111, %v1229
      %v8226 = vmul.f32 %v4112, %v1230
      %v8227 = vmul.f32 %v4113, %v1231
      %v8228 = vmul.f32 %v4114, %v1232
      %v8229 = vmul.f32 %v4115, %v1233
      %v8230 = vmul.f32 %v4116, %v1234
      %v8231 = vmul.f32 %v4117, %v1235
      %v8232 = vmul.f32 %v4118, %v1236
      %v8233 = vmul.f32 %v4119, %v1237
      %v8234 = vmul.f32 %v4120, %v1238
      %v8235 = vmul.f32 %v4121, %v1239
      %v8236 = vmul.f32 %v4122, %v1240
      %v8237 = vmul.f32 %v4123, %v1241
      %v8238 = vmul.f32 %v4124, %v1242
      %v8239 = vmul.f32 %v4125, %v1243
      %v8240 = vmul.f32 %v4126, %v1244
      %v8241 = vmul.f32 %v4127, %v1245
      %v8242 = vmul.f32 %v4128, %v1246
      %v8243 = vmul.f32 %v4129, %v1247
      %v8244 = vmul.f32 %v4130, %v1248
      %v8245 = vmul.f32 %v4131, %v1249
      %v8246 = vmul.f32 %v4132, %v1250
      %v8247 = vmul.f32 %v4133, %v1251
      %v8248 = vmul.f32 %v4134, %v1252
      %v8249 = vmul.f32 %v4135, %v1253
      %v8250 = vmul.f32 %v4136, %v1254
      %v8251 = vmul.f32 %v4137, %v1255
      %v8252 = vmul.f32 %v4138, %v1256
      %v8253 = vmul.f32 %v4139, %v1257
      %v8254 = vmul.f32 %v4140, %v1258
      %v8255 = vmul.f32 %v4141, %v1259
      %v8256 = vmul.f32 %v4142, %v1260
      %v8257 = vmul.f32 %v4143, %v1261
      %v8258 = vmul.f32 %v4144, %v1262
      %v8259 = vmul.f32 %v4145, %v1263
      %v8260 = vmul.f32 %v4146, %v1264
      %v8261 = vmul.f32 %v4147, %v1265
      %v8262 = vmul.f32 %v4148, %v1266
      %v8263 = vmul.f32 %v4149, %v1267
      %v8264 = vmul.f32 %v4150, %v1268
      %v8265 = vmul.f32 %v4151, %v1269
      %v8266 = vmul.f32 %v4152, %v1270
      %v8267 = vmul.f32 %v4153, %v1271
      %v8268 = vmul.f32 %v4154, %v1272
      %v8269 = vmul.f32 %v4155, %v1273
      %v8270 = vmul.f32 %v4156, %v1274
      %v8271 = vmul.f32 %v4157, %v1275
      %v8272 = vmul.f32 %v4158, %v1276
      %v8273 = vmul.f32 %v4159, %v1277
      %v8274 = vmul.f32 %v4160, %v1278
      %v8275 = vmul.f32 %v4161, %v1279
      %v8276 = vmul.f32 %v4162, %v1280
      %v8277 = vmul.f32 %v4163, %v1281
      %v8278 = vmul.f32 %v4164, %v1282
      %v8279 = vmul.f32 %v4165, %v1283
      %v8280 = vmul.f32 %v4166, %v1284
      %v8281 = vmul.f32 %v4167, %v1285
      %v8282 = vmul.f32 %v4168, %v1286
      %v8283 = vmul.f32 %v4169, %v1287
      %v8284 = vmul.f32 %v4170, %v1288
      %v8285 = vmul.f32 %v4171, %v1289
      %v8286 = vmul.f32 %v4172, %v1290
      %v8287 = vmul.f32 %v4173, %v1291
      %v8288 = vmul.f32 %v4174, %v1292
      %v8289 = vmul.f32 %v4175, %v1293
      %v8290 = vmul.f32 %v4176, %v1294
      %v8291 = vmul.f32 %v4177, %v1295
      %v8292 = vmul.f32 %v4178, %v1296
      %v8293 = vmul.f32 %v4179, %v1297
      %v8294 = vmul.f32 %v4180, %v1298
      %v8295 = vmul.f32 %v4181, %v1299
      %v8296 = vmul.f32 %v4182, %v1300
      %v8297 = vmul.f32 %v4183, %v1301
      %v8298 = vmul.f32 %v4184, %v1302
      %v8299 = vmul.f32 %v4185, %v1303
      %v8300 = vmul.f32 %v4186, %v1304
      %v8301 = vmul.f32 %v4187, %v1305
      %v8302 = vmul.f32 %v4188, %v1306
      %v8303 = vmul.f32 %v4189, %v1307
      %v8304 = vmul.f32 %v4190, %v1308
      %v8305 = vmul.f32 %v4191, %v1309
      %v8306 = vmul.f32 %v4192, %v1310
      %v8307 = vmul.f32 %v4193, %v1311
      %v8308 = vmul.f32 %v4194, %v1312
      %v8309 = vmul.f32 %v4195, %v1313
      %v8310 = vmul.f32 %v4196, %v1314
      %v8311 = vmul.f32 %v4197, %v1315
      %v8312 = vmul.f32 %v4198, %v1316
      %v8313 = vmul.f32 %v4199, %v1317
      %v8314 = vmul.f32 %v4200, %v1318
      %v8315 = vmul.f32 %v4201, %v1319
      %v8316 = vmul.f32 %v4202, %v1320
      %v8317 = vmul.f32 %v4203, %v1321
      %v8318 = vmul.f32 %v4204, %v1322
      %v8319 = vmul.f32 %v4205, %v1323
      %v8320 = vmul.f32 %v4206, %v1324
      %v8321 = vmul.f32 %v4207, %v1325
      %v8322 = vmul.f32 %v4208, %v1326
      %v8323 = vmul.f32 %v4209, %v1327
      %v8324 = vmul.f32 %v4210, %v1328
      %v8325 = vmul.f32 %v4211, %v1329
      %v8326 = vmul.f32 %v4212, %v1330
      %v8327 = vmul.f32 %v4213, %v1331
      %v8328 = vmul.f32 %v4214, %v1332
      %v8329 = vmul.f32 %v4215, %v1333
      %v8330 = vmul.f32 %v4216, %v1334
      %v8331 = vmul.f32 %v4217, %v1335
      %v8332 = vmul.f32 %v4218, %v1336
      %v8333 = vmul.f32 %v4219, %v1337
      %v8334 = vmul.f32 %v4220, %v1338
      %v8335 = vmul.f32 %v4221, %v1339
      %v8336 = vmul.f32 %v4222, %v1340
      %v8337 = vmul.f32 %v4223, %v1341
      %v8338 = vmul.f32 %v4224, %v1342
      %v8339 = vmul.f32 %v4225, %v1343
      %v8340 = vmul.f32 %v4226, %v1344
      %v8341 = vmul.f32 %v4227, %v1345
      %v8342 = vmul.f32 %v4228, %v1346
      %v8343 = vmul.f32 %v4229, %v1347
      %v8344 = vmul.f32 %v4230, %v1348
      %v8345 = vmul.f32 %v4231, %v1349
      %v8346 = vmul.f32 %v4232, %v1350
      %v8347 = vmul.f32 %v4233, %v1351
      %v8348 = vmul.f32 %v4234, %v1352
      %v8349 = vmul.f32 %v4235, %v1353
      %v8350 = vmul.f32 %v4236, %v1354
      %v8351 = vmul.f32 %v4237, %v1355
      %v8352 = vmul.f32 %v4238, %v1356
      %v8353 = vmul.f32 %v4239, %v1357
      %v8354 = vmul.f32 %v4240, %v1358
      %v8355 = vmul.f32 %v4241, %v1359
      %v8356 = vmul.f32 %v4242, %v1360
      %v8357 = vmul.f32 %v4243, %v1361
      %v8358 = vmul.f32 %v4244, %v1362
      %v8359 = vmul.f32 %v4245, %v1363
      %v8360 = vmul.f32 %v4246, %v1364
      %v8361 = vmul.f32 %v4247, %v1365
      %v8362 = vmul.f32 %v4248, %v1366
      %v8363 = vmul.f32 %v4249, %v1367
      %v8364 = vmul.f32 %v4250, %v1368
      %v8365 = vmul.f32 %v4251, %v1369
      %v8366 = vmul.f32 %v4252, %v1370
      %v8367 = vmul.f32 %v4253, %v1371
      %v8368 = vmul.f32 %v4254, %v1372
      %v8369 = vmul.f32 %v4255, %v1373
      %v8370 = vmul.f32 %v4256, %v1374
      %v8371 = vmul.f32 %v4257, %v1375
      %v8372 = vmul.f32 %v4258, %v1376
      %v8373 = vmul.f32 %v4259, %v1377
      %v8374 = vmul.f32 %v4260, %v1378
      %v8375 = vmul.f32 %v4261, %v1379
      %v8376 = vmul.f32 %v4262, %v1380
      %v8377 = vmul.f32 %v4263, %v1381
      %v8378 = vmul.f32 %v4264, %v1382
      %v8379 = vmul.f32 %v4265, %v1383
      %v8380 = vmul.f32 %v4266, %v1384
      %v8381 = vmul.f32 %v4267, %v1385
      %v8382 = vmul.f32 %v4268, %v1386
      %v8383 = vmul.f32 %v4269, %v1387
      %v8384 = vmul.f32 %v4270, %v1388
      %v8385 = vmul.f32 %v4271, %v1389
      %v8386 = vmul.f32 %v4272, %v1390
      %v8387 = vmul.f32 %v4273, %v1391
      %v8388 = vmul.f32 %v4274, %v1392
      %v8389 = vmul.f32 %v4275, %v1393
      %v8390 = vmul.f32 %v4276, %v1394
      %v8391 = vmul.f32 %v4277, %v1395
      %v8392 = vmul.f32 %v4278, %v1396
      %v8393 = vmul.f32 %v4279, %v1397
      %v8394 = vmul.f32 %v4280, %v1398
      %v8395 = vmul.f32 %v4281, %v1399
      %v8396 = vmul.f32 %v4282, %v1400
      %v8397 = vmul.f32 %v4283, %v1401
      %v8398 = vmul.f32 %v4284, %v1402
      %v8399 = vmul.f32 %v4285, %v1403
      %v8400 = vmul.f32 %v4286, %v1404
      %v8401 = vmul.f32 %v4287, %v1405
      %v8402 = vmul.f32 %v4288, %v1406
      %v8403 = vmul.f32 %v4289, %v1407
      %v8404 = vmul.f32 %v4290, %v1408
      %v8405 = vmul.f32 %v4291, %v1409
      %v8406 = vmul.f32 %v4292, %v1410
      %v8407 = vmul.f32 %v4293, %v1411
      %v8408 = vmul.f32 %v4294, %v1412
      %v8409 = vmul.f32 %v4295, %v1413
      %v8410 = vmul.f32 %v4296, %v1414
      %v8411 = vmul.f32 %v4297, %v1415
      %v8412 = vmul.f32 %v4298, %v1416
      %v8413 = vmul.f32 %v4299, %v1417
      %v8414 = vmul.f32 %v4300, %v1418
      %v8415 = vmul.f32 %v4301, %v1419
      %v8416 = vmul.f32 %v4302, %v1420
      %v8417 = vmul.f32 %v4303, %v1421
      %v8418 = vmul.f32 %v4304, %v1422
      %v8419 = vmul.f32 %v4305, %v1423
      %v8420 = vmul.f32 %v4306, %v1424
      %v8421 = vmul.f32 %v4307, %v1425
      %v8422 = vmul.f32 %v4308, %v1426
      %v8423 = vmul.f32 %v4309, %v1427
      %v8424 = vmul.f32 %v4310, %v1428
      %v8425 = vmul.f32 %v4311, %v1429
      %v8426 = vmul.f32 %v4312, %v1430
      %v8427 = vmul.f32 %v4313, %v1431
      %v8428 = vmul.f32 %v4314, %v1432
      %v8429 = vmul.f32 %v4315, %v1433
      %v8430 = vmul.f32 %v4316, %v1434
      %v8431 = vmul.f32 %v4317, %v1435
      %v8432 = vmul.f32 %v4318, %v1436
      %v8433 = vmul.f32 %v4319, %v1437
      %v8434 = vmul.f32 %v4320, %v1438
      %v8435 = vmul.f32 %v4321, %v1439
      %v8436 = vmul.f32 %v4322, %v1440
      %v8437 = vmul.f32 %v4323, %v1441
      %v8438 = vmul.f32 %v4324, %v1442
      %v8439 = vmul.f32 %v4325, %v1443
      %v8440 = vmul.f32 %v4326, %v1444
      %v8441 = vmul.f32 %v4327, %v1445
      %v8442 = vmul.f32 %v4328, %v1446
      %v8443 = vmul.f32 %v4329, %v1447
      %v8444 = vmul.f32 %v4330, %v1448
      %v8445 = vsel %vm3561, %v8189, 0.0
      %v8446 = vsel %vm3562, %v8190, 0.0
      %v8447 = vsel %vm3563, %v8191, 0.0
      %v8448 = vsel %vm3564, %v8192, 0.0
      %v8449 = vsel %vm3565, %v8193, 0.0
      %v8450 = vsel %vm3566, %v8194, 0.0
      %v8451 = vsel %vm3567, %v8195, 0.0
      %v8452 = vsel %vm3568, %v8196, 0.0
      %v8453 = vsel %vm3569, %v8197, 0.0
      %v8454 = vsel %vm3570, %v8198, 0.0
      %v8455 = vsel %vm3571, %v8199, 0.0
      %v8456 = vsel %vm3572, %v8200, 0.0
      %v8457 = vsel %vm3573, %v8201, 0.0
      %v8458 = vsel %vm3574, %v8202, 0.0
      %v8459 = vsel %vm3575, %v8203, 0.0
      %v8460 = vsel %vm3576, %v8204, 0.0
      %v8461 = vsel %vm3577, %v8205, 0.0
      %v8462 = vsel %vm3578, %v8206, 0.0
      %v8463 = vsel %vm3579, %v8207, 0.0
      %v8464 = vsel %vm3580, %v8208, 0.0
      %v8465 = vsel %vm3581, %v8209, 0.0
      %v8466 = vsel %vm3582, %v8210, 0.0
      %v8467 = vsel %vm3583, %v8211, 0.0
      %v8468 = vsel %vm3584, %v8212, 0.0
      %v8469 = vsel %vm3585, %v8213, 0.0
      %v8470 = vsel %vm3586, %v8214, 0.0
      %v8471 = vsel %vm3587, %v8215, 0.0
      %v8472 = vsel %vm3588, %v8216, 0.0
      %v8473 = vsel %vm3589, %v8217, 0.0
      %v8474 = vsel %vm3590, %v8218, 0.0
      %v8475 = vsel %vm3591, %v8219, 0.0
      %v8476 = vsel %vm3592, %v8220, 0.0
      %v8477 = vsel %vm3593, %v8221, 0.0
      %v8478 = vsel %vm3594, %v8222, 0.0
      %v8479 = vsel %vm3595, %v8223, 0.0
      %v8480 = vsel %vm3596, %v8224, 0.0
      %v8481 = vsel %vm3597, %v8225, 0.0
      %v8482 = vsel %vm3598, %v8226, 0.0
      %v8483 = vsel %vm3599, %v8227, 0.0
      %v8484 = vsel %vm3600, %v8228, 0.0
      %v8485 = vsel %vm3601, %v8229, 0.0
      %v8486 = vsel %vm3602, %v8230, 0.0
      %v8487 = vsel %vm3603, %v8231, 0.0
      %v8488 = vsel %vm3604, %v8232, 0.0
      %v8489 = vsel %vm3605, %v8233, 0.0
      %v8490 = vsel %vm3606, %v8234, 0.0
      %v8491 = vsel %vm3607, %v8235, 0.0
      %v8492 = vsel %vm3608, %v8236, 0.0
      %v8493 = vsel %vm3609, %v8237, 0.0
      %v8494 = vsel %vm3610, %v8238, 0.0
      %v8495 = vsel %vm3611, %v8239, 0.0
      %v8496 = vsel %vm3612, %v8240, 0.0
      %v8497 = vsel %vm3613, %v8241, 0.0
      %v8498 = vsel %vm3614, %v8242, 0.0
      %v8499 = vsel %vm3615, %v8243, 0.0
      %v8500 = vsel %vm3616, %v8244, 0.0
      %v8501 = vsel %vm3617, %v8245, 0.0
      %v8502 = vsel %vm3618, %v8246, 0.0
      %v8503 = vsel %vm3619, %v8247, 0.0
      %v8504 = vsel %vm3620, %v8248, 0.0
      %v8505 = vsel %vm3621, %v8249, 0.0
      %v8506 = vsel %vm3622, %v8250, 0.0
      %v8507 = vsel %vm3623, %v8251, 0.0
      %v8508 = vsel %vm3624, %v8252, 0.0
      %v8509 = vsel %vm3625, %v8253, 0.0
      %v8510 = vsel %vm3626, %v8254, 0.0
      %v8511 = vsel %vm3627, %v8255, 0.0
      %v8512 = vsel %vm3628, %v8256, 0.0
      %v8513 = vsel %vm3629, %v8257, 0.0
      %v8514 = vsel %vm3630, %v8258, 0.0
      %v8515 = vsel %vm3631, %v8259, 0.0
      %v8516 = vsel %vm3632, %v8260, 0.0
      %v8517 = vsel %vm3633, %v8261, 0.0
      %v8518 = vsel %vm3634, %v8262, 0.0
      %v8519 = vsel %vm3635, %v8263, 0.0
      %v8520 = vsel %vm3636, %v8264, 0.0
      %v8521 = vsel %vm3637, %v8265, 0.0
      %v8522 = vsel %vm3638, %v8266, 0.0
      %v8523 = vsel %vm3639, %v8267, 0.0
      %v8524 = vsel %vm3640, %v8268, 0.0
      %v8525 = vsel %vm3641, %v8269, 0.0
      %v8526 = vsel %vm3642, %v8270, 0.0
      %v8527 = vsel %vm3643, %v8271, 0.0
      %v8528 = vsel %vm3644, %v8272, 0.0
      %v8529 = vsel %vm3645, %v8273, 0.0
      %v8530 = vsel %vm3646, %v8274, 0.0
      %v8531 = vsel %vm3647, %v8275, 0.0
      %v8532 = vsel %vm3648, %v8276, 0.0
      %v8533 = vsel %vm3649, %v8277, 0.0
      %v8534 = vsel %vm3650, %v8278, 0.0
      %v8535 = vsel %vm3651, %v8279, 0.0
      %v8536 = vsel %vm3652, %v8280, 0.0
      %v8537 = vsel %vm3653, %v8281, 0.0
      %v8538 = vsel %vm3654, %v8282, 0.0
      %v8539 = vsel %vm3655, %v8283, 0.0
      %v8540 = vsel %vm3656, %v8284, 0.0
      %v8541 = vsel %vm3657, %v8285, 0.0
      %v8542 = vsel %vm3658, %v8286, 0.0
      %v8543 = vsel %vm3659, %v8287, 0.0
      %v8544 = vsel %vm3660, %v8288, 0.0
      %v8545 = vsel %vm3661, %v8289, 0.0
      %v8546 = vsel %vm3662, %v8290, 0.0
      %v8547 = vsel %vm3663, %v8291, 0.0
      %v8548 = vsel %vm3664, %v8292, 0.0
      %v8549 = vsel %vm3665, %v8293, 0.0
      %v8550 = vsel %vm3666, %v8294, 0.0
      %v8551 = vsel %vm3667, %v8295, 0.0
      %v8552 = vsel %vm3668, %v8296, 0.0
      %v8553 = vsel %vm3669, %v8297, 0.0
      %v8554 = vsel %vm3670, %v8298, 0.0
      %v8555 = vsel %vm3671, %v8299, 0.0
      %v8556 = vsel %vm3672, %v8300, 0.0
      %v8557 = vsel %vm3673, %v8301, 0.0
      %v8558 = vsel %vm3674, %v8302, 0.0
      %v8559 = vsel %vm3675, %v8303, 0.0
      %v8560 = vsel %vm3676, %v8304, 0.0
      %v8561 = vsel %vm3677, %v8305, 0.0
      %v8562 = vsel %vm3678, %v8306, 0.0
      %v8563 = vsel %vm3679, %v8307, 0.0
      %v8564 = vsel %vm3680, %v8308, 0.0
      %v8565 = vsel %vm3681, %v8309, 0.0
      %v8566 = vsel %vm3682, %v8310, 0.0
      %v8567 = vsel %vm3683, %v8311, 0.0
      %v8568 = vsel %vm3684, %v8312, 0.0
      %v8569 = vsel %vm3685, %v8313, 0.0
      %v8570 = vsel %vm3686, %v8314, 0.0
      %v8571 = vsel %vm3687, %v8315, 0.0
      %v8572 = vsel %vm3688, %v8316, 0.0
      %v8573 = vsel %vm3689, %v8317, 0.0
      %v8574 = vsel %vm3690, %v8318, 0.0
      %v8575 = vsel %vm3691, %v8319, 0.0
      %v8576 = vsel %vm3692, %v8320, 0.0
      %v8577 = vsel %vm3693, %v8321, 0.0
      %v8578 = vsel %vm3694, %v8322, 0.0
      %v8579 = vsel %vm3695, %v8323, 0.0
      %v8580 = vsel %vm3696, %v8324, 0.0
      %v8581 = vsel %vm3697, %v8325, 0.0
      %v8582 = vsel %vm3698, %v8326, 0.0
      %v8583 = vsel %vm3699, %v8327, 0.0
      %v8584 = vsel %vm3700, %v8328, 0.0
      %v8585 = vsel %vm3701, %v8329, 0.0
      %v8586 = vsel %vm3702, %v8330, 0.0
      %v8587 = vsel %vm3703, %v8331, 0.0
      %v8588 = vsel %vm3704, %v8332, 0.0
      %v8589 = vsel %vm3705, %v8333, 0.0
      %v8590 = vsel %vm3706, %v8334, 0.0
      %v8591 = vsel %vm3707, %v8335, 0.0
      %v8592 = vsel %vm3708, %v8336, 0.0
      %v8593 = vsel %vm3709, %v8337, 0.0
      %v8594 = vsel %vm3710, %v8338, 0.0
      %v8595 = vsel %vm3711, %v8339, 0.0
      %v8596 = vsel %vm3712, %v8340, 0.0
      %v8597 = vsel %vm3713, %v8341, 0.0
      %v8598 = vsel %vm3714, %v8342, 0.0
      %v8599 = vsel %vm3715, %v8343, 0.0
      %v8600 = vsel %vm3716, %v8344, 0.0
      %v8601 = vsel %vm3717, %v8345, 0.0
      %v8602 = vsel %vm3718, %v8346, 0.0
      %v8603 = vsel %vm3719, %v8347, 0.0
      %v8604 = vsel %vm3720, %v8348, 0.0
      %v8605 = vsel %vm3721, %v8349, 0.0
      %v8606 = vsel %vm3722, %v8350, 0.0
      %v8607 = vsel %vm3723, %v8351, 0.0
      %v8608 = vsel %vm3724, %v8352, 0.0
      %v8609 = vsel %vm3725, %v8353, 0.0
      %v8610 = vsel %vm3726, %v8354, 0.0
      %v8611 = vsel %vm3727, %v8355, 0.0
      %v8612 = vsel %vm3728, %v8356, 0.0
      %v8613 = vsel %vm3729, %v8357, 0.0
      %v8614 = vsel %vm3730, %v8358, 0.0
      %v8615 = vsel %vm3731, %v8359, 0.0
      %v8616 = vsel %vm3732, %v8360, 0.0
      %v8617 = vsel %vm3733, %v8361, 0.0
      %v8618 = vsel %vm3734, %v8362, 0.0
      %v8619 = vsel %vm3735, %v8363, 0.0
      %v8620 = vsel %vm3736, %v8364, 0.0
      %v8621 = vsel %vm3737, %v8365, 0.0
      %v8622 = vsel %vm3738, %v8366, 0.0
      %v8623 = vsel %vm3739, %v8367, 0.0
      %v8624 = vsel %vm3740, %v8368, 0.0
      %v8625 = vsel %vm3741, %v8369, 0.0
      %v8626 = vsel %vm3742, %v8370, 0.0
      %v8627 = vsel %vm3743, %v8371, 0.0
      %v8628 = vsel %vm3744, %v8372, 0.0
      %v8629 = vsel %vm3745, %v8373, 0.0
      %v8630 = vsel %vm3746, %v8374, 0.0
      %v8631 = vsel %vm3747, %v8375, 0.0
      %v8632 = vsel %vm3748, %v8376, 0.0
      %v8633 = vsel %vm3749, %v8377, 0.0
      %v8634 = vsel %vm3750, %v8378, 0.0
      %v8635 = vsel %vm3751, %v8379, 0.0
      %v8636 = vsel %vm3752, %v8380, 0.0
      %v8637 = vsel %vm3753, %v8381, 0.0
      %v8638 = vsel %vm3754, %v8382, 0.0
      %v8639 = vsel %vm3755, %v8383, 0.0
      %v8640 = vsel %vm3756, %v8384, 0.0
      %v8641 = vsel %vm3757, %v8385, 0.0
      %v8642 = vsel %vm3758, %v8386, 0.0
      %v8643 = vsel %vm3759, %v8387, 0.0
      %v8644 = vsel %vm3760, %v8388, 0.0
      %v8645 = vsel %vm3761, %v8389, 0.0
      %v8646 = vsel %vm3762, %v8390, 0.0
      %v8647 = vsel %vm3763, %v8391, 0.0
      %v8648 = vsel %vm3764, %v8392, 0.0
      %v8649 = vsel %vm3765, %v8393, 0.0
      %v8650 = vsel %vm3766, %v8394, 0.0
      %v8651 = vsel %vm3767, %v8395, 0.0
      %v8652 = vsel %vm3768, %v8396, 0.0
      %v8653 = vsel %vm3769, %v8397, 0.0
      %v8654 = vsel %vm3770, %v8398, 0.0
      %v8655 = vsel %vm3771, %v8399, 0.0
      %v8656 = vsel %vm3772, %v8400, 0.0
      %v8657 = vsel %vm3773, %v8401, 0.0
      %v8658 = vsel %vm3774, %v8402, 0.0
      %v8659 = vsel %vm3775, %v8403, 0.0
      %v8660 = vsel %vm3776, %v8404, 0.0
      %v8661 = vsel %vm3777, %v8405, 0.0
      %v8662 = vsel %vm3778, %v8406, 0.0
      %v8663 = vsel %vm3779, %v8407, 0.0
      %v8664 = vsel %vm3780, %v8408, 0.0
      %v8665 = vsel %vm3781, %v8409, 0.0
      %v8666 = vsel %vm3782, %v8410, 0.0
      %v8667 = vsel %vm3783, %v8411, 0.0
      %v8668 = vsel %vm3784, %v8412, 0.0
      %v8669 = vsel %vm3785, %v8413, 0.0
      %v8670 = vsel %vm3786, %v8414, 0.0
      %v8671 = vsel %vm3787, %v8415, 0.0
      %v8672 = vsel %vm3788, %v8416, 0.0
      %v8673 = vsel %vm3789, %v8417, 0.0
      %v8674 = vsel %vm3790, %v8418, 0.0
      %v8675 = vsel %vm3791, %v8419, 0.0
      %v8676 = vsel %vm3792, %v8420, 0.0
      %v8677 = vsel %vm3793, %v8421, 0.0
      %v8678 = vsel %vm3794, %v8422, 0.0
      %v8679 = vsel %vm3795, %v8423, 0.0
      %v8680 = vsel %vm3796, %v8424, 0.0
      %v8681 = vsel %vm3797, %v8425, 0.0
      %v8682 = vsel %vm3798, %v8426, 0.0
      %v8683 = vsel %vm3799, %v8427, 0.0
      %v8684 = vsel %vm3800, %v8428, 0.0
      %v8685 = vsel %vm3801, %v8429, 0.0
      %v8686 = vsel %vm3802, %v8430, 0.0
      %v8687 = vsel %vm3803, %v8431, 0.0
      %v8688 = vsel %vm3804, %v8432, 0.0
      %v8689 = vsel %vm3805, %v8433, 0.0
      %v8690 = vsel %vm3806, %v8434, 0.0
      %v8691 = vsel %vm3807, %v8435, 0.0
      %v8692 = vsel %vm3808, %v8436, 0.0
      %v8693 = vsel %vm3809, %v8437, 0.0
      %v8694 = vsel %vm3810, %v8438, 0.0
      %v8695 = vsel %vm3811, %v8439, 0.0
      %v8696 = vsel %vm3812, %v8440, 0.0
      %v8697 = vsel %vm3813, %v8441, 0.0
      %v8698 = vsel %vm3814, %v8442, 0.0
      %v8699 = vsel %vm3815, %v8443, 0.0
      %v8700 = vsel %vm3816, %v8444, 0.0
      %v8701 = vadd.f32 %v8445, %v8446
      %v8702 = vadd.f32 %v8701, %v8447
      %v8703 = vadd.f32 %v8702, %v8448
      %v8704 = vadd.f32 %v8703, %v8449
      %v8705 = vadd.f32 %v8704, %v8450
      %v8706 = vadd.f32 %v8705, %v8451
      %v8707 = vadd.f32 %v8706, %v8452
      %v8708 = vadd.f32 %v8707, %v8453
      %v8709 = vadd.f32 %v8708, %v8454
      %v8710 = vadd.f32 %v8709, %v8455
      %v8711 = vadd.f32 %v8710, %v8456
      %v8712 = vadd.f32 %v8711, %v8457
      %v8713 = vadd.f32 %v8712, %v8458
      %v8714 = vadd.f32 %v8713, %v8459
      %v8715 = vadd.f32 %v8714, %v8460
      %v8716 = vadd.f32 %v8715, %v8461
      %v8717 = vadd.f32 %v8716, %v8462
      %v8718 = vadd.f32 %v8717, %v8463
      %v8719 = vadd.f32 %v8718, %v8464
      %v8720 = vadd.f32 %v8719, %v8465
      %v8721 = vadd.f32 %v8720, %v8466
      %v8722 = vadd.f32 %v8721, %v8467
      %v8723 = vadd.f32 %v8722, %v8468
      %v8724 = vadd.f32 %v8723, %v8469
      %v8725 = vadd.f32 %v8724, %v8470
      %v8726 = vadd.f32 %v8725, %v8471
      %v8727 = vadd.f32 %v8726, %v8472
      %v8728 = vadd.f32 %v8727, %v8473
      %v8729 = vadd.f32 %v8728, %v8474
      %v8730 = vadd.f32 %v8729, %v8475
      %v8731 = vadd.f32 %v8730, %v8476
      %v8732 = vadd.f32 %v8731, %v8477
      %v8733 = vadd.f32 %v8732, %v8478
      %v8734 = vadd.f32 %v8733, %v8479
      %v8735 = vadd.f32 %v8734, %v8480
      %v8736 = vadd.f32 %v8735, %v8481
      %v8737 = vadd.f32 %v8736, %v8482
      %v8738 = vadd.f32 %v8737, %v8483
      %v8739 = vadd.f32 %v8738, %v8484
      %v8740 = vadd.f32 %v8739, %v8485
      %v8741 = vadd.f32 %v8740, %v8486
      %v8742 = vadd.f32 %v8741, %v8487
      %v8743 = vadd.f32 %v8742, %v8488
      %v8744 = vadd.f32 %v8743, %v8489
      %v8745 = vadd.f32 %v8744, %v8490
      %v8746 = vadd.f32 %v8745, %v8491
      %v8747 = vadd.f32 %v8746, %v8492
      %v8748 = vadd.f32 %v8747, %v8493
      %v8749 = vadd.f32 %v8748, %v8494
      %v8750 = vadd.f32 %v8749, %v8495
      %v8751 = vadd.f32 %v8750, %v8496
      %v8752 = vadd.f32 %v8751, %v8497
      %v8753 = vadd.f32 %v8752, %v8498
      %v8754 = vadd.f32 %v8753, %v8499
      %v8755 = vadd.f32 %v8754, %v8500
      %v8756 = vadd.f32 %v8755, %v8501
      %v8757 = vadd.f32 %v8756, %v8502
      %v8758 = vadd.f32 %v8757, %v8503
      %v8759 = vadd.f32 %v8758, %v8504
      %v8760 = vadd.f32 %v8759, %v8505
      %v8761 = vadd.f32 %v8760, %v8506
      %v8762 = vadd.f32 %v8761, %v8507
      %v8763 = vadd.f32 %v8762, %v8508
      %v8764 = vadd.f32 %v8763, %v8509
      %v8765 = vadd.f32 %v8764, %v8510
      %v8766 = vadd.f32 %v8765, %v8511
      %v8767 = vadd.f32 %v8766, %v8512
      %v8768 = vadd.f32 %v8767, %v8513
      %v8769 = vadd.f32 %v8768, %v8514
      %v8770 = vadd.f32 %v8769, %v8515
      %v8771 = vadd.f32 %v8770, %v8516
      %v8772 = vadd.f32 %v8771, %v8517
      %v8773 = vadd.f32 %v8772, %v8518
      %v8774 = vadd.f32 %v8773, %v8519
      %v8775 = vadd.f32 %v8774, %v8520
      %v8776 = vadd.f32 %v8775, %v8521
      %v8777 = vadd.f32 %v8776, %v8522
      %v8778 = vadd.f32 %v8777, %v8523
      %v8779 = vadd.f32 %v8778, %v8524
      %v8780 = vadd.f32 %v8779, %v8525
      %v8781 = vadd.f32 %v8780, %v8526
      %v8782 = vadd.f32 %v8781, %v8527
      %v8783 = vadd.f32 %v8782, %v8528
      %v8784 = vadd.f32 %v8783, %v8529
      %v8785 = vadd.f32 %v8784, %v8530
      %v8786 = vadd.f32 %v8785, %v8531
      %v8787 = vadd.f32 %v8786, %v8532
      %v8788 = vadd.f32 %v8787, %v8533
      %v8789 = vadd.f32 %v8788, %v8534
      %v8790 = vadd.f32 %v8789, %v8535
      %v8791 = vadd.f32 %v8790, %v8536
      %v8792 = vadd.f32 %v8791, %v8537
      %v8793 = vadd.f32 %v8792, %v8538
      %v8794 = vadd.f32 %v8793, %v8539
      %v8795 = vadd.f32 %v8794, %v8540
      %v8796 = vadd.f32 %v8795, %v8541
      %v8797 = vadd.f32 %v8796, %v8542
      %v8798 = vadd.f32 %v8797, %v8543
      %v8799 = vadd.f32 %v8798, %v8544
      %v8800 = vadd.f32 %v8799, %v8545
      %v8801 = vadd.f32 %v8800, %v8546
      %v8802 = vadd.f32 %v8801, %v8547
      %v8803 = vadd.f32 %v8802, %v8548
      %v8804 = vadd.f32 %v8803, %v8549
      %v8805 = vadd.f32 %v8804, %v8550
      %v8806 = vadd.f32 %v8805, %v8551
      %v8807 = vadd.f32 %v8806, %v8552
      %v8808 = vadd.f32 %v8807, %v8553
      %v8809 = vadd.f32 %v8808, %v8554
      %v8810 = vadd.f32 %v8809, %v8555
      %v8811 = vadd.f32 %v8810, %v8556
      %v8812 = vadd.f32 %v8811, %v8557
      %v8813 = vadd.f32 %v8812, %v8558
      %v8814 = vadd.f32 %v8813, %v8559
      %v8815 = vadd.f32 %v8814, %v8560
      %v8816 = vadd.f32 %v8815, %v8561
      %v8817 = vadd.f32 %v8816, %v8562
      %v8818 = vadd.f32 %v8817, %v8563
      %v8819 = vadd.f32 %v8818, %v8564
      %v8820 = vadd.f32 %v8819, %v8565
      %v8821 = vadd.f32 %v8820, %v8566
      %v8822 = vadd.f32 %v8821, %v8567
      %v8823 = vadd.f32 %v8822, %v8568
      %v8824 = vadd.f32 %v8823, %v8569
      %v8825 = vadd.f32 %v8824, %v8570
      %v8826 = vadd.f32 %v8825, %v8571
      %v8827 = vadd.f32 %v8826, %v8572
      %v8828 = vadd.f32 %v8827, %v8573
      %v8829 = vadd.f32 %v8828, %v8574
      %v8830 = vadd.f32 %v8829, %v8575
      %v8831 = vadd.f32 %v8830, %v8576
      %v8832 = vadd.f32 %v8831, %v8577
      %v8833 = vadd.f32 %v8832, %v8578
      %v8834 = vadd.f32 %v8833, %v8579
      %v8835 = vadd.f32 %v8834, %v8580
      %v8836 = vadd.f32 %v8835, %v8581
      %v8837 = vadd.f32 %v8836, %v8582
      %v8838 = vadd.f32 %v8837, %v8583
      %v8839 = vadd.f32 %v8838, %v8584
      %v8840 = vadd.f32 %v8839, %v8585
      %v8841 = vadd.f32 %v8840, %v8586
      %v8842 = vadd.f32 %v8841, %v8587
      %v8843 = vadd.f32 %v8842, %v8588
      %v8844 = vadd.f32 %v8843, %v8589
      %v8845 = vadd.f32 %v8844, %v8590
      %v8846 = vadd.f32 %v8845, %v8591
      %v8847 = vadd.f32 %v8846, %v8592
      %v8848 = vadd.f32 %v8847, %v8593
      %v8849 = vadd.f32 %v8848, %v8594
      %v8850 = vadd.f32 %v8849, %v8595
      %v8851 = vadd.f32 %v8850, %v8596
      %v8852 = vadd.f32 %v8851, %v8597
      %v8853 = vadd.f32 %v8852, %v8598
      %v8854 = vadd.f32 %v8853, %v8599
      %v8855 = vadd.f32 %v8854, %v8600
      %v8856 = vadd.f32 %v8855, %v8601
      %v8857 = vadd.f32 %v8856, %v8602
      %v8858 = vadd.f32 %v8857, %v8603
      %v8859 = vadd.f32 %v8858, %v8604
      %v8860 = vadd.f32 %v8859, %v8605
      %v8861 = vadd.f32 %v8860, %v8606
      %v8862 = vadd.f32 %v8861, %v8607
      %v8863 = vadd.f32 %v8862, %v8608
      %v8864 = vadd.f32 %v8863, %v8609
      %v8865 = vadd.f32 %v8864, %v8610
      %v8866 = vadd.f32 %v8865, %v8611
      %v8867 = vadd.f32 %v8866, %v8612
      %v8868 = vadd.f32 %v8867, %v8613
      %v8869 = vadd.f32 %v8868, %v8614
      %v8870 = vadd.f32 %v8869, %v8615
      %v8871 = vadd.f32 %v8870, %v8616
      %v8872 = vadd.f32 %v8871, %v8617
      %v8873 = vadd.f32 %v8872, %v8618
      %v8874 = vadd.f32 %v8873, %v8619
      %v8875 = vadd.f32 %v8874, %v8620
      %v8876 = vadd.f32 %v8875, %v8621
      %v8877 = vadd.f32 %v8876, %v8622
      %v8878 = vadd.f32 %v8877, %v8623
      %v8879 = vadd.f32 %v8878, %v8624
      %v8880 = vadd.f32 %v8879, %v8625
      %v8881 = vadd.f32 %v8880, %v8626
      %v8882 = vadd.f32 %v8881, %v8627
      %v8883 = vadd.f32 %v8882, %v8628
      %v8884 = vadd.f32 %v8883, %v8629
      %v8885 = vadd.f32 %v8884, %v8630
      %v8886 = vadd.f32 %v8885, %v8631
      %v8887 = vadd.f32 %v8886, %v8632
      %v8888 = vadd.f32 %v8887, %v8633
      %v8889 = vadd.f32 %v8888, %v8634
      %v8890 = vadd.f32 %v8889, %v8635
      %v8891 = vadd.f32 %v8890, %v8636
      %v8892 = vadd.f32 %v8891, %v8637
      %v8893 = vadd.f32 %v8892, %v8638
      %v8894 = vadd.f32 %v8893, %v8639
      %v8895 = vadd.f32 %v8894, %v8640
      %v8896 = vadd.f32 %v8895, %v8641
      %v8897 = vadd.f32 %v8896, %v8642
      %v8898 = vadd.f32 %v8897, %v8643
      %v8899 = vadd.f32 %v8898, %v8644
      %v8900 = vadd.f32 %v8899, %v8645
      %v8901 = vadd.f32 %v8900, %v8646
      %v8902 = vadd.f32 %v8901, %v8647
      %v8903 = vadd.f32 %v8902, %v8648
      %v8904 = vadd.f32 %v8903, %v8649
      %v8905 = vadd.f32 %v8904, %v8650
      %v8906 = vadd.f32 %v8905, %v8651
      %v8907 = vadd.f32 %v8906, %v8652
      %v8908 = vadd.f32 %v8907, %v8653
      %v8909 = vadd.f32 %v8908, %v8654
      %v8910 = vadd.f32 %v8909, %v8655
      %v8911 = vadd.f32 %v8910, %v8656
      %v8912 = vadd.f32 %v8911, %v8657
      %v8913 = vadd.f32 %v8912, %v8658
      %v8914 = vadd.f32 %v8913, %v8659
      %v8915 = vadd.f32 %v8914, %v8660
      %v8916 = vadd.f32 %v8915, %v8661
      %v8917 = vadd.f32 %v8916, %v8662
      %v8918 = vadd.f32 %v8917, %v8663
      %v8919 = vadd.f32 %v8918, %v8664
      %v8920 = vadd.f32 %v8919, %v8665
      %v8921 = vadd.f32 %v8920, %v8666
      %v8922 = vadd.f32 %v8921, %v8667
      %v8923 = vadd.f32 %v8922, %v8668
      %v8924 = vadd.f32 %v8923, %v8669
      %v8925 = vadd.f32 %v8924, %v8670
      %v8926 = vadd.f32 %v8925, %v8671
      %v8927 = vadd.f32 %v8926, %v8672
      %v8928 = vadd.f32 %v8927, %v8673
      %v8929 = vadd.f32 %v8928, %v8674
      %v8930 = vadd.f32 %v8929, %v8675
      %v8931 = vadd.f32 %v8930, %v8676
      %v8932 = vadd.f32 %v8931, %v8677
      %v8933 = vadd.f32 %v8932, %v8678
      %v8934 = vadd.f32 %v8933, %v8679
      %v8935 = vadd.f32 %v8934, %v8680
      %v8936 = vadd.f32 %v8935, %v8681
      %v8937 = vadd.f32 %v8936, %v8682
      %v8938 = vadd.f32 %v8937, %v8683
      %v8939 = vadd.f32 %v8938, %v8684
      %v8940 = vadd.f32 %v8939, %v8685
      %v8941 = vadd.f32 %v8940, %v8686
      %v8942 = vadd.f32 %v8941, %v8687
      %v8943 = vadd.f32 %v8942, %v8688
      %v8944 = vadd.f32 %v8943, %v8689
      %v8945 = vadd.f32 %v8944, %v8690
      %v8946 = vadd.f32 %v8945, %v8691
      %v8947 = vadd.f32 %v8946, %v8692
      %v8948 = vadd.f32 %v8947, %v8693
      %v8949 = vadd.f32 %v8948, %v8694
      %v8950 = vadd.f32 %v8949, %v8695
      %v8951 = vadd.f32 %v8950, %v8696
      %v8952 = vadd.f32 %v8951, %v8697
      %v8953 = vadd.f32 %v8952, %v8698
      %v8954 = vadd.f32 %v8953, %v8699
      %v8955 = vadd.f32 %v8954, %v8700
      %v8956 = vadd.f32 %v8188, %v8955
      %8957 = vst [vmem:[%s8187] sm:$0xff] %v8956
      %s8958 = scalar_lea.vmem %s408, 48
      %v8959 = vld [vmem:[%s8958] sm:$0xff]
      %v8960 = vmul.f32 %v4589, %v4589
      %v8961 = vmul.f32 %v4590, %v4590
      %v8962 = vmul.f32 %v4591, %v4591
      %v8963 = vmul.f32 %v4592, %v4592
      %v8964 = vmul.f32 %v4593, %v4593
      %v8965 = vmul.f32 %v4594, %v4594
      %v8966 = vmul.f32 %v4595, %v4595
      %v8967 = vmul.f32 %v4596, %v4596
      %v8968 = vmul.f32 %v4597, %v4597
      %v8969 = vmul.f32 %v4598, %v4598
      %v8970 = vmul.f32 %v4599, %v4599
      %v8971 = vmul.f32 %v4600, %v4600
      %v8972 = vmul.f32 %v4601, %v4601
      %v8973 = vmul.f32 %v4602, %v4602
      %v8974 = vmul.f32 %v4603, %v4603
      %v8975 = vmul.f32 %v4604, %v4604
      %v8976 = vmul.f32 %v4605, %v4605
      %v8977 = vmul.f32 %v4606, %v4606
      %v8978 = vmul.f32 %v4607, %v4607
      %v8979 = vmul.f32 %v4608, %v4608
      %v8980 = vmul.f32 %v4609, %v4609
      %v8981 = vmul.f32 %v4610, %v4610
      %v8982 = vmul.f32 %v4611, %v4611
      %v8983 = vmul.f32 %v4612, %v4612
      %v8984 = vmul.f32 %v4613, %v4613
      %v8985 = vmul.f32 %v4614, %v4614
      %v8986 = vmul.f32 %v4615, %v4615
      %v8987 = vmul.f32 %v4616, %v4616
      %v8988 = vmul.f32 %v4617, %v4617
      %v8989 = vmul.f32 %v4618, %v4618
      %v8990 = vmul.f32 %v4619, %v4619
      %v8991 = vmul.f32 %v4620, %v4620
      %v8992 = vmul.f32 %v4621, %v4621
      %v8993 = vmul.f32 %v4622, %v4622
      %v8994 = vmul.f32 %v4623, %v4623
      %v8995 = vmul.f32 %v4624, %v4624
      %v8996 = vmul.f32 %v4625, %v4625
      %v8997 = vmul.f32 %v4626, %v4626
      %v8998 = vmul.f32 %v4627, %v4627
      %v8999 = vmul.f32 %v4628, %v4628
      %v9000 = vmul.f32 %v4629, %v4629
      %v9001 = vmul.f32 %v4630, %v4630
      %v9002 = vmul.f32 %v4631, %v4631
      %v9003 = vmul.f32 %v4632, %v4632
      %v9004 = vmul.f32 %v4633, %v4633
      %v9005 = vmul.f32 %v4634, %v4634
      %v9006 = vmul.f32 %v4635, %v4635
      %v9007 = vmul.f32 %v4636, %v4636
      %v9008 = vmul.f32 %v4637, %v4637
      %v9009 = vmul.f32 %v4638, %v4638
      %v9010 = vmul.f32 %v4639, %v4639
      %v9011 = vmul.f32 %v4640, %v4640
      %v9012 = vmul.f32 %v4641, %v4641
      %v9013 = vmul.f32 %v4642, %v4642
      %v9014 = vmul.f32 %v4643, %v4643
      %v9015 = vmul.f32 %v4644, %v4644
      %v9016 = vmul.f32 %v4645, %v4645
      %v9017 = vmul.f32 %v4646, %v4646
      %v9018 = vmul.f32 %v4647, %v4647
      %v9019 = vmul.f32 %v4648, %v4648
      %v9020 = vmul.f32 %v4649, %v4649
      %v9021 = vmul.f32 %v4650, %v4650
      %v9022 = vmul.f32 %v4651, %v4651
      %v9023 = vmul.f32 %v4652, %v4652
      %v9024 = vmul.f32 %v4653, %v4653
      %v9025 = vmul.f32 %v4654, %v4654
      %v9026 = vmul.f32 %v4655, %v4655
      %v9027 = vmul.f32 %v4656, %v4656
      %v9028 = vmul.f32 %v4657, %v4657
      %v9029 = vmul.f32 %v4658, %v4658
      %v9030 = vmul.f32 %v4659, %v4659
      %v9031 = vmul.f32 %v4660, %v4660
      %v9032 = vmul.f32 %v4661, %v4661
      %v9033 = vmul.f32 %v4662, %v4662
      %v9034 = vmul.f32 %v4663, %v4663
      %v9035 = vmul.f32 %v4664, %v4664
      %v9036 = vmul.f32 %v4665, %v4665
      %v9037 = vmul.f32 %v4666, %v4666
      %v9038 = vmul.f32 %v4667, %v4667
      %v9039 = vmul.f32 %v4668, %v4668
      %v9040 = vmul.f32 %v4669, %v4669
      %v9041 = vmul.f32 %v4670, %v4670
      %v9042 = vmul.f32 %v4671, %v4671
      %v9043 = vmul.f32 %v4672, %v4672
      %v9044 = vmul.f32 %v4673, %v4673
      %v9045 = vmul.f32 %v4674, %v4674
      %v9046 = vmul.f32 %v4675, %v4675
      %v9047 = vmul.f32 %v4676, %v4676
      %v9048 = vmul.f32 %v4677, %v4677
      %v9049 = vmul.f32 %v4678, %v4678
      %v9050 = vmul.f32 %v4679, %v4679
      %v9051 = vmul.f32 %v4680, %v4680
      %v9052 = vmul.f32 %v4681, %v4681
      %v9053 = vmul.f32 %v4682, %v4682
      %v9054 = vmul.f32 %v4683, %v4683
      %v9055 = vmul.f32 %v4684, %v4684
      %v9056 = vmul.f32 %v4685, %v4685
      %v9057 = vmul.f32 %v4686, %v4686
      %v9058 = vmul.f32 %v4687, %v4687
      %v9059 = vmul.f32 %v4688, %v4688
      %v9060 = vmul.f32 %v4689, %v4689
      %v9061 = vmul.f32 %v4690, %v4690
      %v9062 = vmul.f32 %v4691, %v4691
      %v9063 = vmul.f32 %v4692, %v4692
      %v9064 = vmul.f32 %v4693, %v4693
      %v9065 = vmul.f32 %v4694, %v4694
      %v9066 = vmul.f32 %v4695, %v4695
      %v9067 = vmul.f32 %v4696, %v4696
      %v9068 = vmul.f32 %v4697, %v4697
      %v9069 = vmul.f32 %v4698, %v4698
      %v9070 = vmul.f32 %v4699, %v4699
      %v9071 = vmul.f32 %v4700, %v4700
      %v9072 = vmul.f32 %v4701, %v4701
      %v9073 = vmul.f32 %v4702, %v4702
      %v9074 = vmul.f32 %v4703, %v4703
      %v9075 = vmul.f32 %v4704, %v4704
      %v9076 = vmul.f32 %v4705, %v4705
      %v9077 = vmul.f32 %v4706, %v4706
      %v9078 = vmul.f32 %v4707, %v4707
      %v9079 = vmul.f32 %v4708, %v4708
      %v9080 = vmul.f32 %v4709, %v4709
      %v9081 = vmul.f32 %v4710, %v4710
      %v9082 = vmul.f32 %v4711, %v4711
      %v9083 = vmul.f32 %v4712, %v4712
      %v9084 = vmul.f32 %v4713, %v4713
      %v9085 = vmul.f32 %v4714, %v4714
      %v9086 = vmul.f32 %v4715, %v4715
      %v9087 = vmul.f32 %v4716, %v4716
      %v9088 = vmul.f32 %v4717, %v4717
      %v9089 = vmul.f32 %v4718, %v4718
      %v9090 = vmul.f32 %v4719, %v4719
      %v9091 = vmul.f32 %v4720, %v4720
      %v9092 = vmul.f32 %v4721, %v4721
      %v9093 = vmul.f32 %v4722, %v4722
      %v9094 = vmul.f32 %v4723, %v4723
      %v9095 = vmul.f32 %v4724, %v4724
      %v9096 = vmul.f32 %v4725, %v4725
      %v9097 = vmul.f32 %v4726, %v4726
      %v9098 = vmul.f32 %v4727, %v4727
      %v9099 = vmul.f32 %v4728, %v4728
      %v9100 = vmul.f32 %v4729, %v4729
      %v9101 = vmul.f32 %v4730, %v4730
      %v9102 = vmul.f32 %v4731, %v4731
      %v9103 = vmul.f32 %v4732, %v4732
      %v9104 = vmul.f32 %v4733, %v4733
      %v9105 = vmul.f32 %v4734, %v4734
      %v9106 = vmul.f32 %v4735, %v4735
      %v9107 = vmul.f32 %v4736, %v4736
      %v9108 = vmul.f32 %v4737, %v4737
      %v9109 = vmul.f32 %v4738, %v4738
      %v9110 = vmul.f32 %v4739, %v4739
      %v9111 = vmul.f32 %v4740, %v4740
      %v9112 = vmul.f32 %v4741, %v4741
      %v9113 = vmul.f32 %v4742, %v4742
      %v9114 = vmul.f32 %v4743, %v4743
      %v9115 = vmul.f32 %v4744, %v4744
      %v9116 = vmul.f32 %v4745, %v4745
      %v9117 = vmul.f32 %v4746, %v4746
      %v9118 = vmul.f32 %v4747, %v4747
      %v9119 = vmul.f32 %v4748, %v4748
      %v9120 = vmul.f32 %v4749, %v4749
      %v9121 = vmul.f32 %v4750, %v4750
      %v9122 = vmul.f32 %v4751, %v4751
      %v9123 = vmul.f32 %v4752, %v4752
      %v9124 = vmul.f32 %v4753, %v4753
      %v9125 = vmul.f32 %v4754, %v4754
      %v9126 = vmul.f32 %v4755, %v4755
      %v9127 = vmul.f32 %v4756, %v4756
      %v9128 = vmul.f32 %v4757, %v4757
      %v9129 = vmul.f32 %v4758, %v4758
      %v9130 = vmul.f32 %v4759, %v4759
      %v9131 = vmul.f32 %v4760, %v4760
      %v9132 = vmul.f32 %v4761, %v4761
      %v9133 = vmul.f32 %v4762, %v4762
      %v9134 = vmul.f32 %v4763, %v4763
      %v9135 = vmul.f32 %v4764, %v4764
      %v9136 = vmul.f32 %v4765, %v4765
      %v9137 = vmul.f32 %v4766, %v4766
      %v9138 = vmul.f32 %v4767, %v4767
      %v9139 = vmul.f32 %v4768, %v4768
      %v9140 = vmul.f32 %v4769, %v4769
      %v9141 = vmul.f32 %v4770, %v4770
      %v9142 = vmul.f32 %v4771, %v4771
      %v9143 = vmul.f32 %v4772, %v4772
      %v9144 = vmul.f32 %v4773, %v4773
      %v9145 = vmul.f32 %v4774, %v4774
      %v9146 = vmul.f32 %v4775, %v4775
      %v9147 = vmul.f32 %v4776, %v4776
      %v9148 = vmul.f32 %v4777, %v4777
      %v9149 = vmul.f32 %v4778, %v4778
      %v9150 = vmul.f32 %v4779, %v4779
      %v9151 = vmul.f32 %v4780, %v4780
      %v9152 = vmul.f32 %v4781, %v4781
      %v9153 = vmul.f32 %v4782, %v4782
      %v9154 = vmul.f32 %v4783, %v4783
      %v9155 = vmul.f32 %v4784, %v4784
      %v9156 = vmul.f32 %v4785, %v4785
      %v9157 = vmul.f32 %v4786, %v4786
      %v9158 = vmul.f32 %v4787, %v4787
      %v9159 = vmul.f32 %v4788, %v4788
      %v9160 = vmul.f32 %v4789, %v4789
      %v9161 = vmul.f32 %v4790, %v4790
      %v9162 = vmul.f32 %v4791, %v4791
      %v9163 = vmul.f32 %v4792, %v4792
      %v9164 = vmul.f32 %v4793, %v4793
      %v9165 = vmul.f32 %v4794, %v4794
      %v9166 = vmul.f32 %v4795, %v4795
      %v9167 = vmul.f32 %v4796, %v4796
      %v9168 = vmul.f32 %v4797, %v4797
      %v9169 = vmul.f32 %v4798, %v4798
      %v9170 = vmul.f32 %v4799, %v4799
      %v9171 = vmul.f32 %v4800, %v4800
      %v9172 = vmul.f32 %v4801, %v4801
      %v9173 = vmul.f32 %v4802, %v4802
      %v9174 = vmul.f32 %v4803, %v4803
      %v9175 = vmul.f32 %v4804, %v4804
      %v9176 = vmul.f32 %v4805, %v4805
      %v9177 = vmul.f32 %v4806, %v4806
      %v9178 = vmul.f32 %v4807, %v4807
      %v9179 = vmul.f32 %v4808, %v4808
      %v9180 = vmul.f32 %v4809, %v4809
      %v9181 = vmul.f32 %v4810, %v4810
      %v9182 = vmul.f32 %v4811, %v4811
      %v9183 = vmul.f32 %v4812, %v4812
      %v9184 = vmul.f32 %v4813, %v4813
      %v9185 = vmul.f32 %v4814, %v4814
      %v9186 = vmul.f32 %v4815, %v4815
      %v9187 = vmul.f32 %v4816, %v4816
      %v9188 = vmul.f32 %v4817, %v4817
      %v9189 = vmul.f32 %v4818, %v4818
      %v9190 = vmul.f32 %v4819, %v4819
      %v9191 = vmul.f32 %v4820, %v4820
      %v9192 = vmul.f32 %v4821, %v4821
      %v9193 = vmul.f32 %v4822, %v4822
      %v9194 = vmul.f32 %v4823, %v4823
      %v9195 = vmul.f32 %v4824, %v4824
      %v9196 = vmul.f32 %v4825, %v4825
      %v9197 = vmul.f32 %v4826, %v4826
      %v9198 = vmul.f32 %v4827, %v4827
      %v9199 = vmul.f32 %v4828, %v4828
      %v9200 = vmul.f32 %v4829, %v4829
      %v9201 = vmul.f32 %v4830, %v4830
      %v9202 = vmul.f32 %v4831, %v4831
      %v9203 = vmul.f32 %v4832, %v4832
      %v9204 = vmul.f32 %v4833, %v4833
      %v9205 = vmul.f32 %v4834, %v4834
      %v9206 = vmul.f32 %v4835, %v4835
      %v9207 = vmul.f32 %v4836, %v4836
      %v9208 = vmul.f32 %v4837, %v4837
      %v9209 = vmul.f32 %v4838, %v4838
      %v9210 = vmul.f32 %v4839, %v4839
      %v9211 = vmul.f32 %v4840, %v4840
      %v9212 = vmul.f32 %v4841, %v4841
      %v9213 = vmul.f32 %v4842, %v4842
      %v9214 = vmul.f32 %v4843, %v4843
      %v9215 = vmul.f32 %v4844, %v4844
      %v9216 = vsel %vm3049, %v8960, 0.0
      %v9217 = vsel %vm3050, %v8961, 0.0
      %v9218 = vsel %vm3051, %v8962, 0.0
      %v9219 = vsel %vm3052, %v8963, 0.0
      %v9220 = vsel %vm3053, %v8964, 0.0
      %v9221 = vsel %vm3054, %v8965, 0.0
      %v9222 = vsel %vm3055, %v8966, 0.0
      %v9223 = vsel %vm3056, %v8967, 0.0
      %v9224 = vsel %vm3057, %v8968, 0.0
      %v9225 = vsel %vm3058, %v8969, 0.0
      %v9226 = vsel %vm3059, %v8970, 0.0
      %v9227 = vsel %vm3060, %v8971, 0.0
      %v9228 = vsel %vm3061, %v8972, 0.0
      %v9229 = vsel %vm3062, %v8973, 0.0
      %v9230 = vsel %vm3063, %v8974, 0.0
      %v9231 = vsel %vm3064, %v8975, 0.0
      %v9232 = vsel %vm3065, %v8976, 0.0
      %v9233 = vsel %vm3066, %v8977, 0.0
      %v9234 = vsel %vm3067, %v8978, 0.0
      %v9235 = vsel %vm3068, %v8979, 0.0
      %v9236 = vsel %vm3069, %v8980, 0.0
      %v9237 = vsel %vm3070, %v8981, 0.0
      %v9238 = vsel %vm3071, %v8982, 0.0
      %v9239 = vsel %vm3072, %v8983, 0.0
      %v9240 = vsel %vm3073, %v8984, 0.0
      %v9241 = vsel %vm3074, %v8985, 0.0
      %v9242 = vsel %vm3075, %v8986, 0.0
      %v9243 = vsel %vm3076, %v8987, 0.0
      %v9244 = vsel %vm3077, %v8988, 0.0
      %v9245 = vsel %vm3078, %v8989, 0.0
      %v9246 = vsel %vm3079, %v8990, 0.0
      %v9247 = vsel %vm3080, %v8991, 0.0
      %v9248 = vsel %vm3081, %v8992, 0.0
      %v9249 = vsel %vm3082, %v8993, 0.0
      %v9250 = vsel %vm3083, %v8994, 0.0
      %v9251 = vsel %vm3084, %v8995, 0.0
      %v9252 = vsel %vm3085, %v8996, 0.0
      %v9253 = vsel %vm3086, %v8997, 0.0
      %v9254 = vsel %vm3087, %v8998, 0.0
      %v9255 = vsel %vm3088, %v8999, 0.0
      %v9256 = vsel %vm3089, %v9000, 0.0
      %v9257 = vsel %vm3090, %v9001, 0.0
      %v9258 = vsel %vm3091, %v9002, 0.0
      %v9259 = vsel %vm3092, %v9003, 0.0
      %v9260 = vsel %vm3093, %v9004, 0.0
      %v9261 = vsel %vm3094, %v9005, 0.0
      %v9262 = vsel %vm3095, %v9006, 0.0
      %v9263 = vsel %vm3096, %v9007, 0.0
      %v9264 = vsel %vm3097, %v9008, 0.0
      %v9265 = vsel %vm3098, %v9009, 0.0
      %v9266 = vsel %vm3099, %v9010, 0.0
      %v9267 = vsel %vm3100, %v9011, 0.0
      %v9268 = vsel %vm3101, %v9012, 0.0
      %v9269 = vsel %vm3102, %v9013, 0.0
      %v9270 = vsel %vm3103, %v9014, 0.0
      %v9271 = vsel %vm3104, %v9015, 0.0
      %v9272 = vsel %vm3105, %v9016, 0.0
      %v9273 = vsel %vm3106, %v9017, 0.0
      %v9274 = vsel %vm3107, %v9018, 0.0
      %v9275 = vsel %vm3108, %v9019, 0.0
      %v9276 = vsel %vm3109, %v9020, 0.0
      %v9277 = vsel %vm3110, %v9021, 0.0
      %v9278 = vsel %vm3111, %v9022, 0.0
      %v9279 = vsel %vm3112, %v9023, 0.0
      %v9280 = vsel %vm3113, %v9024, 0.0
      %v9281 = vsel %vm3114, %v9025, 0.0
      %v9282 = vsel %vm3115, %v9026, 0.0
      %v9283 = vsel %vm3116, %v9027, 0.0
      %v9284 = vsel %vm3117, %v9028, 0.0
      %v9285 = vsel %vm3118, %v9029, 0.0
      %v9286 = vsel %vm3119, %v9030, 0.0
      %v9287 = vsel %vm3120, %v9031, 0.0
      %v9288 = vsel %vm3121, %v9032, 0.0
      %v9289 = vsel %vm3122, %v9033, 0.0
      %v9290 = vsel %vm3123, %v9034, 0.0
      %v9291 = vsel %vm3124, %v9035, 0.0
      %v9292 = vsel %vm3125, %v9036, 0.0
      %v9293 = vsel %vm3126, %v9037, 0.0
      %v9294 = vsel %vm3127, %v9038, 0.0
      %v9295 = vsel %vm3128, %v9039, 0.0
      %v9296 = vsel %vm3129, %v9040, 0.0
      %v9297 = vsel %vm3130, %v9041, 0.0
      %v9298 = vsel %vm3131, %v9042, 0.0
      %v9299 = vsel %vm3132, %v9043, 0.0
      %v9300 = vsel %vm3133, %v9044, 0.0
      %v9301 = vsel %vm3134, %v9045, 0.0
      %v9302 = vsel %vm3135, %v9046, 0.0
      %v9303 = vsel %vm3136, %v9047, 0.0
      %v9304 = vsel %vm3137, %v9048, 0.0
      %v9305 = vsel %vm3138, %v9049, 0.0
      %v9306 = vsel %vm3139, %v9050, 0.0
      %v9307 = vsel %vm3140, %v9051, 0.0
      %v9308 = vsel %vm3141, %v9052, 0.0
      %v9309 = vsel %vm3142, %v9053, 0.0
      %v9310 = vsel %vm3143, %v9054, 0.0
      %v9311 = vsel %vm3144, %v9055, 0.0
      %v9312 = vsel %vm3145, %v9056, 0.0
      %v9313 = vsel %vm3146, %v9057, 0.0
      %v9314 = vsel %vm3147, %v9058, 0.0
      %v9315 = vsel %vm3148, %v9059, 0.0
      %v9316 = vsel %vm3149, %v9060, 0.0
      %v9317 = vsel %vm3150, %v9061, 0.0
      %v9318 = vsel %vm3151, %v9062, 0.0
      %v9319 = vsel %vm3152, %v9063, 0.0
      %v9320 = vsel %vm3153, %v9064, 0.0
      %v9321 = vsel %vm3154, %v9065, 0.0
      %v9322 = vsel %vm3155, %v9066, 0.0
      %v9323 = vsel %vm3156, %v9067, 0.0
      %v9324 = vsel %vm3157, %v9068, 0.0
      %v9325 = vsel %vm3158, %v9069, 0.0
      %v9326 = vsel %vm3159, %v9070, 0.0
      %v9327 = vsel %vm3160, %v9071, 0.0
      %v9328 = vsel %vm3161, %v9072, 0.0
      %v9329 = vsel %vm3162, %v9073, 0.0
      %v9330 = vsel %vm3163, %v9074, 0.0
      %v9331 = vsel %vm3164, %v9075, 0.0
      %v9332 = vsel %vm3165, %v9076, 0.0
      %v9333 = vsel %vm3166, %v9077, 0.0
      %v9334 = vsel %vm3167, %v9078, 0.0
      %v9335 = vsel %vm3168, %v9079, 0.0
      %v9336 = vsel %vm3169, %v9080, 0.0
      %v9337 = vsel %vm3170, %v9081, 0.0
      %v9338 = vsel %vm3171, %v9082, 0.0
      %v9339 = vsel %vm3172, %v9083, 0.0
      %v9340 = vsel %vm3173, %v9084, 0.0
      %v9341 = vsel %vm3174, %v9085, 0.0
      %v9342 = vsel %vm3175, %v9086, 0.0
      %v9343 = vsel %vm3176, %v9087, 0.0
      %v9344 = vsel %vm3177, %v9088, 0.0
      %v9345 = vsel %vm3178, %v9089, 0.0
      %v9346 = vsel %vm3179, %v9090, 0.0
      %v9347 = vsel %vm3180, %v9091, 0.0
      %v9348 = vsel %vm3181, %v9092, 0.0
      %v9349 = vsel %vm3182, %v9093, 0.0
      %v9350 = vsel %vm3183, %v9094, 0.0
      %v9351 = vsel %vm3184, %v9095, 0.0
      %v9352 = vsel %vm3185, %v9096, 0.0
      %v9353 = vsel %vm3186, %v9097, 0.0
      %v9354 = vsel %vm3187, %v9098, 0.0
      %v9355 = vsel %vm3188, %v9099, 0.0
      %v9356 = vsel %vm3189, %v9100, 0.0
      %v9357 = vsel %vm3190, %v9101, 0.0
      %v9358 = vsel %vm3191, %v9102, 0.0
      %v9359 = vsel %vm3192, %v9103, 0.0
      %v9360 = vsel %vm3193, %v9104, 0.0
      %v9361 = vsel %vm3194, %v9105, 0.0
      %v9362 = vsel %vm3195, %v9106, 0.0
      %v9363 = vsel %vm3196, %v9107, 0.0
      %v9364 = vsel %vm3197, %v9108, 0.0
      %v9365 = vsel %vm3198, %v9109, 0.0
      %v9366 = vsel %vm3199, %v9110, 0.0
      %v9367 = vsel %vm3200, %v9111, 0.0
      %v9368 = vsel %vm3201, %v9112, 0.0
      %v9369 = vsel %vm3202, %v9113, 0.0
      %v9370 = vsel %vm3203, %v9114, 0.0
      %v9371 = vsel %vm3204, %v9115, 0.0
      %v9372 = vsel %vm3205, %v9116, 0.0
      %v9373 = vsel %vm3206, %v9117, 0.0
      %v9374 = vsel %vm3207, %v9118, 0.0
      %v9375 = vsel %vm3208, %v9119, 0.0
      %v9376 = vsel %vm3209, %v9120, 0.0
      %v9377 = vsel %vm3210, %v9121, 0.0
      %v9378 = vsel %vm3211, %v9122, 0.0
      %v9379 = vsel %vm3212, %v9123, 0.0
      %v9380 = vsel %vm3213, %v9124, 0.0
      %v9381 = vsel %vm3214, %v9125, 0.0
      %v9382 = vsel %vm3215, %v9126, 0.0
      %v9383 = vsel %vm3216, %v9127, 0.0
      %v9384 = vsel %vm3217, %v9128, 0.0
      %v9385 = vsel %vm3218, %v9129, 0.0
      %v9386 = vsel %vm3219, %v9130, 0.0
      %v9387 = vsel %vm3220, %v9131, 0.0
      %v9388 = vsel %vm3221, %v9132, 0.0
      %v9389 = vsel %vm3222, %v9133, 0.0
      %v9390 = vsel %vm3223, %v9134, 0.0
      %v9391 = vsel %vm3224, %v9135, 0.0
      %v9392 = vsel %vm3225, %v9136, 0.0
      %v9393 = vsel %vm3226, %v9137, 0.0
      %v9394 = vsel %vm3227, %v9138, 0.0
      %v9395 = vsel %vm3228, %v9139, 0.0
      %v9396 = vsel %vm3229, %v9140, 0.0
      %v9397 = vsel %vm3230, %v9141, 0.0
      %v9398 = vsel %vm3231, %v9142, 0.0
      %v9399 = vsel %vm3232, %v9143, 0.0
      %v9400 = vsel %vm3233, %v9144, 0.0
      %v9401 = vsel %vm3234, %v9145, 0.0
      %v9402 = vsel %vm3235, %v9146, 0.0
      %v9403 = vsel %vm3236, %v9147, 0.0
      %v9404 = vsel %vm3237, %v9148, 0.0
      %v9405 = vsel %vm3238, %v9149, 0.0
      %v9406 = vsel %vm3239, %v9150, 0.0
      %v9407 = vsel %vm3240, %v9151, 0.0
      %v9408 = vsel %vm3241, %v9152, 0.0
      %v9409 = vsel %vm3242, %v9153, 0.0
      %v9410 = vsel %vm3243, %v9154, 0.0
      %v9411 = vsel %vm3244, %v9155, 0.0
      %v9412 = vsel %vm3245, %v9156, 0.0
      %v9413 = vsel %vm3246, %v9157, 0.0
      %v9414 = vsel %vm3247, %v9158, 0.0
      %v9415 = vsel %vm3248, %v9159, 0.0
      %v9416 = vsel %vm3249, %v9160, 0.0
      %v9417 = vsel %vm3250, %v9161, 0.0
      %v9418 = vsel %vm3251, %v9162, 0.0
      %v9419 = vsel %vm3252, %v9163, 0.0
      %v9420 = vsel %vm3253, %v9164, 0.0
      %v9421 = vsel %vm3254, %v9165, 0.0
      %v9422 = vsel %vm3255, %v9166, 0.0
      %v9423 = vsel %vm3256, %v9167, 0.0
      %v9424 = vsel %vm3257, %v9168, 0.0
      %v9425 = vsel %vm3258, %v9169, 0.0
      %v9426 = vsel %vm3259, %v9170, 0.0
      %v9427 = vsel %vm3260, %v9171, 0.0
      %v9428 = vsel %vm3261, %v9172, 0.0
      %v9429 = vsel %vm3262, %v9173, 0.0
      %v9430 = vsel %vm3263, %v9174, 0.0
      %v9431 = vsel %vm3264, %v9175, 0.0
      %v9432 = vsel %vm3265, %v9176, 0.0
      %v9433 = vsel %vm3266, %v9177, 0.0
      %v9434 = vsel %vm3267, %v9178, 0.0
      %v9435 = vsel %vm3268, %v9179, 0.0
      %v9436 = vsel %vm3269, %v9180, 0.0
      %v9437 = vsel %vm3270, %v9181, 0.0
      %v9438 = vsel %vm3271, %v9182, 0.0
      %v9439 = vsel %vm3272, %v9183, 0.0
      %v9440 = vsel %vm3273, %v9184, 0.0
      %v9441 = vsel %vm3274, %v9185, 0.0
      %v9442 = vsel %vm3275, %v9186, 0.0
      %v9443 = vsel %vm3276, %v9187, 0.0
      %v9444 = vsel %vm3277, %v9188, 0.0
      %v9445 = vsel %vm3278, %v9189, 0.0
      %v9446 = vsel %vm3279, %v9190, 0.0
      %v9447 = vsel %vm3280, %v9191, 0.0
      %v9448 = vsel %vm3281, %v9192, 0.0
      %v9449 = vsel %vm3282, %v9193, 0.0
      %v9450 = vsel %vm3283, %v9194, 0.0
      %v9451 = vsel %vm3284, %v9195, 0.0
      %v9452 = vsel %vm3285, %v9196, 0.0
      %v9453 = vsel %vm3286, %v9197, 0.0
      %v9454 = vsel %vm3287, %v9198, 0.0
      %v9455 = vsel %vm3288, %v9199, 0.0
      %v9456 = vsel %vm3289, %v9200, 0.0
      %v9457 = vsel %vm3290, %v9201, 0.0
      %v9458 = vsel %vm3291, %v9202, 0.0
      %v9459 = vsel %vm3292, %v9203, 0.0
      %v9460 = vsel %vm3293, %v9204, 0.0
      %v9461 = vsel %vm3294, %v9205, 0.0
      %v9462 = vsel %vm3295, %v9206, 0.0
      %v9463 = vsel %vm3296, %v9207, 0.0
      %v9464 = vsel %vm3297, %v9208, 0.0
      %v9465 = vsel %vm3298, %v9209, 0.0
      %v9466 = vsel %vm3299, %v9210, 0.0
      %v9467 = vsel %vm3300, %v9211, 0.0
      %v9468 = vsel %vm3301, %v9212, 0.0
      %v9469 = vsel %vm3302, %v9213, 0.0
      %v9470 = vsel %vm3303, %v9214, 0.0
      %v9471 = vsel %vm3304, %v9215, 0.0
      %v9472 = vadd.f32 %v9216, %v9217
      %v9473 = vadd.f32 %v9472, %v9218
      %v9474 = vadd.f32 %v9473, %v9219
      %v9475 = vadd.f32 %v9474, %v9220
      %v9476 = vadd.f32 %v9475, %v9221
      %v9477 = vadd.f32 %v9476, %v9222
      %v9478 = vadd.f32 %v9477, %v9223
      %v9479 = vadd.f32 %v9478, %v9224
      %v9480 = vadd.f32 %v9479, %v9225
      %v9481 = vadd.f32 %v9480, %v9226
      %v9482 = vadd.f32 %v9481, %v9227
      %v9483 = vadd.f32 %v9482, %v9228
      %v9484 = vadd.f32 %v9483, %v9229
      %v9485 = vadd.f32 %v9484, %v9230
      %v9486 = vadd.f32 %v9485, %v9231
      %v9487 = vadd.f32 %v9486, %v9232
      %v9488 = vadd.f32 %v9487, %v9233
      %v9489 = vadd.f32 %v9488, %v9234
      %v9490 = vadd.f32 %v9489, %v9235
      %v9491 = vadd.f32 %v9490, %v9236
      %v9492 = vadd.f32 %v9491, %v9237
      %v9493 = vadd.f32 %v9492, %v9238
      %v9494 = vadd.f32 %v9493, %v9239
      %v9495 = vadd.f32 %v9494, %v9240
      %v9496 = vadd.f32 %v9495, %v9241
      %v9497 = vadd.f32 %v9496, %v9242
      %v9498 = vadd.f32 %v9497, %v9243
      %v9499 = vadd.f32 %v9498, %v9244
      %v9500 = vadd.f32 %v9499, %v9245
      %v9501 = vadd.f32 %v9500, %v9246
      %v9502 = vadd.f32 %v9501, %v9247
      %v9503 = vadd.f32 %v9502, %v9248
      %v9504 = vadd.f32 %v9503, %v9249
      %v9505 = vadd.f32 %v9504, %v9250
      %v9506 = vadd.f32 %v9505, %v9251
      %v9507 = vadd.f32 %v9506, %v9252
      %v9508 = vadd.f32 %v9507, %v9253
      %v9509 = vadd.f32 %v9508, %v9254
      %v9510 = vadd.f32 %v9509, %v9255
      %v9511 = vadd.f32 %v9510, %v9256
      %v9512 = vadd.f32 %v9511, %v9257
      %v9513 = vadd.f32 %v9512, %v9258
      %v9514 = vadd.f32 %v9513, %v9259
      %v9515 = vadd.f32 %v9514, %v9260
      %v9516 = vadd.f32 %v9515, %v9261
      %v9517 = vadd.f32 %v9516, %v9262
      %v9518 = vadd.f32 %v9517, %v9263
      %v9519 = vadd.f32 %v9518, %v9264
      %v9520 = vadd.f32 %v9519, %v9265
      %v9521 = vadd.f32 %v9520, %v9266
      %v9522 = vadd.f32 %v9521, %v9267
      %v9523 = vadd.f32 %v9522, %v9268
      %v9524 = vadd.f32 %v9523, %v9269
      %v9525 = vadd.f32 %v9524, %v9270
      %v9526 = vadd.f32 %v9525, %v9271
      %v9527 = vadd.f32 %v9526, %v9272
      %v9528 = vadd.f32 %v9527, %v9273
      %v9529 = vadd.f32 %v9528, %v9274
      %v9530 = vadd.f32 %v9529, %v9275
      %v9531 = vadd.f32 %v9530, %v9276
      %v9532 = vadd.f32 %v9531, %v9277
      %v9533 = vadd.f32 %v9532, %v9278
      %v9534 = vadd.f32 %v9533, %v9279
      %v9535 = vadd.f32 %v9534, %v9280
      %v9536 = vadd.f32 %v9535, %v9281
      %v9537 = vadd.f32 %v9536, %v9282
      %v9538 = vadd.f32 %v9537, %v9283
      %v9539 = vadd.f32 %v9538, %v9284
      %v9540 = vadd.f32 %v9539, %v9285
      %v9541 = vadd.f32 %v9540, %v9286
      %v9542 = vadd.f32 %v9541, %v9287
      %v9543 = vadd.f32 %v9542, %v9288
      %v9544 = vadd.f32 %v9543, %v9289
      %v9545 = vadd.f32 %v9544, %v9290
      %v9546 = vadd.f32 %v9545, %v9291
      %v9547 = vadd.f32 %v9546, %v9292
      %v9548 = vadd.f32 %v9547, %v9293
      %v9549 = vadd.f32 %v9548, %v9294
      %v9550 = vadd.f32 %v9549, %v9295
      %v9551 = vadd.f32 %v9550, %v9296
      %v9552 = vadd.f32 %v9551, %v9297
      %v9553 = vadd.f32 %v9552, %v9298
      %v9554 = vadd.f32 %v9553, %v9299
      %v9555 = vadd.f32 %v9554, %v9300
      %v9556 = vadd.f32 %v9555, %v9301
      %v9557 = vadd.f32 %v9556, %v9302
      %v9558 = vadd.f32 %v9557, %v9303
      %v9559 = vadd.f32 %v9558, %v9304
      %v9560 = vadd.f32 %v9559, %v9305
      %v9561 = vadd.f32 %v9560, %v9306
      %v9562 = vadd.f32 %v9561, %v9307
      %v9563 = vadd.f32 %v9562, %v9308
      %v9564 = vadd.f32 %v9563, %v9309
      %v9565 = vadd.f32 %v9564, %v9310
      %v9566 = vadd.f32 %v9565, %v9311
      %v9567 = vadd.f32 %v9566, %v9312
      %v9568 = vadd.f32 %v9567, %v9313
      %v9569 = vadd.f32 %v9568, %v9314
      %v9570 = vadd.f32 %v9569, %v9315
      %v9571 = vadd.f32 %v9570, %v9316
      %v9572 = vadd.f32 %v9571, %v9317
      %v9573 = vadd.f32 %v9572, %v9318
      %v9574 = vadd.f32 %v9573, %v9319
      %v9575 = vadd.f32 %v9574, %v9320
      %v9576 = vadd.f32 %v9575, %v9321
      %v9577 = vadd.f32 %v9576, %v9322
      %v9578 = vadd.f32 %v9577, %v9323
      %v9579 = vadd.f32 %v9578, %v9324
      %v9580 = vadd.f32 %v9579, %v9325
      %v9581 = vadd.f32 %v9580, %v9326
      %v9582 = vadd.f32 %v9581, %v9327
      %v9583 = vadd.f32 %v9582, %v9328
      %v9584 = vadd.f32 %v9583, %v9329
      %v9585 = vadd.f32 %v9584, %v9330
      %v9586 = vadd.f32 %v9585, %v9331
      %v9587 = vadd.f32 %v9586, %v9332
      %v9588 = vadd.f32 %v9587, %v9333
      %v9589 = vadd.f32 %v9588, %v9334
      %v9590 = vadd.f32 %v9589, %v9335
      %v9591 = vadd.f32 %v9590, %v9336
      %v9592 = vadd.f32 %v9591, %v9337
      %v9593 = vadd.f32 %v9592, %v9338
      %v9594 = vadd.f32 %v9593, %v9339
      %v9595 = vadd.f32 %v9594, %v9340
      %v9596 = vadd.f32 %v9595, %v9341
      %v9597 = vadd.f32 %v9596, %v9342
      %v9598 = vadd.f32 %v9597, %v9343
      %v9599 = vadd.f32 %v9598, %v9344
      %v9600 = vadd.f32 %v9599, %v9345
      %v9601 = vadd.f32 %v9600, %v9346
      %v9602 = vadd.f32 %v9601, %v9347
      %v9603 = vadd.f32 %v9602, %v9348
      %v9604 = vadd.f32 %v9603, %v9349
      %v9605 = vadd.f32 %v9604, %v9350
      %v9606 = vadd.f32 %v9605, %v9351
      %v9607 = vadd.f32 %v9606, %v9352
      %v9608 = vadd.f32 %v9607, %v9353
      %v9609 = vadd.f32 %v9608, %v9354
      %v9610 = vadd.f32 %v9609, %v9355
      %v9611 = vadd.f32 %v9610, %v9356
      %v9612 = vadd.f32 %v9611, %v9357
      %v9613 = vadd.f32 %v9612, %v9358
      %v9614 = vadd.f32 %v9613, %v9359
      %v9615 = vadd.f32 %v9614, %v9360
      %v9616 = vadd.f32 %v9615, %v9361
      %v9617 = vadd.f32 %v9616, %v9362
      %v9618 = vadd.f32 %v9617, %v9363
      %v9619 = vadd.f32 %v9618, %v9364
      %v9620 = vadd.f32 %v9619, %v9365
      %v9621 = vadd.f32 %v9620, %v9366
      %v9622 = vadd.f32 %v9621, %v9367
      %v9623 = vadd.f32 %v9622, %v9368
      %v9624 = vadd.f32 %v9623, %v9369
      %v9625 = vadd.f32 %v9624, %v9370
      %v9626 = vadd.f32 %v9625, %v9371
      %v9627 = vadd.f32 %v9626, %v9372
      %v9628 = vadd.f32 %v9627, %v9373
      %v9629 = vadd.f32 %v9628, %v9374
      %v9630 = vadd.f32 %v9629, %v9375
      %v9631 = vadd.f32 %v9630, %v9376
      %v9632 = vadd.f32 %v9631, %v9377
      %v9633 = vadd.f32 %v9632, %v9378
      %v9634 = vadd.f32 %v9633, %v9379
      %v9635 = vadd.f32 %v9634, %v9380
      %v9636 = vadd.f32 %v9635, %v9381
      %v9637 = vadd.f32 %v9636, %v9382
      %v9638 = vadd.f32 %v9637, %v9383
      %v9639 = vadd.f32 %v9638, %v9384
      %v9640 = vadd.f32 %v9639, %v9385
      %v9641 = vadd.f32 %v9640, %v9386
      %v9642 = vadd.f32 %v9641, %v9387
      %v9643 = vadd.f32 %v9642, %v9388
      %v9644 = vadd.f32 %v9643, %v9389
      %v9645 = vadd.f32 %v9644, %v9390
      %v9646 = vadd.f32 %v9645, %v9391
      %v9647 = vadd.f32 %v9646, %v9392
      %v9648 = vadd.f32 %v9647, %v9393
      %v9649 = vadd.f32 %v9648, %v9394
      %v9650 = vadd.f32 %v9649, %v9395
      %v9651 = vadd.f32 %v9650, %v9396
      %v9652 = vadd.f32 %v9651, %v9397
      %v9653 = vadd.f32 %v9652, %v9398
      %v9654 = vadd.f32 %v9653, %v9399
      %v9655 = vadd.f32 %v9654, %v9400
      %v9656 = vadd.f32 %v9655, %v9401
      %v9657 = vadd.f32 %v9656, %v9402
      %v9658 = vadd.f32 %v9657, %v9403
      %v9659 = vadd.f32 %v9658, %v9404
      %v9660 = vadd.f32 %v9659, %v9405
      %v9661 = vadd.f32 %v9660, %v9406
      %v9662 = vadd.f32 %v9661, %v9407
      %v9663 = vadd.f32 %v9662, %v9408
      %v9664 = vadd.f32 %v9663, %v9409
      %v9665 = vadd.f32 %v9664, %v9410
      %v9666 = vadd.f32 %v9665, %v9411
      %v9667 = vadd.f32 %v9666, %v9412
      %v9668 = vadd.f32 %v9667, %v9413
      %v9669 = vadd.f32 %v9668, %v9414
      %v9670 = vadd.f32 %v9669, %v9415
      %v9671 = vadd.f32 %v9670, %v9416
      %v9672 = vadd.f32 %v9671, %v9417
      %v9673 = vadd.f32 %v9672, %v9418
      %v9674 = vadd.f32 %v9673, %v9419
      %v9675 = vadd.f32 %v9674, %v9420
      %v9676 = vadd.f32 %v9675, %v9421
      %v9677 = vadd.f32 %v9676, %v9422
      %v9678 = vadd.f32 %v9677, %v9423
      %v9679 = vadd.f32 %v9678, %v9424
      %v9680 = vadd.f32 %v9679, %v9425
      %v9681 = vadd.f32 %v9680, %v9426
      %v9682 = vadd.f32 %v9681, %v9427
      %v9683 = vadd.f32 %v9682, %v9428
      %v9684 = vadd.f32 %v9683, %v9429
      %v9685 = vadd.f32 %v9684, %v9430
      %v9686 = vadd.f32 %v9685, %v9431
      %v9687 = vadd.f32 %v9686, %v9432
      %v9688 = vadd.f32 %v9687, %v9433
      %v9689 = vadd.f32 %v9688, %v9434
      %v9690 = vadd.f32 %v9689, %v9435
      %v9691 = vadd.f32 %v9690, %v9436
      %v9692 = vadd.f32 %v9691, %v9437
      %v9693 = vadd.f32 %v9692, %v9438
      %v9694 = vadd.f32 %v9693, %v9439
      %v9695 = vadd.f32 %v9694, %v9440
      %v9696 = vadd.f32 %v9695, %v9441
      %v9697 = vadd.f32 %v9696, %v9442
      %v9698 = vadd.f32 %v9697, %v9443
      %v9699 = vadd.f32 %v9698, %v9444
      %v9700 = vadd.f32 %v9699, %v9445
      %v9701 = vadd.f32 %v9700, %v9446
      %v9702 = vadd.f32 %v9701, %v9447
      %v9703 = vadd.f32 %v9702, %v9448
      %v9704 = vadd.f32 %v9703, %v9449
      %v9705 = vadd.f32 %v9704, %v9450
      %v9706 = vadd.f32 %v9705, %v9451
      %v9707 = vadd.f32 %v9706, %v9452
      %v9708 = vadd.f32 %v9707, %v9453
      %v9709 = vadd.f32 %v9708, %v9454
      %v9710 = vadd.f32 %v9709, %v9455
      %v9711 = vadd.f32 %v9710, %v9456
      %v9712 = vadd.f32 %v9711, %v9457
      %v9713 = vadd.f32 %v9712, %v9458
      %v9714 = vadd.f32 %v9713, %v9459
      %v9715 = vadd.f32 %v9714, %v9460
      %v9716 = vadd.f32 %v9715, %v9461
      %v9717 = vadd.f32 %v9716, %v9462
      %v9718 = vadd.f32 %v9717, %v9463
      %v9719 = vadd.f32 %v9718, %v9464
      %v9720 = vadd.f32 %v9719, %v9465
      %v9721 = vadd.f32 %v9720, %v9466
      %v9722 = vadd.f32 %v9721, %v9467
      %v9723 = vadd.f32 %v9722, %v9468
      %v9724 = vadd.f32 %v9723, %v9469
      %v9725 = vadd.f32 %v9724, %v9470
      %v9726 = vadd.f32 %v9725, %v9471
      %v9727 = vadd.f32 %v8959, %v9726
      %9728 = vst [vmem:[%s8958] sm:$0xff] %v9727
      %p9729 = scmp.lt.s32.totalorder %s26, 1
      %s9730 = scalar_select %p9729, %s26, 1
      %s9731 = smul.addr %s9730, 7
      %s9732 = smul.addr %s9731, 8
      %s9733 = scalar_lea.vmem %s5, %s9732
      // Predicated region
      $region41: #{my_loss_no_sigmoid.1} parent=35 // pred_check
        %p9734 = pneg %p180
      $region42: #{my_loss_no_sigmoid.1} parent=35 // pred_check_branch
        %9736 = sbr.rel (%p9734) target = $region44
      $region43: #{my_loss_no_sigmoid.1} parent=35 // pred_region
        _
      $region44: #{my_loss_no_sigmoid.1} parent=35 // pred_fallthru
        _
    $region36: #{my_loss_no_sigmoid.1} parent=5 // pred_fallthru
      _
    %p9737 = scmp.le.s32.totalorder 2, %s17
    // Predicated region
    $region45: #{my_loss_no_sigmoid.1} parent=5 // pred_check
      %p9738 = pneg %p9737
    $region46: #{my_loss_no_sigmoid.1} parent=5 // pred_check_branch
      %9740 = sbr.rel (%p9738) target = $region48
    $region47: #{my_loss_no_sigmoid.1} parent=5 // pred_region
      %s9741 = ssub.s32 %s17, 2
      // Predicated region
      $region49: #{my_loss_no_sigmoid.1} parent=47 // pred_check
        %p9742 = pneg %p186
      $region50: #{my_loss_no_sigmoid.1} parent=47 // pred_check_branch
        %9744 = sbr.rel (%p9742) target = $region52
      $region51: #{my_loss_no_sigmoid.1} parent=47 // pred_region
        %p9745 = scmp.lt.s32.totalorder %s28, 1
        %s9746 = scalar_select %p9745, %s28, 1
        %s9747 = smul.addr %s9746, 7
        %s9748 = smul.addr %s9747, 8
        %s9749 = scalar_lea.vmem %s5, %s9748
      $region52: #{my_loss_no_sigmoid.1} parent=47 // pred_fallthru
        _
    $region48: #{my_loss_no_sigmoid.1} parent=5 // pred_fallthru
      _
  $region6: #{my_loss_no_sigmoid.1} parent=0 // loop_footer
    %s21 = sadd.s32 1, %s17
  $region7: #{my_loss_no_sigmoid.1} parent=0 // loop_footer_branch
    %16 = sbr.rel target = $region3
  $region8: #{my_loss_no_sigmoid.1} parent=0 // loop_exit
    _

</llo_original>
